<compile_context>
chip_gen: v5e
topology: v5e:2x2
jax: 0.10.0
libtpu: 0.0.40
codegen_flags: <defaults>
</compile_context>

<pallas_src>
import numpy as np
import jax
import jax.numpy as jnp
from jax import lax
from jax.experimental import pallas as pl
from jax.experimental.pallas import tpu as pltpu

_GN_EPS = 1e-5
_INV_SQRT2 = 0.7071067811865476


def _round_up(x, m):
    return ((x + m - 1) // m) * m


def _parity_perm(c):
    # [0, 2, 4, ..., 1, 3, 5, ...]: even channels first, then odd channels.
    return np.concatenate([np.arange(0, c, 2), np.arange(1, c, 2)])


def _gelu_exact(y):
    # PyTorch nn.GELU default (approximate='none').
    return 0.5 * y * (1.0 + lax.erf(y * _INV_SQRT2))


def _bf16_dot(a, b):
    # Single-pass bf16 MXU matmul with f32 accumulation (no HIGHEST emulation).
    return jnp.dot(a.astype(jnp.bfloat16), b.astype(jnp.bfloat16),
                   preferred_element_type=jnp.float32)


def _groupnorm_gelu_split(h, gamma, beta, length, c2):
    """GroupNorm (groups of 2 channels) + exact GELU in the parity-permuted channel
    basis: group g occupies columns {g, c2 + g}, so the group reduction is a contiguous
    half-split add (no (C, C) matmul, no cross-lane roll). All stats in f32.
    Returns the two parity halves (length, c2) so no lane-concat is ever needed."""
    s = jnp.sum(h, axis=0, keepdims=True)          # (1, C) per-channel sums
    ss = jnp.sum(h * h, axis=0, keepdims=True)     # (1, C) per-channel sums of squares
    inv_n = 1.0 / (2.0 * length)
    mean = (s[:, :c2] + s[:, c2:]) * inv_n         # (1, C/2) per-group mean
    ex2 = (ss[:, :c2] + ss[:, c2:]) * inv_n
    var = jnp.maximum(ex2 - mean * mean, 0.0)
    inv = lax.rsqrt(var + _GN_EPS)
    he = (h[:, :c2] - mean) * inv * gamma[:, :c2] + beta[:, :c2]
    ho = (h[:, c2:] - mean) * inv * gamma[:, c2:] + beta[:, c2:]
    return _gelu_exact(he), _gelu_exact(ho)


def _make_group_kernel(cfgs):
    """Kernel for one group of consecutive encoder blocks (one grid step per batch item).
    The first block consumes wrapper-built patches; the fused tail blocks build their
    patches in-register with 0/1 row-selection matmuls (zero HBM traffic in between).
    Per-block params: (weight matrix, affine) where affine rows are
    [conv bias; GroupNorm gamma; GroupNorm beta], all in the parity-permuted order."""

    def kernel(patch_ref, *refs):
        o_ref = refs[-1]
        prefs = refs[:-1]

        # ---- block 0 of the group: conv as one patches @ W matmul --------------
        w_ref, a_ref = prefs[0], prefs[1]
        aff = a_ref[...]
        h = _bf16_dot(patch_ref[...], w_ref[...]) + aff[0:1, :]          # (L0, C) f32
        he, ho = _groupnorm_gelu_split(h, aff[1:2, :], aff[2:3, :],
                                       cfgs[0]["l_out"], cfgs[0]["c_out"] // 2)

        # ---- fused tail blocks: everything stays in VMEM / vregs ---------------
        for k in range(1, len(cfgs)):
            c = cfgs[k]
            w_ref, a_ref = prefs[2 * k], prefs[2 * k + 1]
            wm = w_ref[...]                                    # (W*C_in, C_out) bf16
            aff = a_ref[...]                                   # (3, C_out) f32
            l_in, l_out = c["l_in"], c["l_out"]
            width, stride, pad = c["width"], c["stride"], c["pad"]
            c_in, c_out = c["c_in"], c["c_out"]
            ci2 = c_in // 2

            li = lax.broadcasted_iota(jnp.int32, (l_out, l_in), 0)
            ji = lax.broadcasted_iota(jnp.int32, (l_out, l_in), 1)
            he_b = he.astype(jnp.bfloat16)
            ho_b = ho.astype(jnp.bfloat16)

            acc = jnp.zeros((l_out, c_out), jnp.float32)
            for w in range(width):
                # 0/1 selector: output row l reads previous-activation row
                # stride*l + w - pad; rows outside [0, l_in) select nothing == zero pad.
                sel = (ji == stride * li + (w - pad)).astype(jnp.bfloat16)
                pe = jnp.dot(sel, he_b, preferred_element_type=jnp.float32)  # exact pick
                po = jnp.dot(sel, ho_b, preferred_element_type=jnp.float32)
                w_e = wm[w * c_in:w * c_in + ci2, :]
                w_o = wm[w * c_in + ci2:(w + 1) * c_in, :]
                acc = acc + _bf16_dot(pe, w_e) + _bf16_dot(po, w_o)

            h = acc + aff[0:1, :]
            he, ho = _groupnorm_gelu_split(h, aff[1:2, :], aff[2:3, :],
                                           l_out, c_out // 2)

        o_ref[0] = he.astype(o_ref.dtype)          # even-channel plane
        o_ref[1] = ho.astype(o_ref.dtype)          # odd-channel plane

    return kernel


def _extract_patches(x_cl, width, stride, pad, l_out):
    """x_cl: (B, L, C) channels-last -> (B, l_out, width*C) conv patches."""
    B, L, C = x_cl.shape
    xp = jnp.pad(x_cl, ((0, 0), (pad, pad), (0, 0)))
    if stride == width:
        # Non-overlapping windows: patching is just a slice + reshape (no gather).
        return xp[:, :l_out * width, :].reshape(B, l_out, width * C)
    # General fallback (not hit by the default BENDR config, where width == stride).
    idx = np.arange(l_out)[:, None] * stride + np.arange(width)[None, :]
    return xp[:, idx, :].reshape(B, l_out, width * C)


def _prep_block_params(weight, bias, gamma, beta, permute_input):
    """Reorder a block's parameters into the parity-permuted channel basis and the
    (tap, c_in)-major row layout the kernels expect. Weights go to bf16 (MXU operands);
    conv bias + GroupNorm affine params are packed into one (3, C) f32 array."""
    c_out, c_in, width = weight.shape
    po = _parity_perm(c_out)
    w = weight[po]                                   # permute output channels
    if permute_input:
        w = w[:, _parity_perm(c_in), :]              # the incoming activation is permuted
    wmat = jnp.transpose(w, (2, 1, 0)).reshape(width * c_in, c_out)
    aff = jnp.stack([bias[po], gamma[po], beta[po]]).astype(jnp.float32)   # (3, C)
    return wmat.astype(jnp.bfloat16), aff


def _run_group(x_cl, cfgs, prepped, out_dtype):
    """Run one group of consecutive blocks as a single pallas_call.
    x_cl: (B, L_in, C_in) channels-last input of the group's first block.
    Returns (B, L_out_last, C_out) channels-last, parity-permuted channel order."""
    B = x_cl.shape[0]
    c0 = cfgs[0]
    l0 = c0["l_out"]
    k0 = c0["width"] * c0["c_in"]
    k0p = _round_up(k0, 128)                         # lane-dense patch DMA
    c_last = cfgs[-1]["c_out"]
    c2_last = c_last // 2
    l_last = cfgs[-1]["l_out"]

    patches = _extract_patches(x_cl, c0["width"], c0["stride"], c0["pad"], l0)
    if k0p != k0:
        patches = jnp.pad(patches, ((0, 0), (0, 0), (0, k0p - k0)))
    patches = patches.astype(jnp.bfloat16)           # halve patch DMA bytes

    inputs = [patches]
    in_specs = [pl.BlockSpec((pl.Squeezed(), l0, k0p), lambda b: (b, 0, 0))]
    for i, (wmat, aff) in enumerate(prepped):
        if i == 0 and k0p != k0:
            wmat = jnp.pad(wmat, ((0, k0p - k0), (0, 0)))
        for arr in (wmat, aff):
            inputs.append(arr)
            in_specs.append(pl.BlockSpec(arr.shape, lambda b: (0, 0)))

    out = pl.pallas_call(
        _make_group_kernel(cfgs),
        out_shape=jax.ShapeDtypeStruct((B, 2, l_last, c2_last), out_dtype),
        grid_spec=pltpu.PrefetchScalarGridSpec(
            num_scalar_prefetch=0,
            grid=(B,),
            in_specs=in_specs,
            out_specs=pl.BlockSpec((pl.Squeezed(), 2, l_last, c2_last),
                                   lambda b: (b, 0, 0, 0)),
        ),
        # TODO(synk): for production BENDR shapes (C=512, L_out in the thousands) the
        # leading blocks need an L_out grid axis (with a two-pass GroupNorm) and an
        # explicit vmem_limit_bytes; at these sizes the defaults are ample.
        compiler_params=pltpu.CompilerParams(dimension_semantics=("parallel",)),
    )(*inputs)

    # (B, 2, L, C/2) parity planes -> (B, L, C) channels-last (permuted channel order).
    return jnp.transpose(out, (0, 2, 1, 3)).reshape(B, l_last, c_last)


def bendr_encoder_forward(x, params, widths, downsamples, fuse_max_len=128):
    """x: (B, in_features, L) NCL like the PyTorch module; returns (B, encoder_h, L_out)."""
    B, c_in, l = x.shape
    cfgs = []
    for (w, _, _, _), width, stride in zip(params, widths, downsamples):
        pad = width // 2
        l_out = (l + 2 * pad - width) // stride + 1
        c_out = w.shape[0]
        cfgs.append(dict(width=width, stride=stride, pad=pad,
                         l_in=l, l_out=l_out, c_in=c_in, c_out=c_out))
        c_in, l = c_out, l_out

    prepped = [_prep_block_params(*p, permute_input=(i > 0))
               for i, p in enumerate(params)]

    # TODO(synk): Dropout2d(p=0.0) is an identity in the forward pass; omitted.
    x_cl = jnp.swapaxes(x, 1, 2)                     # NCL -> channels-last, once
    i, n = 0, len(cfgs)
    while i < n:
        # Big blocks run one-per-call; the small tail (L_out <= fuse_max_len) is fused
        # into a single pallas_call so its activations never touch HBM.
        j = n if cfgs[i]["l_out"] <= fuse_max_len else i + 1
        # Inter-group activations round-trip HBM in bf16: they are cast to bf16 for the
        # next conv's MXU matmul anyway, so this is numerically identical to the fully
        # fused path while halving intermediate HBM traffic. The final group stays f32.
        out_dtype = jnp.float32 if j == n else jnp.bfloat16
        x_cl = _run_group(x_cl, cfgs[i:j], prepped[i:j], out_dtype)
        i = j

    # Undo the parity channel permutation and return NCL like PyTorch.
    c = cfgs[-1]["c_out"]
    l_f = cfgs[-1]["l_out"]
    x_cl = x_cl.reshape(B, l_f, 2, c // 2)
    x_cl = jnp.transpose(x_cl, (0, 1, 3, 2)).reshape(B, l_f, c)
    return jnp.swapaxes(x_cl, 1, 2)


# ----------------------------- pure-JAX reference -----------------------------

def _ref_block(x, weight, bias, gamma, beta, width, stride):
    pad = width // 2
    y = lax.conv_general_dilated(
        x, weight, (stride,), [(pad, pad)],
        dimension_numbers=("NCH", "OIH", "NCH"),
        precision=lax.Precision.HIGHEST)
    y = y + bias[None, :, None]
    B, C, L = y.shape
    g = C // 2
    yr = y.reshape(B, g, 2 * L)
    mean = yr.mean(axis=-1, keepdims=True)
    var = ((yr - mean) ** 2).mean(axis=-1, keepdims=True)
    yn = ((yr - mean) / jnp.sqrt(var + _GN_EPS)).reshape(B, C, L)
    yn = yn * gamma[None, :, None] + beta[None, :, None]
    return 0.5 * yn * (1.0 + lax.erf(yn * _INV_SQRT2))


def _ref_forward(x, params, widths, downsamples):
    for (w, b, g, bt), wd, st in zip(params, widths, downsamples):
        x = _ref_block(x, w, b, g, bt, wd, st)
    return x


def init_params(key, in_features, encoder_h, widths):
    params = []
    c_in = in_features
    for w in widths:
        k1, k2, k3, k4, key = jax.random.split(key, 5)
        fan_in = c_in * w
        weight = jax.random.normal(k1, (encoder_h, c_in, w), jnp.float32) / np.sqrt(fan_in)
        bias = 0.1 * jax.random.normal(k2, (encoder_h,), jnp.float32)
        gamma = 1.0 + 0.1 * jax.random.normal(k3, (encoder_h,), jnp.float32)
        beta = 0.1 * jax.random.normal(k4, (encoder_h,), jnp.float32)
        params.append((weight, bias, gamma, beta))
        c_in = encoder_h
    return params


if __name__ == "__main__":
    # Shapes consistent with the module defaults: in_features=1, encoder_h kept small
    # (32), enc_width=enc_downsample=(3,2,2,2,2,2), batch=2, a short 512-sample signal.
    encoder_h = 32
    in_features = 1
    widths = (3, 2, 2, 2, 2, 2)
    downsamples = (3, 2, 2, 2, 2, 2)
    B, L = 2, 512

    key = jax.random.PRNGKey(0)
    kx, kp = jax.random.split(key)
    x = jax.random.normal(kx, (B, in_features, L), jnp.float32)
    params = init_params(kp, in_features, encoder_h, widths)

    ref = jax.block_until_ready(_ref_forward(x, params, widths, downsamples))

    # Mixed mode: block 0 (L_out=171) runs alone, the small tail (L_out<=128) is fused
    # into a single pallas_call (bf16 intermediate between the two calls).
    out = jax.block_until_ready(
        jax.jit(lambda v: bendr_encoder_forward(v, params, widths, downsamples))(x))
    # Fully fused: the whole 6-block stack in one pallas_call.
    out_fused = jax.block_until_ready(
        jax.jit(lambda v: bendr_encoder_forward(v, params, widths, downsamples,
                                                fuse_max_len=10 ** 9))(x))

    # Kernel matmuls are single-pass bf16 on the MXU while the reference is f32/HIGHEST;
    # the tolerance reflects bf16 accumulation compounding across 6 conv+GN+GELU layers.
    np.testing.assert_allclose(np.asarray(out), np.asarray(ref), rtol=5e-2, atol=5e-2)
    np.testing.assert_allclose(np.asarray(out_fused), np.asarray(ref), rtol=5e-2, atol=5e-2)

    print("KERNEL_OK")
</pallas_src>

<mosaic_0001>
module attributes {stable_mosaic.version = 11 : i64} {
  func.func @kernel(%arg0: i32, %arg1: memref<1x171x128xbf16, #tpu.memory_space<vmem>>, %arg2: memref<128x32xbf16, #tpu.memory_space<vmem>>, %arg3: memref<3x32xf32, #tpu.memory_space<vmem>>, %arg4: memref<1x2x171x16xbf16, #tpu.memory_space<vmem>>) attributes {dimension_semantics = [#tpu.dimension_semantics<parallel>], iteration_bounds = array<i64: 2>, scalar_prefetch = 0 : i64, scratch_operands = 0 : i64, tpu.core_type = #tpu.core_type<tc>, window_params = [{transform_indices = @transform_0, window_bounds = array<i64: 1, 171, 128>}, {pipeline_mode = #tpu.pipeline_mode<synchronous>, transform_indices = @transform_1, window_bounds = array<i64: 128, 32>}, {pipeline_mode = #tpu.pipeline_mode<synchronous>, transform_indices = @transform_2, window_bounds = array<i64: 3, 32>}, {transform_indices = @transform_3, window_bounds = array<i64: 1, 2, 171, 16>}]} {
    %c0 = arith.constant 0 : index
    %c0_0 = arith.constant 0 : index
    %0 = vector.load %arg3[%c0, %c0_0] : memref<3x32xf32, #tpu.memory_space<vmem>>, vector<3x32xf32>
    %c0_1 = arith.constant 0 : index
    %c0_2 = arith.constant 0 : index
    %c0_3 = arith.constant 0 : index
    %1 = vector.load %arg1[%c0_1, %c0_2, %c0_3] : memref<1x171x128xbf16, #tpu.memory_space<vmem>>, vector<1x171x128xbf16>
    %2 = vector.shape_cast %1 : vector<1x171x128xbf16> to vector<171x128xbf16>
    %c0_4 = arith.constant 0 : index
    %c0_5 = arith.constant 0 : index
    %3 = vector.load %arg2[%c0_4, %c0_5] : memref<128x32xbf16, #tpu.memory_space<vmem>>, vector<128x32xbf16>
    %cst = arith.constant dense<0.000000e+00> : vector<171x32xf32>
    %4 = tpu.matmul %2, %3, %cst {dimension_numbers = #tpu.dot_dimension_numbers<[1], [0], [0], [1], [0, 0, 1, 1], [], []>} : vector<171x128xbf16>, vector<128x32xbf16>, vector<171x32xf32> -> vector<171x32xf32>
    %5 = vector.extract_strided_slice %0 {offsets = [0, 0], sizes = [1, 32], strides = [1, 1]} : vector<3x32xf32> to vector<1x32xf32>
    %6 = vector.broadcast %5 : vector<1x32xf32> to vector<171x32xf32>
    %7 = arith.addf %4, %6 : vector<171x32xf32>
    %8 = vector.extract_strided_slice %0 {offsets = [1, 0], sizes = [1, 32], strides = [1, 1]} : vector<3x32xf32> to vector<1x32xf32>
    %9 = vector.extract_strided_slice %0 {offsets = [2, 0], sizes = [1, 32], strides = [1, 1]} : vector<3x32xf32> to vector<1x32xf32>
    %cst_6 = arith.constant dense<0.000000e+00> : vector<32xf32>
    %10 = vector.multi_reduction <add>, %7, %cst_6 [0] : vector<171x32xf32> to vector<32xf32>
    %11 = vector.shape_cast %10 : vector<32xf32> to vector<1x32xf32>
    %12 = arith.mulf %7, %7 : vector<171x32xf32>
    %cst_7 = arith.constant dense<0.000000e+00> : vector<32xf32>
    %13 = vector.multi_reduction <add>, %12, %cst_7 [0] : vector<171x32xf32> to vector<32xf32>
    %14 = vector.shape_cast %13 : vector<32xf32> to vector<1x32xf32>
    %15 = vector.extract_strided_slice %11 {offsets = [0, 0], sizes = [1, 16], strides = [1, 1]} : vector<1x32xf32> to vector<1x16xf32>
    %16 = vector.extract_strided_slice %11 {offsets = [0, 16], sizes = [1, 16], strides = [1, 1]} : vector<1x32xf32> to vector<1x16xf32>
    %17 = arith.addf %15, %16 : vector<1x16xf32>
    %cst_8 = arith.constant 0.00292397663 : f32
    %18 = vector.broadcast %cst_8 : f32 to vector<1x16xf32>
    %19 = arith.mulf %17, %18 : vector<1x16xf32>
    %20 = vector.extract_strided_slice %14 {offsets = [0, 0], sizes = [1, 16], strides = [1, 1]} : vector<1x32xf32> to vector<1x16xf32>
    %21 = vector.extract_strided_slice %14 {offsets = [0, 16], sizes = [1, 16], strides = [1, 1]} : vector<1x32xf32> to vector<1x16xf32>
    %22 = arith.addf %20, %21 : vector<1x16xf32>
    %cst_9 = arith.constant 0.00292397663 : f32
    %23 = vector.broadcast %cst_9 : f32 to vector<1x16xf32>
    %24 = arith.mulf %22, %23 : vector<1x16xf32>
    %25 = arith.mulf %19, %19 : vector<1x16xf32>
    %26 = arith.subf %24, %25 : vector<1x16xf32>
    %cst_10 = arith.constant 0.000000e+00 : f32
    %27 = vector.broadcast %cst_10 : f32 to vector<1x16xf32>
    %28 = arith.maximumf %26, %27 : vector<1x16xf32>
    %cst_11 = arith.constant 9.99999974E-6 : f32
    %29 = vector.broadcast %cst_11 : f32 to vector<1x16xf32>
    %30 = arith.addf %28, %29 : vector<1x16xf32>
    %31 = math.rsqrt %30 : vector<1x16xf32>
    %32 = vector.extract_strided_slice %7 {offsets = [0, 0], sizes = [171, 16], strides = [1, 1]} : vector<171x32xf32> to vector<171x16xf32>
    %33 = vector.broadcast %19 : vector<1x16xf32> to vector<171x16xf32>
    %34 = arith.subf %32, %33 : vector<171x16xf32>
    %35 = vector.broadcast %31 : vector<1x16xf32> to vector<171x16xf32>
    %36 = arith.mulf %34, %35 : vector<171x16xf32>
    %37 = vector.extract_strided_slice %8 {offsets = [0, 0], sizes = [1, 16], strides = [1, 1]} : vector<1x32xf32> to vector<1x16xf32>
    %38 = vector.broadcast %37 : vector<1x16xf32> to vector<171x16xf32>
    %39 = arith.mulf %36, %38 : vector<171x16xf32>
    %40 = vector.extract_strided_slice %9 {offsets = [0, 0], sizes = [1, 16], strides = [1, 1]} : vector<1x32xf32> to vector<1x16xf32>
    %41 = vector.broadcast %40 : vector<1x16xf32> to vector<171x16xf32>
    %42 = arith.addf %39, %41 : vector<171x16xf32>
    %43 = vector.extract_strided_slice %7 {offsets = [0, 16], sizes = [171, 16], strides = [1, 1]} : vector<171x32xf32> to vector<171x16xf32>
    %44 = vector.broadcast %19 : vector<1x16xf32> to vector<171x16xf32>
    %45 = arith.subf %43, %44 : vector<171x16xf32>
    %46 = vector.broadcast %31 : vector<1x16xf32> to vector<171x16xf32>
    %47 = arith.mulf %45, %46 : vector<171x16xf32>
    %48 = vector.extract_strided_slice %8 {offsets = [0, 16], sizes = [1, 16], strides = [1, 1]} : vector<1x32xf32> to vector<1x16xf32>
    %49 = vector.broadcast %48 : vector<1x16xf32> to vector<171x16xf32>
    %50 = arith.mulf %47, %49 : vector<171x16xf32>
    %51 = vector.extract_strided_slice %9 {offsets = [0, 16], sizes = [1, 16], strides = [1, 1]} : vector<1x32xf32> to vector<1x16xf32>
    %52 = vector.broadcast %51 : vector<1x16xf32> to vector<171x16xf32>
    %53 = arith.addf %50, %52 : vector<171x16xf32>
    %cst_12 = arith.constant 5.000000e-01 : f32
    %54 = vector.broadcast %cst_12 : f32 to vector<171x16xf32>
    %55 = arith.mulf %54, %42 : vector<171x16xf32>
    %cst_13 = arith.constant 0.707106769 : f32
    %56 = vector.broadcast %cst_13 : f32 to vector<171x16xf32>
    %57 = arith.mulf %42, %56 : vector<171x16xf32>
    %58 = math.erf %57 : vector<171x16xf32>
    %cst_14 = arith.constant 1.000000e+00 : f32
    %59 = vector.broadcast %cst_14 : f32 to vector<171x16xf32>
    %60 = arith.addf %59, %58 : vector<171x16xf32>
    %61 = arith.mulf %55, %60 : vector<171x16xf32>
    %cst_15 = arith.constant 5.000000e-01 : f32
    %62 = vector.broadcast %cst_15 : f32 to vector<171x16xf32>
    %63 = arith.mulf %62, %53 : vector<171x16xf32>
    %cst_16 = arith.constant 0.707106769 : f32
    %64 = vector.broadcast %cst_16 : f32 to vector<171x16xf32>
    %65 = arith.mulf %53, %64 : vector<171x16xf32>
    %66 = math.erf %65 : vector<171x16xf32>
    %cst_17 = arith.constant 1.000000e+00 : f32
    %67 = vector.broadcast %cst_17 : f32 to vector<171x16xf32>
    %68 = arith.addf %67, %66 : vector<171x16xf32>
    %69 = arith.mulf %63, %68 : vector<171x16xf32>
    %70 = arith.truncf %61 : vector<171x16xf32> to vector<171x16xbf16>
    %c0_18 = arith.constant 0 : index
    %c0_19 = arith.constant 0 : index
    %c0_20 = arith.constant 0 : index
    %c0_21 = arith.constant 0 : index
    %71 = vector.load %arg4[%c0_18, %c0_19, %c0_20, %c0_21] : memref<1x2x171x16xbf16, #tpu.memory_space<vmem>>, vector<1x1x171x16xbf16>
    %72 = vector.shape_cast %71 : vector<1x1x171x16xbf16> to vector<171x16xbf16>
    %73 = vector.shape_cast %70 : vector<171x16xbf16> to vector<1x1x171x16xbf16>
    tpu.vector_store %arg4[%c0_18, %c0_19, %c0_20, %c0_21], %73 {strides = array<i32>} : memref<1x2x171x16xbf16, #tpu.memory_space<vmem>>, vector<1x1x171x16xbf16>,
    %74 = arith.truncf %69 : vector<171x16xf32> to vector<171x16xbf16>
    %c0_22 = arith.constant 0 : index
    %c1 = arith.constant 1 : index
    %c0_23 = arith.constant 0 : index
    %c0_24 = arith.constant 0 : index
    %75 = vector.load %arg4[%c0_22, %c1, %c0_23, %c0_24] : memref<1x2x171x16xbf16, #tpu.memory_space<vmem>>, vector<1x1x171x16xbf16>
    %76 = vector.shape_cast %75 : vector<1x1x171x16xbf16> to vector<171x16xbf16>
    %77 = vector.shape_cast %74 : vector<171x16xbf16> to vector<1x1x171x16xbf16>
    tpu.vector_store %arg4[%c0_22, %c1, %c0_23, %c0_24], %77 {strides = array<i32>} : memref<1x2x171x16xbf16, #tpu.memory_space<vmem>>, vector<1x1x171x16xbf16>,
    return
  }
  func.func @transform_0(%arg0: i32) -> (i32, i32, i32) {
    %c0_i32 = arith.constant 0 : i32
    %c0_i32_0 = arith.constant 0 : i32
    %c0_i32_1 = arith.constant 0 : i32
    return %arg0, %c0_i32, %c0_i32_0 : i32, i32, i32
  }
  func.func @transform_1(%arg0: i32) -> (i32, i32) {
    %c0_i32 = arith.constant 0 : i32
    %c0_i32_0 = arith.constant 0 : i32
    %c0_i32_1 = arith.constant 0 : i32
    return %c0_i32, %c0_i32_0 : i32, i32
  }
  func.func @transform_2(%arg0: i32) -> (i32, i32) {
    %c0_i32 = arith.constant 0 : i32
    %c0_i32_0 = arith.constant 0 : i32
    %c0_i32_1 = arith.constant 0 : i32
    return %c0_i32, %c0_i32_0 : i32, i32
  }
  func.func @transform_3(%arg0: i32) -> (i32, i32, i32, i32) {
    %c0_i32 = arith.constant 0 : i32
    %c0_i32_0 = arith.constant 0 : i32
    %c0_i32_1 = arith.constant 0 : i32
    %c0_i32_2 = arith.constant 0 : i32
    return %arg0, %c0_i32, %c0_i32_0, %c0_i32_1 : i32, i32, i32, i32
  }
}

module attributes {stable_mosaic.version = 11 : i64} {
  func.func @kernel(%arg0: i32, %arg1: memref<1x86x128xbf16, #tpu.memory_space<vmem>>, %arg2: memref<128x32xbf16, #tpu.memory_space<vmem>>, %arg3: memref<3x32xf32, #tpu.memory_space<vmem>>, %arg4: memref<64x32xbf16, #tpu.memory_space<vmem>>, %arg5: memref<3x32xf32, #tpu.memory_space<vmem>>, %arg6: memref<64x32xbf16, #tpu.memory_space<vmem>>, %arg7: memref<3x32xf32, #tpu.memory_space<vmem>>, %arg8: memref<64x32xbf16, #tpu.memory_space<vmem>>, %arg9: memref<3x32xf32, #tpu.memory_space<vmem>>, %arg10: memref<64x32xbf16, #tpu.memory_space<vmem>>, %arg11: memref<3x32xf32, #tpu.memory_space<vmem>>, %arg12: memref<1x2x7x16xf32, #tpu.memory_space<vmem>>) attributes {dimension_semantics = [#tpu.dimension_semantics<parallel>], iteration_bounds = array<i64: 2>, scalar_prefetch = 0 : i64, scratch_operands = 0 : i64, tpu.core_type = #tpu.core_type<tc>, window_params = [{transform_indices = @transform_0, window_bounds = array<i64: 1, 86, 128>}, {pipeline_mode = #tpu.pipeline_mode<synchronous>, transform_indices = @transform_1, window_bounds = array<i64: 128, 32>}, {pipeline_mode = #tpu.pipeline_mode<synchronous>, transform_indices = @transform_2, window_bounds = array<i64: 3, 32>}, {pipeline_mode = #tpu.pipeline_mode<synchronous>, transform_indices = @transform_3, window_bounds = array<i64: 64, 32>}, {pipeline_mode = #tpu.pipeline_mode<synchronous>, transform_indices = @transform_4, window_bounds = array<i64: 3, 32>}, {pipeline_mode = #tpu.pipeline_mode<synchronous>, transform_indices = @transform_5, window_bounds = array<i64: 64, 32>}, {pipeline_mode = #tpu.pipeline_mode<synchronous>, transform_indices = @transform_6, window_bounds = array<i64: 3, 32>}, {pipeline_mode = #tpu.pipeline_mode<synchronous>, transform_indices = @transform_7, window_bounds = array<i64: 64, 32>}, {pipeline_mode = #tpu.pipeline_mode<synchronous>, transform_indices = @transform_8, window_bounds = array<i64: 3, 32>}, {pipeline_mode = #tpu.pipeline_mode<synchronous>, transform_indices = @transform_9, window_bounds = array<i64: 64, 32>}, {pipeline_mode = #tpu.pipeline_mode<synchronous>, transform_indices = @transform_10, window_bounds = array<i64: 3, 32>}, {transform_indices = @transform_11, window_bounds = array<i64: 1, 2, 7, 16>}]} {
    %c0 = arith.constant 0 : index
    %c0_0 = arith.constant 0 : index
    %0 = vector.load %arg3[%c0, %c0_0] : memref<3x32xf32, #tpu.memory_space<vmem>>, vector<3x32xf32>
    %c0_1 = arith.constant 0 : index
    %c0_2 = arith.constant 0 : index
    %c0_3 = arith.constant 0 : index
    %1 = vector.load %arg1[%c0_1, %c0_2, %c0_3] : memref<1x86x128xbf16, #tpu.memory_space<vmem>>, vector<1x86x128xbf16>
    %2 = vector.shape_cast %1 : vector<1x86x128xbf16> to vector<86x128xbf16>
    %c0_4 = arith.constant 0 : index
    %c0_5 = arith.constant 0 : index
    %3 = vector.load %arg2[%c0_4, %c0_5] : memref<128x32xbf16, #tpu.memory_space<vmem>>, vector<128x32xbf16>
    %cst = arith.constant dense<0.000000e+00> : vector<86x32xf32>
    %4 = tpu.matmul %2, %3, %cst {dimension_numbers = #tpu.dot_dimension_numbers<[1], [0], [0], [1], [0, 0, 1, 1], [], []>} : vector<86x128xbf16>, vector<128x32xbf16>, vector<86x32xf32> -> vector<86x32xf32>
    %5 = vector.extract_strided_slice %0 {offsets = [0, 0], sizes = [1, 32], strides = [1, 1]} : vector<3x32xf32> to vector<1x32xf32>
    %6 = vector.broadcast %5 : vector<1x32xf32> to vector<86x32xf32>
    %7 = arith.addf %4, %6 : vector<86x32xf32>
    %8 = vector.extract_strided_slice %0 {offsets = [1, 0], sizes = [1, 32], strides = [1, 1]} : vector<3x32xf32> to vector<1x32xf32>
    %9 = vector.extract_strided_slice %0 {offsets = [2, 0], sizes = [1, 32], strides = [1, 1]} : vector<3x32xf32> to vector<1x32xf32>
    %cst_6 = arith.constant dense<0.000000e+00> : vector<32xf32>
    %10 = vector.multi_reduction <add>, %7, %cst_6 [0] : vector<86x32xf32> to vector<32xf32>
    %11 = vector.shape_cast %10 : vector<32xf32> to vector<1x32xf32>
    %12 = arith.mulf %7, %7 : vector<86x32xf32>
    %cst_7 = arith.constant dense<0.000000e+00> : vector<32xf32>
    %13 = vector.multi_reduction <add>, %12, %cst_7 [0] : vector<86x32xf32> to vector<32xf32>
    %14 = vector.shape_cast %13 : vector<32xf32> to vector<1x32xf32>
    %15 = vector.extract_strided_slice %11 {offsets = [0, 0], sizes = [1, 16], strides = [1, 1]} : vector<1x32xf32> to vector<1x16xf32>
    %16 = vector.extract_strided_slice %11 {offsets = [0, 16], sizes = [1, 16], strides = [1, 1]} : vector<1x32xf32> to vector<1x16xf32>
    %17 = arith.addf %15, %16 : vector<1x16xf32>
    %cst_8 = arith.constant 0.00581395347 : f32
    %18 = vector.broadcast %cst_8 : f32 to vector<1x16xf32>
    %19 = arith.mulf %17, %18 : vector<1x16xf32>
    %20 = vector.extract_strided_slice %14 {offsets = [0, 0], sizes = [1, 16], strides = [1, 1]} : vector<1x32xf32> to vector<1x16xf32>
    %21 = vector.extract_strided_slice %14 {offsets = [0, 16], sizes = [1, 16], strides = [1, 1]} : vector<1x32xf32> to vector<1x16xf32>
    %22 = arith.addf %20, %21 : vector<1x16xf32>
    %cst_9 = arith.constant 0.00581395347 : f32
    %23 = vector.broadcast %cst_9 : f32 to vector<1x16xf32>
    %24 = arith.mulf %22, %23 : vector<1x16xf32>
    %25 = arith.mulf %19, %19 : vector<1x16xf32>
    %26 = arith.subf %24, %25 : vector<1x16xf32>
    %cst_10 = arith.constant 0.000000e+00 : f32
    %27 = vector.broadcast %cst_10 : f32 to vector<1x16xf32>
    %28 = arith.maximumf %26, %27 : vector<1x16xf32>
    %cst_11 = arith.constant 9.99999974E-6 : f32
    %29 = vector.broadcast %cst_11 : f32 to vector<1x16xf32>
    %30 = arith.addf %28, %29 : vector<1x16xf32>
    %31 = math.rsqrt %30 : vector<1x16xf32>
    %32 = vector.extract_strided_slice %7 {offsets = [0, 0], sizes = [86, 16], strides = [1, 1]} : vector<86x32xf32> to vector<86x16xf32>
    %33 = vector.broadcast %19 : vector<1x16xf32> to vector<86x16xf32>
    %34 = arith.subf %32, %33 : vector<86x16xf32>
    %35 = vector.broadcast %31 : vector<1x16xf32> to vector<86x16xf32>
    %36 = arith.mulf %34, %35 : vector<86x16xf32>
    %37 = vector.extract_strided_slice %8 {offsets = [0, 0], sizes = [1, 16], strides = [1, 1]} : vector<1x32xf32> to vector<1x16xf32>
    %38 = vector.broadcast %37 : vector<1x16xf32> to vector<86x16xf32>
    %39 = arith.mulf %36, %38 : vector<86x16xf32>
    %40 = vector.extract_strided_slice %9 {offsets = [0, 0], sizes = [1, 16], strides = [1, 1]} : vector<1x32xf32> to vector<1x16xf32>
    %41 = vector.broadcast %40 : vector<1x16xf32> to vector<86x16xf32>
    %42 = arith.addf %39, %41 : vector<86x16xf32>
    %43 = vector.extract_strided_slice %7 {offsets = [0, 16], sizes = [86, 16], strides = [1, 1]} : vector<86x32xf32> to vector<86x16xf32>
    %44 = vector.broadcast %19 : vector<1x16xf32> to vector<86x16xf32>
    %45 = arith.subf %43, %44 : vector<86x16xf32>
    %46 = vector.broadcast %31 : vector<1x16xf32> to vector<86x16xf32>
    %47 = arith.mulf %45, %46 : vector<86x16xf32>
    %48 = vector.extract_strided_slice %8 {offsets = [0, 16], sizes = [1, 16], strides = [1, 1]} : vector<1x32xf32> to vector<1x16xf32>
    %49 = vector.broadcast %48 : vector<1x16xf32> to vector<86x16xf32>
    %50 = arith.mulf %47, %49 : vector<86x16xf32>
    %51 = vector.extract_strided_slice %9 {offsets = [0, 16], sizes = [1, 16], strides = [1, 1]} : vector<1x32xf32> to vector<1x16xf32>
    %52 = vector.broadcast %51 : vector<1x16xf32> to vector<86x16xf32>
    %53 = arith.addf %50, %52 : vector<86x16xf32>
    %cst_12 = arith.constant 5.000000e-01 : f32
    %54 = vector.broadcast %cst_12 : f32 to vector<86x16xf32>
    %55 = arith.mulf %54, %42 : vector<86x16xf32>
    %cst_13 = arith.constant 0.707106769 : f32
    %56 = vector.broadcast %cst_13 : f32 to vector<86x16xf32>
    %57 = arith.mulf %42, %56 : vector<86x16xf32>
    %58 = math.erf %57 : vector<86x16xf32>
    %cst_14 = arith.constant 1.000000e+00 : f32
    %59 = vector.broadcast %cst_14 : f32 to vector<86x16xf32>
    %60 = arith.addf %59, %58 : vector<86x16xf32>
    %61 = arith.mulf %55, %60 : vector<86x16xf32>
    %cst_15 = arith.constant 5.000000e-01 : f32
    %62 = vector.broadcast %cst_15 : f32 to vector<86x16xf32>
    %63 = arith.mulf %62, %53 : vector<86x16xf32>
    %cst_16 = arith.constant 0.707106769 : f32
    %64 = vector.broadcast %cst_16 : f32 to vector<86x16xf32>
    %65 = arith.mulf %53, %64 : vector<86x16xf32>
    %66 = math.erf %65 : vector<86x16xf32>
    %cst_17 = arith.constant 1.000000e+00 : f32
    %67 = vector.broadcast %cst_17 : f32 to vector<86x16xf32>
    %68 = arith.addf %67, %66 : vector<86x16xf32>
    %69 = arith.mulf %63, %68 : vector<86x16xf32>
    %c0_18 = arith.constant 0 : index
    %c0_19 = arith.constant 0 : index
    %70 = vector.load %arg4[%c0_18, %c0_19] : memref<64x32xbf16, #tpu.memory_space<vmem>>, vector<64x32xbf16>
    %c0_20 = arith.constant 0 : index
    %c0_21 = arith.constant 0 : index
    %71 = vector.load %arg5[%c0_20, %c0_21] : memref<3x32xf32, #tpu.memory_space<vmem>>, vector<3x32xf32>
    %72 = tpu.iota {dimensions = array<i32: 0>} : vector<44x86xi32>
    %73 = tpu.iota {dimensions = array<i32: 1>} : vector<44x86xi32>
    %74 = arith.truncf %61 : vector<86x16xf32> to vector<86x16xbf16>
    %75 = arith.truncf %69 : vector<86x16xf32> to vector<86x16xbf16>
    %cst_22 = arith.constant 0.000000e+00 : f32
    %76 = vector.broadcast %cst_22 : f32 to vector<44x32xf32>
    %c2_i32 = arith.constant 2 : i32
    %77 = vector.broadcast %c2_i32 : i32 to vector<44x86xi32>
    %78 = arith.muli %77, %72 : vector<44x86xi32>
    %c-1_i32 = arith.constant -1 : i32
    %79 = vector.broadcast %c-1_i32 : i32 to vector<44x86xi32>
    %80 = arith.addi %78, %79 : vector<44x86xi32>
    %81 = arith.cmpi eq, %73, %80 : vector<44x86xi32>
    %82 = arith.extui %81 : vector<44x86xi1> to vector<44x86xi32>
    %83 = arith.sitofp %82 : vector<44x86xi32> to vector<44x86xf32>
    %84 = arith.truncf %83 : vector<44x86xf32> to vector<44x86xbf16>
    %cst_23 = arith.constant dense<0.000000e+00> : vector<44x16xf32>
    %85 = tpu.matmul %84, %74, %cst_23 {dimension_numbers = #tpu.dot_dimension_numbers<[1], [0], [0], [1], [0, 0, 1, 1], [], []>} : vector<44x86xbf16>, vector<86x16xbf16>, vector<44x16xf32> -> vector<44x16xf32>
    %cst_24 = arith.constant dense<0.000000e+00> : vector<44x16xf32>
    %86 = tpu.matmul %84, %75, %cst_24 {dimension_numbers = #tpu.dot_dimension_numbers<[1], [0], [0], [1], [0, 0, 1, 1], [], []>} : vector<44x86xbf16>, vector<86x16xbf16>, vector<44x16xf32> -> vector<44x16xf32>
    %87 = vector.extract_strided_slice %70 {offsets = [0, 0], sizes = [16, 32], strides = [1, 1]} : vector<64x32xbf16> to vector<16x32xbf16>
    %88 = vector.extract_strided_slice %70 {offsets = [16, 0], sizes = [16, 32], strides = [1, 1]} : vector<64x32xbf16> to vector<16x32xbf16>
    %89 = arith.truncf %85 : vector<44x16xf32> to vector<44x16xbf16>
    %cst_25 = arith.constant dense<0.000000e+00> : vector<44x32xf32>
    %90 = tpu.matmul %89, %87, %cst_25 {dimension_numbers = #tpu.dot_dimension_numbers<[1], [0], [0], [1], [0, 0, 1, 1], [], []>} : vector<44x16xbf16>, vector<16x32xbf16>, vector<44x32xf32> -> vector<44x32xf32>
    %91 = arith.addf %76, %90 : vector<44x32xf32>
    %92 = arith.truncf %86 : vector<44x16xf32> to vector<44x16xbf16>
    %cst_26 = arith.constant dense<0.000000e+00> : vector<44x32xf32>
    %93 = tpu.matmul %92, %88, %cst_26 {dimension_numbers = #tpu.dot_dimension_numbers<[1], [0], [0], [1], [0, 0, 1, 1], [], []>} : vector<44x16xbf16>, vector<16x32xbf16>, vector<44x32xf32> -> vector<44x32xf32>
    %94 = arith.addf %91, %93 : vector<44x32xf32>
    %c2_i32_27 = arith.constant 2 : i32
    %95 = vector.broadcast %c2_i32_27 : i32 to vector<44x86xi32>
    %96 = arith.muli %95, %72 : vector<44x86xi32>
    %c0_i32 = arith.constant 0 : i32
    %97 = vector.broadcast %c0_i32 : i32 to vector<44x86xi32>
    %98 = arith.addi %96, %97 : vector<44x86xi32>
    %99 = arith.cmpi eq, %73, %98 : vector<44x86xi32>
    %100 = arith.extui %99 : vector<44x86xi1> to vector<44x86xi32>
    %101 = arith.sitofp %100 : vector<44x86xi32> to vector<44x86xf32>
    %102 = arith.truncf %101 : vector<44x86xf32> to vector<44x86xbf16>
    %cst_28 = arith.constant dense<0.000000e+00> : vector<44x16xf32>
    %103 = tpu.matmul %102, %74, %cst_28 {dimension_numbers = #tpu.dot_dimension_numbers<[1], [0], [0], [1], [0, 0, 1, 1], [], []>} : vector<44x86xbf16>, vector<86x16xbf16>, vector<44x16xf32> -> vector<44x16xf32>
    %cst_29 = arith.constant dense<0.000000e+00> : vector<44x16xf32>
    %104 = tpu.matmul %102, %75, %cst_29 {dimension_numbers = #tpu.dot_dimension_numbers<[1], [0], [0], [1], [0, 0, 1, 1], [], []>} : vector<44x86xbf16>, vector<86x16xbf16>, vector<44x16xf32> -> vector<44x16xf32>
    %105 = vector.extract_strided_slice %70 {offsets = [32, 0], sizes = [16, 32], strides = [1, 1]} : vector<64x32xbf16> to vector<16x32xbf16>
    %106 = vector.extract_strided_slice %70 {offsets = [48, 0], sizes = [16, 32], strides = [1, 1]} : vector<64x32xbf16> to vector<16x32xbf16>
    %107 = arith.truncf %103 : vector<44x16xf32> to vector<44x16xbf16>
    %cst_30 = arith.constant dense<0.000000e+00> : vector<44x32xf32>
    %108 = tpu.matmul %107, %105, %cst_30 {dimension_numbers = #tpu.dot_dimension_numbers<[1], [0], [0], [1], [0, 0, 1, 1], [], []>} : vector<44x16xbf16>, vector<16x32xbf16>, vector<44x32xf32> -> vector<44x32xf32>
    %109 = arith.addf %94, %108 : vector<44x32xf32>
    %110 = arith.truncf %104 : vector<44x16xf32> to vector<44x16xbf16>
    %cst_31 = arith.constant dense<0.000000e+00> : vector<44x32xf32>
    %111 = tpu.matmul %110, %106, %cst_31 {dimension_numbers = #tpu.dot_dimension_numbers<[1], [0], [0], [1], [0, 0, 1, 1], [], []>} : vector<44x16xbf16>, vector<16x32xbf16>, vector<44x32xf32> -> vector<44x32xf32>
    %112 = arith.addf %109, %111 : vector<44x32xf32>
    %113 = vector.extract_strided_slice %71 {offsets = [0, 0], sizes = [1, 32], strides = [1, 1]} : vector<3x32xf32> to vector<1x32xf32>
    %114 = vector.broadcast %113 : vector<1x32xf32> to vector<44x32xf32>
    %115 = arith.addf %112, %114 : vector<44x32xf32>
    %116 = vector.extract_strided_slice %71 {offsets = [1, 0], sizes = [1, 32], strides = [1, 1]} : vector<3x32xf32> to vector<1x32xf32>
    %117 = vector.extract_strided_slice %71 {offsets = [2, 0], sizes = [1, 32], strides = [1, 1]} : vector<3x32xf32> to vector<1x32xf32>
    %cst_32 = arith.constant dense<0.000000e+00> : vector<32xf32>
    %118 = vector.multi_reduction <add>, %115, %cst_32 [0] : vector<44x32xf32> to vector<32xf32>
    %119 = vector.shape_cast %118 : vector<32xf32> to vector<1x32xf32>
    %120 = arith.mulf %115, %115 : vector<44x32xf32>
    %cst_33 = arith.constant dense<0.000000e+00> : vector<32xf32>
    %121 = vector.multi_reduction <add>, %120, %cst_33 [0] : vector<44x32xf32> to vector<32xf32>
    %122 = vector.shape_cast %121 : vector<32xf32> to vector<1x32xf32>
    %123 = vector.extract_strided_slice %119 {offsets = [0, 0], sizes = [1, 16], strides = [1, 1]} : vector<1x32xf32> to vector<1x16xf32>
    %124 = vector.extract_strided_slice %119 {offsets = [0, 16], sizes = [1, 16], strides = [1, 1]} : vector<1x32xf32> to vector<1x16xf32>
    %125 = arith.addf %123, %124 : vector<1x16xf32>
    %cst_34 = arith.constant 0.0113636367 : f32
    %126 = vector.broadcast %cst_34 : f32 to vector<1x16xf32>
    %127 = arith.mulf %125, %126 : vector<1x16xf32>
    %128 = vector.extract_strided_slice %122 {offsets = [0, 0], sizes = [1, 16], strides = [1, 1]} : vector<1x32xf32> to vector<1x16xf32>
    %129 = vector.extract_strided_slice %122 {offsets = [0, 16], sizes = [1, 16], strides = [1, 1]} : vector<1x32xf32> to vector<1x16xf32>
    %130 = arith.addf %128, %129 : vector<1x16xf32>
    %cst_35 = arith.constant 0.0113636367 : f32
    %131 = vector.broadcast %cst_35 : f32 to vector<1x16xf32>
    %132 = arith.mulf %130, %131 : vector<1x16xf32>
    %133 = arith.mulf %127, %127 : vector<1x16xf32>
    %134 = arith.subf %132, %133 : vector<1x16xf32>
    %cst_36 = arith.constant 0.000000e+00 : f32
    %135 = vector.broadcast %cst_36 : f32 to vector<1x16xf32>
    %136 = arith.maximumf %134, %135 : vector<1x16xf32>
    %cst_37 = arith.constant 9.99999974E-6 : f32
    %137 = vector.broadcast %cst_37 : f32 to vector<1x16xf32>
    %138 = arith.addf %136, %137 : vector<1x16xf32>
    %139 = math.rsqrt %138 : vector<1x16xf32>
    %140 = vector.extract_strided_slice %115 {offsets = [0, 0], sizes = [44, 16], strides = [1, 1]} : vector<44x32xf32> to vector<44x16xf32>
    %141 = vector.broadcast %127 : vector<1x16xf32> to vector<44x16xf32>
    %142 = arith.subf %140, %141 : vector<44x16xf32>
    %143 = vector.broadcast %139 : vector<1x16xf32> to vector<44x16xf32>
    %144 = arith.mulf %142, %143 : vector<44x16xf32>
    %145 = vector.extract_strided_slice %116 {offsets = [0, 0], sizes = [1, 16], strides = [1, 1]} : vector<1x32xf32> to vector<1x16xf32>
    %146 = vector.broadcast %145 : vector<1x16xf32> to vector<44x16xf32>
    %147 = arith.mulf %144, %146 : vector<44x16xf32>
    %148 = vector.extract_strided_slice %117 {offsets = [0, 0], sizes = [1, 16], strides = [1, 1]} : vector<1x32xf32> to vector<1x16xf32>
    %149 = vector.broadcast %148 : vector<1x16xf32> to vector<44x16xf32>
    %150 = arith.addf %147, %149 : vector<44x16xf32>
    %151 = vector.extract_strided_slice %115 {offsets = [0, 16], sizes = [44, 16], strides = [1, 1]} : vector<44x32xf32> to vector<44x16xf32>
    %152 = vector.broadcast %127 : vector<1x16xf32> to vector<44x16xf32>
    %153 = arith.subf %151, %152 : vector<44x16xf32>
    %154 = vector.broadcast %139 : vector<1x16xf32> to vector<44x16xf32>
    %155 = arith.mulf %153, %154 : vector<44x16xf32>
    %156 = vector.extract_strided_slice %116 {offsets = [0, 16], sizes = [1, 16], strides = [1, 1]} : vector<1x32xf32> to vector<1x16xf32>
    %157 = vector.broadcast %156 : vector<1x16xf32> to vector<44x16xf32>
    %158 = arith.mulf %155, %157 : vector<44x16xf32>
    %159 = vector.extract_strided_slice %117 {offsets = [0, 16], sizes = [1, 16], strides = [1, 1]} : vector<1x32xf32> to vector<1x16xf32>
    %160 = vector.broadcast %159 : vector<1x16xf32> to vector<44x16xf32>
    %161 = arith.addf %158, %160 : vector<44x16xf32>
    %cst_38 = arith.constant 5.000000e-01 : f32
    %162 = vector.broadcast %cst_38 : f32 to vector<44x16xf32>
    %163 = arith.mulf %162, %150 : vector<44x16xf32>
    %cst_39 = arith.constant 0.707106769 : f32
    %164 = vector.broadcast %cst_39 : f32 to vector<44x16xf32>
    %165 = arith.mulf %150, %164 : vector<44x16xf32>
    %166 = math.erf %165 : vector<44x16xf32>
    %cst_40 = arith.constant 1.000000e+00 : f32
    %167 = vector.broadcast %cst_40 : f32 to vector<44x16xf32>
    %168 = arith.addf %167, %166 : vector<44x16xf32>
    %169 = arith.mulf %163, %168 : vector<44x16xf32>
    %cst_41 = arith.constant 5.000000e-01 : f32
    %170 = vector.broadcast %cst_41 : f32 to vector<44x16xf32>
    %171 = arith.mulf %170, %161 : vector<44x16xf32>
    %cst_42 = arith.constant 0.707106769 : f32
    %172 = vector.broadcast %cst_42 : f32 to vector<44x16xf32>
    %173 = arith.mulf %161, %172 : vector<44x16xf32>
    %174 = math.erf %173 : vector<44x16xf32>
    %cst_43 = arith.constant 1.000000e+00 : f32
    %175 = vector.broadcast %cst_43 : f32 to vector<44x16xf32>
    %176 = arith.addf %175, %174 : vector<44x16xf32>
    %177 = arith.mulf %171, %176 : vector<44x16xf32>
    %c0_44 = arith.constant 0 : index
    %c0_45 = arith.constant 0 : index
    %178 = vector.load %arg6[%c0_44, %c0_45] : memref<64x32xbf16, #tpu.memory_space<vmem>>, vector<64x32xbf16>
    %c0_46 = arith.constant 0 : index
    %c0_47 = arith.constant 0 : index
    %179 = vector.load %arg7[%c0_46, %c0_47] : memref<3x32xf32, #tpu.memory_space<vmem>>, vector<3x32xf32>
    %180 = tpu.iota {dimensions = array<i32: 0>} : vector<23x44xi32>
    %181 = tpu.iota {dimensions = array<i32: 1>} : vector<23x44xi32>
    %182 = arith.truncf %169 : vector<44x16xf32> to vector<44x16xbf16>
    %183 = arith.truncf %177 : vector<44x16xf32> to vector<44x16xbf16>
    %cst_48 = arith.constant 0.000000e+00 : f32
    %184 = vector.broadcast %cst_48 : f32 to vector<23x32xf32>
    %c2_i32_49 = arith.constant 2 : i32
    %185 = vector.broadcast %c2_i32_49 : i32 to vector<23x44xi32>
    %186 = arith.muli %185, %180 : vector<23x44xi32>
    %c-1_i32_50 = arith.constant -1 : i32
    %187 = vector.broadcast %c-1_i32_50 : i32 to vector<23x44xi32>
    %188 = arith.addi %186, %187 : vector<23x44xi32>
    %189 = arith.cmpi eq, %181, %188 : vector<23x44xi32>
    %190 = arith.extui %189 : vector<23x44xi1> to vector<23x44xi32>
    %191 = arith.sitofp %190 : vector<23x44xi32> to vector<23x44xf32>
    %192 = arith.truncf %191 : vector<23x44xf32> to vector<23x44xbf16>
    %cst_51 = arith.constant dense<0.000000e+00> : vector<23x16xf32>
    %193 = tpu.matmul %192, %182, %cst_51 {dimension_numbers = #tpu.dot_dimension_numbers<[1], [0], [0], [1], [0, 0, 1, 1], [], []>} : vector<23x44xbf16>, vector<44x16xbf16>, vector<23x16xf32> -> vector<23x16xf32>
    %cst_52 = arith.constant dense<0.000000e+00> : vector<23x16xf32>
    %194 = tpu.matmul %192, %183, %cst_52 {dimension_numbers = #tpu.dot_dimension_numbers<[1], [0], [0], [1], [0, 0, 1, 1], [], []>} : vector<23x44xbf16>, vector<44x16xbf16>, vector<23x16xf32> -> vector<23x16xf32>
    %195 = vector.extract_strided_slice %178 {offsets = [0, 0], sizes = [16, 32], strides = [1, 1]} : vector<64x32xbf16> to vector<16x32xbf16>
    %196 = vector.extract_strided_slice %178 {offsets = [16, 0], sizes = [16, 32], strides = [1, 1]} : vector<64x32xbf16> to vector<16x32xbf16>
    %197 = arith.truncf %193 : vector<23x16xf32> to vector<23x16xbf16>
    %cst_53 = arith.constant dense<0.000000e+00> : vector<23x32xf32>
    %198 = tpu.matmul %197, %195, %cst_53 {dimension_numbers = #tpu.dot_dimension_numbers<[1], [0], [0], [1], [0, 0, 1, 1], [], []>} : vector<23x16xbf16>, vector<16x32xbf16>, vector<23x32xf32> -> vector<23x32xf32>
    %199 = arith.addf %184, %198 : vector<23x32xf32>
    %200 = arith.truncf %194 : vector<23x16xf32> to vector<23x16xbf16>
    %cst_54 = arith.constant dense<0.000000e+00> : vector<23x32xf32>
    %201 = tpu.matmul %200, %196, %cst_54 {dimension_numbers = #tpu.dot_dimension_numbers<[1], [0], [0], [1], [0, 0, 1, 1], [], []>} : vector<23x16xbf16>, vector<16x32xbf16>, vector<23x32xf32> -> vector<23x32xf32>
    %202 = arith.addf %199, %201 : vector<23x32xf32>
    %c2_i32_55 = arith.constant 2 : i32
    %203 = vector.broadcast %c2_i32_55 : i32 to vector<23x44xi32>
    %204 = arith.muli %203, %180 : vector<23x44xi32>
    %c0_i32_56 = arith.constant 0 : i32
    %205 = vector.broadcast %c0_i32_56 : i32 to vector<23x44xi32>
    %206 = arith.addi %204, %205 : vector<23x44xi32>
    %207 = arith.cmpi eq, %181, %206 : vector<23x44xi32>
    %208 = arith.extui %207 : vector<23x44xi1> to vector<23x44xi32>
    %209 = arith.sitofp %208 : vector<23x44xi32> to vector<23x44xf32>
    %210 = arith.truncf %209 : vector<23x44xf32> to vector<23x44xbf16>
    %cst_57 = arith.constant dense<0.000000e+00> : vector<23x16xf32>
    %211 = tpu.matmul %210, %182, %cst_57 {dimension_numbers = #tpu.dot_dimension_numbers<[1], [0], [0], [1], [0, 0, 1, 1], [], []>} : vector<23x44xbf16>, vector<44x16xbf16>, vector<23x16xf32> -> vector<23x16xf32>
    %cst_58 = arith.constant dense<0.000000e+00> : vector<23x16xf32>
    %212 = tpu.matmul %210, %183, %cst_58 {dimension_numbers = #tpu.dot_dimension_numbers<[1], [0], [0], [1], [0, 0, 1, 1], [], []>} : vector<23x44xbf16>, vector<44x16xbf16>, vector<23x16xf32> -> vector<23x16xf32>
    %213 = vector.extract_strided_slice %178 {offsets = [32, 0], sizes = [16, 32], strides = [1, 1]} : vector<64x32xbf16> to vector<16x32xbf16>
    %214 = vector.extract_strided_slice %178 {offsets = [48, 0], sizes = [16, 32], strides = [1, 1]} : vector<64x32xbf16> to vector<16x32xbf16>
    %215 = arith.truncf %211 : vector<23x16xf32> to vector<23x16xbf16>
    %cst_59 = arith.constant dense<0.000000e+00> : vector<23x32xf32>
    %216 = tpu.matmul %215, %213, %cst_59 {dimension_numbers = #tpu.dot_dimension_numbers<[1], [0], [0], [1], [0, 0, 1, 1], [], []>} : vector<23x16xbf16>, vector<16x32xbf16>, vector<23x32xf32> -> vector<23x32xf32>
    %217 = arith.addf %202, %216 : vector<23x32xf32>
    %218 = arith.truncf %212 : vector<23x16xf32> to vector<23x16xbf16>
    %cst_60 = arith.constant dense<0.000000e+00> : vector<23x32xf32>
    %219 = tpu.matmul %218, %214, %cst_60 {dimension_numbers = #tpu.dot_dimension_numbers<[1], [0], [0], [1], [0, 0, 1, 1], [], []>} : vector<23x16xbf16>, vector<16x32xbf16>, vector<23x32xf32> -> vector<23x32xf32>
    %220 = arith.addf %217, %219 : vector<23x32xf32>
    %221 = vector.extract_strided_slice %179 {offsets = [0, 0], sizes = [1, 32], strides = [1, 1]} : vector<3x32xf32> to vector<1x32xf32>
    %222 = vector.broadcast %221 : vector<1x32xf32> to vector<23x32xf32>
    %223 = arith.addf %220, %222 : vector<23x32xf32>
    %224 = vector.extract_strided_slice %179 {offsets = [1, 0], sizes = [1, 32], strides = [1, 1]} : vector<3x32xf32> to vector<1x32xf32>
    %225 = vector.extract_strided_slice %179 {offsets = [2, 0], sizes = [1, 32], strides = [1, 1]} : vector<3x32xf32> to vector<1x32xf32>
    %cst_61 = arith.constant dense<0.000000e+00> : vector<32xf32>
    %226 = vector.multi_reduction <add>, %223, %cst_61 [0] : vector<23x32xf32> to vector<32xf32>
    %227 = vector.shape_cast %226 : vector<32xf32> to vector<1x32xf32>
    %228 = arith.mulf %223, %223 : vector<23x32xf32>
    %cst_62 = arith.constant dense<0.000000e+00> : vector<32xf32>
    %229 = vector.multi_reduction <add>, %228, %cst_62 [0] : vector<23x32xf32> to vector<32xf32>
    %230 = vector.shape_cast %229 : vector<32xf32> to vector<1x32xf32>
    %231 = vector.extract_strided_slice %227 {offsets = [0, 0], sizes = [1, 16], strides = [1, 1]} : vector<1x32xf32> to vector<1x16xf32>
    %232 = vector.extract_strided_slice %227 {offsets = [0, 16], sizes = [1, 16], strides = [1, 1]} : vector<1x32xf32> to vector<1x16xf32>
    %233 = arith.addf %231, %232 : vector<1x16xf32>
    %cst_63 = arith.constant 0.0217391308 : f32
    %234 = vector.broadcast %cst_63 : f32 to vector<1x16xf32>
    %235 = arith.mulf %233, %234 : vector<1x16xf32>
    %236 = vector.extract_strided_slice %230 {offsets = [0, 0], sizes = [1, 16], strides = [1, 1]} : vector<1x32xf32> to vector<1x16xf32>
    %237 = vector.extract_strided_slice %230 {offsets = [0, 16], sizes = [1, 16], strides = [1, 1]} : vector<1x32xf32> to vector<1x16xf32>
    %238 = arith.addf %236, %237 : vector<1x16xf32>
    %cst_64 = arith.constant 0.0217391308 : f32
    %239 = vector.broadcast %cst_64 : f32 to vector<1x16xf32>
    %240 = arith.mulf %238, %239 : vector<1x16xf32>
    %241 = arith.mulf %235, %235 : vector<1x16xf32>
    %242 = arith.subf %240, %241 : vector<1x16xf32>
    %cst_65 = arith.constant 0.000000e+00 : f32
    %243 = vector.broadcast %cst_65 : f32 to vector<1x16xf32>
    %244 = arith.maximumf %242, %243 : vector<1x16xf32>
    %cst_66 = arith.constant 9.99999974E-6 : f32
    %245 = vector.broadcast %cst_66 : f32 to vector<1x16xf32>
    %246 = arith.addf %244, %245 : vector<1x16xf32>
    %247 = math.rsqrt %246 : vector<1x16xf32>
    %248 = vector.extract_strided_slice %223 {offsets = [0, 0], sizes = [23, 16], strides = [1, 1]} : vector<23x32xf32> to vector<23x16xf32>
    %249 = vector.broadcast %235 : vector<1x16xf32> to vector<23x16xf32>
    %250 = arith.subf %248, %249 : vector<23x16xf32>
    %251 = vector.broadcast %247 : vector<1x16xf32> to vector<23x16xf32>
    %252 = arith.mulf %250, %251 : vector<23x16xf32>
    %253 = vector.extract_strided_slice %224 {offsets = [0, 0], sizes = [1, 16], strides = [1, 1]} : vector<1x32xf32> to vector<1x16xf32>
    %254 = vector.broadcast %253 : vector<1x16xf32> to vector<23x16xf32>
    %255 = arith.mulf %252, %254 : vector<23x16xf32>
    %256 = vector.extract_strided_slice %225 {offsets = [0, 0], sizes = [1, 16], strides = [1, 1]} : vector<1x32xf32> to vector<1x16xf32>
    %257 = vector.broadcast %256 : vector<1x16xf32> to vector<23x16xf32>
    %258 = arith.addf %255, %257 : vector<23x16xf32>
    %259 = vector.extract_strided_slice %223 {offsets = [0, 16], sizes = [23, 16], strides = [1, 1]} : vector<23x32xf32> to vector<23x16xf32>
    %260 = vector.broadcast %235 : vector<1x16xf32> to vector<23x16xf32>
    %261 = arith.subf %259, %260 : vector<23x16xf32>
    %262 = vector.broadcast %247 : vector<1x16xf32> to vector<23x16xf32>
    %263 = arith.mulf %261, %262 : vector<23x16xf32>
    %264 = vector.extract_strided_slice %224 {offsets = [0, 16], sizes = [1, 16], strides = [1, 1]} : vector<1x32xf32> to vector<1x16xf32>
    %265 = vector.broadcast %264 : vector<1x16xf32> to vector<23x16xf32>
    %266 = arith.mulf %263, %265 : vector<23x16xf32>
    %267 = vector.extract_strided_slice %225 {offsets = [0, 16], sizes = [1, 16], strides = [1, 1]} : vector<1x32xf32> to vector<1x16xf32>
    %268 = vector.broadcast %267 : vector<1x16xf32> to vector<23x16xf32>
    %269 = arith.addf %266, %268 : vector<23x16xf32>
    %cst_67 = arith.constant 5.000000e-01 : f32
    %270 = vector.broadcast %cst_67 : f32 to vector<23x16xf32>
    %271 = arith.mulf %270, %258 : vector<23x16xf32>
    %cst_68 = arith.constant 0.707106769 : f32
    %272 = vector.broadcast %cst_68 : f32 to vector<23x16xf32>
    %273 = arith.mulf %258, %272 : vector<23x16xf32>
    %274 = math.erf %273 : vector<23x16xf32>
    %cst_69 = arith.constant 1.000000e+00 : f32
    %275 = vector.broadcast %cst_69 : f32 to vector<23x16xf32>
    %276 = arith.addf %275, %274 : vector<23x16xf32>
    %277 = arith.mulf %271, %276 : vector<23x16xf32>
    %cst_70 = arith.constant 5.000000e-01 : f32
    %278 = vector.broadcast %cst_70 : f32 to vector<23x16xf32>
    %279 = arith.mulf %278, %269 : vector<23x16xf32>
    %cst_71 = arith.constant 0.707106769 : f32
    %280 = vector.broadcast %cst_71 : f32 to vector<23x16xf32>
    %281 = arith.mulf %269, %280 : vector<23x16xf32>
    %282 = math.erf %281 : vector<23x16xf32>
    %cst_72 = arith.constant 1.000000e+00 : f32
    %283 = vector.broadcast %cst_72 : f32 to vector<23x16xf32>
    %284 = arith.addf %283, %282 : vector<23x16xf32>
    %285 = arith.mulf %279, %284 : vector<23x16xf32>
    %c0_73 = arith.constant 0 : index
    %c0_74 = arith.constant 0 : index
    %286 = vector.load %arg8[%c0_73, %c0_74] : memref<64x32xbf16, #tpu.memory_space<vmem>>, vector<64x32xbf16>
    %c0_75 = arith.constant 0 : index
    %c0_76 = arith.constant 0 : index
    %287 = vector.load %arg9[%c0_75, %c0_76] : memref<3x32xf32, #tpu.memory_space<vmem>>, vector<3x32xf32>
    %288 = tpu.iota {dimensions = array<i32: 0>} : vector<12x23xi32>
    %289 = tpu.iota {dimensions = array<i32: 1>} : vector<12x23xi32>
    %290 = arith.truncf %277 : vector<23x16xf32> to vector<23x16xbf16>
    %291 = arith.truncf %285 : vector<23x16xf32> to vector<23x16xbf16>
    %cst_77 = arith.constant 0.000000e+00 : f32
    %292 = vector.broadcast %cst_77 : f32 to vector<12x32xf32>
    %c2_i32_78 = arith.constant 2 : i32
    %293 = vector.broadcast %c2_i32_78 : i32 to vector<12x23xi32>
    %294 = arith.muli %293, %288 : vector<12x23xi32>
    %c-1_i32_79 = arith.constant -1 : i32
    %295 = vector.broadcast %c-1_i32_79 : i32 to vector<12x23xi32>
    %296 = arith.addi %294, %295 : vector<12x23xi32>
    %297 = arith.cmpi eq, %289, %296 : vector<12x23xi32>
    %298 = arith.extui %297 : vector<12x23xi1> to vector<12x23xi32>
    %299 = arith.sitofp %298 : vector<12x23xi32> to vector<12x23xf32>
    %300 = arith.truncf %299 : vector<12x23xf32> to vector<12x23xbf16>
    %cst_80 = arith.constant dense<0.000000e+00> : vector<12x16xf32>
    %301 = tpu.matmul %300, %290, %cst_80 {dimension_numbers = #tpu.dot_dimension_numbers<[1], [0], [0], [1], [0, 0, 1, 1], [], []>} : vector<12x23xbf16>, vector<23x16xbf16>, vector<12x16xf32> -> vector<12x16xf32>
    %cst_81 = arith.constant dense<0.000000e+00> : vector<12x16xf32>
    %302 = tpu.matmul %300, %291, %cst_81 {dimension_numbers = #tpu.dot_dimension_numbers<[1], [0], [0], [1], [0, 0, 1, 1], [], []>} : vector<12x23xbf16>, vector<23x16xbf16>, vector<12x16xf32> -> vector<12x16xf32>
    %303 = vector.extract_strided_slice %286 {offsets = [0, 0], sizes = [16, 32], strides = [1, 1]} : vector<64x32xbf16> to vector<16x32xbf16>
    %304 = vector.extract_strided_slice %286 {offsets = [16, 0], sizes = [16, 32], strides = [1, 1]} : vector<64x32xbf16> to vector<16x32xbf16>
    %305 = arith.truncf %301 : vector<12x16xf32> to vector<12x16xbf16>
    %cst_82 = arith.constant dense<0.000000e+00> : vector<12x32xf32>
    %306 = tpu.matmul %305, %303, %cst_82 {dimension_numbers = #tpu.dot_dimension_numbers<[1], [0], [0], [1], [0, 0, 1, 1], [], []>} : vector<12x16xbf16>, vector<16x32xbf16>, vector<12x32xf32> -> vector<12x32xf32>
    %307 = arith.addf %292, %306 : vector<12x32xf32>
    %308 = arith.truncf %302 : vector<12x16xf32> to vector<12x16xbf16>
    %cst_83 = arith.constant dense<0.000000e+00> : vector<12x32xf32>
    %309 = tpu.matmul %308, %304, %cst_83 {dimension_numbers = #tpu.dot_dimension_numbers<[1], [0], [0], [1], [0, 0, 1, 1], [], []>} : vector<12x16xbf16>, vector<16x32xbf16>, vector<12x32xf32> -> vector<12x32xf32>
    %310 = arith.addf %307, %309 : vector<12x32xf32>
    %c2_i32_84 = arith.constant 2 : i32
    %311 = vector.broadcast %c2_i32_84 : i32 to vector<12x23xi32>
    %312 = arith.muli %311, %288 : vector<12x23xi32>
    %c0_i32_85 = arith.constant 0 : i32
    %313 = vector.broadcast %c0_i32_85 : i32 to vector<12x23xi32>
    %314 = arith.addi %312, %313 : vector<12x23xi32>
    %315 = arith.cmpi eq, %289, %314 : vector<12x23xi32>
    %316 = arith.extui %315 : vector<12x23xi1> to vector<12x23xi32>
    %317 = arith.sitofp %316 : vector<12x23xi32> to vector<12x23xf32>
    %318 = arith.truncf %317 : vector<12x23xf32> to vector<12x23xbf16>
    %cst_86 = arith.constant dense<0.000000e+00> : vector<12x16xf32>
    %319 = tpu.matmul %318, %290, %cst_86 {dimension_numbers = #tpu.dot_dimension_numbers<[1], [0], [0], [1], [0, 0, 1, 1], [], []>} : vector<12x23xbf16>, vector<23x16xbf16>, vector<12x16xf32> -> vector<12x16xf32>
    %cst_87 = arith.constant dense<0.000000e+00> : vector<12x16xf32>
    %320 = tpu.matmul %318, %291, %cst_87 {dimension_numbers = #tpu.dot_dimension_numbers<[1], [0], [0], [1], [0, 0, 1, 1], [], []>} : vector<12x23xbf16>, vector<23x16xbf16>, vector<12x16xf32> -> vector<12x16xf32>
    %321 = vector.extract_strided_slice %286 {offsets = [32, 0], sizes = [16, 32], strides = [1, 1]} : vector<64x32xbf16> to vector<16x32xbf16>
    %322 = vector.extract_strided_slice %286 {offsets = [48, 0], sizes = [16, 32], strides = [1, 1]} : vector<64x32xbf16> to vector<16x32xbf16>
    %323 = arith.truncf %319 : vector<12x16xf32> to vector<12x16xbf16>
    %cst_88 = arith.constant dense<0.000000e+00> : vector<12x32xf32>
    %324 = tpu.matmul %323, %321, %cst_88 {dimension_numbers = #tpu.dot_dimension_numbers<[1], [0], [0], [1], [0, 0, 1, 1], [], []>} : vector<12x16xbf16>, vector<16x32xbf16>, vector<12x32xf32> -> vector<12x32xf32>
    %325 = arith.addf %310, %324 : vector<12x32xf32>
    %326 = arith.truncf %320 : vector<12x16xf32> to vector<12x16xbf16>
    %cst_89 = arith.constant dense<0.000000e+00> : vector<12x32xf32>
    %327 = tpu.matmul %326, %322, %cst_89 {dimension_numbers = #tpu.dot_dimension_numbers<[1], [0], [0], [1], [0, 0, 1, 1], [], []>} : vector<12x16xbf16>, vector<16x32xbf16>, vector<12x32xf32> -> vector<12x32xf32>
    %328 = arith.addf %325, %327 : vector<12x32xf32>
    %329 = vector.extract_strided_slice %287 {offsets = [0, 0], sizes = [1, 32], strides = [1, 1]} : vector<3x32xf32> to vector<1x32xf32>
    %330 = vector.broadcast %329 : vector<1x32xf32> to vector<12x32xf32>
    %331 = arith.addf %328, %330 : vector<12x32xf32>
    %332 = vector.extract_strided_slice %287 {offsets = [1, 0], sizes = [1, 32], strides = [1, 1]} : vector<3x32xf32> to vector<1x32xf32>
    %333 = vector.extract_strided_slice %287 {offsets = [2, 0], sizes = [1, 32], strides = [1, 1]} : vector<3x32xf32> to vector<1x32xf32>
    %cst_90 = arith.constant dense<0.000000e+00> : vector<32xf32>
    %334 = vector.multi_reduction <add>, %331, %cst_90 [0] : vector<12x32xf32> to vector<32xf32>
    %335 = vector.shape_cast %334 : vector<32xf32> to vector<1x32xf32>
    %336 = arith.mulf %331, %331 : vector<12x32xf32>
    %cst_91 = arith.constant dense<0.000000e+00> : vector<32xf32>
    %337 = vector.multi_reduction <add>, %336, %cst_91 [0] : vector<12x32xf32> to vector<32xf32>
    %338 = vector.shape_cast %337 : vector<32xf32> to vector<1x32xf32>
    %339 = vector.extract_strided_slice %335 {offsets = [0, 0], sizes = [1, 16], strides = [1, 1]} : vector<1x32xf32> to vector<1x16xf32>
    %340 = vector.extract_strided_slice %335 {offsets = [0, 16], sizes = [1, 16], strides = [1, 1]} : vector<1x32xf32> to vector<1x16xf32>
    %341 = arith.addf %339, %340 : vector<1x16xf32>
    %cst_92 = arith.constant 0.0416666679 : f32
    %342 = vector.broadcast %cst_92 : f32 to vector<1x16xf32>
    %343 = arith.mulf %341, %342 : vector<1x16xf32>
    %344 = vector.extract_strided_slice %338 {offsets = [0, 0], sizes = [1, 16], strides = [1, 1]} : vector<1x32xf32> to vector<1x16xf32>
    %345 = vector.extract_strided_slice %338 {offsets = [0, 16], sizes = [1, 16], strides = [1, 1]} : vector<1x32xf32> to vector<1x16xf32>
    %346 = arith.addf %344, %345 : vector<1x16xf32>
    %cst_93 = arith.constant 0.0416666679 : f32
    %347 = vector.broadcast %cst_93 : f32 to vector<1x16xf32>
    %348 = arith.mulf %346, %347 : vector<1x16xf32>
    %349 = arith.mulf %343, %343 : vector<1x16xf32>
    %350 = arith.subf %348, %349 : vector<1x16xf32>
    %cst_94 = arith.constant 0.000000e+00 : f32
    %351 = vector.broadcast %cst_94 : f32 to vector<1x16xf32>
    %352 = arith.maximumf %350, %351 : vector<1x16xf32>
    %cst_95 = arith.constant 9.99999974E-6 : f32
    %353 = vector.broadcast %cst_95 : f32 to vector<1x16xf32>
    %354 = arith.addf %352, %353 : vector<1x16xf32>
    %355 = math.rsqrt %354 : vector<1x16xf32>
    %356 = vector.extract_strided_slice %331 {offsets = [0, 0], sizes = [12, 16], strides = [1, 1]} : vector<12x32xf32> to vector<12x16xf32>
    %357 = vector.broadcast %343 : vector<1x16xf32> to vector<12x16xf32>
    %358 = arith.subf %356, %357 : vector<12x16xf32>
    %359 = vector.broadcast %355 : vector<1x16xf32> to vector<12x16xf32>
    %360 = arith.mulf %358, %359 : vector<12x16xf32>
    %361 = vector.extract_strided_slice %332 {offsets = [0, 0], sizes = [1, 16], strides = [1, 1]} : vector<1x32xf32> to vector<1x16xf32>
    %362 = vector.broadcast %361 : vector<1x16xf32> to vector<12x16xf32>
    %363 = arith.mulf %360, %362 : vector<12x16xf32>
    %364 = vector.extract_strided_slice %333 {offsets = [0, 0], sizes = [1, 16], strides = [1, 1]} : vector<1x32xf32> to vector<1x16xf32>
    %365 = vector.broadcast %364 : vector<1x16xf32> to vector<12x16xf32>
    %366 = arith.addf %363, %365 : vector<12x16xf32>
    %367 = vector.extract_strided_slice %331 {offsets = [0, 16], sizes = [12, 16], strides = [1, 1]} : vector<12x32xf32> to vector<12x16xf32>
    %368 = vector.broadcast %343 : vector<1x16xf32> to vector<12x16xf32>
    %369 = arith.subf %367, %368 : vector<12x16xf32>
    %370 = vector.broadcast %355 : vector<1x16xf32> to vector<12x16xf32>
    %371 = arith.mulf %369, %370 : vector<12x16xf32>
    %372 = vector.extract_strided_slice %332 {offsets = [0, 16], sizes = [1, 16], strides = [1, 1]} : vector<1x32xf32> to vector<1x16xf32>
    %373 = vector.broadcast %372 : vector<1x16xf32> to vector<12x16xf32>
    %374 = arith.mulf %371, %373 : vector<12x16xf32>
    %375 = vector.extract_strided_slice %333 {offsets = [0, 16], sizes = [1, 16], strides = [1, 1]} : vector<1x32xf32> to vector<1x16xf32>
    %376 = vector.broadcast %375 : vector<1x16xf32> to vector<12x16xf32>
    %377 = arith.addf %374, %376 : vector<12x16xf32>
    %cst_96 = arith.constant 5.000000e-01 : f32
    %378 = vector.broadcast %cst_96 : f32 to vector<12x16xf32>
    %379 = arith.mulf %378, %366 : vector<12x16xf32>
    %cst_97 = arith.constant 0.707106769 : f32
    %380 = vector.broadcast %cst_97 : f32 to vector<12x16xf32>
    %381 = arith.mulf %366, %380 : vector<12x16xf32>
    %382 = math.erf %381 : vector<12x16xf32>
    %cst_98 = arith.constant 1.000000e+00 : f32
    %383 = vector.broadcast %cst_98 : f32 to vector<12x16xf32>
    %384 = arith.addf %383, %382 : vector<12x16xf32>
    %385 = arith.mulf %379, %384 : vector<12x16xf32>
    %cst_99 = arith.constant 5.000000e-01 : f32
    %386 = vector.broadcast %cst_99 : f32 to vector<12x16xf32>
    %387 = arith.mulf %386, %377 : vector<12x16xf32>
    %cst_100 = arith.constant 0.707106769 : f32
    %388 = vector.broadcast %cst_100 : f32 to vector<12x16xf32>
    %389 = arith.mulf %377, %388 : vector<12x16xf32>
    %390 = math.erf %389 : vector<12x16xf32>
    %cst_101 = arith.constant 1.000000e+00 : f32
    %391 = vector.broadcast %cst_101 : f32 to vector<12x16xf32>
    %392 = arith.addf %391, %390 : vector<12x16xf32>
    %393 = arith.mulf %387, %392 : vector<12x16xf32>
    %c0_102 = arith.constant 0 : index
    %c0_103 = arith.constant 0 : index
    %394 = vector.load %arg10[%c0_102, %c0_103] : memref<64x32xbf16, #tpu.memory_space<vmem>>, vector<64x32xbf16>
    %c0_104 = arith.constant 0 : index
    %c0_105 = arith.constant 0 : index
    %395 = vector.load %arg11[%c0_104, %c0_105] : memref<3x32xf32, #tpu.memory_space<vmem>>, vector<3x32xf32>
    %396 = tpu.iota {dimensions = array<i32: 0>} : vector<7x12xi32>
    %397 = tpu.iota {dimensions = array<i32: 1>} : vector<7x12xi32>
    %398 = arith.truncf %385 : vector<12x16xf32> to vector<12x16xbf16>
    %399 = arith.truncf %393 : vector<12x16xf32> to vector<12x16xbf16>
    %cst_106 = arith.constant 0.000000e+00 : f32
    %400 = vector.broadcast %cst_106 : f32 to vector<7x32xf32>
    %c2_i32_107 = arith.constant 2 : i32
    %401 = vector.broadcast %c2_i32_107 : i32 to vector<7x12xi32>
    %402 = arith.muli %401, %396 : vector<7x12xi32>
    %c-1_i32_108 = arith.constant -1 : i32
    %403 = vector.broadcast %c-1_i32_108 : i32 to vector<7x12xi32>
    %404 = arith.addi %402, %403 : vector<7x12xi32>
    %405 = arith.cmpi eq, %397, %404 : vector<7x12xi32>
    %406 = arith.extui %405 : vector<7x12xi1> to vector<7x12xi32>
    %407 = arith.sitofp %406 : vector<7x12xi32> to vector<7x12xf32>
    %408 = arith.truncf %407 : vector<7x12xf32> to vector<7x12xbf16>
    %cst_109 = arith.constant dense<0.000000e+00> : vector<7x16xf32>
    %409 = tpu.matmul %408, %398, %cst_109 {dimension_numbers = #tpu.dot_dimension_numbers<[1], [0], [0], [1], [0, 0, 1, 1], [], []>} : vector<7x12xbf16>, vector<12x16xbf16>, vector<7x16xf32> -> vector<7x16xf32>
    %cst_110 = arith.constant dense<0.000000e+00> : vector<7x16xf32>
    %410 = tpu.matmul %408, %399, %cst_110 {dimension_numbers = #tpu.dot_dimension_numbers<[1], [0], [0], [1], [0, 0, 1, 1], [], []>} : vector<7x12xbf16>, vector<12x16xbf16>, vector<7x16xf32> -> vector<7x16xf32>
    %411 = vector.extract_strided_slice %394 {offsets = [0, 0], sizes = [16, 32], strides = [1, 1]} : vector<64x32xbf16> to vector<16x32xbf16>
    %412 = vector.extract_strided_slice %394 {offsets = [16, 0], sizes = [16, 32], strides = [1, 1]} : vector<64x32xbf16> to vector<16x32xbf16>
    %413 = arith.truncf %409 : vector<7x16xf32> to vector<7x16xbf16>
    %cst_111 = arith.constant dense<0.000000e+00> : vector<7x32xf32>
    %414 = tpu.matmul %413, %411, %cst_111 {dimension_numbers = #tpu.dot_dimension_numbers<[1], [0], [0], [1], [0, 0, 1, 1], [], []>} : vector<7x16xbf16>, vector<16x32xbf16>, vector<7x32xf32> -> vector<7x32xf32>
    %415 = arith.addf %400, %414 : vector<7x32xf32>
    %416 = arith.truncf %410 : vector<7x16xf32> to vector<7x16xbf16>
    %cst_112 = arith.constant dense<0.000000e+00> : vector<7x32xf32>
    %417 = tpu.matmul %416, %412, %cst_112 {dimension_numbers = #tpu.dot_dimension_numbers<[1], [0], [0], [1], [0, 0, 1, 1], [], []>} : vector<7x16xbf16>, vector<16x32xbf16>, vector<7x32xf32> -> vector<7x32xf32>
    %418 = arith.addf %415, %417 : vector<7x32xf32>
    %c2_i32_113 = arith.constant 2 : i32
    %419 = vector.broadcast %c2_i32_113 : i32 to vector<7x12xi32>
    %420 = arith.muli %419, %396 : vector<7x12xi32>
    %c0_i32_114 = arith.constant 0 : i32
    %421 = vector.broadcast %c0_i32_114 : i32 to vector<7x12xi32>
    %422 = arith.addi %420, %421 : vector<7x12xi32>
    %423 = arith.cmpi eq, %397, %422 : vector<7x12xi32>
    %424 = arith.extui %423 : vector<7x12xi1> to vector<7x12xi32>
    %425 = arith.sitofp %424 : vector<7x12xi32> to vector<7x12xf32>
    %426 = arith.truncf %425 : vector<7x12xf32> to vector<7x12xbf16>
    %cst_115 = arith.constant dense<0.000000e+00> : vector<7x16xf32>
    %427 = tpu.matmul %426, %398, %cst_115 {dimension_numbers = #tpu.dot_dimension_numbers<[1], [0], [0], [1], [0, 0, 1, 1], [], []>} : vector<7x12xbf16>, vector<12x16xbf16>, vector<7x16xf32> -> vector<7x16xf32>
    %cst_116 = arith.constant dense<0.000000e+00> : vector<7x16xf32>
    %428 = tpu.matmul %426, %399, %cst_116 {dimension_numbers = #tpu.dot_dimension_numbers<[1], [0], [0], [1], [0, 0, 1, 1], [], []>} : vector<7x12xbf16>, vector<12x16xbf16>, vector<7x16xf32> -> vector<7x16xf32>
    %429 = vector.extract_strided_slice %394 {offsets = [32, 0], sizes = [16, 32], strides = [1, 1]} : vector<64x32xbf16> to vector<16x32xbf16>
    %430 = vector.extract_strided_slice %394 {offsets = [48, 0], sizes = [16, 32], strides = [1, 1]} : vector<64x32xbf16> to vector<16x32xbf16>
    %431 = arith.truncf %427 : vector<7x16xf32> to vector<7x16xbf16>
    %cst_117 = arith.constant dense<0.000000e+00> : vector<7x32xf32>
    %432 = tpu.matmul %431, %429, %cst_117 {dimension_numbers = #tpu.dot_dimension_numbers<[1], [0], [0], [1], [0, 0, 1, 1], [], []>} : vector<7x16xbf16>, vector<16x32xbf16>, vector<7x32xf32> -> vector<7x32xf32>
    %433 = arith.addf %418, %432 : vector<7x32xf32>
    %434 = arith.truncf %428 : vector<7x16xf32> to vector<7x16xbf16>
    %cst_118 = arith.constant dense<0.000000e+00> : vector<7x32xf32>
    %435 = tpu.matmul %434, %430, %cst_118 {dimension_numbers = #tpu.dot_dimension_numbers<[1], [0], [0], [1], [0, 0, 1, 1], [], []>} : vector<7x16xbf16>, vector<16x32xbf16>, vector<7x32xf32> -> vector<7x32xf32>
    %436 = arith.addf %433, %435 : vector<7x32xf32>
    %437 = vector.extract_strided_slice %395 {offsets = [0, 0], sizes = [1, 32], strides = [1, 1]} : vector<3x32xf32> to vector<1x32xf32>
    %438 = vector.broadcast %437 : vector<1x32xf32> to vector<7x32xf32>
    %439 = arith.addf %436, %438 : vector<7x32xf32>
    %440 = vector.extract_strided_slice %395 {offsets = [1, 0], sizes = [1, 32], strides = [1, 1]} : vector<3x32xf32> to vector<1x32xf32>
    %441 = vector.extract_strided_slice %395 {offsets = [2, 0], sizes = [1, 32], strides = [1, 1]} : vector<3x32xf32> to vector<1x32xf32>
    %cst_119 = arith.constant dense<0.000000e+00> : vector<32xf32>
    %442 = vector.multi_reduction <add>, %439, %cst_119 [0] : vector<7x32xf32> to vector<32xf32>
    %443 = vector.shape_cast %442 : vector<32xf32> to vector<1x32xf32>
    %444 = arith.mulf %439, %439 : vector<7x32xf32>
    %cst_120 = arith.constant dense<0.000000e+00> : vector<32xf32>
    %445 = vector.multi_reduction <add>, %444, %cst_120 [0] : vector<7x32xf32> to vector<32xf32>
    %446 = vector.shape_cast %445 : vector<32xf32> to vector<1x32xf32>
    %447 = vector.extract_strided_slice %443 {offsets = [0, 0], sizes = [1, 16], strides = [1, 1]} : vector<1x32xf32> to vector<1x16xf32>
    %448 = vector.extract_strided_slice %443 {offsets = [0, 16], sizes = [1, 16], strides = [1, 1]} : vector<1x32xf32> to vector<1x16xf32>
    %449 = arith.addf %447, %448 : vector<1x16xf32>
    %cst_121 = arith.constant 0.0714285746 : f32
    %450 = vector.broadcast %cst_121 : f32 to vector<1x16xf32>
    %451 = arith.mulf %449, %450 : vector<1x16xf32>
    %452 = vector.extract_strided_slice %446 {offsets = [0, 0], sizes = [1, 16], strides = [1, 1]} : vector<1x32xf32> to vector<1x16xf32>
    %453 = vector.extract_strided_slice %446 {offsets = [0, 16], sizes = [1, 16], strides = [1, 1]} : vector<1x32xf32> to vector<1x16xf32>
    %454 = arith.addf %452, %453 : vector<1x16xf32>
    %cst_122 = arith.constant 0.0714285746 : f32
    %455 = vector.broadcast %cst_122 : f32 to vector<1x16xf32>
    %456 = arith.mulf %454, %455 : vector<1x16xf32>
    %457 = arith.mulf %451, %451 : vector<1x16xf32>
    %458 = arith.subf %456, %457 : vector<1x16xf32>
    %cst_123 = arith.constant 0.000000e+00 : f32
    %459 = vector.broadcast %cst_123 : f32 to vector<1x16xf32>
    %460 = arith.maximumf %458, %459 : vector<1x16xf32>
    %cst_124 = arith.constant 9.99999974E-6 : f32
    %461 = vector.broadcast %cst_124 : f32 to vector<1x16xf32>
    %462 = arith.addf %460, %461 : vector<1x16xf32>
    %463 = math.rsqrt %462 : vector<1x16xf32>
    %464 = vector.extract_strided_slice %439 {offsets = [0, 0], sizes = [7, 16], strides = [1, 1]} : vector<7x32xf32> to vector<7x16xf32>
    %465 = vector.broadcast %451 : vector<1x16xf32> to vector<7x16xf32>
    %466 = arith.subf %464, %465 : vector<7x16xf32>
    %467 = vector.broadcast %463 : vector<1x16xf32> to vector<7x16xf32>
    %468 = arith.mulf %466, %467 : vector<7x16xf32>
    %469 = vector.extract_strided_slice %440 {offsets = [0, 0], sizes = [1, 16], strides = [1, 1]} : vector<1x32xf32> to vector<1x16xf32>
    %470 = vector.broadcast %469 : vector<1x16xf32> to vector<7x16xf32>
    %471 = arith.mulf %468, %470 : vector<7x16xf32>
    %472 = vector.extract_strided_slice %441 {offsets = [0, 0], sizes = [1, 16], strides = [1, 1]} : vector<1x32xf32> to vector<1x16xf32>
    %473 = vector.broadcast %472 : vector<1x16xf32> to vector<7x16xf32>
    %474 = arith.addf %471, %473 : vector<7x16xf32>
    %475 = vector.extract_strided_slice %439 {offsets = [0, 16], sizes = [7, 16], strides = [1, 1]} : vector<7x32xf32> to vector<7x16xf32>
    %476 = vector.broadcast %451 : vector<1x16xf32> to vector<7x16xf32>
    %477 = arith.subf %475, %476 : vector<7x16xf32>
    %478 = vector.broadcast %463 : vector<1x16xf32> to vector<7x16xf32>
    %479 = arith.mulf %477, %478 : vector<7x16xf32>
    %480 = vector.extract_strided_slice %440 {offsets = [0, 16], sizes = [1, 16], strides = [1, 1]} : vector<1x32xf32> to vector<1x16xf32>
    %481 = vector.broadcast %480 : vector<1x16xf32> to vector<7x16xf32>
    %482 = arith.mulf %479, %481 : vector<7x16xf32>
    %483 = vector.extract_strided_slice %441 {offsets = [0, 16], sizes = [1, 16], strides = [1, 1]} : vector<1x32xf32> to vector<1x16xf32>
    %484 = vector.broadcast %483 : vector<1x16xf32> to vector<7x16xf32>
    %485 = arith.addf %482, %484 : vector<7x16xf32>
    %cst_125 = arith.constant 5.000000e-01 : f32
    %486 = vector.broadcast %cst_125 : f32 to vector<7x16xf32>
    %487 = arith.mulf %486, %474 : vector<7x16xf32>
    %cst_126 = arith.constant 0.707106769 : f32
    %488 = vector.broadcast %cst_126 : f32 to vector<7x16xf32>
    %489 = arith.mulf %474, %488 : vector<7x16xf32>
    %490 = math.erf %489 : vector<7x16xf32>
    %cst_127 = arith.constant 1.000000e+00 : f32
    %491 = vector.broadcast %cst_127 : f32 to vector<7x16xf32>
    %492 = arith.addf %491, %490 : vector<7x16xf32>
    %493 = arith.mulf %487, %492 : vector<7x16xf32>
    %cst_128 = arith.constant 5.000000e-01 : f32
    %494 = vector.broadcast %cst_128 : f32 to vector<7x16xf32>
    %495 = arith.mulf %494, %485 : vector<7x16xf32>
    %cst_129 = arith.constant 0.707106769 : f32
    %496 = vector.broadcast %cst_129 : f32 to vector<7x16xf32>
    %497 = arith.mulf %485, %496 : vector<7x16xf32>
    %498 = math.erf %497 : vector<7x16xf32>
    %cst_130 = arith.constant 1.000000e+00 : f32
    %499 = vector.broadcast %cst_130 : f32 to vector<7x16xf32>
    %500 = arith.addf %499, %498 : vector<7x16xf32>
    %501 = arith.mulf %495, %500 : vector<7x16xf32>
    %c0_131 = arith.constant 0 : index
    %c0_132 = arith.constant 0 : index
    %c0_133 = arith.constant 0 : index
    %c0_134 = arith.constant 0 : index
    %502 = vector.load %arg12[%c0_131, %c0_132, %c0_133, %c0_134] : memref<1x2x7x16xf32, #tpu.memory_space<vmem>>, vector<1x1x7x16xf32>
    %503 = vector.shape_cast %502 : vector<1x1x7x16xf32> to vector<7x16xf32>
    %504 = vector.shape_cast %493 : vector<7x16xf32> to vector<1x1x7x16xf32>
    tpu.vector_store %arg12[%c0_131, %c0_132, %c0_133, %c0_134], %504 {strides = array<i32>} : memref<1x2x7x16xf32, #tpu.memory_space<vmem>>, vector<1x1x7x16xf32>,
    %c0_135 = arith.constant 0 : index
    %c1 = arith.constant 1 : index
    %c0_136 = arith.constant 0 : index
    %c0_137 = arith.constant 0 : index
    %505 = vector.load %arg12[%c0_135, %c1, %c0_136, %c0_137] : memref<1x2x7x16xf32, #tpu.memory_space<vmem>>, vector<1x1x7x16xf32>
    %506 = vector.shape_cast %505 : vector<1x1x7x16xf32> to vector<7x16xf32>
    %507 = vector.shape_cast %501 : vector<7x16xf32> to vector<1x1x7x16xf32>
    tpu.vector_store %arg12[%c0_135, %c1, %c0_136, %c0_137], %507 {strides = array<i32>} : memref<1x2x7x16xf32, #tpu.memory_space<vmem>>, vector<1x1x7x16xf32>,
    return
  }
  func.func @transform_0(%arg0: i32) -> (i32, i32, i32) {
    %c0_i32 = arith.constant 0 : i32
    %c0_i32_0 = arith.constant 0 : i32
    %c0_i32_1 = arith.constant 0 : i32
    return %arg0, %c0_i32, %c0_i32_0 : i32, i32, i32
  }
  func.func @transform_1(%arg0: i32) -> (i32, i32) {
    %c0_i32 = arith.constant 0 : i32
    %c0_i32_0 = arith.constant 0 : i32
    %c0_i32_1 = arith.constant 0 : i32
    return %c0_i32, %c0_i32_0 : i32, i32
  }
  func.func @transform_2(%arg0: i32) -> (i32, i32) {
    %c0_i32 = arith.constant 0 : i32
    %c0_i32_0 = arith.constant 0 : i32
    %c0_i32_1 = arith.constant 0 : i32
    return %c0_i32, %c0_i32_0 : i32, i32
  }
  func.func @transform_3(%arg0: i32) -> (i32, i32) {
    %c0_i32 = arith.constant 0 : i32
    %c0_i32_0 = arith.constant 0 : i32
    %c0_i32_1 = arith.constant 0 : i32
    return %c0_i32, %c0_i32_0 : i32, i32
  }
  func.func @transform_4(%arg0: i32) -> (i32, i32) {
    %c0_i32 = arith.constant 0 : i32
    %c0_i32_0 = arith.constant 0 : i32
    %c0_i32_1 = arith.constant 0 : i32
    return %c0_i32, %c0_i32_0 : i32, i32
  }
  func.func @transform_5(%arg0: i32) -> (i32, i32) {
    %c0_i32 = arith.constant 0 : i32
    %c0_i32_0 = arith.constant 0 : i32
    %c0_i32_1 = arith.constant 0 : i32
    return %c0_i32, %c0_i32_0 : i32, i32
  }
  func.func @transform_6(%arg0: i32) -> (i32, i32) {
    %c0_i32 = arith.constant 0 : i32
    %c0_i32_0 = arith.constant 0 : i32
    %c0_i32_1 = arith.constant 0 : i32
    return %c0_i32, %c0_i32_0 : i32, i32
  }
  func.func @transform_7(%arg0: i32) -> (i32, i32) {
    %c0_i32 = arith.constant 0 : i32
    %c0_i32_0 = arith.constant 0 : i32
    %c0_i32_1 = arith.constant 0 : i32
    return %c0_i32, %c0_i32_0 : i32, i32
  }
  func.func @transform_8(%arg0: i32) -> (i32, i32) {
    %c0_i32 = arith.constant 0 : i32
    %c0_i32_0 = arith.constant 0 : i32
    %c0_i32_1 = arith.constant 0 : i32
    return %c0_i32, %c0_i32_0 : i32, i32
  }
  func.func @transform_9(%arg0: i32) -> (i32, i32) {
    %c0_i32 = arith.constant 0 : i32
    %c0_i32_0 = arith.constant 0 : i32
    %c0_i32_1 = arith.constant 0 : i32
    return %c0_i32, %c0_i32_0 : i32, i32
  }
  func.func @transform_10(%arg0: i32) -> (i32, i32) {
    %c0_i32 = arith.constant 0 : i32
    %c0_i32_0 = arith.constant 0 : i32
    %c0_i32_1 = arith.constant 0 : i32
    return %c0_i32, %c0_i32_0 : i32, i32
  }
  func.func @transform_11(%arg0: i32) -> (i32, i32, i32, i32) {
    %c0_i32 = arith.constant 0 : i32
    %c0_i32_0 = arith.constant 0 : i32
    %c0_i32_1 = arith.constant 0 : i32
    %c0_i32_2 = arith.constant 0 : i32
    return %arg0, %c0_i32, %c0_i32_0, %c0_i32_1 : i32, i32, i32, i32
  }
}

</mosaic_0001>

<llo_original>
// kernel: _lambda_.2
$region0: #{_lambda_.2}
  #allocation0 [shape = 'u32[]', space=smem, size = 0x4, offset = 0x4, fixed_abs, tag = 'smem constant byte address 0x4 - core index']
  #allocation1 [shape = 'u32[72,128]{1,0:T(1,128)}', space=vmem, size = 0x9000, scoped, tag = 'internal scratch']
  %s0 = inlined_call_operand.vmem [shape: bf16[2,171,128], index: 0, kind: input, shape index: {}]
  %s1 = inlined_call_operand.vmem [shape: bf16[128,32], index: 1, kind: input, shape index: {}]
  %s2 = inlined_call_operand.vmem [shape: f32[3,32], index: 2, kind: input, shape index: {}]
  %s3 = inlined_call_operand.vmem [shape: bf16[2,2,171,16], index: 3, kind: output, shape index: {}]
  %s4 = sld [smem:[#allocation0]]
  $region45: #{_lambda_.2} parent=0
    _
  %s6 = ssub.s32 1, %s4
  %s7 = scalar_select 0, %s6, %s4
  loop: start=0, step=1, limit=4
  $region2: #{_lambda_.2} parent=0 // loop_pre_header
    _
  $region3: #{_lambda_.2} parent=0 // loop_header
    %s9 = sphi 0, %s13
    %p10 = scmp.ge.s32.totalorder %s9, 4
    %s19 = sphi 0, %s21
    %s22 = sphi 0, %s19
    %s23 = sphi 0, %s22
    %s39 = sphi 0, %s23
    %s43 = sphi 0, %s43
    %s45 = sphi 0, %s43
    %s46 = sphi 0, %s45
    %s60 = sphi 0, %s46
    %s64 = sphi 0, %s64
    %s66 = sphi 0, %s64
    %s67 = sphi 0, %s66
    %s81 = sphi 0, %s67
    %s87 = sphi 0, %s89
    %s90 = sphi 0, %s87
    %s91 = sphi 0, %s90
    %s107 = sphi 0, %s91
  $region4: #{_lambda_.2} parent=0 // loop_header_branch
    %12 = sbr.rel (%p10) target = $region8
  $region5: #{_lambda_.2} parent=0 // loop_body
    %s14 = ssub.s32 %s9, 1
    %s15 = ssub.s32 %s9, 2
    %s16 = sadd.s32 %s9, 1
    %s17 = ssub.s32 %s9, %s16
    %p18 = scmp.eq.s32.totalorder %s17, 0
    %s20 = sadd.s32 %s19, 1
    %s21 = scalar_select %p18, %s19, %s20
    %p24 = pneg %p18
    %p25 = scmp.eq.s32.totalorder %s9, 1
    %p26 = por %p24, %p25
    %p27 = scmp.ne.s32.totalorder %s19, %s22
    %p28 = scmp.eq.s32.totalorder %s9, 0
    %p29 = por %p27, %p28
    %p30 = scmp.ne.s32.totalorder %s19, %s22
    %p31 = scmp.eq.s32.totalorder %s14, 1
    %p32 = por %p30, %p31
    %p33 = scmp.ne.s32.totalorder %s22, %s23
    %p34 = scmp.eq.s32.totalorder %s14, 0
    %p35 = por %p33, %p34
    %p36 = scmp.ne.s32.totalorder %s22, %s23
    %p37 = scmp.eq.s32.totalorder %s15, 1
    %p38 = por %p36, %p37
    %p40 = scmp.ne.s32.totalorder %s23, %s39
    %p41 = scmp.eq.s32.totalorder %s15, 0
    %p42 = por %p40, %p41
    %s44 = sadd.s32 %s43, 1
    %p47 = scmp.eq.s32.totalorder %s9, 1
    %p48 = scmp.ne.s32.totalorder %s43, %s45
    %p49 = scmp.eq.s32.totalorder %s9, 0
    %p50 = por %p48, %p49
    %p51 = scmp.ne.s32.totalorder %s43, %s45
    %p52 = scmp.eq.s32.totalorder %s14, 1
    %p53 = por %p51, %p52
    %p54 = scmp.ne.s32.totalorder %s45, %s46
    %p55 = scmp.eq.s32.totalorder %s14, 0
    %p56 = por %p54, %p55
    %p57 = scmp.ne.s32.totalorder %s45, %s46
    %p58 = scmp.eq.s32.totalorder %s15, 1
    %p59 = por %p57, %p58
    %p61 = scmp.ne.s32.totalorder %s46, %s60
    %p62 = scmp.eq.s32.totalorder %s15, 0
    %p63 = por %p61, %p62
    %s65 = sadd.s32 %s64, 1
    %p68 = scmp.eq.s32.totalorder %s9, 1
    %p69 = scmp.ne.s32.totalorder %s64, %s66
    %p70 = scmp.eq.s32.totalorder %s9, 0
    %p71 = por %p69, %p70
    %p72 = scmp.ne.s32.totalorder %s64, %s66
    %p73 = scmp.eq.s32.totalorder %s14, 1
    %p74 = por %p72, %p73
    %p75 = scmp.ne.s32.totalorder %s66, %s67
    %p76 = scmp.eq.s32.totalorder %s14, 0
    %p77 = por %p75, %p76
    %p78 = scmp.ne.s32.totalorder %s66, %s67
    %p79 = scmp.eq.s32.totalorder %s15, 1
    %p80 = por %p78, %p79
    %p82 = scmp.ne.s32.totalorder %s67, %s81
    %p83 = scmp.eq.s32.totalorder %s15, 0
    %p84 = por %p82, %p83
    %s85 = ssub.s32 %s9, %s16
    %p86 = scmp.eq.s32.totalorder %s85, 0
    %s88 = sadd.s32 %s87, 1
    %s89 = scalar_select %p86, %s87, %s88
    %p92 = pneg %p86
    %p93 = scmp.eq.s32.totalorder %s9, 1
    %p94 = por %p92, %p93
    %p95 = scmp.ne.s32.totalorder %s87, %s90
    %p96 = scmp.eq.s32.totalorder %s9, 0
    %p97 = por %p95, %p96
    %p98 = scmp.ne.s32.totalorder %s87, %s90
    %p99 = scmp.eq.s32.totalorder %s14, 1
    %p100 = por %p98, %p99
    %p101 = scmp.ne.s32.totalorder %s90, %s91
    %p102 = scmp.eq.s32.totalorder %s14, 0
    %p103 = por %p101, %p102
    %p104 = scmp.ne.s32.totalorder %s90, %s91
    %p105 = scmp.eq.s32.totalorder %s15, 1
    %p106 = por %p104, %p105
    %p108 = scmp.ne.s32.totalorder %s91, %s107
    %p109 = scmp.eq.s32.totalorder %s15, 0
    %p110 = por %p108, %p109
    %p111 = scmp.le.s32.totalorder 1, %s9
    %p112 = scmp.lt.s32.totalorder %s9, 3
    %p113 = pnand %p111, %p112
    %p114 = pneg %p113
    // Predicated region
    $region9: #{_lambda_.2} parent=5 // pred_check
      _
    $region10: #{_lambda_.2} parent=5 // pred_check_branch
      %116 = sbr.rel (%p113) target = $region12
    $region11: #{_lambda_.2} parent=5 // pred_region
      %s117 = ssub.s32 %s9, 1
      // Predicated region
      $region13: #{_lambda_.2} parent=11 // pred_check
        %p118 = pneg %p56
      $region14: #{_lambda_.2} parent=11 // pred_check_branch
        %120 = sbr.rel (%p118) target = $region16
      $region15: #{_lambda_.2} parent=11 // pred_region
        _
      $region16: #{_lambda_.2} parent=11 // pred_fallthru
        _
      // Predicated region
      $region17: #{_lambda_.2} parent=11 // pred_check
        %p121 = pneg %p77
      $region18: #{_lambda_.2} parent=11 // pred_check_branch
        %123 = sbr.rel (%p121) target = $region20
      $region19: #{_lambda_.2} parent=11 // pred_region
        _
      $region20: #{_lambda_.2} parent=11 // pred_fallthru
        _
    $region12: #{_lambda_.2} parent=5 // pred_fallthru
      _
    %p124 = scmp.lt.s32.totalorder %s9, 2
    // Predicated region
    $region21: #{_lambda_.2} parent=5 // pred_check
      %p125 = pneg %p124
    $region22: #{_lambda_.2} parent=5 // pred_check_branch
      %127 = sbr.rel (%p125) target = $region24
    $region23: #{_lambda_.2} parent=5 // pred_region
      // Predicated region
      $region25: #{_lambda_.2} parent=23 // pred_check
        %p128 = pneg %p29
      $region26: #{_lambda_.2} parent=23 // pred_check_branch
        %130 = sbr.rel (%p128) target = $region28
      $region27: #{_lambda_.2} parent=23 // pred_region
        %p131 = scmp.lt.s32.totalorder %s9, 1
        %s132 = scalar_select %p131, %s9, 1
        %s133 = smul.addr %s132, 22
        %s134 = smul.addr %s133, 4
        %s135 = scalar_lea.vmem %s0, %s134
      $region28: #{_lambda_.2} parent=23 // pred_fallthru
        _
    $region24: #{_lambda_.2} parent=5 // pred_fallthru
      _
    %p136 = scmp.le.s32.totalorder 1, %s9
    %p137 = scmp.lt.s32.totalorder %s9, 3
    %p138 = pnand %p136, %p137
    %p139 = pneg %p138
    // Predicated region
    $region29: #{_lambda_.2} parent=5 // pred_check
      _
    $region30: #{_lambda_.2} parent=5 // pred_check_branch
      %141 = sbr.rel (%p138) target = $region32
    $region31: #{_lambda_.2} parent=5 // pred_region
      %s142 = ssub.s32 %s9, 1
      %p143 = scmp.lt.s32.totalorder %s14, 1
      %s144 = scalar_select %p143, %s14, 1
      %s145 = smul.addr %s144, 22
      %s146 = smul.addr %s145, 4
      %s147 = scalar_lea.vmem %s0, %s146
      %p148 = pneg %p35
      %p149 = pneg %p32
      %p150 = pneg %p56
      %p151 = pneg %p53
      %p152 = pneg %p77
      %p153 = pneg %p74
      %p154 = pneg %p103
      %p155 = pneg %p100
      %p156 = scmp.lt.s32.totalorder %s14, 1
      %s157 = scalar_select %p156, %s14, 1
      %s158 = smul.addr %s157, 44
      %s159 = smul.addr %s158, 4
      %s160 = scalar_lea.vmem %s3, %s159
      %p161 = scmp.lt.s32.totalorder %s14, 1
      %s162 = scalar_select %p161, %s14, 1
      %s163 = smul.addr %s162, 22
      %s164 = smul.addr %s163, 4
      %s165 = scalar_lea.vmem %s0, %s164
      %p166 = scmp.lt.s32.totalorder %s14, 1
      %s167 = scalar_select %p166, %s14, 1
      %s168 = smul.addr %s167, 44
      %s169 = smul.addr %s168, 4
      %s170 = scalar_lea.vmem %s3, %s169
      %v171 = vld [vmem:[%s2] sm:$0x7]
      %v172 = vld [vmem:[%s165] sm:$0xf]
      %v173 = vld [vmem:[%s165 + $0x4] sm:$0xf]
      %v174 = vld [vmem:[%s165 + $0x8] sm:$0xf]
      %v175 = vld [vmem:[%s165 + $0xc] sm:$0xf]
      %v176 = vld [vmem:[%s165 + $0x10] sm:$0xf]
      %v177 = vld [vmem:[%s165 + $0x14] sm:$0xf]
      %v178 = vld [vmem:[%s165 + $0x18] sm:$0xf]
      %v179 = vld [vmem:[%s165 + $0x1c] sm:$0xf]
      %v180 = vld [vmem:[%s165 + $0x20] sm:$0xf]
      %v181 = vld [vmem:[%s165 + $0x24] sm:$0xf]
      %v182 = vld [vmem:[%s165 + $0x28] sm:$0xf]
      %v183 = vld [vmem:[%s165 + $0x2c] sm:$0xf]
      %v184 = vld [vmem:[%s165 + $0x30] sm:$0xf]
      %v185 = vld [vmem:[%s165 + $0x34] sm:$0xf]
      %v186 = vld [vmem:[%s165 + $0x38] sm:$0xf]
      %v187 = vld [vmem:[%s165 + $0x3c] sm:$0xf]
      %v188 = vld [vmem:[%s165 + $0x40] sm:$0xf]
      %v189 = vld [vmem:[%s165 + $0x44] sm:$0xf]
      %v190 = vld [vmem:[%s165 + $0x48] sm:$0xf]
      %v191 = vld [vmem:[%s165 + $0x4c] sm:$0xf]
      %v192 = vld [vmem:[%s165 + $0x50] sm:$0xf]
      %v193 = vld [vmem:[%s165 + $0x54] sm:$0x3]
      %v194 = vld [vmem:[%s1] sm:$0xf]
      %v195 = vld [vmem:[%s1 + $0x4] sm:$0xf]
      %v196 = vld [vmem:[%s1 + $0x8] sm:$0xf]
      %v197 = vld [vmem:[%s1 + $0xc] sm:$0xf]
      %v198 = vld [vmem:[%s1 + $0x10] sm:$0xf]
      %v199 = vld [vmem:[%s1 + $0x14] sm:$0xf]
      %v200 = vld [vmem:[%s1 + $0x18] sm:$0xf]
      %v201 = vld [vmem:[%s1 + $0x1c] sm:$0xf]
      %v202 = vld [vmem:[%s1 + $0x20] sm:$0xf]
      %v203 = vld [vmem:[%s1 + $0x24] sm:$0xf]
      %v204 = vld [vmem:[%s1 + $0x28] sm:$0xf]
      %v205 = vld [vmem:[%s1 + $0x2c] sm:$0xf]
      %v206 = vld [vmem:[%s1 + $0x30] sm:$0xf]
      %v207 = vld [vmem:[%s1 + $0x34] sm:$0xf]
      %v208 = vld [vmem:[%s1 + $0x38] sm:$0xf]
      %v209 = vld [vmem:[%s1 + $0x3c] sm:$0xf]
      %v210 = vperm.slane %v171, 0
      %v233 = vunpack.c.l.b16 %v172
      %v234 = vunpack.c.l.b16 %v173
      %v235 = vunpack.c.l.b16 %v174
      %v236 = vunpack.c.l.b16 %v175
      %v237 = vunpack.c.l.b16 %v176
      %v238 = vunpack.c.l.b16 %v177
      %v239 = vunpack.c.l.b16 %v178
      %v240 = vunpack.c.l.b16 %v179
      %v241 = vunpack.c.l.b16 %v180
      %v242 = vunpack.c.l.b16 %v181
      %v243 = vunpack.c.l.b16 %v182
      %v244 = vunpack.c.l.b16 %v183
      %v245 = vunpack.c.l.b16 %v184
      %v246 = vunpack.c.l.b16 %v185
      %v247 = vunpack.c.l.b16 %v186
      %v248 = vunpack.c.l.b16 %v187
      %v249 = vunpack.c.l.b16 %v188
      %v250 = vunpack.c.l.b16 %v189
      %v251 = vunpack.c.l.b16 %v190
      %v252 = vunpack.c.l.b16 %v191
      %v253 = vunpack.c.l.b16 %v192
      %v254 = vunpack.c.l.b16 %v193
      %v255 = vpack.c.b16 %v234, %v233
      %v256 = vpack.c.b16 %v236, %v235
      %v257 = vpack.c.b16 %v238, %v237
      %v258 = vpack.c.b16 %v240, %v239
      %v259 = vpack.c.b16 %v242, %v241
      %v260 = vpack.c.b16 %v244, %v243
      %v261 = vpack.c.b16 %v246, %v245
      %v262 = vpack.c.b16 %v248, %v247
      %v263 = vpack.c.b16 %v250, %v249
      %v264 = vpack.c.b16 %v252, %v251
      %v265 = vpack.c.b16 %v254, %v253
      %v293 = vunpack.c.l.b16 %v194
      %v294 = vunpack.c.l.b16 %v195
      %v295 = vunpack.c.l.b16 %v196
      %v296 = vunpack.c.l.b16 %v197
      %v297 = vunpack.c.l.b16 %v198
      %v298 = vunpack.c.l.b16 %v199
      %v299 = vunpack.c.l.b16 %v200
      %v300 = vunpack.c.l.b16 %v201
      %v301 = vunpack.c.l.b16 %v202
      %v302 = vunpack.c.l.b16 %v203
      %v303 = vunpack.c.l.b16 %v204
      %v304 = vunpack.c.l.b16 %v205
      %v305 = vunpack.c.l.b16 %v206
      %v306 = vunpack.c.l.b16 %v207
      %v307 = vunpack.c.l.b16 %v208
      %v308 = vunpack.c.l.b16 %v209
      %v309 = vpack.c.b16 %v294, %v293
      %v310 = vpack.c.b16 %v296, %v295
      %v311 = vpack.c.b16 %v298, %v297
      %v312 = vpack.c.b16 %v300, %v299
      %v313 = vpack.c.b16 %v302, %v301
      %v314 = vpack.c.b16 %v304, %v303
      %v315 = vpack.c.b16 %v306, %v305
      %v316 = vpack.c.b16 %v308, %v307
      %325 = vmatpush.bf16.msra.mxu0 %v316
      %326 = vmatpush.bf16.msra.mxu0 %v315
      %327 = vmatpush.bf16.msra.mxu0 %v314
      %328 = vmatpush.bf16.msra.mxu0 %v313
      %329 = vmatpush.bf16.msra.mxu0 %v312
      %330 = vmatpush.bf16.msra.mxu0 %v311
      %331 = vmatpush.bf16.msra.mxu0 %v310
      %332 = vmatpush.bf16.msra.mxu0 %v309
      %333 = vmatmul.bf16.gmra.mxu0 %v255
      %v334 = vpop.f32.mrf.mxu0
      %v335 = vadd.f32 %v210, %v334
      %v336 = vpop.f32.mrf.mxu0
      %v337 = vadd.f32 %v210, %v336
      %338 = vmatmul.bf16.gmra.mxu0 %v256
      %v339 = vpop.f32.mrf.mxu0
      %v340 = vadd.f32 %v210, %v339
      %v341 = vpop.f32.mrf.mxu0
      %v342 = vadd.f32 %v210, %v341
      %343 = vmatmul.bf16.gmra.mxu0 %v257
      %v344 = vpop.f32.mrf.mxu0
      %v345 = vadd.f32 %v210, %v344
      %v346 = vpop.f32.mrf.mxu0
      %v347 = vadd.f32 %v210, %v346
      %348 = vmatmul.bf16.gmra.mxu0 %v258
      %v349 = vpop.f32.mrf.mxu0
      %v350 = vadd.f32 %v210, %v349
      %v351 = vpop.f32.mrf.mxu0
      %v352 = vadd.f32 %v210, %v351
      %353 = vmatmul.bf16.gmra.mxu0 %v259
      %v354 = vpop.f32.mrf.mxu0
      %v355 = vadd.f32 %v210, %v354
      %v356 = vpop.f32.mrf.mxu0
      %v357 = vadd.f32 %v210, %v356
      %358 = vmatmul.bf16.gmra.mxu0 %v260
      %v359 = vpop.f32.mrf.mxu0
      %v360 = vadd.f32 %v210, %v359
      %v361 = vpop.f32.mrf.mxu0
      %v362 = vadd.f32 %v210, %v361
      %363 = vmatmul.bf16.gmra.mxu0 %v261
      %v364 = vpop.f32.mrf.mxu0
      %v365 = vadd.f32 %v210, %v364
      %v366 = vpop.f32.mrf.mxu0
      %v367 = vadd.f32 %v210, %v366
      %368 = vmatmul.bf16.gmra.mxu0 %v262
      %v369 = vpop.f32.mrf.mxu0
      %v370 = vadd.f32 %v210, %v369
      %v371 = vpop.f32.mrf.mxu0
      %v372 = vadd.f32 %v210, %v371
      %373 = vmatmul.bf16.gmra.mxu0 %v263
      %v374 = vpop.f32.mrf.mxu0
      %v375 = vadd.f32 %v210, %v374
      %v376 = vpop.f32.mrf.mxu0
      %v377 = vadd.f32 %v210, %v376
      %378 = vmatmul.bf16.gmra.mxu0 %v264
      %v379 = vpop.f32.mrf.mxu0
      %v380 = vadd.f32 %v210, %v379
      %v381 = vpop.f32.mrf.mxu0
      %v382 = vadd.f32 %v210, %v381
      %383 = vmatmul.bf16.gmra.mxu0 %v265
      %v384 = vpop.f32.mrf.mxu0
      %v385 = vadd.f32 %v210, %v384
      %v386 = vpop.f32.mrf.mxu0
      %v387 = vadd.f32 %v210, %v386
      %388 = vdwg.mxu0
      %vm389 = vcmask 261120
      %v390 = vsel %vm389, %v335, 0.0
      %v391 = vsel %vm389, %v337, 0.0
      %v392 = vadd.f32 %v390, %v391
      %v393 = vsel %vm389, %v340, 0.0
      %v394 = vadd.f32 %v392, %v393
      %v395 = vsel %vm389, %v342, 0.0
      %v396 = vadd.f32 %v394, %v395
      %v397 = vsel %vm389, %v345, 0.0
      %v398 = vadd.f32 %v396, %v397
      %v399 = vsel %vm389, %v347, 0.0
      %v400 = vadd.f32 %v398, %v399
      %v401 = vsel %vm389, %v350, 0.0
      %v402 = vadd.f32 %v400, %v401
      %v403 = vsel %vm389, %v352, 0.0
      %v404 = vadd.f32 %v402, %v403
      %v405 = vsel %vm389, %v355, 0.0
      %v406 = vadd.f32 %v404, %v405
      %v407 = vsel %vm389, %v357, 0.0
      %v408 = vadd.f32 %v406, %v407
      %v409 = vsel %vm389, %v360, 0.0
      %v410 = vadd.f32 %v408, %v409
      %v411 = vsel %vm389, %v362, 0.0
      %v412 = vadd.f32 %v410, %v411
      %v413 = vsel %vm389, %v365, 0.0
      %v414 = vadd.f32 %v412, %v413
      %v415 = vsel %vm389, %v367, 0.0
      %v416 = vadd.f32 %v414, %v415
      %v417 = vsel %vm389, %v370, 0.0
      %v418 = vadd.f32 %v416, %v417
      %v419 = vsel %vm389, %v372, 0.0
      %v420 = vadd.f32 %v418, %v419
      %v421 = vsel %vm389, %v375, 0.0
      %v422 = vadd.f32 %v420, %v421
      %v423 = vsel %vm389, %v377, 0.0
      %v424 = vadd.f32 %v422, %v423
      %v425 = vsel %vm389, %v380, 0.0
      %v426 = vadd.f32 %v424, %v425
      %v427 = vsel %vm389, %v382, 0.0
      %v428 = vadd.f32 %v426, %v427
      %v429 = vsel %vm389, %v385, 0.0
      %v430 = vadd.f32 %v428, %v429
      %vm431 = vcmask 256000
      %v432 = vsel %vm431, %v387, 0.0
      %v433 = vadd.f32 %v430, %v432
      %v434 = vrot.slane %v433, 4
      %v435 = vadd.f32 %v433, %v434
      %v436 = vrot.slane %v435, 2
      %v437 = vadd.f32 %v435, %v436
      %v438 = vrot.slane %v437, 1
      %v439 = vadd.f32 %v437, %v438
      %v440 = vmul.f32 %v335, %v335
      %v441 = vmul.f32 %v337, %v337
      %v442 = vmul.f32 %v340, %v340
      %v443 = vmul.f32 %v342, %v342
      %v444 = vmul.f32 %v345, %v345
      %v445 = vmul.f32 %v347, %v347
      %v446 = vmul.f32 %v350, %v350
      %v447 = vmul.f32 %v352, %v352
      %v448 = vmul.f32 %v355, %v355
      %v449 = vmul.f32 %v357, %v357
      %v450 = vmul.f32 %v360, %v360
      %v451 = vmul.f32 %v362, %v362
      %v452 = vmul.f32 %v365, %v365
      %v453 = vmul.f32 %v367, %v367
      %v454 = vmul.f32 %v370, %v370
      %v455 = vmul.f32 %v372, %v372
      %v456 = vmul.f32 %v375, %v375
      %v457 = vmul.f32 %v377, %v377
      %v458 = vmul.f32 %v380, %v380
      %v459 = vmul.f32 %v382, %v382
      %v460 = vmul.f32 %v385, %v385
      %v461 = vmul.f32 %v387, %v387
      %v462 = vsel %vm389, %v440, 0.0
      %v463 = vsel %vm389, %v441, 0.0
      %v464 = vadd.f32 %v462, %v463
      %v465 = vsel %vm389, %v442, 0.0
      %v466 = vadd.f32 %v464, %v465
      %v467 = vsel %vm389, %v443, 0.0
      %v468 = vadd.f32 %v466, %v467
      %v469 = vsel %vm389, %v444, 0.0
      %v470 = vadd.f32 %v468, %v469
      %v471 = vsel %vm389, %v445, 0.0
      %v472 = vadd.f32 %v470, %v471
      %v473 = vsel %vm389, %v446, 0.0
      %v474 = vadd.f32 %v472, %v473
      %v475 = vsel %vm389, %v447, 0.0
      %v476 = vadd.f32 %v474, %v475
      %v477 = vsel %vm389, %v448, 0.0
      %v478 = vadd.f32 %v476, %v477
      %v479 = vsel %vm389, %v449, 0.0
      %v480 = vadd.f32 %v478, %v479
      %v481 = vsel %vm389, %v450, 0.0
      %v482 = vadd.f32 %v480, %v481
      %v483 = vsel %vm389, %v451, 0.0
      %v484 = vadd.f32 %v482, %v483
      %v485 = vsel %vm389, %v452, 0.0
      %v486 = vadd.f32 %v484, %v485
      %v487 = vsel %vm389, %v453, 0.0
      %v488 = vadd.f32 %v486, %v487
      %v489 = vsel %vm389, %v454, 0.0
      %v490 = vadd.f32 %v488, %v489
      %v491 = vsel %vm389, %v455, 0.0
      %v492 = vadd.f32 %v490, %v491
      %v493 = vsel %vm389, %v456, 0.0
      %v494 = vadd.f32 %v492, %v493
      %v495 = vsel %vm389, %v457, 0.0
      %v496 = vadd.f32 %v494, %v495
      %v497 = vsel %vm389, %v458, 0.0
      %v498 = vadd.f32 %v496, %v497
      %v499 = vsel %vm389, %v459, 0.0
      %v500 = vadd.f32 %v498, %v499
      %v501 = vsel %vm389, %v460, 0.0
      %v502 = vadd.f32 %v500, %v501
      %v503 = vsel %vm431, %v461, 0.0
      %v504 = vadd.f32 %v502, %v503
      %v505 = vrot.slane %v504, 4
      %v506 = vadd.f32 %v504, %v505
      %v507 = vrot.slane %v506, 2
      %v508 = vadd.f32 %v506, %v507
      %v509 = vrot.slane %v508, 1
      %v510 = vadd.f32 %v508, %v509
      %512 = vrot.lane.b32.xlu0 %v439, 112
      %v513 = vpop.permute.xlu0 %512
      %v515 = vadd.f32 %v439, %v513
      %v516 = vmul.f32 %v515, 0.0029239766
      %518 = vrot.lane.b32.xlu0 %v510, 112
      %v519 = vpop.permute.xlu0 %518
      %v521 = vadd.f32 %v510, %v519
      %v522 = vmul.f32 %v521, 0.0029239766
      %v523 = vmul.f32 %v516, %v516
      %v524 = vsub.f32 %v522, %v523
      %v525 = vmax.f32 %v524, 0.0
      %v526 = vadd.f32 %v525, 1e-05
      %v527 = vrsqrt.pop %v526
      %v528 = vmul.f32 %v527, %v526
      %v529 = vmul.f32 %v528, %v527
      %v530 = vmul.f32 0.5, %v529
      %v531 = vsub.f32 1.5, %v530
      %v532 = vmul.f32 %v527, %v531
      %vm533 = vweird.f32 %v526
      %vm534 = vweird.f32 %v527
      %vm535 = vmor %vm533, %vm534
      %v536 = vsel %vm535, %v527, %v532
      %v537 = vperm.slane %v516, 0
      %v538 = vsub.f32 %v335, %v537
      %v539 = vsub.f32 %v337, %v537
      %v540 = vsub.f32 %v340, %v537
      %v541 = vsub.f32 %v342, %v537
      %v542 = vsub.f32 %v345, %v537
      %v543 = vsub.f32 %v347, %v537
      %v544 = vsub.f32 %v350, %v537
      %v545 = vsub.f32 %v352, %v537
      %v546 = vsub.f32 %v355, %v537
      %v547 = vsub.f32 %v357, %v537
      %v548 = vsub.f32 %v360, %v537
      %v549 = vsub.f32 %v362, %v537
      %v550 = vsub.f32 %v365, %v537
      %v551 = vsub.f32 %v367, %v537
      %v552 = vsub.f32 %v370, %v537
      %v553 = vsub.f32 %v372, %v537
      %v554 = vsub.f32 %v375, %v537
      %v555 = vsub.f32 %v377, %v537
      %v556 = vsub.f32 %v380, %v537
      %v557 = vsub.f32 %v382, %v537
      %v558 = vsub.f32 %v385, %v537
      %v559 = vsub.f32 %v387, %v537
      %v560 = vperm.slane %v536, 0
      %v561 = vmul.f32 %v538, %v560
      %v562 = vmul.f32 %v539, %v560
      %v563 = vmul.f32 %v540, %v560
      %v564 = vmul.f32 %v541, %v560
      %v565 = vmul.f32 %v542, %v560
      %v566 = vmul.f32 %v543, %v560
      %v567 = vmul.f32 %v544, %v560
      %v568 = vmul.f32 %v545, %v560
      %v569 = vmul.f32 %v546, %v560
      %v570 = vmul.f32 %v547, %v560
      %v571 = vmul.f32 %v548, %v560
      %v572 = vmul.f32 %v549, %v560
      %v573 = vmul.f32 %v550, %v560
      %v574 = vmul.f32 %v551, %v560
      %v575 = vmul.f32 %v552, %v560
      %v576 = vmul.f32 %v553, %v560
      %v577 = vmul.f32 %v554, %v560
      %v578 = vmul.f32 %v555, %v560
      %v579 = vmul.f32 %v556, %v560
      %v580 = vmul.f32 %v557, %v560
      %v581 = vmul.f32 %v558, %v560
      %v582 = vmul.f32 %v559, %v560
      %v583 = vperm.slane %v171, 1
      %v584 = vmul.f32 %v561, %v583
      %v585 = vmul.f32 %v562, %v583
      %v586 = vmul.f32 %v563, %v583
      %v587 = vmul.f32 %v564, %v583
      %v588 = vmul.f32 %v565, %v583
      %v589 = vmul.f32 %v566, %v583
      %v590 = vmul.f32 %v567, %v583
      %v591 = vmul.f32 %v568, %v583
      %v592 = vmul.f32 %v569, %v583
      %v593 = vmul.f32 %v570, %v583
      %v594 = vmul.f32 %v571, %v583
      %v595 = vmul.f32 %v572, %v583
      %v596 = vmul.f32 %v573, %v583
      %v597 = vmul.f32 %v574, %v583
      %v598 = vmul.f32 %v575, %v583
      %v599 = vmul.f32 %v576, %v583
      %v600 = vmul.f32 %v577, %v583
      %v601 = vmul.f32 %v578, %v583
      %v602 = vmul.f32 %v579, %v583
      %v603 = vmul.f32 %v580, %v583
      %v604 = vmul.f32 %v581, %v583
      %v605 = vmul.f32 %v582, %v583
      %v606 = vperm.slane %v171, 2
      %v607 = vadd.f32 %v584, %v606
      %v608 = vadd.f32 %v585, %v606
      %v609 = vadd.f32 %v586, %v606
      %v610 = vadd.f32 %v587, %v606
      %v611 = vadd.f32 %v588, %v606
      %v612 = vadd.f32 %v589, %v606
      %v613 = vadd.f32 %v590, %v606
      %v614 = vadd.f32 %v591, %v606
      %v615 = vadd.f32 %v592, %v606
      %v616 = vadd.f32 %v593, %v606
      %v617 = vadd.f32 %v594, %v606
      %v618 = vadd.f32 %v595, %v606
      %v619 = vadd.f32 %v596, %v606
      %v620 = vadd.f32 %v597, %v606
      %v621 = vadd.f32 %v598, %v606
      %v622 = vadd.f32 %v599, %v606
      %v623 = vadd.f32 %v600, %v606
      %v624 = vadd.f32 %v601, %v606
      %v625 = vadd.f32 %v602, %v606
      %v626 = vadd.f32 %v603, %v606
      %v627 = vadd.f32 %v604, %v606
      %v628 = vadd.f32 %v605, %v606
      %630 = vrot.lane.b32.xlu0 %v537, 16
      %v631 = vpop.permute.xlu0 %630
      %v633 = vsub.f32 %v335, %v631
      %v634 = vsub.f32 %v337, %v631
      %v635 = vsub.f32 %v340, %v631
      %v636 = vsub.f32 %v342, %v631
      %v637 = vsub.f32 %v345, %v631
      %v638 = vsub.f32 %v347, %v631
      %v639 = vsub.f32 %v350, %v631
      %v640 = vsub.f32 %v352, %v631
      %v641 = vsub.f32 %v355, %v631
      %v642 = vsub.f32 %v357, %v631
      %v643 = vsub.f32 %v360, %v631
      %v644 = vsub.f32 %v362, %v631
      %v645 = vsub.f32 %v365, %v631
      %v646 = vsub.f32 %v367, %v631
      %v647 = vsub.f32 %v370, %v631
      %v648 = vsub.f32 %v372, %v631
      %v649 = vsub.f32 %v375, %v631
      %v650 = vsub.f32 %v377, %v631
      %v651 = vsub.f32 %v380, %v631
      %v652 = vsub.f32 %v382, %v631
      %v653 = vsub.f32 %v385, %v631
      %v654 = vsub.f32 %v387, %v631
      %656 = vrot.lane.b32.xlu0 %v560, 16
      %v657 = vpop.permute.xlu0 %656
      %v659 = vmul.f32 %v633, %v657
      %v660 = vmul.f32 %v634, %v657
      %v661 = vmul.f32 %v635, %v657
      %v662 = vmul.f32 %v636, %v657
      %v663 = vmul.f32 %v637, %v657
      %v664 = vmul.f32 %v638, %v657
      %v665 = vmul.f32 %v639, %v657
      %v666 = vmul.f32 %v640, %v657
      %v667 = vmul.f32 %v641, %v657
      %v668 = vmul.f32 %v642, %v657
      %v669 = vmul.f32 %v643, %v657
      %v670 = vmul.f32 %v644, %v657
      %v671 = vmul.f32 %v645, %v657
      %v672 = vmul.f32 %v646, %v657
      %v673 = vmul.f32 %v647, %v657
      %v674 = vmul.f32 %v648, %v657
      %v675 = vmul.f32 %v649, %v657
      %v676 = vmul.f32 %v650, %v657
      %v677 = vmul.f32 %v651, %v657
      %v678 = vmul.f32 %v652, %v657
      %v679 = vmul.f32 %v653, %v657
      %v680 = vmul.f32 %v654, %v657
      %v681 = vmul.f32 %v659, %v583
      %v682 = vmul.f32 %v660, %v583
      %v683 = vmul.f32 %v661, %v583
      %v684 = vmul.f32 %v662, %v583
      %v685 = vmul.f32 %v663, %v583
      %v686 = vmul.f32 %v664, %v583
      %v687 = vmul.f32 %v665, %v583
      %v688 = vmul.f32 %v666, %v583
      %v689 = vmul.f32 %v667, %v583
      %v690 = vmul.f32 %v668, %v583
      %v691 = vmul.f32 %v669, %v583
      %v692 = vmul.f32 %v670, %v583
      %v693 = vmul.f32 %v671, %v583
      %v694 = vmul.f32 %v672, %v583
      %v695 = vmul.f32 %v673, %v583
      %v696 = vmul.f32 %v674, %v583
      %v697 = vmul.f32 %v675, %v583
      %v698 = vmul.f32 %v676, %v583
      %v699 = vmul.f32 %v677, %v583
      %v700 = vmul.f32 %v678, %v583
      %v701 = vmul.f32 %v679, %v583
      %v702 = vmul.f32 %v680, %v583
      %v703 = vadd.f32 %v681, %v606
      %v704 = vadd.f32 %v682, %v606
      %v705 = vadd.f32 %v683, %v606
      %v706 = vadd.f32 %v684, %v606
      %v707 = vadd.f32 %v685, %v606
      %v708 = vadd.f32 %v686, %v606
      %v709 = vadd.f32 %v687, %v606
      %v710 = vadd.f32 %v688, %v606
      %v711 = vadd.f32 %v689, %v606
      %v712 = vadd.f32 %v690, %v606
      %v713 = vadd.f32 %v691, %v606
      %v714 = vadd.f32 %v692, %v606
      %v715 = vadd.f32 %v693, %v606
      %v716 = vadd.f32 %v694, %v606
      %v717 = vadd.f32 %v695, %v606
      %v718 = vadd.f32 %v696, %v606
      %v719 = vadd.f32 %v697, %v606
      %v720 = vadd.f32 %v698, %v606
      %v721 = vadd.f32 %v699, %v606
      %v722 = vadd.f32 %v700, %v606
      %v723 = vadd.f32 %v701, %v606
      %v724 = vadd.f32 %v702, %v606
      %v725 = vmul.f32 %v607, 0.5
      %v726 = vmul.f32 %v608, 0.5
      %v727 = vmul.f32 %v609, 0.5
      %v728 = vmul.f32 %v610, 0.5
      %v729 = vmul.f32 %v611, 0.5
      %v730 = vmul.f32 %v612, 0.5
      %v731 = vmul.f32 %v613, 0.5
      %v732 = vmul.f32 %v614, 0.5
      %v733 = vmul.f32 %v615, 0.5
      %v734 = vmul.f32 %v616, 0.5
      %v735 = vmul.f32 %v617, 0.5
      %v736 = vmul.f32 %v618, 0.5
      %v737 = vmul.f32 %v619, 0.5
      %v738 = vmul.f32 %v620, 0.5
      %v739 = vmul.f32 %v621, 0.5
      %v740 = vmul.f32 %v622, 0.5
      %v741 = vmul.f32 %v623, 0.5
      %v742 = vmul.f32 %v624, 0.5
      %v743 = vmul.f32 %v625, 0.5
      %v744 = vmul.f32 %v626, 0.5
      %v745 = vmul.f32 %v627, 0.5
      %v746 = vmul.f32 %v628, 0.5
      %v747 = vmul.f32 %v607, 0.70710677
      %v748 = vmul.f32 %v608, 0.70710677
      %v749 = vmul.f32 %v609, 0.70710677
      %v750 = vmul.f32 %v610, 0.70710677
      %v751 = vmul.f32 %v611, 0.70710677
      %v752 = vmul.f32 %v612, 0.70710677
      %v753 = vmul.f32 %v613, 0.70710677
      %v754 = vmul.f32 %v614, 0.70710677
      %v755 = vmul.f32 %v615, 0.70710677
      %v756 = vmul.f32 %v616, 0.70710677
      %v757 = vmul.f32 %v617, 0.70710677
      %v758 = vmul.f32 %v618, 0.70710677
      %v759 = vmul.f32 %v619, 0.70710677
      %v760 = vmul.f32 %v620, 0.70710677
      %v761 = vmul.f32 %v621, 0.70710677
      %v762 = vmul.f32 %v622, 0.70710677
      %v763 = vmul.f32 %v623, 0.70710677
      %v764 = vmul.f32 %v624, 0.70710677
      %v765 = vmul.f32 %v625, 0.70710677
      %v766 = vmul.f32 %v626, 0.70710677
      %v767 = vmul.f32 %v627, 0.70710677
      %v768 = vmul.f32 %v628, 0.70710677
      %v769 = vmul.f32 %v747, %v747
      %v770 = vmin.f32 16.0, %v769
      %v771 = vmul.f32 %v770, 2.1237322e-06
      %v772 = vadd.f32 %v771, 0.00028619796
      %v773 = vmul.f32 %v770, %v772
      %v774 = vadd.f32 %v773, 0.0036580483
      %v775 = vmul.f32 %v770, %v774
      %v776 = vadd.f32 %v775, 0.05243302
      %v777 = vmul.f32 %v770, %v776
      %v778 = vadd.f32 %v777, 0.18741608
      %v779 = vmul.f32 %v770, %v778
      %v780 = vadd.f32 %v779, 1.1283791
      %v781 = vmul.f32 %v747, %v780
      %v782 = vmul.f32 %v770, 3.8918573e-05
      %v783 = vadd.f32 %v782, 0.001143296
      %v784 = vmul.f32 %v770, %v783
      %v785 = vadd.f32 %v784, 0.014752088
      %v786 = vmul.f32 %v770, %v785
      %v787 = vadd.f32 %v786, 0.112945676
      %v788 = vmul.f32 %v770, %v787
      %v789 = vadd.f32 %v788, 0.4994258
      %v790 = vmul.f32 %v770, %v789
      %v791 = vadd.f32 %v790, 1.0
      %v792 = vrcp.pop %v791
      %v793 = vmul.f32 %v791, %v792
      %v794 = vsub.f32 1.0, %v793
      %v795 = vmul.f32 %v792, %v794
      %v796 = vadd.f32 %v792, %v795
      %vm797 = vweird.f32 %v791
      %vm798 = vweird.f32 %v792
      %vm799 = vmor %vm797, %vm798
      %v800 = vsel %vm799, %v792, %v796
      %v801 = vand.u32 2147483647, %v791
      %vm802 = vcmp.eq.f32.partialorder %v801, 8.507059e+37
      %v803 = vand.u32 %v791, 2147483648
      %v804 = vor.u32 1.1754944e-38, %v803
      %v805 = vsel %vm802, %v804, %v800
      %v806 = vmul.f32 %v781, %v805
      %v807 = vmin.f32 %v806, 1.0
      %v808 = vmax.f32 %v807, -1.0
      %v809 = vmul.f32 %v748, %v748
      %v810 = vmin.f32 16.0, %v809
      %v811 = vmul.f32 %v810, 2.1237322e-06
      %v812 = vadd.f32 %v811, 0.00028619796
      %v813 = vmul.f32 %v810, %v812
      %v814 = vadd.f32 %v813, 0.0036580483
      %v815 = vmul.f32 %v810, %v814
      %v816 = vadd.f32 %v815, 0.05243302
      %v817 = vmul.f32 %v810, %v816
      %v818 = vadd.f32 %v817, 0.18741608
      %v819 = vmul.f32 %v810, %v818
      %v820 = vadd.f32 %v819, 1.1283791
      %v821 = vmul.f32 %v748, %v820
      %v822 = vmul.f32 %v810, 3.8918573e-05
      %v823 = vadd.f32 %v822, 0.001143296
      %v824 = vmul.f32 %v810, %v823
      %v825 = vadd.f32 %v824, 0.014752088
      %v826 = vmul.f32 %v810, %v825
      %v827 = vadd.f32 %v826, 0.112945676
      %v828 = vmul.f32 %v810, %v827
      %v829 = vadd.f32 %v828, 0.4994258
      %v830 = vmul.f32 %v810, %v829
      %v831 = vadd.f32 %v830, 1.0
      %v832 = vrcp.pop %v831
      %v833 = vmul.f32 %v831, %v832
      %v834 = vsub.f32 1.0, %v833
      %v835 = vmul.f32 %v832, %v834
      %v836 = vadd.f32 %v832, %v835
      %vm837 = vweird.f32 %v831
      %vm838 = vweird.f32 %v832
      %vm839 = vmor %vm837, %vm838
      %v840 = vsel %vm839, %v832, %v836
      %v841 = vand.u32 2147483647, %v831
      %vm842 = vcmp.eq.f32.partialorder %v841, 8.507059e+37
      %v843 = vand.u32 %v831, 2147483648
      %v844 = vor.u32 1.1754944e-38, %v843
      %v845 = vsel %vm842, %v844, %v840
      %v846 = vmul.f32 %v821, %v845
      %v847 = vmin.f32 %v846, 1.0
      %v848 = vmax.f32 %v847, -1.0
      %v849 = vmul.f32 %v749, %v749
      %v850 = vmin.f32 16.0, %v849
      %v851 = vmul.f32 %v850, 2.1237322e-06
      %v852 = vadd.f32 %v851, 0.00028619796
      %v853 = vmul.f32 %v850, %v852
      %v854 = vadd.f32 %v853, 0.0036580483
      %v855 = vmul.f32 %v850, %v854
      %v856 = vadd.f32 %v855, 0.05243302
      %v857 = vmul.f32 %v850, %v856
      %v858 = vadd.f32 %v857, 0.18741608
      %v859 = vmul.f32 %v850, %v858
      %v860 = vadd.f32 %v859, 1.1283791
      %v861 = vmul.f32 %v749, %v860
      %v862 = vmul.f32 %v850, 3.8918573e-05
      %v863 = vadd.f32 %v862, 0.001143296
      %v864 = vmul.f32 %v850, %v863
      %v865 = vadd.f32 %v864, 0.014752088
      %v866 = vmul.f32 %v850, %v865
      %v867 = vadd.f32 %v866, 0.112945676
      %v868 = vmul.f32 %v850, %v867
      %v869 = vadd.f32 %v868, 0.4994258
      %v870 = vmul.f32 %v850, %v869
      %v871 = vadd.f32 %v870, 1.0
      %v872 = vrcp.pop %v871
      %v873 = vmul.f32 %v871, %v872
      %v874 = vsub.f32 1.0, %v873
      %v875 = vmul.f32 %v872, %v874
      %v876 = vadd.f32 %v872, %v875
      %vm877 = vweird.f32 %v871
      %vm878 = vweird.f32 %v872
      %vm879 = vmor %vm877, %vm878
      %v880 = vsel %vm879, %v872, %v876
      %v881 = vand.u32 2147483647, %v871
      %vm882 = vcmp.eq.f32.partialorder %v881, 8.507059e+37
      %v883 = vand.u32 %v871, 2147483648
      %v884 = vor.u32 1.1754944e-38, %v883
      %v885 = vsel %vm882, %v884, %v880
      %v886 = vmul.f32 %v861, %v885
      %v887 = vmin.f32 %v886, 1.0
      %v888 = vmax.f32 %v887, -1.0
      %v889 = vmul.f32 %v750, %v750
      %v890 = vmin.f32 16.0, %v889
      %v891 = vmul.f32 %v890, 2.1237322e-06
      %v892 = vadd.f32 %v891, 0.00028619796
      %v893 = vmul.f32 %v890, %v892
      %v894 = vadd.f32 %v893, 0.0036580483
      %v895 = vmul.f32 %v890, %v894
      %v896 = vadd.f32 %v895, 0.05243302
      %v897 = vmul.f32 %v890, %v896
      %v898 = vadd.f32 %v897, 0.18741608
      %v899 = vmul.f32 %v890, %v898
      %v900 = vadd.f32 %v899, 1.1283791
      %v901 = vmul.f32 %v750, %v900
      %v902 = vmul.f32 %v890, 3.8918573e-05
      %v903 = vadd.f32 %v902, 0.001143296
      %v904 = vmul.f32 %v890, %v903
      %v905 = vadd.f32 %v904, 0.014752088
      %v906 = vmul.f32 %v890, %v905
      %v907 = vadd.f32 %v906, 0.112945676
      %v908 = vmul.f32 %v890, %v907
      %v909 = vadd.f32 %v908, 0.4994258
      %v910 = vmul.f32 %v890, %v909
      %v911 = vadd.f32 %v910, 1.0
      %v912 = vrcp.pop %v911
      %v913 = vmul.f32 %v911, %v912
      %v914 = vsub.f32 1.0, %v913
      %v915 = vmul.f32 %v912, %v914
      %v916 = vadd.f32 %v912, %v915
      %vm917 = vweird.f32 %v911
      %vm918 = vweird.f32 %v912
      %vm919 = vmor %vm917, %vm918
      %v920 = vsel %vm919, %v912, %v916
      %v921 = vand.u32 2147483647, %v911
      %vm922 = vcmp.eq.f32.partialorder %v921, 8.507059e+37
      %v923 = vand.u32 %v911, 2147483648
      %v924 = vor.u32 1.1754944e-38, %v923
      %v925 = vsel %vm922, %v924, %v920
      %v926 = vmul.f32 %v901, %v925
      %v927 = vmin.f32 %v926, 1.0
      %v928 = vmax.f32 %v927, -1.0
      %v929 = vmul.f32 %v751, %v751
      %v930 = vmin.f32 16.0, %v929
      %v931 = vmul.f32 %v930, 2.1237322e-06
      %v932 = vadd.f32 %v931, 0.00028619796
      %v933 = vmul.f32 %v930, %v932
      %v934 = vadd.f32 %v933, 0.0036580483
      %v935 = vmul.f32 %v930, %v934
      %v936 = vadd.f32 %v935, 0.05243302
      %v937 = vmul.f32 %v930, %v936
      %v938 = vadd.f32 %v937, 0.18741608
      %v939 = vmul.f32 %v930, %v938
      %v940 = vadd.f32 %v939, 1.1283791
      %v941 = vmul.f32 %v751, %v940
      %v942 = vmul.f32 %v930, 3.8918573e-05
      %v943 = vadd.f32 %v942, 0.001143296
      %v944 = vmul.f32 %v930, %v943
      %v945 = vadd.f32 %v944, 0.014752088
      %v946 = vmul.f32 %v930, %v945
      %v947 = vadd.f32 %v946, 0.112945676
      %v948 = vmul.f32 %v930, %v947
      %v949 = vadd.f32 %v948, 0.4994258
      %v950 = vmul.f32 %v930, %v949
      %v951 = vadd.f32 %v950, 1.0
      %v952 = vrcp.pop %v951
      %v953 = vmul.f32 %v951, %v952
      %v954 = vsub.f32 1.0, %v953
      %v955 = vmul.f32 %v952, %v954
      %v956 = vadd.f32 %v952, %v955
      %vm957 = vweird.f32 %v951
      %vm958 = vweird.f32 %v952
      %vm959 = vmor %vm957, %vm958
      %v960 = vsel %vm959, %v952, %v956
      %v961 = vand.u32 2147483647, %v951
      %vm962 = vcmp.eq.f32.partialorder %v961, 8.507059e+37
      %v963 = vand.u32 %v951, 2147483648
      %v964 = vor.u32 1.1754944e-38, %v963
      %v965 = vsel %vm962, %v964, %v960
      %v966 = vmul.f32 %v941, %v965
      %v967 = vmin.f32 %v966, 1.0
      %v968 = vmax.f32 %v967, -1.0
      %v969 = vmul.f32 %v752, %v752
      %v970 = vmin.f32 16.0, %v969
      %v971 = vmul.f32 %v970, 2.1237322e-06
      %v972 = vadd.f32 %v971, 0.00028619796
      %v973 = vmul.f32 %v970, %v972
      %v974 = vadd.f32 %v973, 0.0036580483
      %v975 = vmul.f32 %v970, %v974
      %v976 = vadd.f32 %v975, 0.05243302
      %v977 = vmul.f32 %v970, %v976
      %v978 = vadd.f32 %v977, 0.18741608
      %v979 = vmul.f32 %v970, %v978
      %v980 = vadd.f32 %v979, 1.1283791
      %v981 = vmul.f32 %v752, %v980
      %v982 = vmul.f32 %v970, 3.8918573e-05
      %v983 = vadd.f32 %v982, 0.001143296
      %v984 = vmul.f32 %v970, %v983
      %v985 = vadd.f32 %v984, 0.014752088
      %v986 = vmul.f32 %v970, %v985
      %v987 = vadd.f32 %v986, 0.112945676
      %v988 = vmul.f32 %v970, %v987
      %v989 = vadd.f32 %v988, 0.4994258
      %v990 = vmul.f32 %v970, %v989
      %v991 = vadd.f32 %v990, 1.0
      %v992 = vrcp.pop %v991
      %v993 = vmul.f32 %v991, %v992
      %v994 = vsub.f32 1.0, %v993
      %v995 = vmul.f32 %v992, %v994
      %v996 = vadd.f32 %v992, %v995
      %vm997 = vweird.f32 %v991
      %vm998 = vweird.f32 %v992
      %vm999 = vmor %vm997, %vm998
      %v1000 = vsel %vm999, %v992, %v996
      %v1001 = vand.u32 2147483647, %v991
      %vm1002 = vcmp.eq.f32.partialorder %v1001, 8.507059e+37
      %v1003 = vand.u32 %v991, 2147483648
      %v1004 = vor.u32 1.1754944e-38, %v1003
      %v1005 = vsel %vm1002, %v1004, %v1000
      %v1006 = vmul.f32 %v981, %v1005
      %v1007 = vmin.f32 %v1006, 1.0
      %v1008 = vmax.f32 %v1007, -1.0
      %v1009 = vmul.f32 %v753, %v753
      %v1010 = vmin.f32 16.0, %v1009
      %v1011 = vmul.f32 %v1010, 2.1237322e-06
      %v1012 = vadd.f32 %v1011, 0.00028619796
      %v1013 = vmul.f32 %v1010, %v1012
      %v1014 = vadd.f32 %v1013, 0.0036580483
      %v1015 = vmul.f32 %v1010, %v1014
      %v1016 = vadd.f32 %v1015, 0.05243302
      %v1017 = vmul.f32 %v1010, %v1016
      %v1018 = vadd.f32 %v1017, 0.18741608
      %v1019 = vmul.f32 %v1010, %v1018
      %v1020 = vadd.f32 %v1019, 1.1283791
      %v1021 = vmul.f32 %v753, %v1020
      %v1022 = vmul.f32 %v1010, 3.8918573e-05
      %v1023 = vadd.f32 %v1022, 0.001143296
      %v1024 = vmul.f32 %v1010, %v1023
      %v1025 = vadd.f32 %v1024, 0.014752088
      %v1026 = vmul.f32 %v1010, %v1025
      %v1027 = vadd.f32 %v1026, 0.112945676
      %v1028 = vmul.f32 %v1010, %v1027
      %v1029 = vadd.f32 %v1028, 0.4994258
      %v1030 = vmul.f32 %v1010, %v1029
      %v1031 = vadd.f32 %v1030, 1.0
      %v1032 = vrcp.pop %v1031
      %v1033 = vmul.f32 %v1031, %v1032
      %v1034 = vsub.f32 1.0, %v1033
      %v1035 = vmul.f32 %v1032, %v1034
      %v1036 = vadd.f32 %v1032, %v1035
      %vm1037 = vweird.f32 %v1031
      %vm1038 = vweird.f32 %v1032
      %vm1039 = vmor %vm1037, %vm1038
      %v1040 = vsel %vm1039, %v1032, %v1036
      %v1041 = vand.u32 2147483647, %v1031
      %vm1042 = vcmp.eq.f32.partialorder %v1041, 8.507059e+37
      %v1043 = vand.u32 %v1031, 2147483648
      %v1044 = vor.u32 1.1754944e-38, %v1043
      %v1045 = vsel %vm1042, %v1044, %v1040
      %v1046 = vmul.f32 %v1021, %v1045
      %v1047 = vmin.f32 %v1046, 1.0
      %v1048 = vmax.f32 %v1047, -1.0
      %v1049 = vmul.f32 %v754, %v754
      %v1050 = vmin.f32 16.0, %v1049
      %v1051 = vmul.f32 %v1050, 2.1237322e-06
      %v1052 = vadd.f32 %v1051, 0.00028619796
      %v1053 = vmul.f32 %v1050, %v1052
      %v1054 = vadd.f32 %v1053, 0.0036580483
      %v1055 = vmul.f32 %v1050, %v1054
      %v1056 = vadd.f32 %v1055, 0.05243302
      %v1057 = vmul.f32 %v1050, %v1056
      %v1058 = vadd.f32 %v1057, 0.18741608
      %v1059 = vmul.f32 %v1050, %v1058
      %v1060 = vadd.f32 %v1059, 1.1283791
      %v1061 = vmul.f32 %v754, %v1060
      %v1062 = vmul.f32 %v1050, 3.8918573e-05
      %v1063 = vadd.f32 %v1062, 0.001143296
      %v1064 = vmul.f32 %v1050, %v1063
      %v1065 = vadd.f32 %v1064, 0.014752088
      %v1066 = vmul.f32 %v1050, %v1065
      %v1067 = vadd.f32 %v1066, 0.112945676
      %v1068 = vmul.f32 %v1050, %v1067
      %v1069 = vadd.f32 %v1068, 0.4994258
      %v1070 = vmul.f32 %v1050, %v1069
      %v1071 = vadd.f32 %v1070, 1.0
      %v1072 = vrcp.pop %v1071
      %v1073 = vmul.f32 %v1071, %v1072
      %v1074 = vsub.f32 1.0, %v1073
      %v1075 = vmul.f32 %v1072, %v1074
      %v1076 = vadd.f32 %v1072, %v1075
      %vm1077 = vweird.f32 %v1071
      %vm1078 = vweird.f32 %v1072
      %vm1079 = vmor %vm1077, %vm1078
      %v1080 = vsel %vm1079, %v1072, %v1076
      %v1081 = vand.u32 2147483647, %v1071
      %vm1082 = vcmp.eq.f32.partialorder %v1081, 8.507059e+37
      %v1083 = vand.u32 %v1071, 2147483648
      %v1084 = vor.u32 1.1754944e-38, %v1083
      %v1085 = vsel %vm1082, %v1084, %v1080
      %v1086 = vmul.f32 %v1061, %v1085
      %v1087 = vmin.f32 %v1086, 1.0
      %v1088 = vmax.f32 %v1087, -1.0
      %v1089 = vmul.f32 %v755, %v755
      %v1090 = vmin.f32 16.0, %v1089
      %v1091 = vmul.f32 %v1090, 2.1237322e-06
      %v1092 = vadd.f32 %v1091, 0.00028619796
      %v1093 = vmul.f32 %v1090, %v1092
      %v1094 = vadd.f32 %v1093, 0.0036580483
      %v1095 = vmul.f32 %v1090, %v1094
      %v1096 = vadd.f32 %v1095, 0.05243302
      %v1097 = vmul.f32 %v1090, %v1096
      %v1098 = vadd.f32 %v1097, 0.18741608
      %v1099 = vmul.f32 %v1090, %v1098
      %v1100 = vadd.f32 %v1099, 1.1283791
      %v1101 = vmul.f32 %v755, %v1100
      %v1102 = vmul.f32 %v1090, 3.8918573e-05
      %v1103 = vadd.f32 %v1102, 0.001143296
      %v1104 = vmul.f32 %v1090, %v1103
      %v1105 = vadd.f32 %v1104, 0.014752088
      %v1106 = vmul.f32 %v1090, %v1105
      %v1107 = vadd.f32 %v1106, 0.112945676
      %v1108 = vmul.f32 %v1090, %v1107
      %v1109 = vadd.f32 %v1108, 0.4994258
      %v1110 = vmul.f32 %v1090, %v1109
      %v1111 = vadd.f32 %v1110, 1.0
      %v1112 = vrcp.pop %v1111
      %v1113 = vmul.f32 %v1111, %v1112
      %v1114 = vsub.f32 1.0, %v1113
      %v1115 = vmul.f32 %v1112, %v1114
      %v1116 = vadd.f32 %v1112, %v1115
      %vm1117 = vweird.f32 %v1111
      %vm1118 = vweird.f32 %v1112
      %vm1119 = vmor %vm1117, %vm1118
      %v1120 = vsel %vm1119, %v1112, %v1116
      %v1121 = vand.u32 2147483647, %v1111
      %vm1122 = vcmp.eq.f32.partialorder %v1121, 8.507059e+37
      %v1123 = vand.u32 %v1111, 2147483648
      %v1124 = vor.u32 1.1754944e-38, %v1123
      %v1125 = vsel %vm1122, %v1124, %v1120
      %v1126 = vmul.f32 %v1101, %v1125
      %v1127 = vmin.f32 %v1126, 1.0
      %v1128 = vmax.f32 %v1127, -1.0
      %v1129 = vmul.f32 %v756, %v756
      %v1130 = vmin.f32 16.0, %v1129
      %v1131 = vmul.f32 %v1130, 2.1237322e-06
      %v1132 = vadd.f32 %v1131, 0.00028619796
      %v1133 = vmul.f32 %v1130, %v1132
      %v1134 = vadd.f32 %v1133, 0.0036580483
      %v1135 = vmul.f32 %v1130, %v1134
      %v1136 = vadd.f32 %v1135, 0.05243302
      %v1137 = vmul.f32 %v1130, %v1136
      %v1138 = vadd.f32 %v1137, 0.18741608
      %v1139 = vmul.f32 %v1130, %v1138
      %v1140 = vadd.f32 %v1139, 1.1283791
      %v1141 = vmul.f32 %v756, %v1140
      %v1142 = vmul.f32 %v1130, 3.8918573e-05
      %v1143 = vadd.f32 %v1142, 0.001143296
      %v1144 = vmul.f32 %v1130, %v1143
      %v1145 = vadd.f32 %v1144, 0.014752088
      %v1146 = vmul.f32 %v1130, %v1145
      %v1147 = vadd.f32 %v1146, 0.112945676
      %v1148 = vmul.f32 %v1130, %v1147
      %v1149 = vadd.f32 %v1148, 0.4994258
      %v1150 = vmul.f32 %v1130, %v1149
      %v1151 = vadd.f32 %v1150, 1.0
      %v1152 = vrcp.pop %v1151
      %v1153 = vmul.f32 %v1151, %v1152
      %v1154 = vsub.f32 1.0, %v1153
      %v1155 = vmul.f32 %v1152, %v1154
      %v1156 = vadd.f32 %v1152, %v1155
      %vm1157 = vweird.f32 %v1151
      %vm1158 = vweird.f32 %v1152
      %vm1159 = vmor %vm1157, %vm1158
      %v1160 = vsel %vm1159, %v1152, %v1156
      %v1161 = vand.u32 2147483647, %v1151
      %vm1162 = vcmp.eq.f32.partialorder %v1161, 8.507059e+37
      %v1163 = vand.u32 %v1151, 2147483648
      %v1164 = vor.u32 1.1754944e-38, %v1163
      %v1165 = vsel %vm1162, %v1164, %v1160
      %v1166 = vmul.f32 %v1141, %v1165
      %v1167 = vmin.f32 %v1166, 1.0
      %v1168 = vmax.f32 %v1167, -1.0
      %v1169 = vmul.f32 %v757, %v757
      %v1170 = vmin.f32 16.0, %v1169
      %v1171 = vmul.f32 %v1170, 2.1237322e-06
      %v1172 = vadd.f32 %v1171, 0.00028619796
      %v1173 = vmul.f32 %v1170, %v1172
      %v1174 = vadd.f32 %v1173, 0.0036580483
      %v1175 = vmul.f32 %v1170, %v1174
      %v1176 = vadd.f32 %v1175, 0.05243302
      %v1177 = vmul.f32 %v1170, %v1176
      %v1178 = vadd.f32 %v1177, 0.18741608
      %v1179 = vmul.f32 %v1170, %v1178
      %v1180 = vadd.f32 %v1179, 1.1283791
      %v1181 = vmul.f32 %v757, %v1180
      %v1182 = vmul.f32 %v1170, 3.8918573e-05
      %v1183 = vadd.f32 %v1182, 0.001143296
      %v1184 = vmul.f32 %v1170, %v1183
      %v1185 = vadd.f32 %v1184, 0.014752088
      %v1186 = vmul.f32 %v1170, %v1185
      %v1187 = vadd.f32 %v1186, 0.112945676
      %v1188 = vmul.f32 %v1170, %v1187
      %v1189 = vadd.f32 %v1188, 0.4994258
      %v1190 = vmul.f32 %v1170, %v1189
      %v1191 = vadd.f32 %v1190, 1.0
      %v1192 = vrcp.pop %v1191
      %v1193 = vmul.f32 %v1191, %v1192
      %v1194 = vsub.f32 1.0, %v1193
      %v1195 = vmul.f32 %v1192, %v1194
      %v1196 = vadd.f32 %v1192, %v1195
      %vm1197 = vweird.f32 %v1191
      %vm1198 = vweird.f32 %v1192
      %vm1199 = vmor %vm1197, %vm1198
      %v1200 = vsel %vm1199, %v1192, %v1196
      %v1201 = vand.u32 2147483647, %v1191
      %vm1202 = vcmp.eq.f32.partialorder %v1201, 8.507059e+37
      %v1203 = vand.u32 %v1191, 2147483648
      %v1204 = vor.u32 1.1754944e-38, %v1203
      %v1205 = vsel %vm1202, %v1204, %v1200
      %v1206 = vmul.f32 %v1181, %v1205
      %v1207 = vmin.f32 %v1206, 1.0
      %v1208 = vmax.f32 %v1207, -1.0
      %v1209 = vmul.f32 %v758, %v758
      %v1210 = vmin.f32 16.0, %v1209
      %v1211 = vmul.f32 %v1210, 2.1237322e-06
      %v1212 = vadd.f32 %v1211, 0.00028619796
      %v1213 = vmul.f32 %v1210, %v1212
      %v1214 = vadd.f32 %v1213, 0.0036580483
      %v1215 = vmul.f32 %v1210, %v1214
      %v1216 = vadd.f32 %v1215, 0.05243302
      %v1217 = vmul.f32 %v1210, %v1216
      %v1218 = vadd.f32 %v1217, 0.18741608
      %v1219 = vmul.f32 %v1210, %v1218
      %v1220 = vadd.f32 %v1219, 1.1283791
      %v1221 = vmul.f32 %v758, %v1220
      %v1222 = vmul.f32 %v1210, 3.8918573e-05
      %v1223 = vadd.f32 %v1222, 0.001143296
      %v1224 = vmul.f32 %v1210, %v1223
      %v1225 = vadd.f32 %v1224, 0.014752088
      %v1226 = vmul.f32 %v1210, %v1225
      %v1227 = vadd.f32 %v1226, 0.112945676
      %v1228 = vmul.f32 %v1210, %v1227
      %v1229 = vadd.f32 %v1228, 0.4994258
      %v1230 = vmul.f32 %v1210, %v1229
      %v1231 = vadd.f32 %v1230, 1.0
      %v1232 = vrcp.pop %v1231
      %v1233 = vmul.f32 %v1231, %v1232
      %v1234 = vsub.f32 1.0, %v1233
      %v1235 = vmul.f32 %v1232, %v1234
      %v1236 = vadd.f32 %v1232, %v1235
      %vm1237 = vweird.f32 %v1231
      %vm1238 = vweird.f32 %v1232
      %vm1239 = vmor %vm1237, %vm1238
      %v1240 = vsel %vm1239, %v1232, %v1236
      %v1241 = vand.u32 2147483647, %v1231
      %vm1242 = vcmp.eq.f32.partialorder %v1241, 8.507059e+37
      %v1243 = vand.u32 %v1231, 2147483648
      %v1244 = vor.u32 1.1754944e-38, %v1243
      %v1245 = vsel %vm1242, %v1244, %v1240
      %v1246 = vmul.f32 %v1221, %v1245
      %v1247 = vmin.f32 %v1246, 1.0
      %v1248 = vmax.f32 %v1247, -1.0
      %v1249 = vmul.f32 %v759, %v759
      %v1250 = vmin.f32 16.0, %v1249
      %v1251 = vmul.f32 %v1250, 2.1237322e-06
      %v1252 = vadd.f32 %v1251, 0.00028619796
      %v1253 = vmul.f32 %v1250, %v1252
      %v1254 = vadd.f32 %v1253, 0.0036580483
      %v1255 = vmul.f32 %v1250, %v1254
      %v1256 = vadd.f32 %v1255, 0.05243302
      %v1257 = vmul.f32 %v1250, %v1256
      %v1258 = vadd.f32 %v1257, 0.18741608
      %v1259 = vmul.f32 %v1250, %v1258
      %v1260 = vadd.f32 %v1259, 1.1283791
      %v1261 = vmul.f32 %v759, %v1260
      %v1262 = vmul.f32 %v1250, 3.8918573e-05
      %v1263 = vadd.f32 %v1262, 0.001143296
      %v1264 = vmul.f32 %v1250, %v1263
      %v1265 = vadd.f32 %v1264, 0.014752088
      %v1266 = vmul.f32 %v1250, %v1265
      %v1267 = vadd.f32 %v1266, 0.112945676
      %v1268 = vmul.f32 %v1250, %v1267
      %v1269 = vadd.f32 %v1268, 0.4994258
      %v1270 = vmul.f32 %v1250, %v1269
      %v1271 = vadd.f32 %v1270, 1.0
      %v1272 = vrcp.pop %v1271
      %v1273 = vmul.f32 %v1271, %v1272
      %v1274 = vsub.f32 1.0, %v1273
      %v1275 = vmul.f32 %v1272, %v1274
      %v1276 = vadd.f32 %v1272, %v1275
      %vm1277 = vweird.f32 %v1271
      %vm1278 = vweird.f32 %v1272
      %vm1279 = vmor %vm1277, %vm1278
      %v1280 = vsel %vm1279, %v1272, %v1276
      %v1281 = vand.u32 2147483647, %v1271
      %vm1282 = vcmp.eq.f32.partialorder %v1281, 8.507059e+37
      %v1283 = vand.u32 %v1271, 2147483648
      %v1284 = vor.u32 1.1754944e-38, %v1283
      %v1285 = vsel %vm1282, %v1284, %v1280
      %v1286 = vmul.f32 %v1261, %v1285
      %v1287 = vmin.f32 %v1286, 1.0
      %v1288 = vmax.f32 %v1287, -1.0
      %v1289 = vmul.f32 %v760, %v760
      %v1290 = vmin.f32 16.0, %v1289
      %v1291 = vmul.f32 %v1290, 2.1237322e-06
      %v1292 = vadd.f32 %v1291, 0.00028619796
      %v1293 = vmul.f32 %v1290, %v1292
      %v1294 = vadd.f32 %v1293, 0.0036580483
      %v1295 = vmul.f32 %v1290, %v1294
      %v1296 = vadd.f32 %v1295, 0.05243302
      %v1297 = vmul.f32 %v1290, %v1296
      %v1298 = vadd.f32 %v1297, 0.18741608
      %v1299 = vmul.f32 %v1290, %v1298
      %v1300 = vadd.f32 %v1299, 1.1283791
      %v1301 = vmul.f32 %v760, %v1300
      %v1302 = vmul.f32 %v1290, 3.8918573e-05
      %v1303 = vadd.f32 %v1302, 0.001143296
      %v1304 = vmul.f32 %v1290, %v1303
      %v1305 = vadd.f32 %v1304, 0.014752088
      %v1306 = vmul.f32 %v1290, %v1305
      %v1307 = vadd.f32 %v1306, 0.112945676
      %v1308 = vmul.f32 %v1290, %v1307
      %v1309 = vadd.f32 %v1308, 0.4994258
      %v1310 = vmul.f32 %v1290, %v1309
      %v1311 = vadd.f32 %v1310, 1.0
      %v1312 = vrcp.pop %v1311
      %v1313 = vmul.f32 %v1311, %v1312
      %v1314 = vsub.f32 1.0, %v1313
      %v1315 = vmul.f32 %v1312, %v1314
      %v1316 = vadd.f32 %v1312, %v1315
      %vm1317 = vweird.f32 %v1311
      %vm1318 = vweird.f32 %v1312
      %vm1319 = vmor %vm1317, %vm1318
      %v1320 = vsel %vm1319, %v1312, %v1316
      %v1321 = vand.u32 2147483647, %v1311
      %vm1322 = vcmp.eq.f32.partialorder %v1321, 8.507059e+37
      %v1323 = vand.u32 %v1311, 2147483648
      %v1324 = vor.u32 1.1754944e-38, %v1323
      %v1325 = vsel %vm1322, %v1324, %v1320
      %v1326 = vmul.f32 %v1301, %v1325
      %v1327 = vmin.f32 %v1326, 1.0
      %v1328 = vmax.f32 %v1327, -1.0
      %v1329 = vmul.f32 %v761, %v761
      %v1330 = vmin.f32 16.0, %v1329
      %v1331 = vmul.f32 %v1330, 2.1237322e-06
      %v1332 = vadd.f32 %v1331, 0.00028619796
      %v1333 = vmul.f32 %v1330, %v1332
      %v1334 = vadd.f32 %v1333, 0.0036580483
      %v1335 = vmul.f32 %v1330, %v1334
      %v1336 = vadd.f32 %v1335, 0.05243302
      %v1337 = vmul.f32 %v1330, %v1336
      %v1338 = vadd.f32 %v1337, 0.18741608
      %v1339 = vmul.f32 %v1330, %v1338
      %v1340 = vadd.f32 %v1339, 1.1283791
      %v1341 = vmul.f32 %v761, %v1340
      %v1342 = vmul.f32 %v1330, 3.8918573e-05
      %v1343 = vadd.f32 %v1342, 0.001143296
      %v1344 = vmul.f32 %v1330, %v1343
      %v1345 = vadd.f32 %v1344, 0.014752088
      %v1346 = vmul.f32 %v1330, %v1345
      %v1347 = vadd.f32 %v1346, 0.112945676
      %v1348 = vmul.f32 %v1330, %v1347
      %v1349 = vadd.f32 %v1348, 0.4994258
      %v1350 = vmul.f32 %v1330, %v1349
      %v1351 = vadd.f32 %v1350, 1.0
      %v1352 = vrcp.pop %v1351
      %v1353 = vmul.f32 %v1351, %v1352
      %v1354 = vsub.f32 1.0, %v1353
      %v1355 = vmul.f32 %v1352, %v1354
      %v1356 = vadd.f32 %v1352, %v1355
      %vm1357 = vweird.f32 %v1351
      %vm1358 = vweird.f32 %v1352
      %vm1359 = vmor %vm1357, %vm1358
      %v1360 = vsel %vm1359, %v1352, %v1356
      %v1361 = vand.u32 2147483647, %v1351
      %vm1362 = vcmp.eq.f32.partialorder %v1361, 8.507059e+37
      %v1363 = vand.u32 %v1351, 2147483648
      %v1364 = vor.u32 1.1754944e-38, %v1363
      %v1365 = vsel %vm1362, %v1364, %v1360
      %v1366 = vmul.f32 %v1341, %v1365
      %v1367 = vmin.f32 %v1366, 1.0
      %v1368 = vmax.f32 %v1367, -1.0
      %v1369 = vmul.f32 %v762, %v762
      %v1370 = vmin.f32 16.0, %v1369
      %v1371 = vmul.f32 %v1370, 2.1237322e-06
      %v1372 = vadd.f32 %v1371, 0.00028619796
      %v1373 = vmul.f32 %v1370, %v1372
      %v1374 = vadd.f32 %v1373, 0.0036580483
      %v1375 = vmul.f32 %v1370, %v1374
      %v1376 = vadd.f32 %v1375, 0.05243302
      %v1377 = vmul.f32 %v1370, %v1376
      %v1378 = vadd.f32 %v1377, 0.18741608
      %v1379 = vmul.f32 %v1370, %v1378
      %v1380 = vadd.f32 %v1379, 1.1283791
      %v1381 = vmul.f32 %v762, %v1380
      %v1382 = vmul.f32 %v1370, 3.8918573e-05
      %v1383 = vadd.f32 %v1382, 0.001143296
      %v1384 = vmul.f32 %v1370, %v1383
      %v1385 = vadd.f32 %v1384, 0.014752088
      %v1386 = vmul.f32 %v1370, %v1385
      %v1387 = vadd.f32 %v1386, 0.112945676
      %v1388 = vmul.f32 %v1370, %v1387
      %v1389 = vadd.f32 %v1388, 0.4994258
      %v1390 = vmul.f32 %v1370, %v1389
      %v1391 = vadd.f32 %v1390, 1.0
      %v1392 = vrcp.pop %v1391
      %v1393 = vmul.f32 %v1391, %v1392
      %v1394 = vsub.f32 1.0, %v1393
      %v1395 = vmul.f32 %v1392, %v1394
      %v1396 = vadd.f32 %v1392, %v1395
      %vm1397 = vweird.f32 %v1391
      %vm1398 = vweird.f32 %v1392
      %vm1399 = vmor %vm1397, %vm1398
      %v1400 = vsel %vm1399, %v1392, %v1396
      %v1401 = vand.u32 2147483647, %v1391
      %vm1402 = vcmp.eq.f32.partialorder %v1401, 8.507059e+37
      %v1403 = vand.u32 %v1391, 2147483648
      %v1404 = vor.u32 1.1754944e-38, %v1403
      %v1405 = vsel %vm1402, %v1404, %v1400
      %v1406 = vmul.f32 %v1381, %v1405
      %v1407 = vmin.f32 %v1406, 1.0
      %v1408 = vmax.f32 %v1407, -1.0
      %v1409 = vmul.f32 %v763, %v763
      %v1410 = vmin.f32 16.0, %v1409
      %v1411 = vmul.f32 %v1410, 2.1237322e-06
      %v1412 = vadd.f32 %v1411, 0.00028619796
      %v1413 = vmul.f32 %v1410, %v1412
      %v1414 = vadd.f32 %v1413, 0.0036580483
      %v1415 = vmul.f32 %v1410, %v1414
      %v1416 = vadd.f32 %v1415, 0.05243302
      %v1417 = vmul.f32 %v1410, %v1416
      %v1418 = vadd.f32 %v1417, 0.18741608
      %v1419 = vmul.f32 %v1410, %v1418
      %v1420 = vadd.f32 %v1419, 1.1283791
      %v1421 = vmul.f32 %v763, %v1420
      %v1422 = vmul.f32 %v1410, 3.8918573e-05
      %v1423 = vadd.f32 %v1422, 0.001143296
      %v1424 = vmul.f32 %v1410, %v1423
      %v1425 = vadd.f32 %v1424, 0.014752088
      %v1426 = vmul.f32 %v1410, %v1425
      %v1427 = vadd.f32 %v1426, 0.112945676
      %v1428 = vmul.f32 %v1410, %v1427
      %v1429 = vadd.f32 %v1428, 0.4994258
      %v1430 = vmul.f32 %v1410, %v1429
      %v1431 = vadd.f32 %v1430, 1.0
      %v1432 = vrcp.pop %v1431
      %v1433 = vmul.f32 %v1431, %v1432
      %v1434 = vsub.f32 1.0, %v1433
      %v1435 = vmul.f32 %v1432, %v1434
      %v1436 = vadd.f32 %v1432, %v1435
      %vm1437 = vweird.f32 %v1431
      %vm1438 = vweird.f32 %v1432
      %vm1439 = vmor %vm1437, %vm1438
      %v1440 = vsel %vm1439, %v1432, %v1436
      %v1441 = vand.u32 2147483647, %v1431
      %vm1442 = vcmp.eq.f32.partialorder %v1441, 8.507059e+37
      %v1443 = vand.u32 %v1431, 2147483648
      %v1444 = vor.u32 1.1754944e-38, %v1443
      %v1445 = vsel %vm1442, %v1444, %v1440
      %v1446 = vmul.f32 %v1421, %v1445
      %v1447 = vmin.f32 %v1446, 1.0
      %v1448 = vmax.f32 %v1447, -1.0
      %v1449 = vmul.f32 %v764, %v764
      %v1450 = vmin.f32 16.0, %v1449
      %v1451 = vmul.f32 %v1450, 2.1237322e-06
      %v1452 = vadd.f32 %v1451, 0.00028619796
      %v1453 = vmul.f32 %v1450, %v1452
      %v1454 = vadd.f32 %v1453, 0.0036580483
      %v1455 = vmul.f32 %v1450, %v1454
      %v1456 = vadd.f32 %v1455, 0.05243302
      %v1457 = vmul.f32 %v1450, %v1456
      %v1458 = vadd.f32 %v1457, 0.18741608
      %v1459 = vmul.f32 %v1450, %v1458
      %v1460 = vadd.f32 %v1459, 1.1283791
      %v1461 = vmul.f32 %v764, %v1460
      %v1462 = vmul.f32 %v1450, 3.8918573e-05
      %v1463 = vadd.f32 %v1462, 0.001143296
      %v1464 = vmul.f32 %v1450, %v1463
      %v1465 = vadd.f32 %v1464, 0.014752088
      %v1466 = vmul.f32 %v1450, %v1465
      %v1467 = vadd.f32 %v1466, 0.112945676
      %v1468 = vmul.f32 %v1450, %v1467
      %v1469 = vadd.f32 %v1468, 0.4994258
      %v1470 = vmul.f32 %v1450, %v1469
      %v1471 = vadd.f32 %v1470, 1.0
      %v1472 = vrcp.pop %v1471
      %v1473 = vmul.f32 %v1471, %v1472
      %v1474 = vsub.f32 1.0, %v1473
      %v1475 = vmul.f32 %v1472, %v1474
      %v1476 = vadd.f32 %v1472, %v1475
      %vm1477 = vweird.f32 %v1471
      %vm1478 = vweird.f32 %v1472
      %vm1479 = vmor %vm1477, %vm1478
      %v1480 = vsel %vm1479, %v1472, %v1476
      %v1481 = vand.u32 2147483647, %v1471
      %vm1482 = vcmp.eq.f32.partialorder %v1481, 8.507059e+37
      %v1483 = vand.u32 %v1471, 2147483648
      %v1484 = vor.u32 1.1754944e-38, %v1483
      %v1485 = vsel %vm1482, %v1484, %v1480
      %v1486 = vmul.f32 %v1461, %v1485
      %v1487 = vmin.f32 %v1486, 1.0
      %v1488 = vmax.f32 %v1487, -1.0
      %v1489 = vmul.f32 %v765, %v765
      %v1490 = vmin.f32 16.0, %v1489
      %v1491 = vmul.f32 %v1490, 2.1237322e-06
      %v1492 = vadd.f32 %v1491, 0.00028619796
      %v1493 = vmul.f32 %v1490, %v1492
      %v1494 = vadd.f32 %v1493, 0.0036580483
      %v1495 = vmul.f32 %v1490, %v1494
      %v1496 = vadd.f32 %v1495, 0.05243302
      %v1497 = vmul.f32 %v1490, %v1496
      %v1498 = vadd.f32 %v1497, 0.18741608
      %v1499 = vmul.f32 %v1490, %v1498
      %v1500 = vadd.f32 %v1499, 1.1283791
      %v1501 = vmul.f32 %v765, %v1500
      %v1502 = vmul.f32 %v1490, 3.8918573e-05
      %v1503 = vadd.f32 %v1502, 0.001143296
      %v1504 = vmul.f32 %v1490, %v1503
      %v1505 = vadd.f32 %v1504, 0.014752088
      %v1506 = vmul.f32 %v1490, %v1505
      %v1507 = vadd.f32 %v1506, 0.112945676
      %v1508 = vmul.f32 %v1490, %v1507
      %v1509 = vadd.f32 %v1508, 0.4994258
      %v1510 = vmul.f32 %v1490, %v1509
      %v1511 = vadd.f32 %v1510, 1.0
      %v1512 = vrcp.pop %v1511
      %v1513 = vmul.f32 %v1511, %v1512
      %v1514 = vsub.f32 1.0, %v1513
      %v1515 = vmul.f32 %v1512, %v1514
      %v1516 = vadd.f32 %v1512, %v1515
      %vm1517 = vweird.f32 %v1511
      %vm1518 = vweird.f32 %v1512
      %vm1519 = vmor %vm1517, %vm1518
      %v1520 = vsel %vm1519, %v1512, %v1516
      %v1521 = vand.u32 2147483647, %v1511
      %vm1522 = vcmp.eq.f32.partialorder %v1521, 8.507059e+37
      %v1523 = vand.u32 %v1511, 2147483648
      %v1524 = vor.u32 1.1754944e-38, %v1523
      %v1525 = vsel %vm1522, %v1524, %v1520
      %v1526 = vmul.f32 %v1501, %v1525
      %v1527 = vmin.f32 %v1526, 1.0
      %v1528 = vmax.f32 %v1527, -1.0
      %v1529 = vmul.f32 %v766, %v766
      %v1530 = vmin.f32 16.0, %v1529
      %v1531 = vmul.f32 %v1530, 2.1237322e-06
      %v1532 = vadd.f32 %v1531, 0.00028619796
      %v1533 = vmul.f32 %v1530, %v1532
      %v1534 = vadd.f32 %v1533, 0.0036580483
      %v1535 = vmul.f32 %v1530, %v1534
      %v1536 = vadd.f32 %v1535, 0.05243302
      %v1537 = vmul.f32 %v1530, %v1536
      %v1538 = vadd.f32 %v1537, 0.18741608
      %v1539 = vmul.f32 %v1530, %v1538
      %v1540 = vadd.f32 %v1539, 1.1283791
      %v1541 = vmul.f32 %v766, %v1540
      %v1542 = vmul.f32 %v1530, 3.8918573e-05
      %v1543 = vadd.f32 %v1542, 0.001143296
      %v1544 = vmul.f32 %v1530, %v1543
      %v1545 = vadd.f32 %v1544, 0.014752088
      %v1546 = vmul.f32 %v1530, %v1545
      %v1547 = vadd.f32 %v1546, 0.112945676
      %v1548 = vmul.f32 %v1530, %v1547
      %v1549 = vadd.f32 %v1548, 0.4994258
      %v1550 = vmul.f32 %v1530, %v1549
      %v1551 = vadd.f32 %v1550, 1.0
      %v1552 = vrcp.pop %v1551
      %v1553 = vmul.f32 %v1551, %v1552
      %v1554 = vsub.f32 1.0, %v1553
      %v1555 = vmul.f32 %v1552, %v1554
      %v1556 = vadd.f32 %v1552, %v1555
      %vm1557 = vweird.f32 %v1551
      %vm1558 = vweird.f32 %v1552
      %vm1559 = vmor %vm1557, %vm1558
      %v1560 = vsel %vm1559, %v1552, %v1556
      %v1561 = vand.u32 2147483647, %v1551
      %vm1562 = vcmp.eq.f32.partialorder %v1561, 8.507059e+37
      %v1563 = vand.u32 %v1551, 2147483648
      %v1564 = vor.u32 1.1754944e-38, %v1563
      %v1565 = vsel %vm1562, %v1564, %v1560
      %v1566 = vmul.f32 %v1541, %v1565
      %v1567 = vmin.f32 %v1566, 1.0
      %v1568 = vmax.f32 %v1567, -1.0
      %v1569 = vmul.f32 %v767, %v767
      %v1570 = vmin.f32 16.0, %v1569
      %v1571 = vmul.f32 %v1570, 2.1237322e-06
      %v1572 = vadd.f32 %v1571, 0.00028619796
      %v1573 = vmul.f32 %v1570, %v1572
      %v1574 = vadd.f32 %v1573, 0.0036580483
      %v1575 = vmul.f32 %v1570, %v1574
      %v1576 = vadd.f32 %v1575, 0.05243302
      %v1577 = vmul.f32 %v1570, %v1576
      %v1578 = vadd.f32 %v1577, 0.18741608
      %v1579 = vmul.f32 %v1570, %v1578
      %v1580 = vadd.f32 %v1579, 1.1283791
      %v1581 = vmul.f32 %v767, %v1580
      %v1582 = vmul.f32 %v1570, 3.8918573e-05
      %v1583 = vadd.f32 %v1582, 0.001143296
      %v1584 = vmul.f32 %v1570, %v1583
      %v1585 = vadd.f32 %v1584, 0.014752088
      %v1586 = vmul.f32 %v1570, %v1585
      %v1587 = vadd.f32 %v1586, 0.112945676
      %v1588 = vmul.f32 %v1570, %v1587
      %v1589 = vadd.f32 %v1588, 0.4994258
      %v1590 = vmul.f32 %v1570, %v1589
      %v1591 = vadd.f32 %v1590, 1.0
      %v1592 = vrcp.pop %v1591
      %v1593 = vmul.f32 %v1591, %v1592
      %v1594 = vsub.f32 1.0, %v1593
      %v1595 = vmul.f32 %v1592, %v1594
      %v1596 = vadd.f32 %v1592, %v1595
      %vm1597 = vweird.f32 %v1591
      %vm1598 = vweird.f32 %v1592
      %vm1599 = vmor %vm1597, %vm1598
      %v1600 = vsel %vm1599, %v1592, %v1596
      %v1601 = vand.u32 2147483647, %v1591
      %vm1602 = vcmp.eq.f32.partialorder %v1601, 8.507059e+37
      %v1603 = vand.u32 %v1591, 2147483648
      %v1604 = vor.u32 1.1754944e-38, %v1603
      %v1605 = vsel %vm1602, %v1604, %v1600
      %v1606 = vmul.f32 %v1581, %v1605
      %v1607 = vmin.f32 %v1606, 1.0
      %v1608 = vmax.f32 %v1607, -1.0
      %v1609 = vmul.f32 %v768, %v768
      %v1610 = vmin.f32 16.0, %v1609
      %v1611 = vmul.f32 %v1610, 2.1237322e-06
      %v1612 = vadd.f32 %v1611, 0.00028619796
      %v1613 = vmul.f32 %v1610, %v1612
      %v1614 = vadd.f32 %v1613, 0.0036580483
      %v1615 = vmul.f32 %v1610, %v1614
      %v1616 = vadd.f32 %v1615, 0.05243302
      %v1617 = vmul.f32 %v1610, %v1616
      %v1618 = vadd.f32 %v1617, 0.18741608
      %v1619 = vmul.f32 %v1610, %v1618
      %v1620 = vadd.f32 %v1619, 1.1283791
      %v1621 = vmul.f32 %v768, %v1620
      %v1622 = vmul.f32 %v1610, 3.8918573e-05
      %v1623 = vadd.f32 %v1622, 0.001143296
      %v1624 = vmul.f32 %v1610, %v1623
      %v1625 = vadd.f32 %v1624, 0.014752088
      %v1626 = vmul.f32 %v1610, %v1625
      %v1627 = vadd.f32 %v1626, 0.112945676
      %v1628 = vmul.f32 %v1610, %v1627
      %v1629 = vadd.f32 %v1628, 0.4994258
      %v1630 = vmul.f32 %v1610, %v1629
      %v1631 = vadd.f32 %v1630, 1.0
      %v1632 = vrcp.pop %v1631
      %v1633 = vmul.f32 %v1631, %v1632
      %v1634 = vsub.f32 1.0, %v1633
      %v1635 = vmul.f32 %v1632, %v1634
      %v1636 = vadd.f32 %v1632, %v1635
      %vm1637 = vweird.f32 %v1631
      %vm1638 = vweird.f32 %v1632
      %vm1639 = vmor %vm1637, %vm1638
      %v1640 = vsel %vm1639, %v1632, %v1636
      %v1641 = vand.u32 2147483647, %v1631
      %vm1642 = vcmp.eq.f32.partialorder %v1641, 8.507059e+37
      %v1643 = vand.u32 %v1631, 2147483648
      %v1644 = vor.u32 1.1754944e-38, %v1643
      %v1645 = vsel %vm1642, %v1644, %v1640
      %v1646 = vmul.f32 %v1621, %v1645
      %v1647 = vmin.f32 %v1646, 1.0
      %v1648 = vmax.f32 %v1647, -1.0
      %v1649 = vadd.f32 %v808, 1.0
      %v1650 = vadd.f32 %v848, 1.0
      %v1651 = vadd.f32 %v888, 1.0
      %v1652 = vadd.f32 %v928, 1.0
      %v1653 = vadd.f32 %v968, 1.0
      %v1654 = vadd.f32 %v1008, 1.0
      %v1655 = vadd.f32 %v1048, 1.0
      %v1656 = vadd.f32 %v1088, 1.0
      %v1657 = vadd.f32 %v1128, 1.0
      %v1658 = vadd.f32 %v1168, 1.0
      %v1659 = vadd.f32 %v1208, 1.0
      %v1660 = vadd.f32 %v1248, 1.0
      %v1661 = vadd.f32 %v1288, 1.0
      %v1662 = vadd.f32 %v1328, 1.0
      %v1663 = vadd.f32 %v1368, 1.0
      %v1664 = vadd.f32 %v1408, 1.0
      %v1665 = vadd.f32 %v1448, 1.0
      %v1666 = vadd.f32 %v1488, 1.0
      %v1667 = vadd.f32 %v1528, 1.0
      %v1668 = vadd.f32 %v1568, 1.0
      %v1669 = vadd.f32 %v1608, 1.0
      %v1670 = vadd.f32 %v1648, 1.0
      %v1671 = vmul.f32 %v725, %v1649
      %v1672 = vmul.f32 %v726, %v1650
      %v1673 = vmul.f32 %v727, %v1651
      %v1674 = vmul.f32 %v728, %v1652
      %v1675 = vmul.f32 %v729, %v1653
      %v1676 = vmul.f32 %v730, %v1654
      %v1677 = vmul.f32 %v731, %v1655
      %v1678 = vmul.f32 %v732, %v1656
      %v1679 = vmul.f32 %v733, %v1657
      %v1680 = vmul.f32 %v734, %v1658
      %v1681 = vmul.f32 %v735, %v1659
      %v1682 = vmul.f32 %v736, %v1660
      %v1683 = vmul.f32 %v737, %v1661
      %v1684 = vmul.f32 %v738, %v1662
      %v1685 = vmul.f32 %v739, %v1663
      %v1686 = vmul.f32 %v740, %v1664
      %v1687 = vmul.f32 %v741, %v1665
      %v1688 = vmul.f32 %v742, %v1666
      %v1689 = vmul.f32 %v743, %v1667
      %v1690 = vmul.f32 %v744, %v1668
      %v1691 = vmul.f32 %v745, %v1669
      %v1692 = vmul.f32 %v746, %v1670
      %v1693 = vmul.f32 %v703, 0.5
      %v1694 = vmul.f32 %v704, 0.5
      %v1695 = vmul.f32 %v705, 0.5
      %v1696 = vmul.f32 %v706, 0.5
      %v1697 = vmul.f32 %v707, 0.5
      %v1698 = vmul.f32 %v708, 0.5
      %v1699 = vmul.f32 %v709, 0.5
      %v1700 = vmul.f32 %v710, 0.5
      %v1701 = vmul.f32 %v711, 0.5
      %v1702 = vmul.f32 %v712, 0.5
      %v1703 = vmul.f32 %v713, 0.5
      %v1704 = vmul.f32 %v714, 0.5
      %v1705 = vmul.f32 %v715, 0.5
      %v1706 = vmul.f32 %v716, 0.5
      %v1707 = vmul.f32 %v717, 0.5
      %v1708 = vmul.f32 %v718, 0.5
      %v1709 = vmul.f32 %v719, 0.5
      %v1710 = vmul.f32 %v720, 0.5
      %v1711 = vmul.f32 %v721, 0.5
      %v1712 = vmul.f32 %v722, 0.5
      %v1713 = vmul.f32 %v723, 0.5
      %v1714 = vmul.f32 %v724, 0.5
      %v1715 = vmul.f32 %v703, 0.70710677
      %v1716 = vmul.f32 %v704, 0.70710677
      %v1717 = vmul.f32 %v705, 0.70710677
      %v1718 = vmul.f32 %v706, 0.70710677
      %v1719 = vmul.f32 %v707, 0.70710677
      %v1720 = vmul.f32 %v708, 0.70710677
      %v1721 = vmul.f32 %v709, 0.70710677
      %v1722 = vmul.f32 %v710, 0.70710677
      %v1723 = vmul.f32 %v711, 0.70710677
      %v1724 = vmul.f32 %v712, 0.70710677
      %v1725 = vmul.f32 %v713, 0.70710677
      %v1726 = vmul.f32 %v714, 0.70710677
      %v1727 = vmul.f32 %v715, 0.70710677
      %v1728 = vmul.f32 %v716, 0.70710677
      %v1729 = vmul.f32 %v717, 0.70710677
      %v1730 = vmul.f32 %v718, 0.70710677
      %v1731 = vmul.f32 %v719, 0.70710677
      %v1732 = vmul.f32 %v720, 0.70710677
      %v1733 = vmul.f32 %v721, 0.70710677
      %v1734 = vmul.f32 %v722, 0.70710677
      %v1735 = vmul.f32 %v723, 0.70710677
      %v1736 = vmul.f32 %v724, 0.70710677
      %v1737 = vmul.f32 %v1715, %v1715
      %v1738 = vmin.f32 16.0, %v1737
      %v1739 = vmul.f32 %v1738, 2.1237322e-06
      %v1740 = vadd.f32 %v1739, 0.00028619796
      %v1741 = vmul.f32 %v1738, %v1740
      %v1742 = vadd.f32 %v1741, 0.0036580483
      %v1743 = vmul.f32 %v1738, %v1742
      %v1744 = vadd.f32 %v1743, 0.05243302
      %v1745 = vmul.f32 %v1738, %v1744
      %v1746 = vadd.f32 %v1745, 0.18741608
      %v1747 = vmul.f32 %v1738, %v1746
      %v1748 = vadd.f32 %v1747, 1.1283791
      %v1749 = vmul.f32 %v1715, %v1748
      %v1750 = vmul.f32 %v1738, 3.8918573e-05
      %v1751 = vadd.f32 %v1750, 0.001143296
      %v1752 = vmul.f32 %v1738, %v1751
      %v1753 = vadd.f32 %v1752, 0.014752088
      %v1754 = vmul.f32 %v1738, %v1753
      %v1755 = vadd.f32 %v1754, 0.112945676
      %v1756 = vmul.f32 %v1738, %v1755
      %v1757 = vadd.f32 %v1756, 0.4994258
      %v1758 = vmul.f32 %v1738, %v1757
      %v1759 = vadd.f32 %v1758, 1.0
      %v1760 = vrcp.pop %v1759
      %v1761 = vmul.f32 %v1759, %v1760
      %v1762 = vsub.f32 1.0, %v1761
      %v1763 = vmul.f32 %v1760, %v1762
      %v1764 = vadd.f32 %v1760, %v1763
      %vm1765 = vweird.f32 %v1759
      %vm1766 = vweird.f32 %v1760
      %vm1767 = vmor %vm1765, %vm1766
      %v1768 = vsel %vm1767, %v1760, %v1764
      %v1769 = vand.u32 2147483647, %v1759
      %vm1770 = vcmp.eq.f32.partialorder %v1769, 8.507059e+37
      %v1771 = vand.u32 %v1759, 2147483648
      %v1772 = vor.u32 1.1754944e-38, %v1771
      %v1773 = vsel %vm1770, %v1772, %v1768
      %v1774 = vmul.f32 %v1749, %v1773
      %v1775 = vmin.f32 %v1774, 1.0
      %v1776 = vmax.f32 %v1775, -1.0
      %v1777 = vmul.f32 %v1716, %v1716
      %v1778 = vmin.f32 16.0, %v1777
      %v1779 = vmul.f32 %v1778, 2.1237322e-06
      %v1780 = vadd.f32 %v1779, 0.00028619796
      %v1781 = vmul.f32 %v1778, %v1780
      %v1782 = vadd.f32 %v1781, 0.0036580483
      %v1783 = vmul.f32 %v1778, %v1782
      %v1784 = vadd.f32 %v1783, 0.05243302
      %v1785 = vmul.f32 %v1778, %v1784
      %v1786 = vadd.f32 %v1785, 0.18741608
      %v1787 = vmul.f32 %v1778, %v1786
      %v1788 = vadd.f32 %v1787, 1.1283791
      %v1789 = vmul.f32 %v1716, %v1788
      %v1790 = vmul.f32 %v1778, 3.8918573e-05
      %v1791 = vadd.f32 %v1790, 0.001143296
      %v1792 = vmul.f32 %v1778, %v1791
      %v1793 = vadd.f32 %v1792, 0.014752088
      %v1794 = vmul.f32 %v1778, %v1793
      %v1795 = vadd.f32 %v1794, 0.112945676
      %v1796 = vmul.f32 %v1778, %v1795
      %v1797 = vadd.f32 %v1796, 0.4994258
      %v1798 = vmul.f32 %v1778, %v1797
      %v1799 = vadd.f32 %v1798, 1.0
      %v1800 = vrcp.pop %v1799
      %v1801 = vmul.f32 %v1799, %v1800
      %v1802 = vsub.f32 1.0, %v1801
      %v1803 = vmul.f32 %v1800, %v1802
      %v1804 = vadd.f32 %v1800, %v1803
      %vm1805 = vweird.f32 %v1799
      %vm1806 = vweird.f32 %v1800
      %vm1807 = vmor %vm1805, %vm1806
      %v1808 = vsel %vm1807, %v1800, %v1804
      %v1809 = vand.u32 2147483647, %v1799
      %vm1810 = vcmp.eq.f32.partialorder %v1809, 8.507059e+37
      %v1811 = vand.u32 %v1799, 2147483648
      %v1812 = vor.u32 1.1754944e-38, %v1811
      %v1813 = vsel %vm1810, %v1812, %v1808
      %v1814 = vmul.f32 %v1789, %v1813
      %v1815 = vmin.f32 %v1814, 1.0
      %v1816 = vmax.f32 %v1815, -1.0
      %v1817 = vmul.f32 %v1717, %v1717
      %v1818 = vmin.f32 16.0, %v1817
      %v1819 = vmul.f32 %v1818, 2.1237322e-06
      %v1820 = vadd.f32 %v1819, 0.00028619796
      %v1821 = vmul.f32 %v1818, %v1820
      %v1822 = vadd.f32 %v1821, 0.0036580483
      %v1823 = vmul.f32 %v1818, %v1822
      %v1824 = vadd.f32 %v1823, 0.05243302
      %v1825 = vmul.f32 %v1818, %v1824
      %v1826 = vadd.f32 %v1825, 0.18741608
      %v1827 = vmul.f32 %v1818, %v1826
      %v1828 = vadd.f32 %v1827, 1.1283791
      %v1829 = vmul.f32 %v1717, %v1828
      %v1830 = vmul.f32 %v1818, 3.8918573e-05
      %v1831 = vadd.f32 %v1830, 0.001143296
      %v1832 = vmul.f32 %v1818, %v1831
      %v1833 = vadd.f32 %v1832, 0.014752088
      %v1834 = vmul.f32 %v1818, %v1833
      %v1835 = vadd.f32 %v1834, 0.112945676
      %v1836 = vmul.f32 %v1818, %v1835
      %v1837 = vadd.f32 %v1836, 0.4994258
      %v1838 = vmul.f32 %v1818, %v1837
      %v1839 = vadd.f32 %v1838, 1.0
      %v1840 = vrcp.pop %v1839
      %v1841 = vmul.f32 %v1839, %v1840
      %v1842 = vsub.f32 1.0, %v1841
      %v1843 = vmul.f32 %v1840, %v1842
      %v1844 = vadd.f32 %v1840, %v1843
      %vm1845 = vweird.f32 %v1839
      %vm1846 = vweird.f32 %v1840
      %vm1847 = vmor %vm1845, %vm1846
      %v1848 = vsel %vm1847, %v1840, %v1844
      %v1849 = vand.u32 2147483647, %v1839
      %vm1850 = vcmp.eq.f32.partialorder %v1849, 8.507059e+37
      %v1851 = vand.u32 %v1839, 2147483648
      %v1852 = vor.u32 1.1754944e-38, %v1851
      %v1853 = vsel %vm1850, %v1852, %v1848
      %v1854 = vmul.f32 %v1829, %v1853
      %v1855 = vmin.f32 %v1854, 1.0
      %v1856 = vmax.f32 %v1855, -1.0
      %v1857 = vmul.f32 %v1718, %v1718
      %v1858 = vmin.f32 16.0, %v1857
      %v1859 = vmul.f32 %v1858, 2.1237322e-06
      %v1860 = vadd.f32 %v1859, 0.00028619796
      %v1861 = vmul.f32 %v1858, %v1860
      %v1862 = vadd.f32 %v1861, 0.0036580483
      %v1863 = vmul.f32 %v1858, %v1862
      %v1864 = vadd.f32 %v1863, 0.05243302
      %v1865 = vmul.f32 %v1858, %v1864
      %v1866 = vadd.f32 %v1865, 0.18741608
      %v1867 = vmul.f32 %v1858, %v1866
      %v1868 = vadd.f32 %v1867, 1.1283791
      %v1869 = vmul.f32 %v1718, %v1868
      %v1870 = vmul.f32 %v1858, 3.8918573e-05
      %v1871 = vadd.f32 %v1870, 0.001143296
      %v1872 = vmul.f32 %v1858, %v1871
      %v1873 = vadd.f32 %v1872, 0.014752088
      %v1874 = vmul.f32 %v1858, %v1873
      %v1875 = vadd.f32 %v1874, 0.112945676
      %v1876 = vmul.f32 %v1858, %v1875
      %v1877 = vadd.f32 %v1876, 0.4994258
      %v1878 = vmul.f32 %v1858, %v1877
      %v1879 = vadd.f32 %v1878, 1.0
      %v1880 = vrcp.pop %v1879
      %v1881 = vmul.f32 %v1879, %v1880
      %v1882 = vsub.f32 1.0, %v1881
      %v1883 = vmul.f32 %v1880, %v1882
      %v1884 = vadd.f32 %v1880, %v1883
      %vm1885 = vweird.f32 %v1879
      %vm1886 = vweird.f32 %v1880
      %vm1887 = vmor %vm1885, %vm1886
      %v1888 = vsel %vm1887, %v1880, %v1884
      %v1889 = vand.u32 2147483647, %v1879
      %vm1890 = vcmp.eq.f32.partialorder %v1889, 8.507059e+37
      %v1891 = vand.u32 %v1879, 2147483648
      %v1892 = vor.u32 1.1754944e-38, %v1891
      %v1893 = vsel %vm1890, %v1892, %v1888
      %v1894 = vmul.f32 %v1869, %v1893
      %v1895 = vmin.f32 %v1894, 1.0
      %v1896 = vmax.f32 %v1895, -1.0
      %v1897 = vmul.f32 %v1719, %v1719
      %v1898 = vmin.f32 16.0, %v1897
      %v1899 = vmul.f32 %v1898, 2.1237322e-06
      %v1900 = vadd.f32 %v1899, 0.00028619796
      %v1901 = vmul.f32 %v1898, %v1900
      %v1902 = vadd.f32 %v1901, 0.0036580483
      %v1903 = vmul.f32 %v1898, %v1902
      %v1904 = vadd.f32 %v1903, 0.05243302
      %v1905 = vmul.f32 %v1898, %v1904
      %v1906 = vadd.f32 %v1905, 0.18741608
      %v1907 = vmul.f32 %v1898, %v1906
      %v1908 = vadd.f32 %v1907, 1.1283791
      %v1909 = vmul.f32 %v1719, %v1908
      %v1910 = vmul.f32 %v1898, 3.8918573e-05
      %v1911 = vadd.f32 %v1910, 0.001143296
      %v1912 = vmul.f32 %v1898, %v1911
      %v1913 = vadd.f32 %v1912, 0.014752088
      %v1914 = vmul.f32 %v1898, %v1913
      %v1915 = vadd.f32 %v1914, 0.112945676
      %v1916 = vmul.f32 %v1898, %v1915
      %v1917 = vadd.f32 %v1916, 0.4994258
      %v1918 = vmul.f32 %v1898, %v1917
      %v1919 = vadd.f32 %v1918, 1.0
      %v1920 = vrcp.pop %v1919
      %v1921 = vmul.f32 %v1919, %v1920
      %v1922 = vsub.f32 1.0, %v1921
      %v1923 = vmul.f32 %v1920, %v1922
      %v1924 = vadd.f32 %v1920, %v1923
      %vm1925 = vweird.f32 %v1919
      %vm1926 = vweird.f32 %v1920
      %vm1927 = vmor %vm1925, %vm1926
      %v1928 = vsel %vm1927, %v1920, %v1924
      %v1929 = vand.u32 2147483647, %v1919
      %vm1930 = vcmp.eq.f32.partialorder %v1929, 8.507059e+37
      %v1931 = vand.u32 %v1919, 2147483648
      %v1932 = vor.u32 1.1754944e-38, %v1931
      %v1933 = vsel %vm1930, %v1932, %v1928
      %v1934 = vmul.f32 %v1909, %v1933
      %v1935 = vmin.f32 %v1934, 1.0
      %v1936 = vmax.f32 %v1935, -1.0
      %v1937 = vmul.f32 %v1720, %v1720
      %v1938 = vmin.f32 16.0, %v1937
      %v1939 = vmul.f32 %v1938, 2.1237322e-06
      %v1940 = vadd.f32 %v1939, 0.00028619796
      %v1941 = vmul.f32 %v1938, %v1940
      %v1942 = vadd.f32 %v1941, 0.0036580483
      %v1943 = vmul.f32 %v1938, %v1942
      %v1944 = vadd.f32 %v1943, 0.05243302
      %v1945 = vmul.f32 %v1938, %v1944
      %v1946 = vadd.f32 %v1945, 0.18741608
      %v1947 = vmul.f32 %v1938, %v1946
      %v1948 = vadd.f32 %v1947, 1.1283791
      %v1949 = vmul.f32 %v1720, %v1948
      %v1950 = vmul.f32 %v1938, 3.8918573e-05
      %v1951 = vadd.f32 %v1950, 0.001143296
      %v1952 = vmul.f32 %v1938, %v1951
      %v1953 = vadd.f32 %v1952, 0.014752088
      %v1954 = vmul.f32 %v1938, %v1953
      %v1955 = vadd.f32 %v1954, 0.112945676
      %v1956 = vmul.f32 %v1938, %v1955
      %v1957 = vadd.f32 %v1956, 0.4994258
      %v1958 = vmul.f32 %v1938, %v1957
      %v1959 = vadd.f32 %v1958, 1.0
      %v1960 = vrcp.pop %v1959
      %v1961 = vmul.f32 %v1959, %v1960
      %v1962 = vsub.f32 1.0, %v1961
      %v1963 = vmul.f32 %v1960, %v1962
      %v1964 = vadd.f32 %v1960, %v1963
      %vm1965 = vweird.f32 %v1959
      %vm1966 = vweird.f32 %v1960
      %vm1967 = vmor %vm1965, %vm1966
      %v1968 = vsel %vm1967, %v1960, %v1964
      %v1969 = vand.u32 2147483647, %v1959
      %vm1970 = vcmp.eq.f32.partialorder %v1969, 8.507059e+37
      %v1971 = vand.u32 %v1959, 2147483648
      %v1972 = vor.u32 1.1754944e-38, %v1971
      %v1973 = vsel %vm1970, %v1972, %v1968
      %v1974 = vmul.f32 %v1949, %v1973
      %v1975 = vmin.f32 %v1974, 1.0
      %v1976 = vmax.f32 %v1975, -1.0
      %v1977 = vmul.f32 %v1721, %v1721
      %v1978 = vmin.f32 16.0, %v1977
      %v1979 = vmul.f32 %v1978, 2.1237322e-06
      %v1980 = vadd.f32 %v1979, 0.00028619796
      %v1981 = vmul.f32 %v1978, %v1980
      %v1982 = vadd.f32 %v1981, 0.0036580483
      %v1983 = vmul.f32 %v1978, %v1982
      %v1984 = vadd.f32 %v1983, 0.05243302
      %v1985 = vmul.f32 %v1978, %v1984
      %v1986 = vadd.f32 %v1985, 0.18741608
      %v1987 = vmul.f32 %v1978, %v1986
      %v1988 = vadd.f32 %v1987, 1.1283791
      %v1989 = vmul.f32 %v1721, %v1988
      %v1990 = vmul.f32 %v1978, 3.8918573e-05
      %v1991 = vadd.f32 %v1990, 0.001143296
      %v1992 = vmul.f32 %v1978, %v1991
      %v1993 = vadd.f32 %v1992, 0.014752088
      %v1994 = vmul.f32 %v1978, %v1993
      %v1995 = vadd.f32 %v1994, 0.112945676
      %v1996 = vmul.f32 %v1978, %v1995
      %v1997 = vadd.f32 %v1996, 0.4994258
      %v1998 = vmul.f32 %v1978, %v1997
      %v1999 = vadd.f32 %v1998, 1.0
      %v2000 = vrcp.pop %v1999
      %v2001 = vmul.f32 %v1999, %v2000
      %v2002 = vsub.f32 1.0, %v2001
      %v2003 = vmul.f32 %v2000, %v2002
      %v2004 = vadd.f32 %v2000, %v2003
      %vm2005 = vweird.f32 %v1999
      %vm2006 = vweird.f32 %v2000
      %vm2007 = vmor %vm2005, %vm2006
      %v2008 = vsel %vm2007, %v2000, %v2004
      %v2009 = vand.u32 2147483647, %v1999
      %vm2010 = vcmp.eq.f32.partialorder %v2009, 8.507059e+37
      %v2011 = vand.u32 %v1999, 2147483648
      %v2012 = vor.u32 1.1754944e-38, %v2011
      %v2013 = vsel %vm2010, %v2012, %v2008
      %v2014 = vmul.f32 %v1989, %v2013
      %v2015 = vmin.f32 %v2014, 1.0
      %v2016 = vmax.f32 %v2015, -1.0
      %v2017 = vmul.f32 %v1722, %v1722
      %v2018 = vmin.f32 16.0, %v2017
      %v2019 = vmul.f32 %v2018, 2.1237322e-06
      %v2020 = vadd.f32 %v2019, 0.00028619796
      %v2021 = vmul.f32 %v2018, %v2020
      %v2022 = vadd.f32 %v2021, 0.0036580483
      %v2023 = vmul.f32 %v2018, %v2022
      %v2024 = vadd.f32 %v2023, 0.05243302
      %v2025 = vmul.f32 %v2018, %v2024
      %v2026 = vadd.f32 %v2025, 0.18741608
      %v2027 = vmul.f32 %v2018, %v2026
      %v2028 = vadd.f32 %v2027, 1.1283791
      %v2029 = vmul.f32 %v1722, %v2028
      %v2030 = vmul.f32 %v2018, 3.8918573e-05
      %v2031 = vadd.f32 %v2030, 0.001143296
      %v2032 = vmul.f32 %v2018, %v2031
      %v2033 = vadd.f32 %v2032, 0.014752088
      %v2034 = vmul.f32 %v2018, %v2033
      %v2035 = vadd.f32 %v2034, 0.112945676
      %v2036 = vmul.f32 %v2018, %v2035
      %v2037 = vadd.f32 %v2036, 0.4994258
      %v2038 = vmul.f32 %v2018, %v2037
      %v2039 = vadd.f32 %v2038, 1.0
      %v2040 = vrcp.pop %v2039
      %v2041 = vmul.f32 %v2039, %v2040
      %v2042 = vsub.f32 1.0, %v2041
      %v2043 = vmul.f32 %v2040, %v2042
      %v2044 = vadd.f32 %v2040, %v2043
      %vm2045 = vweird.f32 %v2039
      %vm2046 = vweird.f32 %v2040
      %vm2047 = vmor %vm2045, %vm2046
      %v2048 = vsel %vm2047, %v2040, %v2044
      %v2049 = vand.u32 2147483647, %v2039
      %vm2050 = vcmp.eq.f32.partialorder %v2049, 8.507059e+37
      %v2051 = vand.u32 %v2039, 2147483648
      %v2052 = vor.u32 1.1754944e-38, %v2051
      %v2053 = vsel %vm2050, %v2052, %v2048
      %v2054 = vmul.f32 %v2029, %v2053
      %v2055 = vmin.f32 %v2054, 1.0
      %v2056 = vmax.f32 %v2055, -1.0
      %v2057 = vmul.f32 %v1723, %v1723
      %v2058 = vmin.f32 16.0, %v2057
      %v2059 = vmul.f32 %v2058, 2.1237322e-06
      %v2060 = vadd.f32 %v2059, 0.00028619796
      %v2061 = vmul.f32 %v2058, %v2060
      %v2062 = vadd.f32 %v2061, 0.0036580483
      %v2063 = vmul.f32 %v2058, %v2062
      %v2064 = vadd.f32 %v2063, 0.05243302
      %v2065 = vmul.f32 %v2058, %v2064
      %v2066 = vadd.f32 %v2065, 0.18741608
      %v2067 = vmul.f32 %v2058, %v2066
      %v2068 = vadd.f32 %v2067, 1.1283791
      %v2069 = vmul.f32 %v1723, %v2068
      %v2070 = vmul.f32 %v2058, 3.8918573e-05
      %v2071 = vadd.f32 %v2070, 0.001143296
      %v2072 = vmul.f32 %v2058, %v2071
      %v2073 = vadd.f32 %v2072, 0.014752088
      %v2074 = vmul.f32 %v2058, %v2073
      %v2075 = vadd.f32 %v2074, 0.112945676
      %v2076 = vmul.f32 %v2058, %v2075
      %v2077 = vadd.f32 %v2076, 0.4994258
      %v2078 = vmul.f32 %v2058, %v2077
      %v2079 = vadd.f32 %v2078, 1.0
      %v2080 = vrcp.pop %v2079
      %v2081 = vmul.f32 %v2079, %v2080
      %v2082 = vsub.f32 1.0, %v2081
      %v2083 = vmul.f32 %v2080, %v2082
      %v2084 = vadd.f32 %v2080, %v2083
      %vm2085 = vweird.f32 %v2079
      %vm2086 = vweird.f32 %v2080
      %vm2087 = vmor %vm2085, %vm2086
      %v2088 = vsel %vm2087, %v2080, %v2084
      %v2089 = vand.u32 2147483647, %v2079
      %vm2090 = vcmp.eq.f32.partialorder %v2089, 8.507059e+37
      %v2091 = vand.u32 %v2079, 2147483648
      %v2092 = vor.u32 1.1754944e-38, %v2091
      %v2093 = vsel %vm2090, %v2092, %v2088
      %v2094 = vmul.f32 %v2069, %v2093
      %v2095 = vmin.f32 %v2094, 1.0
      %v2096 = vmax.f32 %v2095, -1.0
      %v2097 = vmul.f32 %v1724, %v1724
      %v2098 = vmin.f32 16.0, %v2097
      %v2099 = vmul.f32 %v2098, 2.1237322e-06
      %v2100 = vadd.f32 %v2099, 0.00028619796
      %v2101 = vmul.f32 %v2098, %v2100
      %v2102 = vadd.f32 %v2101, 0.0036580483
      %v2103 = vmul.f32 %v2098, %v2102
      %v2104 = vadd.f32 %v2103, 0.05243302
      %v2105 = vmul.f32 %v2098, %v2104
      %v2106 = vadd.f32 %v2105, 0.18741608
      %v2107 = vmul.f32 %v2098, %v2106
      %v2108 = vadd.f32 %v2107, 1.1283791
      %v2109 = vmul.f32 %v1724, %v2108
      %v2110 = vmul.f32 %v2098, 3.8918573e-05
      %v2111 = vadd.f32 %v2110, 0.001143296
      %v2112 = vmul.f32 %v2098, %v2111
      %v2113 = vadd.f32 %v2112, 0.014752088
      %v2114 = vmul.f32 %v2098, %v2113
      %v2115 = vadd.f32 %v2114, 0.112945676
      %v2116 = vmul.f32 %v2098, %v2115
      %v2117 = vadd.f32 %v2116, 0.4994258
      %v2118 = vmul.f32 %v2098, %v2117
      %v2119 = vadd.f32 %v2118, 1.0
      %v2120 = vrcp.pop %v2119
      %v2121 = vmul.f32 %v2119, %v2120
      %v2122 = vsub.f32 1.0, %v2121
      %v2123 = vmul.f32 %v2120, %v2122
      %v2124 = vadd.f32 %v2120, %v2123
      %vm2125 = vweird.f32 %v2119
      %vm2126 = vweird.f32 %v2120
      %vm2127 = vmor %vm2125, %vm2126
      %v2128 = vsel %vm2127, %v2120, %v2124
      %v2129 = vand.u32 2147483647, %v2119
      %vm2130 = vcmp.eq.f32.partialorder %v2129, 8.507059e+37
      %v2131 = vand.u32 %v2119, 2147483648
      %v2132 = vor.u32 1.1754944e-38, %v2131
      %v2133 = vsel %vm2130, %v2132, %v2128
      %v2134 = vmul.f32 %v2109, %v2133
      %v2135 = vmin.f32 %v2134, 1.0
      %v2136 = vmax.f32 %v2135, -1.0
      %v2137 = vmul.f32 %v1725, %v1725
      %v2138 = vmin.f32 16.0, %v2137
      %v2139 = vmul.f32 %v2138, 2.1237322e-06
      %v2140 = vadd.f32 %v2139, 0.00028619796
      %v2141 = vmul.f32 %v2138, %v2140
      %v2142 = vadd.f32 %v2141, 0.0036580483
      %v2143 = vmul.f32 %v2138, %v2142
      %v2144 = vadd.f32 %v2143, 0.05243302
      %v2145 = vmul.f32 %v2138, %v2144
      %v2146 = vadd.f32 %v2145, 0.18741608
      %v2147 = vmul.f32 %v2138, %v2146
      %v2148 = vadd.f32 %v2147, 1.1283791
      %v2149 = vmul.f32 %v1725, %v2148
      %v2150 = vmul.f32 %v2138, 3.8918573e-05
      %v2151 = vadd.f32 %v2150, 0.001143296
      %v2152 = vmul.f32 %v2138, %v2151
      %v2153 = vadd.f32 %v2152, 0.014752088
      %v2154 = vmul.f32 %v2138, %v2153
      %v2155 = vadd.f32 %v2154, 0.112945676
      %v2156 = vmul.f32 %v2138, %v2155
      %v2157 = vadd.f32 %v2156, 0.4994258
      %v2158 = vmul.f32 %v2138, %v2157
      %v2159 = vadd.f32 %v2158, 1.0
      %v2160 = vrcp.pop %v2159
      %v2161 = vmul.f32 %v2159, %v2160
      %v2162 = vsub.f32 1.0, %v2161
      %v2163 = vmul.f32 %v2160, %v2162
      %v2164 = vadd.f32 %v2160, %v2163
      %vm2165 = vweird.f32 %v2159
      %vm2166 = vweird.f32 %v2160
      %vm2167 = vmor %vm2165, %vm2166
      %v2168 = vsel %vm2167, %v2160, %v2164
      %v2169 = vand.u32 2147483647, %v2159
      %vm2170 = vcmp.eq.f32.partialorder %v2169, 8.507059e+37
      %v2171 = vand.u32 %v2159, 2147483648
      %v2172 = vor.u32 1.1754944e-38, %v2171
      %v2173 = vsel %vm2170, %v2172, %v2168
      %v2174 = vmul.f32 %v2149, %v2173
      %v2175 = vmin.f32 %v2174, 1.0
      %v2176 = vmax.f32 %v2175, -1.0
      %v2177 = vmul.f32 %v1726, %v1726
      %v2178 = vmin.f32 16.0, %v2177
      %v2179 = vmul.f32 %v2178, 2.1237322e-06
      %v2180 = vadd.f32 %v2179, 0.00028619796
      %v2181 = vmul.f32 %v2178, %v2180
      %v2182 = vadd.f32 %v2181, 0.0036580483
      %v2183 = vmul.f32 %v2178, %v2182
      %v2184 = vadd.f32 %v2183, 0.05243302
      %v2185 = vmul.f32 %v2178, %v2184
      %v2186 = vadd.f32 %v2185, 0.18741608
      %v2187 = vmul.f32 %v2178, %v2186
      %v2188 = vadd.f32 %v2187, 1.1283791
      %v2189 = vmul.f32 %v1726, %v2188
      %v2190 = vmul.f32 %v2178, 3.8918573e-05
      %v2191 = vadd.f32 %v2190, 0.001143296
      %v2192 = vmul.f32 %v2178, %v2191
      %v2193 = vadd.f32 %v2192, 0.014752088
      %v2194 = vmul.f32 %v2178, %v2193
      %v2195 = vadd.f32 %v2194, 0.112945676
      %v2196 = vmul.f32 %v2178, %v2195
      %v2197 = vadd.f32 %v2196, 0.4994258
      %v2198 = vmul.f32 %v2178, %v2197
      %v2199 = vadd.f32 %v2198, 1.0
      %v2200 = vrcp.pop %v2199
      %v2201 = vmul.f32 %v2199, %v2200
      %v2202 = vsub.f32 1.0, %v2201
      %v2203 = vmul.f32 %v2200, %v2202
      %v2204 = vadd.f32 %v2200, %v2203
      %vm2205 = vweird.f32 %v2199
      %vm2206 = vweird.f32 %v2200
      %vm2207 = vmor %vm2205, %vm2206
      %v2208 = vsel %vm2207, %v2200, %v2204
      %v2209 = vand.u32 2147483647, %v2199
      %vm2210 = vcmp.eq.f32.partialorder %v2209, 8.507059e+37
      %v2211 = vand.u32 %v2199, 2147483648
      %v2212 = vor.u32 1.1754944e-38, %v2211
      %v2213 = vsel %vm2210, %v2212, %v2208
      %v2214 = vmul.f32 %v2189, %v2213
      %v2215 = vmin.f32 %v2214, 1.0
      %v2216 = vmax.f32 %v2215, -1.0
      %v2217 = vmul.f32 %v1727, %v1727
      %v2218 = vmin.f32 16.0, %v2217
      %v2219 = vmul.f32 %v2218, 2.1237322e-06
      %v2220 = vadd.f32 %v2219, 0.00028619796
      %v2221 = vmul.f32 %v2218, %v2220
      %v2222 = vadd.f32 %v2221, 0.0036580483
      %v2223 = vmul.f32 %v2218, %v2222
      %v2224 = vadd.f32 %v2223, 0.05243302
      %v2225 = vmul.f32 %v2218, %v2224
      %v2226 = vadd.f32 %v2225, 0.18741608
      %v2227 = vmul.f32 %v2218, %v2226
      %v2228 = vadd.f32 %v2227, 1.1283791
      %v2229 = vmul.f32 %v1727, %v2228
      %v2230 = vmul.f32 %v2218, 3.8918573e-05
      %v2231 = vadd.f32 %v2230, 0.001143296
      %v2232 = vmul.f32 %v2218, %v2231
      %v2233 = vadd.f32 %v2232, 0.014752088
      %v2234 = vmul.f32 %v2218, %v2233
      %v2235 = vadd.f32 %v2234, 0.112945676
      %v2236 = vmul.f32 %v2218, %v2235
      %v2237 = vadd.f32 %v2236, 0.4994258
      %v2238 = vmul.f32 %v2218, %v2237
      %v2239 = vadd.f32 %v2238, 1.0
      %v2240 = vrcp.pop %v2239
      %v2241 = vmul.f32 %v2239, %v2240
      %v2242 = vsub.f32 1.0, %v2241
      %v2243 = vmul.f32 %v2240, %v2242
      %v2244 = vadd.f32 %v2240, %v2243
      %vm2245 = vweird.f32 %v2239
      %vm2246 = vweird.f32 %v2240
      %vm2247 = vmor %vm2245, %vm2246
      %v2248 = vsel %vm2247, %v2240, %v2244
      %v2249 = vand.u32 2147483647, %v2239
      %vm2250 = vcmp.eq.f32.partialorder %v2249, 8.507059e+37
      %v2251 = vand.u32 %v2239, 2147483648
      %v2252 = vor.u32 1.1754944e-38, %v2251
      %v2253 = vsel %vm2250, %v2252, %v2248
      %v2254 = vmul.f32 %v2229, %v2253
      %v2255 = vmin.f32 %v2254, 1.0
      %v2256 = vmax.f32 %v2255, -1.0
      %v2257 = vmul.f32 %v1728, %v1728
      %v2258 = vmin.f32 16.0, %v2257
      %v2259 = vmul.f32 %v2258, 2.1237322e-06
      %v2260 = vadd.f32 %v2259, 0.00028619796
      %v2261 = vmul.f32 %v2258, %v2260
      %v2262 = vadd.f32 %v2261, 0.0036580483
      %v2263 = vmul.f32 %v2258, %v2262
      %v2264 = vadd.f32 %v2263, 0.05243302
      %v2265 = vmul.f32 %v2258, %v2264
      %v2266 = vadd.f32 %v2265, 0.18741608
      %v2267 = vmul.f32 %v2258, %v2266
      %v2268 = vadd.f32 %v2267, 1.1283791
      %v2269 = vmul.f32 %v1728, %v2268
      %v2270 = vmul.f32 %v2258, 3.8918573e-05
      %v2271 = vadd.f32 %v2270, 0.001143296
      %v2272 = vmul.f32 %v2258, %v2271
      %v2273 = vadd.f32 %v2272, 0.014752088
      %v2274 = vmul.f32 %v2258, %v2273
      %v2275 = vadd.f32 %v2274, 0.112945676
      %v2276 = vmul.f32 %v2258, %v2275
      %v2277 = vadd.f32 %v2276, 0.4994258
      %v2278 = vmul.f32 %v2258, %v2277
      %v2279 = vadd.f32 %v2278, 1.0
      %v2280 = vrcp.pop %v2279
      %v2281 = vmul.f32 %v2279, %v2280
      %v2282 = vsub.f32 1.0, %v2281
      %v2283 = vmul.f32 %v2280, %v2282
      %v2284 = vadd.f32 %v2280, %v2283
      %vm2285 = vweird.f32 %v2279
      %vm2286 = vweird.f32 %v2280
      %vm2287 = vmor %vm2285, %vm2286
      %v2288 = vsel %vm2287, %v2280, %v2284
      %v2289 = vand.u32 2147483647, %v2279
      %vm2290 = vcmp.eq.f32.partialorder %v2289, 8.507059e+37
      %v2291 = vand.u32 %v2279, 2147483648
      %v2292 = vor.u32 1.1754944e-38, %v2291
      %v2293 = vsel %vm2290, %v2292, %v2288
      %v2294 = vmul.f32 %v2269, %v2293
      %v2295 = vmin.f32 %v2294, 1.0
      %v2296 = vmax.f32 %v2295, -1.0
      %v2297 = vmul.f32 %v1729, %v1729
      %v2298 = vmin.f32 16.0, %v2297
      %v2299 = vmul.f32 %v2298, 2.1237322e-06
      %v2300 = vadd.f32 %v2299, 0.00028619796
      %v2301 = vmul.f32 %v2298, %v2300
      %v2302 = vadd.f32 %v2301, 0.0036580483
      %v2303 = vmul.f32 %v2298, %v2302
      %v2304 = vadd.f32 %v2303, 0.05243302
      %v2305 = vmul.f32 %v2298, %v2304
      %v2306 = vadd.f32 %v2305, 0.18741608
      %v2307 = vmul.f32 %v2298, %v2306
      %v2308 = vadd.f32 %v2307, 1.1283791
      %v2309 = vmul.f32 %v1729, %v2308
      %v2310 = vmul.f32 %v2298, 3.8918573e-05
      %v2311 = vadd.f32 %v2310, 0.001143296
      %v2312 = vmul.f32 %v2298, %v2311
      %v2313 = vadd.f32 %v2312, 0.014752088
      %v2314 = vmul.f32 %v2298, %v2313
      %v2315 = vadd.f32 %v2314, 0.112945676
      %v2316 = vmul.f32 %v2298, %v2315
      %v2317 = vadd.f32 %v2316, 0.4994258
      %v2318 = vmul.f32 %v2298, %v2317
      %v2319 = vadd.f32 %v2318, 1.0
      %v2320 = vrcp.pop %v2319
      %v2321 = vmul.f32 %v2319, %v2320
      %v2322 = vsub.f32 1.0, %v2321
      %v2323 = vmul.f32 %v2320, %v2322
      %v2324 = vadd.f32 %v2320, %v2323
      %vm2325 = vweird.f32 %v2319
      %vm2326 = vweird.f32 %v2320
      %vm2327 = vmor %vm2325, %vm2326
      %v2328 = vsel %vm2327, %v2320, %v2324
      %v2329 = vand.u32 2147483647, %v2319
      %vm2330 = vcmp.eq.f32.partialorder %v2329, 8.507059e+37
      %v2331 = vand.u32 %v2319, 2147483648
      %v2332 = vor.u32 1.1754944e-38, %v2331
      %v2333 = vsel %vm2330, %v2332, %v2328
      %v2334 = vmul.f32 %v2309, %v2333
      %v2335 = vmin.f32 %v2334, 1.0
      %v2336 = vmax.f32 %v2335, -1.0
      %v2337 = vmul.f32 %v1730, %v1730
      %v2338 = vmin.f32 16.0, %v2337
      %v2339 = vmul.f32 %v2338, 2.1237322e-06
      %v2340 = vadd.f32 %v2339, 0.00028619796
      %v2341 = vmul.f32 %v2338, %v2340
      %v2342 = vadd.f32 %v2341, 0.0036580483
      %v2343 = vmul.f32 %v2338, %v2342
      %v2344 = vadd.f32 %v2343, 0.05243302
      %v2345 = vmul.f32 %v2338, %v2344
      %v2346 = vadd.f32 %v2345, 0.18741608
      %v2347 = vmul.f32 %v2338, %v2346
      %v2348 = vadd.f32 %v2347, 1.1283791
      %v2349 = vmul.f32 %v1730, %v2348
      %v2350 = vmul.f32 %v2338, 3.8918573e-05
      %v2351 = vadd.f32 %v2350, 0.001143296
      %v2352 = vmul.f32 %v2338, %v2351
      %v2353 = vadd.f32 %v2352, 0.014752088
      %v2354 = vmul.f32 %v2338, %v2353
      %v2355 = vadd.f32 %v2354, 0.112945676
      %v2356 = vmul.f32 %v2338, %v2355
      %v2357 = vadd.f32 %v2356, 0.4994258
      %v2358 = vmul.f32 %v2338, %v2357
      %v2359 = vadd.f32 %v2358, 1.0
      %v2360 = vrcp.pop %v2359
      %v2361 = vmul.f32 %v2359, %v2360
      %v2362 = vsub.f32 1.0, %v2361
      %v2363 = vmul.f32 %v2360, %v2362
      %v2364 = vadd.f32 %v2360, %v2363
      %vm2365 = vweird.f32 %v2359
      %vm2366 = vweird.f32 %v2360
      %vm2367 = vmor %vm2365, %vm2366
      %v2368 = vsel %vm2367, %v2360, %v2364
      %v2369 = vand.u32 2147483647, %v2359
      %vm2370 = vcmp.eq.f32.partialorder %v2369, 8.507059e+37
      %v2371 = vand.u32 %v2359, 2147483648
      %v2372 = vor.u32 1.1754944e-38, %v2371
      %v2373 = vsel %vm2370, %v2372, %v2368
      %v2374 = vmul.f32 %v2349, %v2373
      %v2375 = vmin.f32 %v2374, 1.0
      %v2376 = vmax.f32 %v2375, -1.0
      %v2377 = vmul.f32 %v1731, %v1731
      %v2378 = vmin.f32 16.0, %v2377
      %v2379 = vmul.f32 %v2378, 2.1237322e-06
      %v2380 = vadd.f32 %v2379, 0.00028619796
      %v2381 = vmul.f32 %v2378, %v2380
      %v2382 = vadd.f32 %v2381, 0.0036580483
      %v2383 = vmul.f32 %v2378, %v2382
      %v2384 = vadd.f32 %v2383, 0.05243302
      %v2385 = vmul.f32 %v2378, %v2384
      %v2386 = vadd.f32 %v2385, 0.18741608
      %v2387 = vmul.f32 %v2378, %v2386
      %v2388 = vadd.f32 %v2387, 1.1283791
      %v2389 = vmul.f32 %v1731, %v2388
      %v2390 = vmul.f32 %v2378, 3.8918573e-05
      %v2391 = vadd.f32 %v2390, 0.001143296
      %v2392 = vmul.f32 %v2378, %v2391
      %v2393 = vadd.f32 %v2392, 0.014752088
      %v2394 = vmul.f32 %v2378, %v2393
      %v2395 = vadd.f32 %v2394, 0.112945676
      %v2396 = vmul.f32 %v2378, %v2395
      %v2397 = vadd.f32 %v2396, 0.4994258
      %v2398 = vmul.f32 %v2378, %v2397
      %v2399 = vadd.f32 %v2398, 1.0
      %v2400 = vrcp.pop %v2399
      %v2401 = vmul.f32 %v2399, %v2400
      %v2402 = vsub.f32 1.0, %v2401
      %v2403 = vmul.f32 %v2400, %v2402
      %v2404 = vadd.f32 %v2400, %v2403
      %vm2405 = vweird.f32 %v2399
      %vm2406 = vweird.f32 %v2400
      %vm2407 = vmor %vm2405, %vm2406
      %v2408 = vsel %vm2407, %v2400, %v2404
      %v2409 = vand.u32 2147483647, %v2399
      %vm2410 = vcmp.eq.f32.partialorder %v2409, 8.507059e+37
      %v2411 = vand.u32 %v2399, 2147483648
      %v2412 = vor.u32 1.1754944e-38, %v2411
      %v2413 = vsel %vm2410, %v2412, %v2408
      %v2414 = vmul.f32 %v2389, %v2413
      %v2415 = vmin.f32 %v2414, 1.0
      %v2416 = vmax.f32 %v2415, -1.0
      %v2417 = vmul.f32 %v1732, %v1732
      %v2418 = vmin.f32 16.0, %v2417
      %v2419 = vmul.f32 %v2418, 2.1237322e-06
      %v2420 = vadd.f32 %v2419, 0.00028619796
      %v2421 = vmul.f32 %v2418, %v2420
      %v2422 = vadd.f32 %v2421, 0.0036580483
      %v2423 = vmul.f32 %v2418, %v2422
      %v2424 = vadd.f32 %v2423, 0.05243302
      %v2425 = vmul.f32 %v2418, %v2424
      %v2426 = vadd.f32 %v2425, 0.18741608
      %v2427 = vmul.f32 %v2418, %v2426
      %v2428 = vadd.f32 %v2427, 1.1283791
      %v2429 = vmul.f32 %v1732, %v2428
      %v2430 = vmul.f32 %v2418, 3.8918573e-05
      %v2431 = vadd.f32 %v2430, 0.001143296
      %v2432 = vmul.f32 %v2418, %v2431
      %v2433 = vadd.f32 %v2432, 0.014752088
      %v2434 = vmul.f32 %v2418, %v2433
      %v2435 = vadd.f32 %v2434, 0.112945676
      %v2436 = vmul.f32 %v2418, %v2435
      %v2437 = vadd.f32 %v2436, 0.4994258
      %v2438 = vmul.f32 %v2418, %v2437
      %v2439 = vadd.f32 %v2438, 1.0
      %v2440 = vrcp.pop %v2439
      %v2441 = vmul.f32 %v2439, %v2440
      %v2442 = vsub.f32 1.0, %v2441
      %v2443 = vmul.f32 %v2440, %v2442
      %v2444 = vadd.f32 %v2440, %v2443
      %vm2445 = vweird.f32 %v2439
      %vm2446 = vweird.f32 %v2440
      %vm2447 = vmor %vm2445, %vm2446
      %v2448 = vsel %vm2447, %v2440, %v2444
      %v2449 = vand.u32 2147483647, %v2439
      %vm2450 = vcmp.eq.f32.partialorder %v2449, 8.507059e+37
      %v2451 = vand.u32 %v2439, 2147483648
      %v2452 = vor.u32 1.1754944e-38, %v2451
      %v2453 = vsel %vm2450, %v2452, %v2448
      %v2454 = vmul.f32 %v2429, %v2453
      %v2455 = vmin.f32 %v2454, 1.0
      %v2456 = vmax.f32 %v2455, -1.0
      %v2457 = vmul.f32 %v1733, %v1733
      %v2458 = vmin.f32 16.0, %v2457
      %v2459 = vmul.f32 %v2458, 2.1237322e-06
      %v2460 = vadd.f32 %v2459, 0.00028619796
      %v2461 = vmul.f32 %v2458, %v2460
      %v2462 = vadd.f32 %v2461, 0.0036580483
      %v2463 = vmul.f32 %v2458, %v2462
      %v2464 = vadd.f32 %v2463, 0.05243302
      %v2465 = vmul.f32 %v2458, %v2464
      %v2466 = vadd.f32 %v2465, 0.18741608
      %v2467 = vmul.f32 %v2458, %v2466
      %v2468 = vadd.f32 %v2467, 1.1283791
      %v2469 = vmul.f32 %v1733, %v2468
      %v2470 = vmul.f32 %v2458, 3.8918573e-05
      %v2471 = vadd.f32 %v2470, 0.001143296
      %v2472 = vmul.f32 %v2458, %v2471
      %v2473 = vadd.f32 %v2472, 0.014752088
      %v2474 = vmul.f32 %v2458, %v2473
      %v2475 = vadd.f32 %v2474, 0.112945676
      %v2476 = vmul.f32 %v2458, %v2475
      %v2477 = vadd.f32 %v2476, 0.4994258
      %v2478 = vmul.f32 %v2458, %v2477
      %v2479 = vadd.f32 %v2478, 1.0
      %v2480 = vrcp.pop %v2479
      %v2481 = vmul.f32 %v2479, %v2480
      %v2482 = vsub.f32 1.0, %v2481
      %v2483 = vmul.f32 %v2480, %v2482
      %v2484 = vadd.f32 %v2480, %v2483
      %vm2485 = vweird.f32 %v2479
      %vm2486 = vweird.f32 %v2480
      %vm2487 = vmor %vm2485, %vm2486
      %v2488 = vsel %vm2487, %v2480, %v2484
      %v2489 = vand.u32 2147483647, %v2479
      %vm2490 = vcmp.eq.f32.partialorder %v2489, 8.507059e+37
      %v2491 = vand.u32 %v2479, 2147483648
      %v2492 = vor.u32 1.1754944e-38, %v2491
      %v2493 = vsel %vm2490, %v2492, %v2488
      %v2494 = vmul.f32 %v2469, %v2493
      %v2495 = vmin.f32 %v2494, 1.0
      %v2496 = vmax.f32 %v2495, -1.0
      %v2497 = vmul.f32 %v1734, %v1734
      %v2498 = vmin.f32 16.0, %v2497
      %v2499 = vmul.f32 %v2498, 2.1237322e-06
      %v2500 = vadd.f32 %v2499, 0.00028619796
      %v2501 = vmul.f32 %v2498, %v2500
      %v2502 = vadd.f32 %v2501, 0.0036580483
      %v2503 = vmul.f32 %v2498, %v2502
      %v2504 = vadd.f32 %v2503, 0.05243302
      %v2505 = vmul.f32 %v2498, %v2504
      %v2506 = vadd.f32 %v2505, 0.18741608
      %v2507 = vmul.f32 %v2498, %v2506
      %v2508 = vadd.f32 %v2507, 1.1283791
      %v2509 = vmul.f32 %v1734, %v2508
      %v2510 = vmul.f32 %v2498, 3.8918573e-05
      %v2511 = vadd.f32 %v2510, 0.001143296
      %v2512 = vmul.f32 %v2498, %v2511
      %v2513 = vadd.f32 %v2512, 0.014752088
      %v2514 = vmul.f32 %v2498, %v2513
      %v2515 = vadd.f32 %v2514, 0.112945676
      %v2516 = vmul.f32 %v2498, %v2515
      %v2517 = vadd.f32 %v2516, 0.4994258
      %v2518 = vmul.f32 %v2498, %v2517
      %v2519 = vadd.f32 %v2518, 1.0
      %v2520 = vrcp.pop %v2519
      %v2521 = vmul.f32 %v2519, %v2520
      %v2522 = vsub.f32 1.0, %v2521
      %v2523 = vmul.f32 %v2520, %v2522
      %v2524 = vadd.f32 %v2520, %v2523
      %vm2525 = vweird.f32 %v2519
      %vm2526 = vweird.f32 %v2520
      %vm2527 = vmor %vm2525, %vm2526
      %v2528 = vsel %vm2527, %v2520, %v2524
      %v2529 = vand.u32 2147483647, %v2519
      %vm2530 = vcmp.eq.f32.partialorder %v2529, 8.507059e+37
      %v2531 = vand.u32 %v2519, 2147483648
      %v2532 = vor.u32 1.1754944e-38, %v2531
      %v2533 = vsel %vm2530, %v2532, %v2528
      %v2534 = vmul.f32 %v2509, %v2533
      %v2535 = vmin.f32 %v2534, 1.0
      %v2536 = vmax.f32 %v2535, -1.0
      %v2537 = vmul.f32 %v1735, %v1735
      %v2538 = vmin.f32 16.0, %v2537
      %v2539 = vmul.f32 %v2538, 2.1237322e-06
      %v2540 = vadd.f32 %v2539, 0.00028619796
      %v2541 = vmul.f32 %v2538, %v2540
      %v2542 = vadd.f32 %v2541, 0.0036580483
      %v2543 = vmul.f32 %v2538, %v2542
      %v2544 = vadd.f32 %v2543, 0.05243302
      %v2545 = vmul.f32 %v2538, %v2544
      %v2546 = vadd.f32 %v2545, 0.18741608
      %v2547 = vmul.f32 %v2538, %v2546
      %v2548 = vadd.f32 %v2547, 1.1283791
      %v2549 = vmul.f32 %v1735, %v2548
      %v2550 = vmul.f32 %v2538, 3.8918573e-05
      %v2551 = vadd.f32 %v2550, 0.001143296
      %v2552 = vmul.f32 %v2538, %v2551
      %v2553 = vadd.f32 %v2552, 0.014752088
      %v2554 = vmul.f32 %v2538, %v2553
      %v2555 = vadd.f32 %v2554, 0.112945676
      %v2556 = vmul.f32 %v2538, %v2555
      %v2557 = vadd.f32 %v2556, 0.4994258
      %v2558 = vmul.f32 %v2538, %v2557
      %v2559 = vadd.f32 %v2558, 1.0
      %v2560 = vrcp.pop %v2559
      %v2561 = vmul.f32 %v2559, %v2560
      %v2562 = vsub.f32 1.0, %v2561
      %v2563 = vmul.f32 %v2560, %v2562
      %v2564 = vadd.f32 %v2560, %v2563
      %vm2565 = vweird.f32 %v2559
      %vm2566 = vweird.f32 %v2560
      %vm2567 = vmor %vm2565, %vm2566
      %v2568 = vsel %vm2567, %v2560, %v2564
      %v2569 = vand.u32 2147483647, %v2559
      %vm2570 = vcmp.eq.f32.partialorder %v2569, 8.507059e+37
      %v2571 = vand.u32 %v2559, 2147483648
      %v2572 = vor.u32 1.1754944e-38, %v2571
      %v2573 = vsel %vm2570, %v2572, %v2568
      %v2574 = vmul.f32 %v2549, %v2573
      %v2575 = vmin.f32 %v2574, 1.0
      %v2576 = vmax.f32 %v2575, -1.0
      %v2577 = vmul.f32 %v1736, %v1736
      %v2578 = vmin.f32 16.0, %v2577
      %v2579 = vmul.f32 %v2578, 2.1237322e-06
      %v2580 = vadd.f32 %v2579, 0.00028619796
      %v2581 = vmul.f32 %v2578, %v2580
      %v2582 = vadd.f32 %v2581, 0.0036580483
      %v2583 = vmul.f32 %v2578, %v2582
      %v2584 = vadd.f32 %v2583, 0.05243302
      %v2585 = vmul.f32 %v2578, %v2584
      %v2586 = vadd.f32 %v2585, 0.18741608
      %v2587 = vmul.f32 %v2578, %v2586
      %v2588 = vadd.f32 %v2587, 1.1283791
      %v2589 = vmul.f32 %v1736, %v2588
      %v2590 = vmul.f32 %v2578, 3.8918573e-05
      %v2591 = vadd.f32 %v2590, 0.001143296
      %v2592 = vmul.f32 %v2578, %v2591
      %v2593 = vadd.f32 %v2592, 0.014752088
      %v2594 = vmul.f32 %v2578, %v2593
      %v2595 = vadd.f32 %v2594, 0.112945676
      %v2596 = vmul.f32 %v2578, %v2595
      %v2597 = vadd.f32 %v2596, 0.4994258
      %v2598 = vmul.f32 %v2578, %v2597
      %v2599 = vadd.f32 %v2598, 1.0
      %v2600 = vrcp.pop %v2599
      %v2601 = vmul.f32 %v2599, %v2600
      %v2602 = vsub.f32 1.0, %v2601
      %v2603 = vmul.f32 %v2600, %v2602
      %v2604 = vadd.f32 %v2600, %v2603
      %vm2605 = vweird.f32 %v2599
      %vm2606 = vweird.f32 %v2600
      %vm2607 = vmor %vm2605, %vm2606
      %v2608 = vsel %vm2607, %v2600, %v2604
      %v2609 = vand.u32 2147483647, %v2599
      %vm2610 = vcmp.eq.f32.partialorder %v2609, 8.507059e+37
      %v2611 = vand.u32 %v2599, 2147483648
      %v2612 = vor.u32 1.1754944e-38, %v2611
      %v2613 = vsel %vm2610, %v2612, %v2608
      %v2614 = vmul.f32 %v2589, %v2613
      %v2615 = vmin.f32 %v2614, 1.0
      %v2616 = vmax.f32 %v2615, -1.0
      %v2617 = vadd.f32 %v1776, 1.0
      %v2618 = vadd.f32 %v1816, 1.0
      %v2619 = vadd.f32 %v1856, 1.0
      %v2620 = vadd.f32 %v1896, 1.0
      %v2621 = vadd.f32 %v1936, 1.0
      %v2622 = vadd.f32 %v1976, 1.0
      %v2623 = vadd.f32 %v2016, 1.0
      %v2624 = vadd.f32 %v2056, 1.0
      %v2625 = vadd.f32 %v2096, 1.0
      %v2626 = vadd.f32 %v2136, 1.0
      %v2627 = vadd.f32 %v2176, 1.0
      %v2628 = vadd.f32 %v2216, 1.0
      %v2629 = vadd.f32 %v2256, 1.0
      %v2630 = vadd.f32 %v2296, 1.0
      %v2631 = vadd.f32 %v2336, 1.0
      %v2632 = vadd.f32 %v2376, 1.0
      %v2633 = vadd.f32 %v2416, 1.0
      %v2634 = vadd.f32 %v2456, 1.0
      %v2635 = vadd.f32 %v2496, 1.0
      %v2636 = vadd.f32 %v2536, 1.0
      %v2637 = vadd.f32 %v2576, 1.0
      %v2638 = vadd.f32 %v2616, 1.0
      %v2639 = vmul.f32 %v1693, %v2617
      %v2640 = vmul.f32 %v1694, %v2618
      %v2641 = vmul.f32 %v1695, %v2619
      %v2642 = vmul.f32 %v1696, %v2620
      %v2643 = vmul.f32 %v1697, %v2621
      %v2644 = vmul.f32 %v1698, %v2622
      %v2645 = vmul.f32 %v1699, %v2623
      %v2646 = vmul.f32 %v1700, %v2624
      %v2647 = vmul.f32 %v1701, %v2625
      %v2648 = vmul.f32 %v1702, %v2626
      %v2649 = vmul.f32 %v1703, %v2627
      %v2650 = vmul.f32 %v1704, %v2628
      %v2651 = vmul.f32 %v1705, %v2629
      %v2652 = vmul.f32 %v1706, %v2630
      %v2653 = vmul.f32 %v1707, %v2631
      %v2654 = vmul.f32 %v1708, %v2632
      %v2655 = vmul.f32 %v1709, %v2633
      %v2656 = vmul.f32 %v1710, %v2634
      %v2657 = vmul.f32 %v1711, %v2635
      %v2658 = vmul.f32 %v1712, %v2636
      %v2659 = vmul.f32 %v1713, %v2637
      %v2660 = vmul.f32 %v1714, %v2638
      %v2661 = vpack.c.bf16 %v1671, %v1671
      %v2662 = vpack.c.bf16 %v1672, %v1672
      %v2663 = vpack.c.bf16 %v1673, %v1673
      %v2664 = vpack.c.bf16 %v1674, %v1674
      %v2665 = vpack.c.bf16 %v1675, %v1675
      %v2666 = vpack.c.bf16 %v1676, %v1676
      %v2667 = vpack.c.bf16 %v1677, %v1677
      %v2668 = vpack.c.bf16 %v1678, %v1678
      %v2669 = vpack.c.bf16 %v1679, %v1679
      %v2670 = vpack.c.bf16 %v1680, %v1680
      %v2671 = vpack.c.bf16 %v1681, %v1681
      %v2672 = vpack.c.bf16 %v1682, %v1682
      %v2673 = vpack.c.bf16 %v1683, %v1683
      %v2674 = vpack.c.bf16 %v1684, %v1684
      %v2675 = vpack.c.bf16 %v1685, %v1685
      %v2676 = vpack.c.bf16 %v1686, %v1686
      %v2677 = vpack.c.bf16 %v1687, %v1687
      %v2678 = vpack.c.bf16 %v1688, %v1688
      %v2679 = vpack.c.bf16 %v1689, %v1689
      %v2680 = vpack.c.bf16 %v1690, %v1690
      %v2681 = vpack.c.bf16 %v1691, %v1691
      %v2682 = vpack.c.bf16 %v1692, %v1692
      %vm2683 = vcmask 125952
      %2684 = vst.msk [vmem:[%s170] sm:$0xf] %vm2683, %v2661
      %2685 = vst.msk [vmem:[%s170 + $0x4] sm:$0xf] %vm2683, %v2662
      %2686 = vst.msk [vmem:[%s170 + $0x8] sm:$0xf] %vm2683, %v2663
      %2687 = vst.msk [vmem:[%s170 + $0xc] sm:$0xf] %vm2683, %v2664
      %2688 = vst.msk [vmem:[%s170 + $0x10] sm:$0xf] %vm2683, %v2665
      %2689 = vst.msk [vmem:[%s170 + $0x14] sm:$0xf] %vm2683, %v2666
      %2690 = vst.msk [vmem:[%s170 + $0x18] sm:$0xf] %vm2683, %v2667
      %2691 = vst.msk [vmem:[%s170 + $0x1c] sm:$0xf] %vm2683, %v2668
      %2692 = vst.msk [vmem:[%s170 + $0x20] sm:$0xf] %vm2683, %v2669
      %2693 = vst.msk [vmem:[%s170 + $0x24] sm:$0xf] %vm2683, %v2670
      %2694 = vst.msk [vmem:[%s170 + $0x28] sm:$0xf] %vm2683, %v2671
      %2695 = vst.msk [vmem:[%s170 + $0x2c] sm:$0xf] %vm2683, %v2672
      %2696 = vst.msk [vmem:[%s170 + $0x30] sm:$0xf] %vm2683, %v2673
      %2697 = vst.msk [vmem:[%s170 + $0x34] sm:$0xf] %vm2683, %v2674
      %2698 = vst.msk [vmem:[%s170 + $0x38] sm:$0xf] %vm2683, %v2675
      %2699 = vst.msk [vmem:[%s170 + $0x3c] sm:$0xf] %vm2683, %v2676
      %2700 = vst.msk [vmem:[%s170 + $0x40] sm:$0xf] %vm2683, %v2677
      %2701 = vst.msk [vmem:[%s170 + $0x44] sm:$0xf] %vm2683, %v2678
      %2702 = vst.msk [vmem:[%s170 + $0x48] sm:$0xf] %vm2683, %v2679
      %2703 = vst.msk [vmem:[%s170 + $0x4c] sm:$0xf] %vm2683, %v2680
      %2704 = vst.msk [vmem:[%s170 + $0x50] sm:$0xf] %vm2683, %v2681
      %vm2705 = vcmask 123904
      %vm2706 = vsmask.f32 1280
      %vm2707 = vmand %vm2705, %vm2706
      %v2708 = vld [vmem:[%s170 + $0x54] sm:$0x3]
      %v2709 = vsel %vm2707, %v2682, %v2708
      %2710 = vst [vmem:[%s170 + $0x54] sm:$0x3] %v2709
      %v2711 = vpack.c.bf16 %v2639, %v2639
      %v2712 = vpack.c.bf16 %v2640, %v2640
      %v2713 = vpack.c.bf16 %v2641, %v2641
      %v2714 = vpack.c.bf16 %v2642, %v2642
      %v2715 = vpack.c.bf16 %v2643, %v2643
      %v2716 = vpack.c.bf16 %v2644, %v2644
      %v2717 = vpack.c.bf16 %v2645, %v2645
      %v2718 = vpack.c.bf16 %v2646, %v2646
      %v2719 = vpack.c.bf16 %v2647, %v2647
      %v2720 = vpack.c.bf16 %v2648, %v2648
      %v2721 = vpack.c.bf16 %v2649, %v2649
      %v2722 = vpack.c.bf16 %v2650, %v2650
      %v2723 = vpack.c.bf16 %v2651, %v2651
      %v2724 = vpack.c.bf16 %v2652, %v2652
      %v2725 = vpack.c.bf16 %v2653, %v2653
      %v2726 = vpack.c.bf16 %v2654, %v2654
      %v2727 = vpack.c.bf16 %v2655, %v2655
      %v2728 = vpack.c.bf16 %v2656, %v2656
      %v2729 = vpack.c.bf16 %v2657, %v2657
      %v2730 = vpack.c.bf16 %v2658, %v2658
      %v2731 = vpack.c.bf16 %v2659, %v2659
      %v2732 = vpack.c.bf16 %v2660, %v2660
      %2755 = vrot.lane.b32.xlu0 %v2711, 112
      %v2756 = vpop.permute.xlu0 %2755
      %2757 = vrot.lane.b32.xlu0 %v2712, 112
      %v2758 = vpop.permute.xlu0 %2757
      %2759 = vrot.lane.b32.xlu0 %v2713, 112
      %v2760 = vpop.permute.xlu0 %2759
      %2761 = vrot.lane.b32.xlu0 %v2714, 112
      %v2762 = vpop.permute.xlu0 %2761
      %2763 = vrot.lane.b32.xlu0 %v2715, 112
      %v2764 = vpop.permute.xlu0 %2763
      %2765 = vrot.lane.b32.xlu0 %v2716, 112
      %v2766 = vpop.permute.xlu0 %2765
      %2767 = vrot.lane.b32.xlu0 %v2717, 112
      %v2768 = vpop.permute.xlu0 %2767
      %2769 = vrot.lane.b32.xlu0 %v2718, 112
      %v2770 = vpop.permute.xlu0 %2769
      %2771 = vrot.lane.b32.xlu0 %v2719, 112
      %v2772 = vpop.permute.xlu0 %2771
      %2773 = vrot.lane.b32.xlu0 %v2720, 112
      %v2774 = vpop.permute.xlu0 %2773
      %2775 = vrot.lane.b32.xlu0 %v2721, 112
      %v2776 = vpop.permute.xlu0 %2775
      %2777 = vrot.lane.b32.xlu0 %v2722, 112
      %v2778 = vpop.permute.xlu0 %2777
      %2779 = vrot.lane.b32.xlu0 %v2723, 112
      %v2780 = vpop.permute.xlu0 %2779
      %2781 = vrot.lane.b32.xlu0 %v2724, 112
      %v2782 = vpop.permute.xlu0 %2781
      %2783 = vrot.lane.b32.xlu0 %v2725, 112
      %v2784 = vpop.permute.xlu0 %2783
      %2785 = vrot.lane.b32.xlu0 %v2726, 112
      %v2786 = vpop.permute.xlu0 %2785
      %2787 = vrot.lane.b32.xlu0 %v2727, 112
      %v2788 = vpop.permute.xlu0 %2787
      %2789 = vrot.lane.b32.xlu0 %v2728, 112
      %v2790 = vpop.permute.xlu0 %2789
      %2791 = vrot.lane.b32.xlu0 %v2729, 112
      %v2792 = vpop.permute.xlu0 %2791
      %2793 = vrot.lane.b32.xlu0 %v2730, 112
      %v2794 = vpop.permute.xlu0 %2793
      %2795 = vrot.lane.b32.xlu0 %v2731, 112
      %v2796 = vpop.permute.xlu0 %2795
      %2797 = vrot.lane.b32.xlu0 %v2732, 112
      %v2798 = vpop.permute.xlu0 %2797
      %s2821 = scalar_lea.vmem %s170, 88
      %2822 = vst.msk [vmem:[%s2821] sm:$0xf] %vm2683, %v2756
      %2823 = vst.msk [vmem:[%s2821 + $0x4] sm:$0xf] %vm2683, %v2758
      %2824 = vst.msk [vmem:[%s2821 + $0x8] sm:$0xf] %vm2683, %v2760
      %2825 = vst.msk [vmem:[%s2821 + $0xc] sm:$0xf] %vm2683, %v2762
      %2826 = vst.msk [vmem:[%s2821 + $0x10] sm:$0xf] %vm2683, %v2764
      %2827 = vst.msk [vmem:[%s2821 + $0x14] sm:$0xf] %vm2683, %v2766
      %2828 = vst.msk [vmem:[%s2821 + $0x18] sm:$0xf] %vm2683, %v2768
      %2829 = vst.msk [vmem:[%s2821 + $0x1c] sm:$0xf] %vm2683, %v2770
      %2830 = vst.msk [vmem:[%s2821 + $0x20] sm:$0xf] %vm2683, %v2772
      %2831 = vst.msk [vmem:[%s2821 + $0x24] sm:$0xf] %vm2683, %v2774
      %2832 = vst.msk [vmem:[%s2821 + $0x28] sm:$0xf] %vm2683, %v2776
      %2833 = vst.msk [vmem:[%s2821 + $0x2c] sm:$0xf] %vm2683, %v2778
      %2834 = vst.msk [vmem:[%s2821 + $0x30] sm:$0xf] %vm2683, %v2780
      %2835 = vst.msk [vmem:[%s2821 + $0x34] sm:$0xf] %vm2683, %v2782
      %2836 = vst.msk [vmem:[%s2821 + $0x38] sm:$0xf] %vm2683, %v2784
      %2837 = vst.msk [vmem:[%s2821 + $0x3c] sm:$0xf] %vm2683, %v2786
      %2838 = vst.msk [vmem:[%s2821 + $0x40] sm:$0xf] %vm2683, %v2788
      %2839 = vst.msk [vmem:[%s2821 + $0x44] sm:$0xf] %vm2683, %v2790
      %2840 = vst.msk [vmem:[%s2821 + $0x48] sm:$0xf] %vm2683, %v2792
      %2841 = vst.msk [vmem:[%s2821 + $0x4c] sm:$0xf] %vm2683, %v2794
      %2842 = vst.msk [vmem:[%s2821 + $0x50] sm:$0xf] %vm2683, %v2796
      %v2843 = vld [vmem:[%s2821 + $0x54] sm:$0x3]
      %v2844 = vsel %vm2707, %v2798, %v2843
      %2845 = vst [vmem:[%s2821 + $0x54] sm:$0x3] %v2844
      %p2846 = scmp.lt.s32.totalorder %s14, 1
      %s2847 = scalar_select %p2846, %s14, 1
      %s2848 = smul.addr %s2847, 44
      %s2849 = smul.addr %s2848, 4
      %s2850 = scalar_lea.vmem %s3, %s2849
      // Predicated region
      $region33: #{_lambda_.2} parent=31 // pred_check
        %p2851 = pneg %p100
      $region34: #{_lambda_.2} parent=31 // pred_check_branch
        %2853 = sbr.rel (%p2851) target = $region36
      $region35: #{_lambda_.2} parent=31 // pred_region
        _
      $region36: #{_lambda_.2} parent=31 // pred_fallthru
        _
    $region32: #{_lambda_.2} parent=5 // pred_fallthru
      _
    %p2854 = scmp.le.s32.totalorder 2, %s9
    // Predicated region
    $region37: #{_lambda_.2} parent=5 // pred_check
      %p2855 = pneg %p2854
    $region38: #{_lambda_.2} parent=5 // pred_check_branch
      %2857 = sbr.rel (%p2855) target = $region40
    $region39: #{_lambda_.2} parent=5 // pred_region
      %s2858 = ssub.s32 %s9, 2
      // Predicated region
      $region41: #{_lambda_.2} parent=39 // pred_check
        %p2859 = pneg %p106
      $region42: #{_lambda_.2} parent=39 // pred_check_branch
        %2861 = sbr.rel (%p2859) target = $region44
      $region43: #{_lambda_.2} parent=39 // pred_region
        %p2862 = scmp.lt.s32.totalorder %s15, 1
        %s2863 = scalar_select %p2862, %s15, 1
        %s2864 = smul.addr %s2863, 44
        %s2865 = smul.addr %s2864, 4
        %s2866 = scalar_lea.vmem %s3, %s2865
      $region44: #{_lambda_.2} parent=39 // pred_fallthru
        _
    $region40: #{_lambda_.2} parent=5 // pred_fallthru
      _
  $region6: #{_lambda_.2} parent=0 // loop_footer
    %s13 = sadd.s32 1, %s9
  $region7: #{_lambda_.2} parent=0 // loop_footer_branch
    %8 = sbr.rel target = $region3
  $region8: #{_lambda_.2} parent=0 // loop_exit
    _

// kernel: _lambda_.3
$region0: #{_lambda_.3}
  #allocation0 [shape = 'u32[]', space=smem, size = 0x4, offset = 0x4, fixed_abs, tag = 'smem constant byte address 0x4 - core index']
  #allocation1 [shape = 'u32[72,128]{1,0:T(1,128)}', space=vmem, size = 0x9000, scoped, tag = 'internal scratch']
  %s0 = inlined_call_operand.vmem [shape: bf16[2,86,128], index: 0, kind: input, shape index: {}]
  %s1 = inlined_call_operand.vmem [shape: bf16[128,32], index: 1, kind: input, shape index: {}]
  %s2 = inlined_call_operand.vmem [shape: f32[3,32], index: 2, kind: input, shape index: {}]
  %s3 = inlined_call_operand.vmem [shape: bf16[64,32], index: 3, kind: input, shape index: {}]
  %s4 = inlined_call_operand.vmem [shape: f32[3,32], index: 4, kind: input, shape index: {}]
  %s5 = inlined_call_operand.vmem [shape: bf16[64,32], index: 5, kind: input, shape index: {}]
  %s6 = inlined_call_operand.vmem [shape: f32[3,32], index: 6, kind: input, shape index: {}]
  %s7 = inlined_call_operand.vmem [shape: bf16[64,32], index: 7, kind: input, shape index: {}]
  %s8 = inlined_call_operand.vmem [shape: f32[3,32], index: 8, kind: input, shape index: {}]
  %s9 = inlined_call_operand.vmem [shape: bf16[64,32], index: 9, kind: input, shape index: {}]
  %s10 = inlined_call_operand.vmem [shape: f32[3,32], index: 10, kind: input, shape index: {}]
  %s11 = inlined_call_operand.vmem [shape: f32[2,2,7,16], index: 11, kind: output, shape index: {}]
  %s12 = sld [smem:[#allocation0]]
  $region77: #{_lambda_.3} parent=0
    _
  %s14 = ssub.s32 1, %s12
  %s15 = scalar_select 0, %s14, %s12
  loop: start=0, step=1, limit=4
  $region2: #{_lambda_.3} parent=0 // loop_pre_header
    _
  $region3: #{_lambda_.3} parent=0 // loop_header
    %s17 = sphi 0, %s21
    %p18 = scmp.ge.s32.totalorder %s17, 4
    %s27 = sphi 0, %s29
    %s30 = sphi 0, %s27
    %s31 = sphi 0, %s30
    %s47 = sphi 0, %s31
    %s51 = sphi 0, %s51
    %s53 = sphi 0, %s51
    %s54 = sphi 0, %s53
    %s68 = sphi 0, %s54
    %s72 = sphi 0, %s72
    %s74 = sphi 0, %s72
    %s75 = sphi 0, %s74
    %s89 = sphi 0, %s75
    %s93 = sphi 0, %s93
    %s95 = sphi 0, %s93
    %s96 = sphi 0, %s95
    %s110 = sphi 0, %s96
    %s114 = sphi 0, %s114
    %s116 = sphi 0, %s114
    %s117 = sphi 0, %s116
    %s131 = sphi 0, %s117
    %s135 = sphi 0, %s135
    %s137 = sphi 0, %s135
    %s138 = sphi 0, %s137
    %s152 = sphi 0, %s138
    %s156 = sphi 0, %s156
    %s158 = sphi 0, %s156
    %s159 = sphi 0, %s158
    %s173 = sphi 0, %s159
    %s177 = sphi 0, %s177
    %s179 = sphi 0, %s177
    %s180 = sphi 0, %s179
    %s194 = sphi 0, %s180
    %s198 = sphi 0, %s198
    %s200 = sphi 0, %s198
    %s201 = sphi 0, %s200
    %s215 = sphi 0, %s201
    %s219 = sphi 0, %s219
    %s221 = sphi 0, %s219
    %s222 = sphi 0, %s221
    %s236 = sphi 0, %s222
    %s240 = sphi 0, %s240
    %s242 = sphi 0, %s240
    %s243 = sphi 0, %s242
    %s257 = sphi 0, %s243
    %s263 = sphi 0, %s265
    %s266 = sphi 0, %s263
    %s267 = sphi 0, %s266
    %s283 = sphi 0, %s267
  $region4: #{_lambda_.3} parent=0 // loop_header_branch
    %20 = sbr.rel (%p18) target = $region8
  $region5: #{_lambda_.3} parent=0 // loop_body
    %s22 = ssub.s32 %s17, 1
    %s23 = ssub.s32 %s17, 2
    %s24 = sadd.s32 %s17, 1
    %s25 = ssub.s32 %s17, %s24
    %p26 = scmp.eq.s32.totalorder %s25, 0
    %s28 = sadd.s32 %s27, 1
    %s29 = scalar_select %p26, %s27, %s28
    %p32 = pneg %p26
    %p33 = scmp.eq.s32.totalorder %s17, 1
    %p34 = por %p32, %p33
    %p35 = scmp.ne.s32.totalorder %s27, %s30
    %p36 = scmp.eq.s32.totalorder %s17, 0
    %p37 = por %p35, %p36
    %p38 = scmp.ne.s32.totalorder %s27, %s30
    %p39 = scmp.eq.s32.totalorder %s22, 1
    %p40 = por %p38, %p39
    %p41 = scmp.ne.s32.totalorder %s30, %s31
    %p42 = scmp.eq.s32.totalorder %s22, 0
    %p43 = por %p41, %p42
    %p44 = scmp.ne.s32.totalorder %s30, %s31
    %p45 = scmp.eq.s32.totalorder %s23, 1
    %p46 = por %p44, %p45
    %p48 = scmp.ne.s32.totalorder %s31, %s47
    %p49 = scmp.eq.s32.totalorder %s23, 0
    %p50 = por %p48, %p49
    %s52 = sadd.s32 %s51, 1
    %p55 = scmp.eq.s32.totalorder %s17, 1
    %p56 = scmp.ne.s32.totalorder %s51, %s53
    %p57 = scmp.eq.s32.totalorder %s17, 0
    %p58 = por %p56, %p57
    %p59 = scmp.ne.s32.totalorder %s51, %s53
    %p60 = scmp.eq.s32.totalorder %s22, 1
    %p61 = por %p59, %p60
    %p62 = scmp.ne.s32.totalorder %s53, %s54
    %p63 = scmp.eq.s32.totalorder %s22, 0
    %p64 = por %p62, %p63
    %p65 = scmp.ne.s32.totalorder %s53, %s54
    %p66 = scmp.eq.s32.totalorder %s23, 1
    %p67 = por %p65, %p66
    %p69 = scmp.ne.s32.totalorder %s54, %s68
    %p70 = scmp.eq.s32.totalorder %s23, 0
    %p71 = por %p69, %p70
    %s73 = sadd.s32 %s72, 1
    %p76 = scmp.eq.s32.totalorder %s17, 1
    %p77 = scmp.ne.s32.totalorder %s72, %s74
    %p78 = scmp.eq.s32.totalorder %s17, 0
    %p79 = por %p77, %p78
    %p80 = scmp.ne.s32.totalorder %s72, %s74
    %p81 = scmp.eq.s32.totalorder %s22, 1
    %p82 = por %p80, %p81
    %p83 = scmp.ne.s32.totalorder %s74, %s75
    %p84 = scmp.eq.s32.totalorder %s22, 0
    %p85 = por %p83, %p84
    %p86 = scmp.ne.s32.totalorder %s74, %s75
    %p87 = scmp.eq.s32.totalorder %s23, 1
    %p88 = por %p86, %p87
    %p90 = scmp.ne.s32.totalorder %s75, %s89
    %p91 = scmp.eq.s32.totalorder %s23, 0
    %p92 = por %p90, %p91
    %s94 = sadd.s32 %s93, 1
    %p97 = scmp.eq.s32.totalorder %s17, 1
    %p98 = scmp.ne.s32.totalorder %s93, %s95
    %p99 = scmp.eq.s32.totalorder %s17, 0
    %p100 = por %p98, %p99
    %p101 = scmp.ne.s32.totalorder %s93, %s95
    %p102 = scmp.eq.s32.totalorder %s22, 1
    %p103 = por %p101, %p102
    %p104 = scmp.ne.s32.totalorder %s95, %s96
    %p105 = scmp.eq.s32.totalorder %s22, 0
    %p106 = por %p104, %p105
    %p107 = scmp.ne.s32.totalorder %s95, %s96
    %p108 = scmp.eq.s32.totalorder %s23, 1
    %p109 = por %p107, %p108
    %p111 = scmp.ne.s32.totalorder %s96, %s110
    %p112 = scmp.eq.s32.totalorder %s23, 0
    %p113 = por %p111, %p112
    %s115 = sadd.s32 %s114, 1
    %p118 = scmp.eq.s32.totalorder %s17, 1
    %p119 = scmp.ne.s32.totalorder %s114, %s116
    %p120 = scmp.eq.s32.totalorder %s17, 0
    %p121 = por %p119, %p120
    %p122 = scmp.ne.s32.totalorder %s114, %s116
    %p123 = scmp.eq.s32.totalorder %s22, 1
    %p124 = por %p122, %p123
    %p125 = scmp.ne.s32.totalorder %s116, %s117
    %p126 = scmp.eq.s32.totalorder %s22, 0
    %p127 = por %p125, %p126
    %p128 = scmp.ne.s32.totalorder %s116, %s117
    %p129 = scmp.eq.s32.totalorder %s23, 1
    %p130 = por %p128, %p129
    %p132 = scmp.ne.s32.totalorder %s117, %s131
    %p133 = scmp.eq.s32.totalorder %s23, 0
    %p134 = por %p132, %p133
    %s136 = sadd.s32 %s135, 1
    %p139 = scmp.eq.s32.totalorder %s17, 1
    %p140 = scmp.ne.s32.totalorder %s135, %s137
    %p141 = scmp.eq.s32.totalorder %s17, 0
    %p142 = por %p140, %p141
    %p143 = scmp.ne.s32.totalorder %s135, %s137
    %p144 = scmp.eq.s32.totalorder %s22, 1
    %p145 = por %p143, %p144
    %p146 = scmp.ne.s32.totalorder %s137, %s138
    %p147 = scmp.eq.s32.totalorder %s22, 0
    %p148 = por %p146, %p147
    %p149 = scmp.ne.s32.totalorder %s137, %s138
    %p150 = scmp.eq.s32.totalorder %s23, 1
    %p151 = por %p149, %p150
    %p153 = scmp.ne.s32.totalorder %s138, %s152
    %p154 = scmp.eq.s32.totalorder %s23, 0
    %p155 = por %p153, %p154
    %s157 = sadd.s32 %s156, 1
    %p160 = scmp.eq.s32.totalorder %s17, 1
    %p161 = scmp.ne.s32.totalorder %s156, %s158
    %p162 = scmp.eq.s32.totalorder %s17, 0
    %p163 = por %p161, %p162
    %p164 = scmp.ne.s32.totalorder %s156, %s158
    %p165 = scmp.eq.s32.totalorder %s22, 1
    %p166 = por %p164, %p165
    %p167 = scmp.ne.s32.totalorder %s158, %s159
    %p168 = scmp.eq.s32.totalorder %s22, 0
    %p169 = por %p167, %p168
    %p170 = scmp.ne.s32.totalorder %s158, %s159
    %p171 = scmp.eq.s32.totalorder %s23, 1
    %p172 = por %p170, %p171
    %p174 = scmp.ne.s32.totalorder %s159, %s173
    %p175 = scmp.eq.s32.totalorder %s23, 0
    %p176 = por %p174, %p175
    %s178 = sadd.s32 %s177, 1
    %p181 = scmp.eq.s32.totalorder %s17, 1
    %p182 = scmp.ne.s32.totalorder %s177, %s179
    %p183 = scmp.eq.s32.totalorder %s17, 0
    %p184 = por %p182, %p183
    %p185 = scmp.ne.s32.totalorder %s177, %s179
    %p186 = scmp.eq.s32.totalorder %s22, 1
    %p187 = por %p185, %p186
    %p188 = scmp.ne.s32.totalorder %s179, %s180
    %p189 = scmp.eq.s32.totalorder %s22, 0
    %p190 = por %p188, %p189
    %p191 = scmp.ne.s32.totalorder %s179, %s180
    %p192 = scmp.eq.s32.totalorder %s23, 1
    %p193 = por %p191, %p192
    %p195 = scmp.ne.s32.totalorder %s180, %s194
    %p196 = scmp.eq.s32.totalorder %s23, 0
    %p197 = por %p195, %p196
    %s199 = sadd.s32 %s198, 1
    %p202 = scmp.eq.s32.totalorder %s17, 1
    %p203 = scmp.ne.s32.totalorder %s198, %s200
    %p204 = scmp.eq.s32.totalorder %s17, 0
    %p205 = por %p203, %p204
    %p206 = scmp.ne.s32.totalorder %s198, %s200
    %p207 = scmp.eq.s32.totalorder %s22, 1
    %p208 = por %p206, %p207
    %p209 = scmp.ne.s32.totalorder %s200, %s201
    %p210 = scmp.eq.s32.totalorder %s22, 0
    %p211 = por %p209, %p210
    %p212 = scmp.ne.s32.totalorder %s200, %s201
    %p213 = scmp.eq.s32.totalorder %s23, 1
    %p214 = por %p212, %p213
    %p216 = scmp.ne.s32.totalorder %s201, %s215
    %p217 = scmp.eq.s32.totalorder %s23, 0
    %p218 = por %p216, %p217
    %s220 = sadd.s32 %s219, 1
    %p223 = scmp.eq.s32.totalorder %s17, 1
    %p224 = scmp.ne.s32.totalorder %s219, %s221
    %p225 = scmp.eq.s32.totalorder %s17, 0
    %p226 = por %p224, %p225
    %p227 = scmp.ne.s32.totalorder %s219, %s221
    %p228 = scmp.eq.s32.totalorder %s22, 1
    %p229 = por %p227, %p228
    %p230 = scmp.ne.s32.totalorder %s221, %s222
    %p231 = scmp.eq.s32.totalorder %s22, 0
    %p232 = por %p230, %p231
    %p233 = scmp.ne.s32.totalorder %s221, %s222
    %p234 = scmp.eq.s32.totalorder %s23, 1
    %p235 = por %p233, %p234
    %p237 = scmp.ne.s32.totalorder %s222, %s236
    %p238 = scmp.eq.s32.totalorder %s23, 0
    %p239 = por %p237, %p238
    %s241 = sadd.s32 %s240, 1
    %p244 = scmp.eq.s32.totalorder %s17, 1
    %p245 = scmp.ne.s32.totalorder %s240, %s242
    %p246 = scmp.eq.s32.totalorder %s17, 0
    %p247 = por %p245, %p246
    %p248 = scmp.ne.s32.totalorder %s240, %s242
    %p249 = scmp.eq.s32.totalorder %s22, 1
    %p250 = por %p248, %p249
    %p251 = scmp.ne.s32.totalorder %s242, %s243
    %p252 = scmp.eq.s32.totalorder %s22, 0
    %p253 = por %p251, %p252
    %p254 = scmp.ne.s32.totalorder %s242, %s243
    %p255 = scmp.eq.s32.totalorder %s23, 1
    %p256 = por %p254, %p255
    %p258 = scmp.ne.s32.totalorder %s243, %s257
    %p259 = scmp.eq.s32.totalorder %s23, 0
    %p260 = por %p258, %p259
    %s261 = ssub.s32 %s17, %s24
    %p262 = scmp.eq.s32.totalorder %s261, 0
    %s264 = sadd.s32 %s263, 1
    %s265 = scalar_select %p262, %s263, %s264
    %p268 = pneg %p262
    %p269 = scmp.eq.s32.totalorder %s17, 1
    %p270 = por %p268, %p269
    %p271 = scmp.ne.s32.totalorder %s263, %s266
    %p272 = scmp.eq.s32.totalorder %s17, 0
    %p273 = por %p271, %p272
    %p274 = scmp.ne.s32.totalorder %s263, %s266
    %p275 = scmp.eq.s32.totalorder %s22, 1
    %p276 = por %p274, %p275
    %p277 = scmp.ne.s32.totalorder %s266, %s267
    %p278 = scmp.eq.s32.totalorder %s22, 0
    %p279 = por %p277, %p278
    %p280 = scmp.ne.s32.totalorder %s266, %s267
    %p281 = scmp.eq.s32.totalorder %s23, 1
    %p282 = por %p280, %p281
    %p284 = scmp.ne.s32.totalorder %s267, %s283
    %p285 = scmp.eq.s32.totalorder %s23, 0
    %p286 = por %p284, %p285
    %p287 = scmp.le.s32.totalorder 1, %s17
    %p288 = scmp.lt.s32.totalorder %s17, 3
    %p289 = pnand %p287, %p288
    %p290 = pneg %p289
    // Predicated region
    $region9: #{_lambda_.3} parent=5 // pred_check
      _
    $region10: #{_lambda_.3} parent=5 // pred_check_branch
      %292 = sbr.rel (%p289) target = $region12
    $region11: #{_lambda_.3} parent=5 // pred_region
      %s293 = ssub.s32 %s17, 1
      // Predicated region
      $region13: #{_lambda_.3} parent=11 // pred_check
        %p294 = pneg %p64
      $region14: #{_lambda_.3} parent=11 // pred_check_branch
        %296 = sbr.rel (%p294) target = $region16
      $region15: #{_lambda_.3} parent=11 // pred_region
        _
      $region16: #{_lambda_.3} parent=11 // pred_fallthru
        _
      // Predicated region
      $region17: #{_lambda_.3} parent=11 // pred_check
        %p297 = pneg %p85
      $region18: #{_lambda_.3} parent=11 // pred_check_branch
        %299 = sbr.rel (%p297) target = $region20
      $region19: #{_lambda_.3} parent=11 // pred_region
        _
      $region20: #{_lambda_.3} parent=11 // pred_fallthru
        _
      // Predicated region
      $region21: #{_lambda_.3} parent=11 // pred_check
        %p300 = pneg %p106
      $region22: #{_lambda_.3} parent=11 // pred_check_branch
        %302 = sbr.rel (%p300) target = $region24
      $region23: #{_lambda_.3} parent=11 // pred_region
        _
      $region24: #{_lambda_.3} parent=11 // pred_fallthru
        _
      // Predicated region
      $region25: #{_lambda_.3} parent=11 // pred_check
        %p303 = pneg %p127
      $region26: #{_lambda_.3} parent=11 // pred_check_branch
        %305 = sbr.rel (%p303) target = $region28
      $region27: #{_lambda_.3} parent=11 // pred_region
        _
      $region28: #{_lambda_.3} parent=11 // pred_fallthru
        _
      // Predicated region
      $region29: #{_lambda_.3} parent=11 // pred_check
        %p306 = pneg %p148
      $region30: #{_lambda_.3} parent=11 // pred_check_branch
        %308 = sbr.rel (%p306) target = $region32
      $region31: #{_lambda_.3} parent=11 // pred_region
        _
      $region32: #{_lambda_.3} parent=11 // pred_fallthru
        _
      // Predicated region
      $region33: #{_lambda_.3} parent=11 // pred_check
        %p309 = pneg %p169
      $region34: #{_lambda_.3} parent=11 // pred_check_branch
        %311 = sbr.rel (%p309) target = $region36
      $region35: #{_lambda_.3} parent=11 // pred_region
        _
      $region36: #{_lambda_.3} parent=11 // pred_fallthru
        _
      // Predicated region
      $region37: #{_lambda_.3} parent=11 // pred_check
        %p312 = pneg %p190
      $region38: #{_lambda_.3} parent=11 // pred_check_branch
        %314 = sbr.rel (%p312) target = $region40
      $region39: #{_lambda_.3} parent=11 // pred_region
        _
      $region40: #{_lambda_.3} parent=11 // pred_fallthru
        _
      // Predicated region
      $region41: #{_lambda_.3} parent=11 // pred_check
        %p315 = pneg %p211
      $region42: #{_lambda_.3} parent=11 // pred_check_branch
        %317 = sbr.rel (%p315) target = $region44
      $region43: #{_lambda_.3} parent=11 // pred_region
        _
      $region44: #{_lambda_.3} parent=11 // pred_fallthru
        _
      // Predicated region
      $region45: #{_lambda_.3} parent=11 // pred_check
        %p318 = pneg %p232
      $region46: #{_lambda_.3} parent=11 // pred_check_branch
        %320 = sbr.rel (%p318) target = $region48
      $region47: #{_lambda_.3} parent=11 // pred_region
        _
      $region48: #{_lambda_.3} parent=11 // pred_fallthru
        _
      // Predicated region
      $region49: #{_lambda_.3} parent=11 // pred_check
        %p321 = pneg %p253
      $region50: #{_lambda_.3} parent=11 // pred_check_branch
        %323 = sbr.rel (%p321) target = $region52
      $region51: #{_lambda_.3} parent=11 // pred_region
        _
      $region52: #{_lambda_.3} parent=11 // pred_fallthru
        _
    $region12: #{_lambda_.3} parent=5 // pred_fallthru
      _
    %p324 = scmp.lt.s32.totalorder %s17, 2
    // Predicated region
    $region53: #{_lambda_.3} parent=5 // pred_check
      %p325 = pneg %p324
    $region54: #{_lambda_.3} parent=5 // pred_check_branch
      %327 = sbr.rel (%p325) target = $region56
    $region55: #{_lambda_.3} parent=5 // pred_region
      // Predicated region
      $region57: #{_lambda_.3} parent=55 // pred_check
        %p328 = pneg %p37
      $region58: #{_lambda_.3} parent=55 // pred_check_branch
        %330 = sbr.rel (%p328) target = $region60
      $region59: #{_lambda_.3} parent=55 // pred_region
        %p331 = scmp.lt.s32.totalorder %s17, 1
        %s332 = scalar_select %p331, %s17, 1
        %s333 = smul.addr %s332, 11
        %s334 = smul.addr %s333, 4
        %s335 = scalar_lea.vmem %s0, %s334
      $region60: #{_lambda_.3} parent=55 // pred_fallthru
        _
    $region56: #{_lambda_.3} parent=5 // pred_fallthru
      _
    %p336 = scmp.le.s32.totalorder 1, %s17
    %p337 = scmp.lt.s32.totalorder %s17, 3
    %p338 = pnand %p336, %p337
    %p339 = pneg %p338
    // Predicated region
    $region61: #{_lambda_.3} parent=5 // pred_check
      _
    $region62: #{_lambda_.3} parent=5 // pred_check_branch
      %341 = sbr.rel (%p338) target = $region64
    $region63: #{_lambda_.3} parent=5 // pred_region
      %s342 = ssub.s32 %s17, 1
      %p343 = scmp.lt.s32.totalorder %s22, 1
      %s344 = scalar_select %p343, %s22, 1
      %s345 = smul.addr %s344, 11
      %s346 = smul.addr %s345, 4
      %s347 = scalar_lea.vmem %s0, %s346
      %p348 = pneg %p43
      %p349 = pneg %p40
      %p350 = pneg %p64
      %p351 = pneg %p61
      %p352 = pneg %p85
      %p353 = pneg %p82
      %p354 = pneg %p106
      %p355 = pneg %p103
      %p356 = pneg %p127
      %p357 = pneg %p124
      %p358 = pneg %p148
      %p359 = pneg %p145
      %p360 = pneg %p169
      %p361 = pneg %p166
      %p362 = pneg %p190
      %p363 = pneg %p187
      %p364 = pneg %p211
      %p365 = pneg %p208
      %p366 = pneg %p232
      %p367 = pneg %p229
      %p368 = pneg %p253
      %p369 = pneg %p250
      %p370 = pneg %p279
      %p371 = pneg %p276
      %p372 = scmp.lt.s32.totalorder %s22, 1
      %s373 = scalar_select %p372, %s22, 1
      %s374 = smul.addr %s373, 2
      %s375 = smul.addr %s374, 8
      %s376 = scalar_lea.vmem %s11, %s375
      %p377 = scmp.lt.s32.totalorder %s22, 1
      %s378 = scalar_select %p377, %s22, 1
      %s379 = smul.addr %s378, 11
      %s380 = smul.addr %s379, 4
      %s381 = scalar_lea.vmem %s0, %s380
      %p382 = scmp.lt.s32.totalorder %s22, 1
      %s383 = scalar_select %p382, %s22, 1
      %s384 = smul.addr %s383, 2
      %s385 = smul.addr %s384, 8
      %s386 = scalar_lea.vmem %s11, %s385
      %v388 = vld [vmem:[%s2] sm:$0x7]
      %v389 = vld [vmem:[%s381] sm:$0xf]
      %v390 = vld [vmem:[%s381 + $0x4] sm:$0xf]
      %v391 = vld [vmem:[%s381 + $0x8] sm:$0xf]
      %v392 = vld [vmem:[%s381 + $0xc] sm:$0xf]
      %v393 = vld [vmem:[%s381 + $0x10] sm:$0xf]
      %v394 = vld [vmem:[%s381 + $0x14] sm:$0xf]
      %v395 = vld [vmem:[%s381 + $0x18] sm:$0xf]
      %v396 = vld [vmem:[%s381 + $0x1c] sm:$0xf]
      %v397 = vld [vmem:[%s381 + $0x20] sm:$0xf]
      %v398 = vld [vmem:[%s381 + $0x24] sm:$0xf]
      %v399 = vld [vmem:[%s381 + $0x28] sm:$0x7]
      %v400 = vld [vmem:[%s1] sm:$0xf]
      %v401 = vld [vmem:[%s1 + $0x4] sm:$0xf]
      %v402 = vld [vmem:[%s1 + $0x8] sm:$0xf]
      %v403 = vld [vmem:[%s1 + $0xc] sm:$0xf]
      %v404 = vld [vmem:[%s1 + $0x10] sm:$0xf]
      %v405 = vld [vmem:[%s1 + $0x14] sm:$0xf]
      %v406 = vld [vmem:[%s1 + $0x18] sm:$0xf]
      %v407 = vld [vmem:[%s1 + $0x1c] sm:$0xf]
      %v408 = vld [vmem:[%s1 + $0x20] sm:$0xf]
      %v409 = vld [vmem:[%s1 + $0x24] sm:$0xf]
      %v410 = vld [vmem:[%s1 + $0x28] sm:$0xf]
      %v411 = vld [vmem:[%s1 + $0x2c] sm:$0xf]
      %v412 = vld [vmem:[%s1 + $0x30] sm:$0xf]
      %v413 = vld [vmem:[%s1 + $0x34] sm:$0xf]
      %v414 = vld [vmem:[%s1 + $0x38] sm:$0xf]
      %v415 = vld [vmem:[%s1 + $0x3c] sm:$0xf]
      %v416 = vperm.slane %v388, 0
      %v428 = vunpack.c.l.b16 %v389
      %v429 = vunpack.c.l.b16 %v390
      %v430 = vunpack.c.l.b16 %v391
      %v431 = vunpack.c.l.b16 %v392
      %v432 = vunpack.c.l.b16 %v393
      %v433 = vunpack.c.l.b16 %v394
      %v434 = vunpack.c.l.b16 %v395
      %v435 = vunpack.c.l.b16 %v396
      %v436 = vunpack.c.l.b16 %v397
      %v437 = vunpack.c.l.b16 %v398
      %v438 = vunpack.c.l.b16 %v399
      %v439 = vpack.c.b16 %v429, %v428
      %v440 = vpack.c.b16 %v431, %v430
      %v441 = vpack.c.b16 %v433, %v432
      %v442 = vpack.c.b16 %v435, %v434
      %v443 = vpack.c.b16 %v437, %v436
      %v444 = vpack.c.b16 %v438, %v438
      %v467 = vunpack.c.l.b16 %v400
      %v468 = vunpack.c.l.b16 %v401
      %v469 = vunpack.c.l.b16 %v402
      %v470 = vunpack.c.l.b16 %v403
      %v471 = vunpack.c.l.b16 %v404
      %v472 = vunpack.c.l.b16 %v405
      %v473 = vunpack.c.l.b16 %v406
      %v474 = vunpack.c.l.b16 %v407
      %v475 = vunpack.c.l.b16 %v408
      %v476 = vunpack.c.l.b16 %v409
      %v477 = vunpack.c.l.b16 %v410
      %v478 = vunpack.c.l.b16 %v411
      %v479 = vunpack.c.l.b16 %v412
      %v480 = vunpack.c.l.b16 %v413
      %v481 = vunpack.c.l.b16 %v414
      %v482 = vunpack.c.l.b16 %v415
      %v483 = vpack.c.b16 %v468, %v467
      %v484 = vpack.c.b16 %v470, %v469
      %v485 = vpack.c.b16 %v472, %v471
      %v486 = vpack.c.b16 %v474, %v473
      %v487 = vpack.c.b16 %v476, %v475
      %v488 = vpack.c.b16 %v478, %v477
      %v489 = vpack.c.b16 %v480, %v479
      %v490 = vpack.c.b16 %v482, %v481
      %499 = vmatpush.bf16.msra.mxu0 %v490
      %500 = vmatpush.bf16.msra.mxu0 %v489
      %501 = vmatpush.bf16.msra.mxu0 %v488
      %502 = vmatpush.bf16.msra.mxu0 %v487
      %503 = vmatpush.bf16.msra.mxu0 %v486
      %504 = vmatpush.bf16.msra.mxu0 %v485
      %505 = vmatpush.bf16.msra.mxu0 %v484
      %506 = vmatpush.bf16.msra.mxu0 %v483
      %507 = vmatmul.bf16.gmra.mxu0 %v439
      %v508 = vpop.f32.mrf.mxu0
      %v509 = vadd.f32 %v416, %v508
      %v510 = vpop.f32.mrf.mxu0
      %v511 = vadd.f32 %v416, %v510
      %512 = vmatmul.bf16.gmra.mxu0 %v440
      %v513 = vpop.f32.mrf.mxu0
      %v514 = vadd.f32 %v416, %v513
      %v515 = vpop.f32.mrf.mxu0
      %v516 = vadd.f32 %v416, %v515
      %517 = vmatmul.bf16.gmra.mxu0 %v441
      %v518 = vpop.f32.mrf.mxu0
      %v519 = vadd.f32 %v416, %v518
      %v520 = vpop.f32.mrf.mxu0
      %v521 = vadd.f32 %v416, %v520
      %522 = vmatmul.bf16.gmra.mxu0 %v442
      %v523 = vpop.f32.mrf.mxu0
      %v524 = vadd.f32 %v416, %v523
      %v525 = vpop.f32.mrf.mxu0
      %v526 = vadd.f32 %v416, %v525
      %527 = vmatmul.bf16.gmra.mxu0 %v443
      %v528 = vpop.f32.mrf.mxu0
      %v529 = vadd.f32 %v416, %v528
      %v530 = vpop.f32.mrf.mxu0
      %v531 = vadd.f32 %v416, %v530
      %532 = vmatmul.bf16.gmra.mxu0 %v444
      %v533 = vpop.f32.mrf.mxu0
      %v534 = vadd.f32 %v416, %v533
      %v535 = vpop.f32.mrf.mxu0
      %536 = vdwg.mxu0
      %vm537 = vcmask 261120
      %v538 = vsel %vm537, %v509, 0.0
      %v539 = vsel %vm537, %v511, 0.0
      %v540 = vadd.f32 %v538, %v539
      %v541 = vsel %vm537, %v514, 0.0
      %v542 = vadd.f32 %v540, %v541
      %v543 = vsel %vm537, %v516, 0.0
      %v544 = vadd.f32 %v542, %v543
      %v545 = vsel %vm537, %v519, 0.0
      %v546 = vadd.f32 %v544, %v545
      %v547 = vsel %vm537, %v521, 0.0
      %v548 = vadd.f32 %v546, %v547
      %v549 = vsel %vm537, %v524, 0.0
      %v550 = vadd.f32 %v548, %v549
      %v551 = vsel %vm537, %v526, 0.0
      %v552 = vadd.f32 %v550, %v551
      %v553 = vsel %vm537, %v529, 0.0
      %v554 = vadd.f32 %v552, %v553
      %v555 = vsel %vm537, %v531, 0.0
      %v556 = vadd.f32 %v554, %v555
      %vm557 = vcmask 259072
      %v558 = vsel %vm557, %v534, 0.0
      %v559 = vadd.f32 %v556, %v558
      %v560 = vrot.slane %v559, 4
      %v561 = vadd.f32 %v559, %v560
      %v562 = vrot.slane %v561, 2
      %v563 = vadd.f32 %v561, %v562
      %v564 = vrot.slane %v563, 1
      %v565 = vadd.f32 %v563, %v564
      %v566 = vmul.f32 %v509, %v509
      %v567 = vmul.f32 %v511, %v511
      %v568 = vmul.f32 %v514, %v514
      %v569 = vmul.f32 %v516, %v516
      %v570 = vmul.f32 %v519, %v519
      %v571 = vmul.f32 %v521, %v521
      %v572 = vmul.f32 %v524, %v524
      %v573 = vmul.f32 %v526, %v526
      %v574 = vmul.f32 %v529, %v529
      %v575 = vmul.f32 %v531, %v531
      %v576 = vmul.f32 %v534, %v534
      %v577 = vsel %vm537, %v566, 0.0
      %v578 = vsel %vm537, %v567, 0.0
      %v579 = vadd.f32 %v577, %v578
      %v580 = vsel %vm537, %v568, 0.0
      %v581 = vadd.f32 %v579, %v580
      %v582 = vsel %vm537, %v569, 0.0
      %v583 = vadd.f32 %v581, %v582
      %v584 = vsel %vm537, %v570, 0.0
      %v585 = vadd.f32 %v583, %v584
      %v586 = vsel %vm537, %v571, 0.0
      %v587 = vadd.f32 %v585, %v586
      %v588 = vsel %vm537, %v572, 0.0
      %v589 = vadd.f32 %v587, %v588
      %v590 = vsel %vm537, %v573, 0.0
      %v591 = vadd.f32 %v589, %v590
      %v592 = vsel %vm537, %v574, 0.0
      %v593 = vadd.f32 %v591, %v592
      %v594 = vsel %vm537, %v575, 0.0
      %v595 = vadd.f32 %v593, %v594
      %v596 = vsel %vm557, %v576, 0.0
      %v597 = vadd.f32 %v595, %v596
      %v598 = vrot.slane %v597, 4
      %v599 = vadd.f32 %v597, %v598
      %v600 = vrot.slane %v599, 2
      %v601 = vadd.f32 %v599, %v600
      %v602 = vrot.slane %v601, 1
      %v603 = vadd.f32 %v601, %v602
      %605 = vrot.lane.b32.xlu0 %v565, 112
      %v606 = vpop.permute.xlu0 %605
      %v608 = vadd.f32 %v565, %v606
      %v609 = vmul.f32 %v608, 0.0058139535
      %611 = vrot.lane.b32.xlu0 %v603, 112
      %v612 = vpop.permute.xlu0 %611
      %v614 = vadd.f32 %v603, %v612
      %v615 = vmul.f32 %v614, 0.0058139535
      %v616 = vmul.f32 %v609, %v609
      %v617 = vsub.f32 %v615, %v616
      %v618 = vmax.f32 %v617, 0.0
      %v619 = vadd.f32 %v618, 1e-05
      %v620 = vrsqrt.pop %v619
      %v621 = vmul.f32 %v620, %v619
      %v622 = vmul.f32 %v621, %v620
      %v623 = vmul.f32 0.5, %v622
      %v624 = vsub.f32 1.5, %v623
      %v625 = vmul.f32 %v620, %v624
      %vm626 = vweird.f32 %v619
      %vm627 = vweird.f32 %v620
      %vm628 = vmor %vm626, %vm627
      %v629 = vsel %vm628, %v620, %v625
      %v630 = vperm.slane %v609, 0
      %v631 = vsub.f32 %v509, %v630
      %v632 = vsub.f32 %v511, %v630
      %v633 = vsub.f32 %v514, %v630
      %v634 = vsub.f32 %v516, %v630
      %v635 = vsub.f32 %v519, %v630
      %v636 = vsub.f32 %v521, %v630
      %v637 = vsub.f32 %v524, %v630
      %v638 = vsub.f32 %v526, %v630
      %v639 = vsub.f32 %v529, %v630
      %v640 = vsub.f32 %v531, %v630
      %v641 = vsub.f32 %v534, %v630
      %v642 = vperm.slane %v629, 0
      %v643 = vmul.f32 %v631, %v642
      %v644 = vmul.f32 %v632, %v642
      %v645 = vmul.f32 %v633, %v642
      %v646 = vmul.f32 %v634, %v642
      %v647 = vmul.f32 %v635, %v642
      %v648 = vmul.f32 %v636, %v642
      %v649 = vmul.f32 %v637, %v642
      %v650 = vmul.f32 %v638, %v642
      %v651 = vmul.f32 %v639, %v642
      %v652 = vmul.f32 %v640, %v642
      %v653 = vmul.f32 %v641, %v642
      %v654 = vperm.slane %v388, 1
      %v655 = vmul.f32 %v643, %v654
      %v656 = vmul.f32 %v644, %v654
      %v657 = vmul.f32 %v645, %v654
      %v658 = vmul.f32 %v646, %v654
      %v659 = vmul.f32 %v647, %v654
      %v660 = vmul.f32 %v648, %v654
      %v661 = vmul.f32 %v649, %v654
      %v662 = vmul.f32 %v650, %v654
      %v663 = vmul.f32 %v651, %v654
      %v664 = vmul.f32 %v652, %v654
      %v665 = vmul.f32 %v653, %v654
      %v666 = vperm.slane %v388, 2
      %v667 = vadd.f32 %v655, %v666
      %v668 = vadd.f32 %v656, %v666
      %v669 = vadd.f32 %v657, %v666
      %v670 = vadd.f32 %v658, %v666
      %v671 = vadd.f32 %v659, %v666
      %v672 = vadd.f32 %v660, %v666
      %v673 = vadd.f32 %v661, %v666
      %v674 = vadd.f32 %v662, %v666
      %v675 = vadd.f32 %v663, %v666
      %v676 = vadd.f32 %v664, %v666
      %v677 = vadd.f32 %v665, %v666
      %679 = vrot.lane.b32.xlu0 %v630, 16
      %v680 = vpop.permute.xlu0 %679
      %v682 = vsub.f32 %v509, %v680
      %v683 = vsub.f32 %v511, %v680
      %v684 = vsub.f32 %v514, %v680
      %v685 = vsub.f32 %v516, %v680
      %v686 = vsub.f32 %v519, %v680
      %v687 = vsub.f32 %v521, %v680
      %v688 = vsub.f32 %v524, %v680
      %v689 = vsub.f32 %v526, %v680
      %v690 = vsub.f32 %v529, %v680
      %v691 = vsub.f32 %v531, %v680
      %v692 = vsub.f32 %v534, %v680
      %694 = vrot.lane.b32.xlu0 %v642, 16
      %v695 = vpop.permute.xlu0 %694
      %v697 = vmul.f32 %v682, %v695
      %v698 = vmul.f32 %v683, %v695
      %v699 = vmul.f32 %v684, %v695
      %v700 = vmul.f32 %v685, %v695
      %v701 = vmul.f32 %v686, %v695
      %v702 = vmul.f32 %v687, %v695
      %v703 = vmul.f32 %v688, %v695
      %v704 = vmul.f32 %v689, %v695
      %v705 = vmul.f32 %v690, %v695
      %v706 = vmul.f32 %v691, %v695
      %v707 = vmul.f32 %v692, %v695
      %v708 = vmul.f32 %v697, %v654
      %v709 = vmul.f32 %v698, %v654
      %v710 = vmul.f32 %v699, %v654
      %v711 = vmul.f32 %v700, %v654
      %v712 = vmul.f32 %v701, %v654
      %v713 = vmul.f32 %v702, %v654
      %v714 = vmul.f32 %v703, %v654
      %v715 = vmul.f32 %v704, %v654
      %v716 = vmul.f32 %v705, %v654
      %v717 = vmul.f32 %v706, %v654
      %v718 = vmul.f32 %v707, %v654
      %v719 = vadd.f32 %v708, %v666
      %v720 = vadd.f32 %v709, %v666
      %v721 = vadd.f32 %v710, %v666
      %v722 = vadd.f32 %v711, %v666
      %v723 = vadd.f32 %v712, %v666
      %v724 = vadd.f32 %v713, %v666
      %v725 = vadd.f32 %v714, %v666
      %v726 = vadd.f32 %v715, %v666
      %v727 = vadd.f32 %v716, %v666
      %v728 = vadd.f32 %v717, %v666
      %v729 = vadd.f32 %v718, %v666
      %v730 = vmul.f32 %v667, 0.5
      %v731 = vmul.f32 %v668, 0.5
      %v732 = vmul.f32 %v669, 0.5
      %v733 = vmul.f32 %v670, 0.5
      %v734 = vmul.f32 %v671, 0.5
      %v735 = vmul.f32 %v672, 0.5
      %v736 = vmul.f32 %v673, 0.5
      %v737 = vmul.f32 %v674, 0.5
      %v738 = vmul.f32 %v675, 0.5
      %v739 = vmul.f32 %v676, 0.5
      %v740 = vmul.f32 %v677, 0.5
      %v741 = vmul.f32 %v667, 0.70710677
      %v742 = vmul.f32 %v668, 0.70710677
      %v743 = vmul.f32 %v669, 0.70710677
      %v744 = vmul.f32 %v670, 0.70710677
      %v745 = vmul.f32 %v671, 0.70710677
      %v746 = vmul.f32 %v672, 0.70710677
      %v747 = vmul.f32 %v673, 0.70710677
      %v748 = vmul.f32 %v674, 0.70710677
      %v749 = vmul.f32 %v675, 0.70710677
      %v750 = vmul.f32 %v676, 0.70710677
      %v751 = vmul.f32 %v677, 0.70710677
      %v752 = vmul.f32 %v741, %v741
      %v753 = vmin.f32 16.0, %v752
      %v754 = vmul.f32 %v753, 2.1237322e-06
      %v755 = vadd.f32 %v754, 0.00028619796
      %v756 = vmul.f32 %v753, %v755
      %v757 = vadd.f32 %v756, 0.0036580483
      %v758 = vmul.f32 %v753, %v757
      %v759 = vadd.f32 %v758, 0.05243302
      %v760 = vmul.f32 %v753, %v759
      %v761 = vadd.f32 %v760, 0.18741608
      %v762 = vmul.f32 %v753, %v761
      %v763 = vadd.f32 %v762, 1.1283791
      %v764 = vmul.f32 %v741, %v763
      %v765 = vmul.f32 %v753, 3.8918573e-05
      %v766 = vadd.f32 %v765, 0.001143296
      %v767 = vmul.f32 %v753, %v766
      %v768 = vadd.f32 %v767, 0.014752088
      %v769 = vmul.f32 %v753, %v768
      %v770 = vadd.f32 %v769, 0.112945676
      %v771 = vmul.f32 %v753, %v770
      %v772 = vadd.f32 %v771, 0.4994258
      %v773 = vmul.f32 %v753, %v772
      %v774 = vadd.f32 %v773, 1.0
      %v775 = vrcp.pop %v774
      %v776 = vmul.f32 %v774, %v775
      %v777 = vsub.f32 1.0, %v776
      %v778 = vmul.f32 %v775, %v777
      %v779 = vadd.f32 %v775, %v778
      %vm780 = vweird.f32 %v774
      %vm781 = vweird.f32 %v775
      %vm782 = vmor %vm780, %vm781
      %v783 = vsel %vm782, %v775, %v779
      %v784 = vand.u32 2147483647, %v774
      %vm785 = vcmp.eq.f32.partialorder %v784, 8.507059e+37
      %v786 = vand.u32 %v774, 2147483648
      %v787 = vor.u32 1.1754944e-38, %v786
      %v788 = vsel %vm785, %v787, %v783
      %v789 = vmul.f32 %v764, %v788
      %v790 = vmin.f32 %v789, 1.0
      %v791 = vmax.f32 %v790, -1.0
      %v792 = vmul.f32 %v742, %v742
      %v793 = vmin.f32 16.0, %v792
      %v794 = vmul.f32 %v793, 2.1237322e-06
      %v795 = vadd.f32 %v794, 0.00028619796
      %v796 = vmul.f32 %v793, %v795
      %v797 = vadd.f32 %v796, 0.0036580483
      %v798 = vmul.f32 %v793, %v797
      %v799 = vadd.f32 %v798, 0.05243302
      %v800 = vmul.f32 %v793, %v799
      %v801 = vadd.f32 %v800, 0.18741608
      %v802 = vmul.f32 %v793, %v801
      %v803 = vadd.f32 %v802, 1.1283791
      %v804 = vmul.f32 %v742, %v803
      %v805 = vmul.f32 %v793, 3.8918573e-05
      %v806 = vadd.f32 %v805, 0.001143296
      %v807 = vmul.f32 %v793, %v806
      %v808 = vadd.f32 %v807, 0.014752088
      %v809 = vmul.f32 %v793, %v808
      %v810 = vadd.f32 %v809, 0.112945676
      %v811 = vmul.f32 %v793, %v810
      %v812 = vadd.f32 %v811, 0.4994258
      %v813 = vmul.f32 %v793, %v812
      %v814 = vadd.f32 %v813, 1.0
      %v815 = vrcp.pop %v814
      %v816 = vmul.f32 %v814, %v815
      %v817 = vsub.f32 1.0, %v816
      %v818 = vmul.f32 %v815, %v817
      %v819 = vadd.f32 %v815, %v818
      %vm820 = vweird.f32 %v814
      %vm821 = vweird.f32 %v815
      %vm822 = vmor %vm820, %vm821
      %v823 = vsel %vm822, %v815, %v819
      %v824 = vand.u32 2147483647, %v814
      %vm825 = vcmp.eq.f32.partialorder %v824, 8.507059e+37
      %v826 = vand.u32 %v814, 2147483648
      %v827 = vor.u32 1.1754944e-38, %v826
      %v828 = vsel %vm825, %v827, %v823
      %v829 = vmul.f32 %v804, %v828
      %v830 = vmin.f32 %v829, 1.0
      %v831 = vmax.f32 %v830, -1.0
      %v832 = vmul.f32 %v743, %v743
      %v833 = vmin.f32 16.0, %v832
      %v834 = vmul.f32 %v833, 2.1237322e-06
      %v835 = vadd.f32 %v834, 0.00028619796
      %v836 = vmul.f32 %v833, %v835
      %v837 = vadd.f32 %v836, 0.0036580483
      %v838 = vmul.f32 %v833, %v837
      %v839 = vadd.f32 %v838, 0.05243302
      %v840 = vmul.f32 %v833, %v839
      %v841 = vadd.f32 %v840, 0.18741608
      %v842 = vmul.f32 %v833, %v841
      %v843 = vadd.f32 %v842, 1.1283791
      %v844 = vmul.f32 %v743, %v843
      %v845 = vmul.f32 %v833, 3.8918573e-05
      %v846 = vadd.f32 %v845, 0.001143296
      %v847 = vmul.f32 %v833, %v846
      %v848 = vadd.f32 %v847, 0.014752088
      %v849 = vmul.f32 %v833, %v848
      %v850 = vadd.f32 %v849, 0.112945676
      %v851 = vmul.f32 %v833, %v850
      %v852 = vadd.f32 %v851, 0.4994258
      %v853 = vmul.f32 %v833, %v852
      %v854 = vadd.f32 %v853, 1.0
      %v855 = vrcp.pop %v854
      %v856 = vmul.f32 %v854, %v855
      %v857 = vsub.f32 1.0, %v856
      %v858 = vmul.f32 %v855, %v857
      %v859 = vadd.f32 %v855, %v858
      %vm860 = vweird.f32 %v854
      %vm861 = vweird.f32 %v855
      %vm862 = vmor %vm860, %vm861
      %v863 = vsel %vm862, %v855, %v859
      %v864 = vand.u32 2147483647, %v854
      %vm865 = vcmp.eq.f32.partialorder %v864, 8.507059e+37
      %v866 = vand.u32 %v854, 2147483648
      %v867 = vor.u32 1.1754944e-38, %v866
      %v868 = vsel %vm865, %v867, %v863
      %v869 = vmul.f32 %v844, %v868
      %v870 = vmin.f32 %v869, 1.0
      %v871 = vmax.f32 %v870, -1.0
      %v872 = vmul.f32 %v744, %v744
      %v873 = vmin.f32 16.0, %v872
      %v874 = vmul.f32 %v873, 2.1237322e-06
      %v875 = vadd.f32 %v874, 0.00028619796
      %v876 = vmul.f32 %v873, %v875
      %v877 = vadd.f32 %v876, 0.0036580483
      %v878 = vmul.f32 %v873, %v877
      %v879 = vadd.f32 %v878, 0.05243302
      %v880 = vmul.f32 %v873, %v879
      %v881 = vadd.f32 %v880, 0.18741608
      %v882 = vmul.f32 %v873, %v881
      %v883 = vadd.f32 %v882, 1.1283791
      %v884 = vmul.f32 %v744, %v883
      %v885 = vmul.f32 %v873, 3.8918573e-05
      %v886 = vadd.f32 %v885, 0.001143296
      %v887 = vmul.f32 %v873, %v886
      %v888 = vadd.f32 %v887, 0.014752088
      %v889 = vmul.f32 %v873, %v888
      %v890 = vadd.f32 %v889, 0.112945676
      %v891 = vmul.f32 %v873, %v890
      %v892 = vadd.f32 %v891, 0.4994258
      %v893 = vmul.f32 %v873, %v892
      %v894 = vadd.f32 %v893, 1.0
      %v895 = vrcp.pop %v894
      %v896 = vmul.f32 %v894, %v895
      %v897 = vsub.f32 1.0, %v896
      %v898 = vmul.f32 %v895, %v897
      %v899 = vadd.f32 %v895, %v898
      %vm900 = vweird.f32 %v894
      %vm901 = vweird.f32 %v895
      %vm902 = vmor %vm900, %vm901
      %v903 = vsel %vm902, %v895, %v899
      %v904 = vand.u32 2147483647, %v894
      %vm905 = vcmp.eq.f32.partialorder %v904, 8.507059e+37
      %v906 = vand.u32 %v894, 2147483648
      %v907 = vor.u32 1.1754944e-38, %v906
      %v908 = vsel %vm905, %v907, %v903
      %v909 = vmul.f32 %v884, %v908
      %v910 = vmin.f32 %v909, 1.0
      %v911 = vmax.f32 %v910, -1.0
      %v912 = vmul.f32 %v745, %v745
      %v913 = vmin.f32 16.0, %v912
      %v914 = vmul.f32 %v913, 2.1237322e-06
      %v915 = vadd.f32 %v914, 0.00028619796
      %v916 = vmul.f32 %v913, %v915
      %v917 = vadd.f32 %v916, 0.0036580483
      %v918 = vmul.f32 %v913, %v917
      %v919 = vadd.f32 %v918, 0.05243302
      %v920 = vmul.f32 %v913, %v919
      %v921 = vadd.f32 %v920, 0.18741608
      %v922 = vmul.f32 %v913, %v921
      %v923 = vadd.f32 %v922, 1.1283791
      %v924 = vmul.f32 %v745, %v923
      %v925 = vmul.f32 %v913, 3.8918573e-05
      %v926 = vadd.f32 %v925, 0.001143296
      %v927 = vmul.f32 %v913, %v926
      %v928 = vadd.f32 %v927, 0.014752088
      %v929 = vmul.f32 %v913, %v928
      %v930 = vadd.f32 %v929, 0.112945676
      %v931 = vmul.f32 %v913, %v930
      %v932 = vadd.f32 %v931, 0.4994258
      %v933 = vmul.f32 %v913, %v932
      %v934 = vadd.f32 %v933, 1.0
      %v935 = vrcp.pop %v934
      %v936 = vmul.f32 %v934, %v935
      %v937 = vsub.f32 1.0, %v936
      %v938 = vmul.f32 %v935, %v937
      %v939 = vadd.f32 %v935, %v938
      %vm940 = vweird.f32 %v934
      %vm941 = vweird.f32 %v935
      %vm942 = vmor %vm940, %vm941
      %v943 = vsel %vm942, %v935, %v939
      %v944 = vand.u32 2147483647, %v934
      %vm945 = vcmp.eq.f32.partialorder %v944, 8.507059e+37
      %v946 = vand.u32 %v934, 2147483648
      %v947 = vor.u32 1.1754944e-38, %v946
      %v948 = vsel %vm945, %v947, %v943
      %v949 = vmul.f32 %v924, %v948
      %v950 = vmin.f32 %v949, 1.0
      %v951 = vmax.f32 %v950, -1.0
      %v952 = vmul.f32 %v746, %v746
      %v953 = vmin.f32 16.0, %v952
      %v954 = vmul.f32 %v953, 2.1237322e-06
      %v955 = vadd.f32 %v954, 0.00028619796
      %v956 = vmul.f32 %v953, %v955
      %v957 = vadd.f32 %v956, 0.0036580483
      %v958 = vmul.f32 %v953, %v957
      %v959 = vadd.f32 %v958, 0.05243302
      %v960 = vmul.f32 %v953, %v959
      %v961 = vadd.f32 %v960, 0.18741608
      %v962 = vmul.f32 %v953, %v961
      %v963 = vadd.f32 %v962, 1.1283791
      %v964 = vmul.f32 %v746, %v963
      %v965 = vmul.f32 %v953, 3.8918573e-05
      %v966 = vadd.f32 %v965, 0.001143296
      %v967 = vmul.f32 %v953, %v966
      %v968 = vadd.f32 %v967, 0.014752088
      %v969 = vmul.f32 %v953, %v968
      %v970 = vadd.f32 %v969, 0.112945676
      %v971 = vmul.f32 %v953, %v970
      %v972 = vadd.f32 %v971, 0.4994258
      %v973 = vmul.f32 %v953, %v972
      %v974 = vadd.f32 %v973, 1.0
      %v975 = vrcp.pop %v974
      %v976 = vmul.f32 %v974, %v975
      %v977 = vsub.f32 1.0, %v976
      %v978 = vmul.f32 %v975, %v977
      %v979 = vadd.f32 %v975, %v978
      %vm980 = vweird.f32 %v974
      %vm981 = vweird.f32 %v975
      %vm982 = vmor %vm980, %vm981
      %v983 = vsel %vm982, %v975, %v979
      %v984 = vand.u32 2147483647, %v974
      %vm985 = vcmp.eq.f32.partialorder %v984, 8.507059e+37
      %v986 = vand.u32 %v974, 2147483648
      %v987 = vor.u32 1.1754944e-38, %v986
      %v988 = vsel %vm985, %v987, %v983
      %v989 = vmul.f32 %v964, %v988
      %v990 = vmin.f32 %v989, 1.0
      %v991 = vmax.f32 %v990, -1.0
      %v992 = vmul.f32 %v747, %v747
      %v993 = vmin.f32 16.0, %v992
      %v994 = vmul.f32 %v993, 2.1237322e-06
      %v995 = vadd.f32 %v994, 0.00028619796
      %v996 = vmul.f32 %v993, %v995
      %v997 = vadd.f32 %v996, 0.0036580483
      %v998 = vmul.f32 %v993, %v997
      %v999 = vadd.f32 %v998, 0.05243302
      %v1000 = vmul.f32 %v993, %v999
      %v1001 = vadd.f32 %v1000, 0.18741608
      %v1002 = vmul.f32 %v993, %v1001
      %v1003 = vadd.f32 %v1002, 1.1283791
      %v1004 = vmul.f32 %v747, %v1003
      %v1005 = vmul.f32 %v993, 3.8918573e-05
      %v1006 = vadd.f32 %v1005, 0.001143296
      %v1007 = vmul.f32 %v993, %v1006
      %v1008 = vadd.f32 %v1007, 0.014752088
      %v1009 = vmul.f32 %v993, %v1008
      %v1010 = vadd.f32 %v1009, 0.112945676
      %v1011 = vmul.f32 %v993, %v1010
      %v1012 = vadd.f32 %v1011, 0.4994258
      %v1013 = vmul.f32 %v993, %v1012
      %v1014 = vadd.f32 %v1013, 1.0
      %v1015 = vrcp.pop %v1014
      %v1016 = vmul.f32 %v1014, %v1015
      %v1017 = vsub.f32 1.0, %v1016
      %v1018 = vmul.f32 %v1015, %v1017
      %v1019 = vadd.f32 %v1015, %v1018
      %vm1020 = vweird.f32 %v1014
      %vm1021 = vweird.f32 %v1015
      %vm1022 = vmor %vm1020, %vm1021
      %v1023 = vsel %vm1022, %v1015, %v1019
      %v1024 = vand.u32 2147483647, %v1014
      %vm1025 = vcmp.eq.f32.partialorder %v1024, 8.507059e+37
      %v1026 = vand.u32 %v1014, 2147483648
      %v1027 = vor.u32 1.1754944e-38, %v1026
      %v1028 = vsel %vm1025, %v1027, %v1023
      %v1029 = vmul.f32 %v1004, %v1028
      %v1030 = vmin.f32 %v1029, 1.0
      %v1031 = vmax.f32 %v1030, -1.0
      %v1032 = vmul.f32 %v748, %v748
      %v1033 = vmin.f32 16.0, %v1032
      %v1034 = vmul.f32 %v1033, 2.1237322e-06
      %v1035 = vadd.f32 %v1034, 0.00028619796
      %v1036 = vmul.f32 %v1033, %v1035
      %v1037 = vadd.f32 %v1036, 0.0036580483
      %v1038 = vmul.f32 %v1033, %v1037
      %v1039 = vadd.f32 %v1038, 0.05243302
      %v1040 = vmul.f32 %v1033, %v1039
      %v1041 = vadd.f32 %v1040, 0.18741608
      %v1042 = vmul.f32 %v1033, %v1041
      %v1043 = vadd.f32 %v1042, 1.1283791
      %v1044 = vmul.f32 %v748, %v1043
      %v1045 = vmul.f32 %v1033, 3.8918573e-05
      %v1046 = vadd.f32 %v1045, 0.001143296
      %v1047 = vmul.f32 %v1033, %v1046
      %v1048 = vadd.f32 %v1047, 0.014752088
      %v1049 = vmul.f32 %v1033, %v1048
      %v1050 = vadd.f32 %v1049, 0.112945676
      %v1051 = vmul.f32 %v1033, %v1050
      %v1052 = vadd.f32 %v1051, 0.4994258
      %v1053 = vmul.f32 %v1033, %v1052
      %v1054 = vadd.f32 %v1053, 1.0
      %v1055 = vrcp.pop %v1054
      %v1056 = vmul.f32 %v1054, %v1055
      %v1057 = vsub.f32 1.0, %v1056
      %v1058 = vmul.f32 %v1055, %v1057
      %v1059 = vadd.f32 %v1055, %v1058
      %vm1060 = vweird.f32 %v1054
      %vm1061 = vweird.f32 %v1055
      %vm1062 = vmor %vm1060, %vm1061
      %v1063 = vsel %vm1062, %v1055, %v1059
      %v1064 = vand.u32 2147483647, %v1054
      %vm1065 = vcmp.eq.f32.partialorder %v1064, 8.507059e+37
      %v1066 = vand.u32 %v1054, 2147483648
      %v1067 = vor.u32 1.1754944e-38, %v1066
      %v1068 = vsel %vm1065, %v1067, %v1063
      %v1069 = vmul.f32 %v1044, %v1068
      %v1070 = vmin.f32 %v1069, 1.0
      %v1071 = vmax.f32 %v1070, -1.0
      %v1072 = vmul.f32 %v749, %v749
      %v1073 = vmin.f32 16.0, %v1072
      %v1074 = vmul.f32 %v1073, 2.1237322e-06
      %v1075 = vadd.f32 %v1074, 0.00028619796
      %v1076 = vmul.f32 %v1073, %v1075
      %v1077 = vadd.f32 %v1076, 0.0036580483
      %v1078 = vmul.f32 %v1073, %v1077
      %v1079 = vadd.f32 %v1078, 0.05243302
      %v1080 = vmul.f32 %v1073, %v1079
      %v1081 = vadd.f32 %v1080, 0.18741608
      %v1082 = vmul.f32 %v1073, %v1081
      %v1083 = vadd.f32 %v1082, 1.1283791
      %v1084 = vmul.f32 %v749, %v1083
      %v1085 = vmul.f32 %v1073, 3.8918573e-05
      %v1086 = vadd.f32 %v1085, 0.001143296
      %v1087 = vmul.f32 %v1073, %v1086
      %v1088 = vadd.f32 %v1087, 0.014752088
      %v1089 = vmul.f32 %v1073, %v1088
      %v1090 = vadd.f32 %v1089, 0.112945676
      %v1091 = vmul.f32 %v1073, %v1090
      %v1092 = vadd.f32 %v1091, 0.4994258
      %v1093 = vmul.f32 %v1073, %v1092
      %v1094 = vadd.f32 %v1093, 1.0
      %v1095 = vrcp.pop %v1094
      %v1096 = vmul.f32 %v1094, %v1095
      %v1097 = vsub.f32 1.0, %v1096
      %v1098 = vmul.f32 %v1095, %v1097
      %v1099 = vadd.f32 %v1095, %v1098
      %vm1100 = vweird.f32 %v1094
      %vm1101 = vweird.f32 %v1095
      %vm1102 = vmor %vm1100, %vm1101
      %v1103 = vsel %vm1102, %v1095, %v1099
      %v1104 = vand.u32 2147483647, %v1094
      %vm1105 = vcmp.eq.f32.partialorder %v1104, 8.507059e+37
      %v1106 = vand.u32 %v1094, 2147483648
      %v1107 = vor.u32 1.1754944e-38, %v1106
      %v1108 = vsel %vm1105, %v1107, %v1103
      %v1109 = vmul.f32 %v1084, %v1108
      %v1110 = vmin.f32 %v1109, 1.0
      %v1111 = vmax.f32 %v1110, -1.0
      %v1112 = vmul.f32 %v750, %v750
      %v1113 = vmin.f32 16.0, %v1112
      %v1114 = vmul.f32 %v1113, 2.1237322e-06
      %v1115 = vadd.f32 %v1114, 0.00028619796
      %v1116 = vmul.f32 %v1113, %v1115
      %v1117 = vadd.f32 %v1116, 0.0036580483
      %v1118 = vmul.f32 %v1113, %v1117
      %v1119 = vadd.f32 %v1118, 0.05243302
      %v1120 = vmul.f32 %v1113, %v1119
      %v1121 = vadd.f32 %v1120, 0.18741608
      %v1122 = vmul.f32 %v1113, %v1121
      %v1123 = vadd.f32 %v1122, 1.1283791
      %v1124 = vmul.f32 %v750, %v1123
      %v1125 = vmul.f32 %v1113, 3.8918573e-05
      %v1126 = vadd.f32 %v1125, 0.001143296
      %v1127 = vmul.f32 %v1113, %v1126
      %v1128 = vadd.f32 %v1127, 0.014752088
      %v1129 = vmul.f32 %v1113, %v1128
      %v1130 = vadd.f32 %v1129, 0.112945676
      %v1131 = vmul.f32 %v1113, %v1130
      %v1132 = vadd.f32 %v1131, 0.4994258
      %v1133 = vmul.f32 %v1113, %v1132
      %v1134 = vadd.f32 %v1133, 1.0
      %v1135 = vrcp.pop %v1134
      %v1136 = vmul.f32 %v1134, %v1135
      %v1137 = vsub.f32 1.0, %v1136
      %v1138 = vmul.f32 %v1135, %v1137
      %v1139 = vadd.f32 %v1135, %v1138
      %vm1140 = vweird.f32 %v1134
      %vm1141 = vweird.f32 %v1135
      %vm1142 = vmor %vm1140, %vm1141
      %v1143 = vsel %vm1142, %v1135, %v1139
      %v1144 = vand.u32 2147483647, %v1134
      %vm1145 = vcmp.eq.f32.partialorder %v1144, 8.507059e+37
      %v1146 = vand.u32 %v1134, 2147483648
      %v1147 = vor.u32 1.1754944e-38, %v1146
      %v1148 = vsel %vm1145, %v1147, %v1143
      %v1149 = vmul.f32 %v1124, %v1148
      %v1150 = vmin.f32 %v1149, 1.0
      %v1151 = vmax.f32 %v1150, -1.0
      %v1152 = vmul.f32 %v751, %v751
      %v1153 = vmin.f32 16.0, %v1152
      %v1154 = vmul.f32 %v1153, 2.1237322e-06
      %v1155 = vadd.f32 %v1154, 0.00028619796
      %v1156 = vmul.f32 %v1153, %v1155
      %v1157 = vadd.f32 %v1156, 0.0036580483
      %v1158 = vmul.f32 %v1153, %v1157
      %v1159 = vadd.f32 %v1158, 0.05243302
      %v1160 = vmul.f32 %v1153, %v1159
      %v1161 = vadd.f32 %v1160, 0.18741608
      %v1162 = vmul.f32 %v1153, %v1161
      %v1163 = vadd.f32 %v1162, 1.1283791
      %v1164 = vmul.f32 %v751, %v1163
      %v1165 = vmul.f32 %v1153, 3.8918573e-05
      %v1166 = vadd.f32 %v1165, 0.001143296
      %v1167 = vmul.f32 %v1153, %v1166
      %v1168 = vadd.f32 %v1167, 0.014752088
      %v1169 = vmul.f32 %v1153, %v1168
      %v1170 = vadd.f32 %v1169, 0.112945676
      %v1171 = vmul.f32 %v1153, %v1170
      %v1172 = vadd.f32 %v1171, 0.4994258
      %v1173 = vmul.f32 %v1153, %v1172
      %v1174 = vadd.f32 %v1173, 1.0
      %v1175 = vrcp.pop %v1174
      %v1176 = vmul.f32 %v1174, %v1175
      %v1177 = vsub.f32 1.0, %v1176
      %v1178 = vmul.f32 %v1175, %v1177
      %v1179 = vadd.f32 %v1175, %v1178
      %vm1180 = vweird.f32 %v1174
      %vm1181 = vweird.f32 %v1175
      %vm1182 = vmor %vm1180, %vm1181
      %v1183 = vsel %vm1182, %v1175, %v1179
      %v1184 = vand.u32 2147483647, %v1174
      %vm1185 = vcmp.eq.f32.partialorder %v1184, 8.507059e+37
      %v1186 = vand.u32 %v1174, 2147483648
      %v1187 = vor.u32 1.1754944e-38, %v1186
      %v1188 = vsel %vm1185, %v1187, %v1183
      %v1189 = vmul.f32 %v1164, %v1188
      %v1190 = vmin.f32 %v1189, 1.0
      %v1191 = vmax.f32 %v1190, -1.0
      %v1192 = vadd.f32 %v791, 1.0
      %v1193 = vadd.f32 %v831, 1.0
      %v1194 = vadd.f32 %v871, 1.0
      %v1195 = vadd.f32 %v911, 1.0
      %v1196 = vadd.f32 %v951, 1.0
      %v1197 = vadd.f32 %v991, 1.0
      %v1198 = vadd.f32 %v1031, 1.0
      %v1199 = vadd.f32 %v1071, 1.0
      %v1200 = vadd.f32 %v1111, 1.0
      %v1201 = vadd.f32 %v1151, 1.0
      %v1202 = vadd.f32 %v1191, 1.0
      %v1203 = vmul.f32 %v730, %v1192
      %v1204 = vmul.f32 %v731, %v1193
      %v1205 = vmul.f32 %v732, %v1194
      %v1206 = vmul.f32 %v733, %v1195
      %v1207 = vmul.f32 %v734, %v1196
      %v1208 = vmul.f32 %v735, %v1197
      %v1209 = vmul.f32 %v736, %v1198
      %v1210 = vmul.f32 %v737, %v1199
      %v1211 = vmul.f32 %v738, %v1200
      %v1212 = vmul.f32 %v739, %v1201
      %v1213 = vmul.f32 %v740, %v1202
      %v1214 = vmul.f32 %v719, 0.5
      %v1215 = vmul.f32 %v720, 0.5
      %v1216 = vmul.f32 %v721, 0.5
      %v1217 = vmul.f32 %v722, 0.5
      %v1218 = vmul.f32 %v723, 0.5
      %v1219 = vmul.f32 %v724, 0.5
      %v1220 = vmul.f32 %v725, 0.5
      %v1221 = vmul.f32 %v726, 0.5
      %v1222 = vmul.f32 %v727, 0.5
      %v1223 = vmul.f32 %v728, 0.5
      %v1224 = vmul.f32 %v729, 0.5
      %v1225 = vmul.f32 %v719, 0.70710677
      %v1226 = vmul.f32 %v720, 0.70710677
      %v1227 = vmul.f32 %v721, 0.70710677
      %v1228 = vmul.f32 %v722, 0.70710677
      %v1229 = vmul.f32 %v723, 0.70710677
      %v1230 = vmul.f32 %v724, 0.70710677
      %v1231 = vmul.f32 %v725, 0.70710677
      %v1232 = vmul.f32 %v726, 0.70710677
      %v1233 = vmul.f32 %v727, 0.70710677
      %v1234 = vmul.f32 %v728, 0.70710677
      %v1235 = vmul.f32 %v729, 0.70710677
      %v1236 = vmul.f32 %v1225, %v1225
      %v1237 = vmin.f32 16.0, %v1236
      %v1238 = vmul.f32 %v1237, 2.1237322e-06
      %v1239 = vadd.f32 %v1238, 0.00028619796
      %v1240 = vmul.f32 %v1237, %v1239
      %v1241 = vadd.f32 %v1240, 0.0036580483
      %v1242 = vmul.f32 %v1237, %v1241
      %v1243 = vadd.f32 %v1242, 0.05243302
      %v1244 = vmul.f32 %v1237, %v1243
      %v1245 = vadd.f32 %v1244, 0.18741608
      %v1246 = vmul.f32 %v1237, %v1245
      %v1247 = vadd.f32 %v1246, 1.1283791
      %v1248 = vmul.f32 %v1225, %v1247
      %v1249 = vmul.f32 %v1237, 3.8918573e-05
      %v1250 = vadd.f32 %v1249, 0.001143296
      %v1251 = vmul.f32 %v1237, %v1250
      %v1252 = vadd.f32 %v1251, 0.014752088
      %v1253 = vmul.f32 %v1237, %v1252
      %v1254 = vadd.f32 %v1253, 0.112945676
      %v1255 = vmul.f32 %v1237, %v1254
      %v1256 = vadd.f32 %v1255, 0.4994258
      %v1257 = vmul.f32 %v1237, %v1256
      %v1258 = vadd.f32 %v1257, 1.0
      %v1259 = vrcp.pop %v1258
      %v1260 = vmul.f32 %v1258, %v1259
      %v1261 = vsub.f32 1.0, %v1260
      %v1262 = vmul.f32 %v1259, %v1261
      %v1263 = vadd.f32 %v1259, %v1262
      %vm1264 = vweird.f32 %v1258
      %vm1265 = vweird.f32 %v1259
      %vm1266 = vmor %vm1264, %vm1265
      %v1267 = vsel %vm1266, %v1259, %v1263
      %v1268 = vand.u32 2147483647, %v1258
      %vm1269 = vcmp.eq.f32.partialorder %v1268, 8.507059e+37
      %v1270 = vand.u32 %v1258, 2147483648
      %v1271 = vor.u32 1.1754944e-38, %v1270
      %v1272 = vsel %vm1269, %v1271, %v1267
      %v1273 = vmul.f32 %v1248, %v1272
      %v1274 = vmin.f32 %v1273, 1.0
      %v1275 = vmax.f32 %v1274, -1.0
      %v1276 = vmul.f32 %v1226, %v1226
      %v1277 = vmin.f32 16.0, %v1276
      %v1278 = vmul.f32 %v1277, 2.1237322e-06
      %v1279 = vadd.f32 %v1278, 0.00028619796
      %v1280 = vmul.f32 %v1277, %v1279
      %v1281 = vadd.f32 %v1280, 0.0036580483
      %v1282 = vmul.f32 %v1277, %v1281
      %v1283 = vadd.f32 %v1282, 0.05243302
      %v1284 = vmul.f32 %v1277, %v1283
      %v1285 = vadd.f32 %v1284, 0.18741608
      %v1286 = vmul.f32 %v1277, %v1285
      %v1287 = vadd.f32 %v1286, 1.1283791
      %v1288 = vmul.f32 %v1226, %v1287
      %v1289 = vmul.f32 %v1277, 3.8918573e-05
      %v1290 = vadd.f32 %v1289, 0.001143296
      %v1291 = vmul.f32 %v1277, %v1290
      %v1292 = vadd.f32 %v1291, 0.014752088
      %v1293 = vmul.f32 %v1277, %v1292
      %v1294 = vadd.f32 %v1293, 0.112945676
      %v1295 = vmul.f32 %v1277, %v1294
      %v1296 = vadd.f32 %v1295, 0.4994258
      %v1297 = vmul.f32 %v1277, %v1296
      %v1298 = vadd.f32 %v1297, 1.0
      %v1299 = vrcp.pop %v1298
      %v1300 = vmul.f32 %v1298, %v1299
      %v1301 = vsub.f32 1.0, %v1300
      %v1302 = vmul.f32 %v1299, %v1301
      %v1303 = vadd.f32 %v1299, %v1302
      %vm1304 = vweird.f32 %v1298
      %vm1305 = vweird.f32 %v1299
      %vm1306 = vmor %vm1304, %vm1305
      %v1307 = vsel %vm1306, %v1299, %v1303
      %v1308 = vand.u32 2147483647, %v1298
      %vm1309 = vcmp.eq.f32.partialorder %v1308, 8.507059e+37
      %v1310 = vand.u32 %v1298, 2147483648
      %v1311 = vor.u32 1.1754944e-38, %v1310
      %v1312 = vsel %vm1309, %v1311, %v1307
      %v1313 = vmul.f32 %v1288, %v1312
      %v1314 = vmin.f32 %v1313, 1.0
      %v1315 = vmax.f32 %v1314, -1.0
      %v1316 = vmul.f32 %v1227, %v1227
      %v1317 = vmin.f32 16.0, %v1316
      %v1318 = vmul.f32 %v1317, 2.1237322e-06
      %v1319 = vadd.f32 %v1318, 0.00028619796
      %v1320 = vmul.f32 %v1317, %v1319
      %v1321 = vadd.f32 %v1320, 0.0036580483
      %v1322 = vmul.f32 %v1317, %v1321
      %v1323 = vadd.f32 %v1322, 0.05243302
      %v1324 = vmul.f32 %v1317, %v1323
      %v1325 = vadd.f32 %v1324, 0.18741608
      %v1326 = vmul.f32 %v1317, %v1325
      %v1327 = vadd.f32 %v1326, 1.1283791
      %v1328 = vmul.f32 %v1227, %v1327
      %v1329 = vmul.f32 %v1317, 3.8918573e-05
      %v1330 = vadd.f32 %v1329, 0.001143296
      %v1331 = vmul.f32 %v1317, %v1330
      %v1332 = vadd.f32 %v1331, 0.014752088
      %v1333 = vmul.f32 %v1317, %v1332
      %v1334 = vadd.f32 %v1333, 0.112945676
      %v1335 = vmul.f32 %v1317, %v1334
      %v1336 = vadd.f32 %v1335, 0.4994258
      %v1337 = vmul.f32 %v1317, %v1336
      %v1338 = vadd.f32 %v1337, 1.0
      %v1339 = vrcp.pop %v1338
      %v1340 = vmul.f32 %v1338, %v1339
      %v1341 = vsub.f32 1.0, %v1340
      %v1342 = vmul.f32 %v1339, %v1341
      %v1343 = vadd.f32 %v1339, %v1342
      %vm1344 = vweird.f32 %v1338
      %vm1345 = vweird.f32 %v1339
      %vm1346 = vmor %vm1344, %vm1345
      %v1347 = vsel %vm1346, %v1339, %v1343
      %v1348 = vand.u32 2147483647, %v1338
      %vm1349 = vcmp.eq.f32.partialorder %v1348, 8.507059e+37
      %v1350 = vand.u32 %v1338, 2147483648
      %v1351 = vor.u32 1.1754944e-38, %v1350
      %v1352 = vsel %vm1349, %v1351, %v1347
      %v1353 = vmul.f32 %v1328, %v1352
      %v1354 = vmin.f32 %v1353, 1.0
      %v1355 = vmax.f32 %v1354, -1.0
      %v1356 = vmul.f32 %v1228, %v1228
      %v1357 = vmin.f32 16.0, %v1356
      %v1358 = vmul.f32 %v1357, 2.1237322e-06
      %v1359 = vadd.f32 %v1358, 0.00028619796
      %v1360 = vmul.f32 %v1357, %v1359
      %v1361 = vadd.f32 %v1360, 0.0036580483
      %v1362 = vmul.f32 %v1357, %v1361
      %v1363 = vadd.f32 %v1362, 0.05243302
      %v1364 = vmul.f32 %v1357, %v1363
      %v1365 = vadd.f32 %v1364, 0.18741608
      %v1366 = vmul.f32 %v1357, %v1365
      %v1367 = vadd.f32 %v1366, 1.1283791
      %v1368 = vmul.f32 %v1228, %v1367
      %v1369 = vmul.f32 %v1357, 3.8918573e-05
      %v1370 = vadd.f32 %v1369, 0.001143296
      %v1371 = vmul.f32 %v1357, %v1370
      %v1372 = vadd.f32 %v1371, 0.014752088
      %v1373 = vmul.f32 %v1357, %v1372
      %v1374 = vadd.f32 %v1373, 0.112945676
      %v1375 = vmul.f32 %v1357, %v1374
      %v1376 = vadd.f32 %v1375, 0.4994258
      %v1377 = vmul.f32 %v1357, %v1376
      %v1378 = vadd.f32 %v1377, 1.0
      %v1379 = vrcp.pop %v1378
      %v1380 = vmul.f32 %v1378, %v1379
      %v1381 = vsub.f32 1.0, %v1380
      %v1382 = vmul.f32 %v1379, %v1381
      %v1383 = vadd.f32 %v1379, %v1382
      %vm1384 = vweird.f32 %v1378
      %vm1385 = vweird.f32 %v1379
      %vm1386 = vmor %vm1384, %vm1385
      %v1387 = vsel %vm1386, %v1379, %v1383
      %v1388 = vand.u32 2147483647, %v1378
      %vm1389 = vcmp.eq.f32.partialorder %v1388, 8.507059e+37
      %v1390 = vand.u32 %v1378, 2147483648
      %v1391 = vor.u32 1.1754944e-38, %v1390
      %v1392 = vsel %vm1389, %v1391, %v1387
      %v1393 = vmul.f32 %v1368, %v1392
      %v1394 = vmin.f32 %v1393, 1.0
      %v1395 = vmax.f32 %v1394, -1.0
      %v1396 = vmul.f32 %v1229, %v1229
      %v1397 = vmin.f32 16.0, %v1396
      %v1398 = vmul.f32 %v1397, 2.1237322e-06
      %v1399 = vadd.f32 %v1398, 0.00028619796
      %v1400 = vmul.f32 %v1397, %v1399
      %v1401 = vadd.f32 %v1400, 0.0036580483
      %v1402 = vmul.f32 %v1397, %v1401
      %v1403 = vadd.f32 %v1402, 0.05243302
      %v1404 = vmul.f32 %v1397, %v1403
      %v1405 = vadd.f32 %v1404, 0.18741608
      %v1406 = vmul.f32 %v1397, %v1405
      %v1407 = vadd.f32 %v1406, 1.1283791
      %v1408 = vmul.f32 %v1229, %v1407
      %v1409 = vmul.f32 %v1397, 3.8918573e-05
      %v1410 = vadd.f32 %v1409, 0.001143296
      %v1411 = vmul.f32 %v1397, %v1410
      %v1412 = vadd.f32 %v1411, 0.014752088
      %v1413 = vmul.f32 %v1397, %v1412
      %v1414 = vadd.f32 %v1413, 0.112945676
      %v1415 = vmul.f32 %v1397, %v1414
      %v1416 = vadd.f32 %v1415, 0.4994258
      %v1417 = vmul.f32 %v1397, %v1416
      %v1418 = vadd.f32 %v1417, 1.0
      %v1419 = vrcp.pop %v1418
      %v1420 = vmul.f32 %v1418, %v1419
      %v1421 = vsub.f32 1.0, %v1420
      %v1422 = vmul.f32 %v1419, %v1421
      %v1423 = vadd.f32 %v1419, %v1422
      %vm1424 = vweird.f32 %v1418
      %vm1425 = vweird.f32 %v1419
      %vm1426 = vmor %vm1424, %vm1425
      %v1427 = vsel %vm1426, %v1419, %v1423
      %v1428 = vand.u32 2147483647, %v1418
      %vm1429 = vcmp.eq.f32.partialorder %v1428, 8.507059e+37
      %v1430 = vand.u32 %v1418, 2147483648
      %v1431 = vor.u32 1.1754944e-38, %v1430
      %v1432 = vsel %vm1429, %v1431, %v1427
      %v1433 = vmul.f32 %v1408, %v1432
      %v1434 = vmin.f32 %v1433, 1.0
      %v1435 = vmax.f32 %v1434, -1.0
      %v1436 = vmul.f32 %v1230, %v1230
      %v1437 = vmin.f32 16.0, %v1436
      %v1438 = vmul.f32 %v1437, 2.1237322e-06
      %v1439 = vadd.f32 %v1438, 0.00028619796
      %v1440 = vmul.f32 %v1437, %v1439
      %v1441 = vadd.f32 %v1440, 0.0036580483
      %v1442 = vmul.f32 %v1437, %v1441
      %v1443 = vadd.f32 %v1442, 0.05243302
      %v1444 = vmul.f32 %v1437, %v1443
      %v1445 = vadd.f32 %v1444, 0.18741608
      %v1446 = vmul.f32 %v1437, %v1445
      %v1447 = vadd.f32 %v1446, 1.1283791
      %v1448 = vmul.f32 %v1230, %v1447
      %v1449 = vmul.f32 %v1437, 3.8918573e-05
      %v1450 = vadd.f32 %v1449, 0.001143296
      %v1451 = vmul.f32 %v1437, %v1450
      %v1452 = vadd.f32 %v1451, 0.014752088
      %v1453 = vmul.f32 %v1437, %v1452
      %v1454 = vadd.f32 %v1453, 0.112945676
      %v1455 = vmul.f32 %v1437, %v1454
      %v1456 = vadd.f32 %v1455, 0.4994258
      %v1457 = vmul.f32 %v1437, %v1456
      %v1458 = vadd.f32 %v1457, 1.0
      %v1459 = vrcp.pop %v1458
      %v1460 = vmul.f32 %v1458, %v1459
      %v1461 = vsub.f32 1.0, %v1460
      %v1462 = vmul.f32 %v1459, %v1461
      %v1463 = vadd.f32 %v1459, %v1462
      %vm1464 = vweird.f32 %v1458
      %vm1465 = vweird.f32 %v1459
      %vm1466 = vmor %vm1464, %vm1465
      %v1467 = vsel %vm1466, %v1459, %v1463
      %v1468 = vand.u32 2147483647, %v1458
      %vm1469 = vcmp.eq.f32.partialorder %v1468, 8.507059e+37
      %v1470 = vand.u32 %v1458, 2147483648
      %v1471 = vor.u32 1.1754944e-38, %v1470
      %v1472 = vsel %vm1469, %v1471, %v1467
      %v1473 = vmul.f32 %v1448, %v1472
      %v1474 = vmin.f32 %v1473, 1.0
      %v1475 = vmax.f32 %v1474, -1.0
      %v1476 = vmul.f32 %v1231, %v1231
      %v1477 = vmin.f32 16.0, %v1476
      %v1478 = vmul.f32 %v1477, 2.1237322e-06
      %v1479 = vadd.f32 %v1478, 0.00028619796
      %v1480 = vmul.f32 %v1477, %v1479
      %v1481 = vadd.f32 %v1480, 0.0036580483
      %v1482 = vmul.f32 %v1477, %v1481
      %v1483 = vadd.f32 %v1482, 0.05243302
      %v1484 = vmul.f32 %v1477, %v1483
      %v1485 = vadd.f32 %v1484, 0.18741608
      %v1486 = vmul.f32 %v1477, %v1485
      %v1487 = vadd.f32 %v1486, 1.1283791
      %v1488 = vmul.f32 %v1231, %v1487
      %v1489 = vmul.f32 %v1477, 3.8918573e-05
      %v1490 = vadd.f32 %v1489, 0.001143296
      %v1491 = vmul.f32 %v1477, %v1490
      %v1492 = vadd.f32 %v1491, 0.014752088
      %v1493 = vmul.f32 %v1477, %v1492
      %v1494 = vadd.f32 %v1493, 0.112945676
      %v1495 = vmul.f32 %v1477, %v1494
      %v1496 = vadd.f32 %v1495, 0.4994258
      %v1497 = vmul.f32 %v1477, %v1496
      %v1498 = vadd.f32 %v1497, 1.0
      %v1499 = vrcp.pop %v1498
      %v1500 = vmul.f32 %v1498, %v1499
      %v1501 = vsub.f32 1.0, %v1500
      %v1502 = vmul.f32 %v1499, %v1501
      %v1503 = vadd.f32 %v1499, %v1502
      %vm1504 = vweird.f32 %v1498
      %vm1505 = vweird.f32 %v1499
      %vm1506 = vmor %vm1504, %vm1505
      %v1507 = vsel %vm1506, %v1499, %v1503
      %v1508 = vand.u32 2147483647, %v1498
      %vm1509 = vcmp.eq.f32.partialorder %v1508, 8.507059e+37
      %v1510 = vand.u32 %v1498, 2147483648
      %v1511 = vor.u32 1.1754944e-38, %v1510
      %v1512 = vsel %vm1509, %v1511, %v1507
      %v1513 = vmul.f32 %v1488, %v1512
      %v1514 = vmin.f32 %v1513, 1.0
      %v1515 = vmax.f32 %v1514, -1.0
      %v1516 = vmul.f32 %v1232, %v1232
      %v1517 = vmin.f32 16.0, %v1516
      %v1518 = vmul.f32 %v1517, 2.1237322e-06
      %v1519 = vadd.f32 %v1518, 0.00028619796
      %v1520 = vmul.f32 %v1517, %v1519
      %v1521 = vadd.f32 %v1520, 0.0036580483
      %v1522 = vmul.f32 %v1517, %v1521
      %v1523 = vadd.f32 %v1522, 0.05243302
      %v1524 = vmul.f32 %v1517, %v1523
      %v1525 = vadd.f32 %v1524, 0.18741608
      %v1526 = vmul.f32 %v1517, %v1525
      %v1527 = vadd.f32 %v1526, 1.1283791
      %v1528 = vmul.f32 %v1232, %v1527
      %v1529 = vmul.f32 %v1517, 3.8918573e-05
      %v1530 = vadd.f32 %v1529, 0.001143296
      %v1531 = vmul.f32 %v1517, %v1530
      %v1532 = vadd.f32 %v1531, 0.014752088
      %v1533 = vmul.f32 %v1517, %v1532
      %v1534 = vadd.f32 %v1533, 0.112945676
      %v1535 = vmul.f32 %v1517, %v1534
      %v1536 = vadd.f32 %v1535, 0.4994258
      %v1537 = vmul.f32 %v1517, %v1536
      %v1538 = vadd.f32 %v1537, 1.0
      %v1539 = vrcp.pop %v1538
      %v1540 = vmul.f32 %v1538, %v1539
      %v1541 = vsub.f32 1.0, %v1540
      %v1542 = vmul.f32 %v1539, %v1541
      %v1543 = vadd.f32 %v1539, %v1542
      %vm1544 = vweird.f32 %v1538
      %vm1545 = vweird.f32 %v1539
      %vm1546 = vmor %vm1544, %vm1545
      %v1547 = vsel %vm1546, %v1539, %v1543
      %v1548 = vand.u32 2147483647, %v1538
      %vm1549 = vcmp.eq.f32.partialorder %v1548, 8.507059e+37
      %v1550 = vand.u32 %v1538, 2147483648
      %v1551 = vor.u32 1.1754944e-38, %v1550
      %v1552 = vsel %vm1549, %v1551, %v1547
      %v1553 = vmul.f32 %v1528, %v1552
      %v1554 = vmin.f32 %v1553, 1.0
      %v1555 = vmax.f32 %v1554, -1.0
      %v1556 = vmul.f32 %v1233, %v1233
      %v1557 = vmin.f32 16.0, %v1556
      %v1558 = vmul.f32 %v1557, 2.1237322e-06
      %v1559 = vadd.f32 %v1558, 0.00028619796
      %v1560 = vmul.f32 %v1557, %v1559
      %v1561 = vadd.f32 %v1560, 0.0036580483
      %v1562 = vmul.f32 %v1557, %v1561
      %v1563 = vadd.f32 %v1562, 0.05243302
      %v1564 = vmul.f32 %v1557, %v1563
      %v1565 = vadd.f32 %v1564, 0.18741608
      %v1566 = vmul.f32 %v1557, %v1565
      %v1567 = vadd.f32 %v1566, 1.1283791
      %v1568 = vmul.f32 %v1233, %v1567
      %v1569 = vmul.f32 %v1557, 3.8918573e-05
      %v1570 = vadd.f32 %v1569, 0.001143296
      %v1571 = vmul.f32 %v1557, %v1570
      %v1572 = vadd.f32 %v1571, 0.014752088
      %v1573 = vmul.f32 %v1557, %v1572
      %v1574 = vadd.f32 %v1573, 0.112945676
      %v1575 = vmul.f32 %v1557, %v1574
      %v1576 = vadd.f32 %v1575, 0.4994258
      %v1577 = vmul.f32 %v1557, %v1576
      %v1578 = vadd.f32 %v1577, 1.0
      %v1579 = vrcp.pop %v1578
      %v1580 = vmul.f32 %v1578, %v1579
      %v1581 = vsub.f32 1.0, %v1580
      %v1582 = vmul.f32 %v1579, %v1581
      %v1583 = vadd.f32 %v1579, %v1582
      %vm1584 = vweird.f32 %v1578
      %vm1585 = vweird.f32 %v1579
      %vm1586 = vmor %vm1584, %vm1585
      %v1587 = vsel %vm1586, %v1579, %v1583
      %v1588 = vand.u32 2147483647, %v1578
      %vm1589 = vcmp.eq.f32.partialorder %v1588, 8.507059e+37
      %v1590 = vand.u32 %v1578, 2147483648
      %v1591 = vor.u32 1.1754944e-38, %v1590
      %v1592 = vsel %vm1589, %v1591, %v1587
      %v1593 = vmul.f32 %v1568, %v1592
      %v1594 = vmin.f32 %v1593, 1.0
      %v1595 = vmax.f32 %v1594, -1.0
      %v1596 = vmul.f32 %v1234, %v1234
      %v1597 = vmin.f32 16.0, %v1596
      %v1598 = vmul.f32 %v1597, 2.1237322e-06
      %v1599 = vadd.f32 %v1598, 0.00028619796
      %v1600 = vmul.f32 %v1597, %v1599
      %v1601 = vadd.f32 %v1600, 0.0036580483
      %v1602 = vmul.f32 %v1597, %v1601
      %v1603 = vadd.f32 %v1602, 0.05243302
      %v1604 = vmul.f32 %v1597, %v1603
      %v1605 = vadd.f32 %v1604, 0.18741608
      %v1606 = vmul.f32 %v1597, %v1605
      %v1607 = vadd.f32 %v1606, 1.1283791
      %v1608 = vmul.f32 %v1234, %v1607
      %v1609 = vmul.f32 %v1597, 3.8918573e-05
      %v1610 = vadd.f32 %v1609, 0.001143296
      %v1611 = vmul.f32 %v1597, %v1610
      %v1612 = vadd.f32 %v1611, 0.014752088
      %v1613 = vmul.f32 %v1597, %v1612
      %v1614 = vadd.f32 %v1613, 0.112945676
      %v1615 = vmul.f32 %v1597, %v1614
      %v1616 = vadd.f32 %v1615, 0.4994258
      %v1617 = vmul.f32 %v1597, %v1616
      %v1618 = vadd.f32 %v1617, 1.0
      %v1619 = vrcp.pop %v1618
      %v1620 = vmul.f32 %v1618, %v1619
      %v1621 = vsub.f32 1.0, %v1620
      %v1622 = vmul.f32 %v1619, %v1621
      %v1623 = vadd.f32 %v1619, %v1622
      %vm1624 = vweird.f32 %v1618
      %vm1625 = vweird.f32 %v1619
      %vm1626 = vmor %vm1624, %vm1625
      %v1627 = vsel %vm1626, %v1619, %v1623
      %v1628 = vand.u32 2147483647, %v1618
      %vm1629 = vcmp.eq.f32.partialorder %v1628, 8.507059e+37
      %v1630 = vand.u32 %v1618, 2147483648
      %v1631 = vor.u32 1.1754944e-38, %v1630
      %v1632 = vsel %vm1629, %v1631, %v1627
      %v1633 = vmul.f32 %v1608, %v1632
      %v1634 = vmin.f32 %v1633, 1.0
      %v1635 = vmax.f32 %v1634, -1.0
      %v1636 = vmul.f32 %v1235, %v1235
      %v1637 = vmin.f32 16.0, %v1636
      %v1638 = vmul.f32 %v1637, 2.1237322e-06
      %v1639 = vadd.f32 %v1638, 0.00028619796
      %v1640 = vmul.f32 %v1637, %v1639
      %v1641 = vadd.f32 %v1640, 0.0036580483
      %v1642 = vmul.f32 %v1637, %v1641
      %v1643 = vadd.f32 %v1642, 0.05243302
      %v1644 = vmul.f32 %v1637, %v1643
      %v1645 = vadd.f32 %v1644, 0.18741608
      %v1646 = vmul.f32 %v1637, %v1645
      %v1647 = vadd.f32 %v1646, 1.1283791
      %v1648 = vmul.f32 %v1235, %v1647
      %v1649 = vmul.f32 %v1637, 3.8918573e-05
      %v1650 = vadd.f32 %v1649, 0.001143296
      %v1651 = vmul.f32 %v1637, %v1650
      %v1652 = vadd.f32 %v1651, 0.014752088
      %v1653 = vmul.f32 %v1637, %v1652
      %v1654 = vadd.f32 %v1653, 0.112945676
      %v1655 = vmul.f32 %v1637, %v1654
      %v1656 = vadd.f32 %v1655, 0.4994258
      %v1657 = vmul.f32 %v1637, %v1656
      %v1658 = vadd.f32 %v1657, 1.0
      %v1659 = vrcp.pop %v1658
      %v1660 = vmul.f32 %v1658, %v1659
      %v1661 = vsub.f32 1.0, %v1660
      %v1662 = vmul.f32 %v1659, %v1661
      %v1663 = vadd.f32 %v1659, %v1662
      %vm1664 = vweird.f32 %v1658
      %vm1665 = vweird.f32 %v1659
      %vm1666 = vmor %vm1664, %vm1665
      %v1667 = vsel %vm1666, %v1659, %v1663
      %v1668 = vand.u32 2147483647, %v1658
      %vm1669 = vcmp.eq.f32.partialorder %v1668, 8.507059e+37
      %v1670 = vand.u32 %v1658, 2147483648
      %v1671 = vor.u32 1.1754944e-38, %v1670
      %v1672 = vsel %vm1669, %v1671, %v1667
      %v1673 = vmul.f32 %v1648, %v1672
      %v1674 = vmin.f32 %v1673, 1.0
      %v1675 = vmax.f32 %v1674, -1.0
      %v1676 = vadd.f32 %v1275, 1.0
      %v1677 = vadd.f32 %v1315, 1.0
      %v1678 = vadd.f32 %v1355, 1.0
      %v1679 = vadd.f32 %v1395, 1.0
      %v1680 = vadd.f32 %v1435, 1.0
      %v1681 = vadd.f32 %v1475, 1.0
      %v1682 = vadd.f32 %v1515, 1.0
      %v1683 = vadd.f32 %v1555, 1.0
      %v1684 = vadd.f32 %v1595, 1.0
      %v1685 = vadd.f32 %v1635, 1.0
      %v1686 = vadd.f32 %v1675, 1.0
      %v1687 = vmul.f32 %v1214, %v1676
      %v1688 = vmul.f32 %v1215, %v1677
      %v1689 = vmul.f32 %v1216, %v1678
      %v1690 = vmul.f32 %v1217, %v1679
      %v1691 = vmul.f32 %v1218, %v1680
      %v1692 = vmul.f32 %v1219, %v1681
      %v1693 = vmul.f32 %v1220, %v1682
      %v1694 = vmul.f32 %v1221, %v1683
      %v1695 = vmul.f32 %v1222, %v1684
      %v1696 = vmul.f32 %v1223, %v1685
      %v1697 = vmul.f32 %v1224, %v1686
      %v1698 = vld [vmem:[%s3] sm:$0xf]
      %v1699 = vld [vmem:[%s3 + $0x4] sm:$0xf]
      %v1700 = vld [vmem:[%s3 + $0x8] sm:$0xf]
      %v1701 = vld [vmem:[%s3 + $0xc] sm:$0xf]
      %v1702 = vld [vmem:[%s3 + $0x10] sm:$0xf]
      %v1703 = vld [vmem:[%s3 + $0x14] sm:$0xf]
      %v1704 = vld [vmem:[%s3 + $0x18] sm:$0xf]
      %v1705 = vld [vmem:[%s3 + $0x1c] sm:$0xf]
      %v1706 = vld [vmem:[%s4] sm:$0x7]
      %v1707 = vlaneseq
      %v1708 = vshrl.u32 %v1707, 7
      %v1709 = vadd.s32 %v1708, 8
      %v1710 = vadd.s32 %v1708, 16
      %v1711 = vadd.s32 %v1708, 24
      %v1712 = vadd.s32 %v1708, 32
      %v1713 = vadd.s32 %v1708, 40
      %v1714 = vlaneseq
      %v1715 = vand.u32 %v1714, 127
      %v1716 = vpack.c.bf16 %v1204, %v1203
      %v1717 = vpack.c.bf16 %v1206, %v1205
      %v1718 = vpack.c.bf16 %v1208, %v1207
      %v1719 = vpack.c.bf16 %v1210, %v1209
      %v1720 = vpack.c.bf16 %v1212, %v1211
      %v1721 = vpack.c.bf16 %v1213, %v1213
      %v1722 = vpack.c.bf16 %v1688, %v1687
      %v1723 = vpack.c.bf16 %v1690, %v1689
      %v1724 = vpack.c.bf16 %v1692, %v1691
      %v1725 = vpack.c.bf16 %v1694, %v1693
      %v1726 = vpack.c.bf16 %v1696, %v1695
      %v1727 = vpack.c.bf16 %v1697, %v1697
      %v1728 = vmul.u32 %v1708, 2
      %v1729 = vmul.u32 %v1709, 2
      %v1730 = vmul.u32 %v1710, 2
      %v1731 = vmul.u32 %v1711, 2
      %v1732 = vmul.u32 %v1712, 2
      %v1733 = vmul.u32 %v1713, 2
      %v1734 = vadd.s32 %v1728, 4294967295
      %v1735 = vadd.s32 %v1729, 4294967295
      %v1736 = vadd.s32 %v1730, 4294967295
      %v1737 = vadd.s32 %v1731, 4294967295
      %v1738 = vadd.s32 %v1732, 4294967295
      %v1739 = vadd.s32 %v1733, 4294967295
      %vm1740 = vcmp.eq.s32.totalorder %v1715, %v1734
      %vm1741 = vcmp.eq.s32.totalorder %v1715, %v1735
      %vm1742 = vcmp.eq.s32.totalorder %v1715, %v1736
      %vm1743 = vcmp.eq.s32.totalorder %v1715, %v1737
      %vm1744 = vcmp.eq.s32.totalorder %v1715, %v1738
      %vm1745 = vcmp.eq.s32.totalorder %v1715, %v1739
      %v1746 = vsel %vm1740, 1, 0
      %v1747 = vsel %vm1741, 1, 0
      %v1748 = vsel %vm1742, 1, 0
      %v1749 = vsel %vm1743, 1, 0
      %v1750 = vsel %vm1744, 1, 0
      %v1751 = vsel %vm1745, 1, 0
      %v1752 = vcvt.s32.f32 %v1746
      %v1753 = vcvt.s32.f32 %v1747
      %v1754 = vcvt.s32.f32 %v1748
      %v1755 = vcvt.s32.f32 %v1749
      %v1756 = vcvt.s32.f32 %v1750
      %v1757 = vcvt.s32.f32 %v1751
      %v1758 = vpack.c.bf16 %v1753, %v1752
      %v1759 = vpack.c.bf16 %v1755, %v1754
      %v1760 = vpack.c.bf16 %v1757, %v1756
      %vm1761 = vcmask 703488
      %v1763 = vsel %vm1761, %v1758, 0
      %v1766 = vsel %vm1761, %v1759, 0
      %v1769 = vsel %vm1761, %v1760, 0
      %vm1771 = vcmask 1042432
      %v1773 = vsel %vm1771, %v1721, 0
      %1775 = vmatpush.bf16.msra.mxu0 0
      %1776 = vmatpush.bf16.msra.mxu0 0
      %1777 = vmatpush.bf16.msra.mxu0 %v1773
      %1778 = vmatpush.bf16.msra.mxu0 %v1720
      %1779 = vmatpush.bf16.msra.mxu0 %v1719
      %1780 = vmatpush.bf16.msra.mxu0 %v1718
      %1781 = vmatpush.bf16.msra.mxu0 %v1717
      %1782 = vmatpush.bf16.msra.mxu0 %v1716
      %1783 = vmatmul.bf16.gmra.mxu0 %v1763
      %v1784 = vpop.f32.mrf.mxu0
      %v1785 = vadd.f32 0.0, %v1784
      %v1786 = vpop.f32.mrf.mxu0
      %v1787 = vadd.f32 0.0, %v1786
      %1788 = vmatmul.bf16.gmra.mxu0 %v1766
      %v1789 = vpop.f32.mrf.mxu0
      %v1790 = vadd.f32 0.0, %v1789
      %v1791 = vpop.f32.mrf.mxu0
      %v1792 = vadd.f32 0.0, %v1791
      %1793 = vmatmul.bf16.gmra.mxu0 %v1769
      %v1794 = vpop.f32.mrf.mxu0
      %v1795 = vadd.f32 0.0, %v1794
      %v1796 = vpop.f32.mrf.mxu0
      %v1797 = vadd.f32 0.0, %v1796
      %1798 = vdwg.mxu0
      %1805 = vrot.lane.b32.xlu0 %v1722, 112
      %v1806 = vpop.permute.xlu0 %1805
      %1807 = vrot.lane.b32.xlu0 %v1723, 112
      %v1808 = vpop.permute.xlu0 %1807
      %1809 = vrot.lane.b32.xlu0 %v1724, 112
      %v1810 = vpop.permute.xlu0 %1809
      %1811 = vrot.lane.b32.xlu0 %v1725, 112
      %v1812 = vpop.permute.xlu0 %1811
      %1813 = vrot.lane.b32.xlu0 %v1726, 112
      %v1814 = vpop.permute.xlu0 %1813
      %1815 = vrot.lane.b32.xlu0 %v1727, 112
      %v1816 = vpop.permute.xlu0 %1815
      %v1823 = vsel %vm1771, %v1816, 0
      %1825 = vmatpush.bf16.msra.mxu0 0
      %1826 = vmatpush.bf16.msra.mxu0 0
      %1827 = vmatpush.bf16.msra.mxu0 %v1823
      %1828 = vmatpush.bf16.msra.mxu0 %v1814
      %1829 = vmatpush.bf16.msra.mxu0 %v1812
      %1830 = vmatpush.bf16.msra.mxu0 %v1810
      %1831 = vmatpush.bf16.msra.mxu0 %v1808
      %1832 = vmatpush.bf16.msra.mxu0 %v1806
      %1833 = vmatmul.bf16.gmra.mxu0 %v1763
      %v1834 = vpop.f32.mrf.mxu0
      %v1835 = vadd.f32 0.0, %v1834
      %v1836 = vpop.f32.mrf.mxu0
      %v1837 = vadd.f32 0.0, %v1836
      %1838 = vmatmul.bf16.gmra.mxu0 %v1766
      %v1839 = vpop.f32.mrf.mxu0
      %v1840 = vadd.f32 0.0, %v1839
      %v1841 = vpop.f32.mrf.mxu0
      %v1842 = vadd.f32 0.0, %v1841
      %1843 = vmatmul.bf16.gmra.mxu0 %v1769
      %v1844 = vpop.f32.mrf.mxu0
      %v1845 = vadd.f32 0.0, %v1844
      %v1846 = vpop.f32.mrf.mxu0
      %v1847 = vadd.f32 0.0, %v1846
      %1848 = vdwg.mxu0
      %v1849 = vpack.c.bf16 %v1787, %v1785
      %v1850 = vpack.c.bf16 %v1792, %v1790
      %v1851 = vpack.c.bf16 %v1797, %v1795
      %v1852 = vpack.c.bf16 %v1837, %v1835
      %v1853 = vpack.c.bf16 %v1842, %v1840
      %v1854 = vpack.c.bf16 %v1847, %v1845
      %v1857 = vunpack.c.l.b16 %v1700
      %v1858 = vunpack.c.l.b16 %v1701
      %v1859 = vpack.c.b16 %v1858, %v1857
      %vm1861 = vcmask 130048
      %v1863 = vsel %vm1861, %v1852, 0
      %v1866 = vsel %vm1861, %v1853, 0
      %v1869 = vsel %vm1861, %v1854, 0
      %1871 = vmatpush.bf16.msra.mxu0 0
      %1872 = vmatpush.bf16.msra.mxu0 0
      %1873 = vmatpush.bf16.msra.mxu0 0
      %1874 = vmatpush.bf16.msra.mxu0 0
      %1875 = vmatpush.bf16.msra.mxu0 0
      %1876 = vmatpush.bf16.msra.mxu0 0
      %1877 = vmatpush.bf16.msra.mxu0 0
      %1878 = vmatpush.bf16.msra.mxu0 %v1859
      %1879 = vmatmul.bf16.gmra.mxu0 %v1863
      %v1880 = vpop.f32.mrf.mxu0
      %v1881 = vadd.f32 0.0, %v1880
      %v1882 = vpop.f32.mrf.mxu0
      %v1883 = vadd.f32 0.0, %v1882
      %1884 = vmatmul.bf16.gmra.mxu0 %v1866
      %v1885 = vpop.f32.mrf.mxu0
      %v1886 = vadd.f32 0.0, %v1885
      %v1887 = vpop.f32.mrf.mxu0
      %v1888 = vadd.f32 0.0, %v1887
      %1889 = vmatmul.bf16.gmra.mxu0 %v1869
      %v1890 = vpop.f32.mrf.mxu0
      %v1891 = vadd.f32 0.0, %v1890
      %v1892 = vpop.f32.mrf.mxu0
      %v1893 = vadd.f32 0.0, %v1892
      %1894 = vdwg.mxu0
      %v1897 = vunpack.c.l.b16 %v1698
      %v1898 = vunpack.c.l.b16 %v1699
      %v1899 = vpack.c.b16 %v1898, %v1897
      %v1902 = vsel %vm1861, %v1849, 0
      %v1905 = vsel %vm1861, %v1850, 0
      %v1908 = vsel %vm1861, %v1851, 0
      %1910 = vmatpush.bf16.msra.mxu0 0
      %1911 = vmatpush.bf16.msra.mxu0 0
      %1912 = vmatpush.bf16.msra.mxu0 0
      %1913 = vmatpush.bf16.msra.mxu0 0
      %1914 = vmatpush.bf16.msra.mxu0 0
      %1915 = vmatpush.bf16.msra.mxu0 0
      %1916 = vmatpush.bf16.msra.mxu0 0
      %1917 = vmatpush.bf16.msra.mxu0 %v1899
      %1918 = vmatmul.bf16.gmra.mxu0 %v1902
      %v1919 = vpop.f32.mrf.mxu0
      %v1920 = vadd.f32 %v1881, %v1919
      %v1921 = vpop.f32.mrf.mxu0
      %v1922 = vadd.f32 %v1883, %v1921
      %1923 = vmatmul.bf16.gmra.mxu0 %v1905
      %v1924 = vpop.f32.mrf.mxu0
      %v1925 = vadd.f32 %v1886, %v1924
      %v1926 = vpop.f32.mrf.mxu0
      %v1927 = vadd.f32 %v1888, %v1926
      %1928 = vmatmul.bf16.gmra.mxu0 %v1908
      %v1929 = vpop.f32.mrf.mxu0
      %v1930 = vadd.f32 %v1891, %v1929
      %v1931 = vpop.f32.mrf.mxu0
      %v1932 = vadd.f32 %v1893, %v1931
      %1933 = vdwg.mxu0
      %vm1934 = vcmp.eq.s32.totalorder %v1715, %v1728
      %vm1935 = vcmp.eq.s32.totalorder %v1715, %v1729
      %vm1936 = vcmp.eq.s32.totalorder %v1715, %v1730
      %vm1937 = vcmp.eq.s32.totalorder %v1715, %v1731
      %vm1938 = vcmp.eq.s32.totalorder %v1715, %v1732
      %vm1939 = vcmp.eq.s32.totalorder %v1715, %v1733
      %v1940 = vsel %vm1934, 1, 0
      %v1941 = vsel %vm1935, 1, 0
      %v1942 = vsel %vm1936, 1, 0
      %v1943 = vsel %vm1937, 1, 0
      %v1944 = vsel %vm1938, 1, 0
      %v1945 = vsel %vm1939, 1, 0
      %v1946 = vcvt.s32.f32 %v1940
      %v1947 = vcvt.s32.f32 %v1941
      %v1948 = vcvt.s32.f32 %v1942
      %v1949 = vcvt.s32.f32 %v1943
      %v1950 = vcvt.s32.f32 %v1944
      %v1951 = vcvt.s32.f32 %v1945
      %v1952 = vpack.c.bf16 %v1947, %v1946
      %v1953 = vpack.c.bf16 %v1949, %v1948
      %v1954 = vpack.c.bf16 %v1951, %v1950
      %v1956 = vsel %vm1761, %v1952, 0
      %v1959 = vsel %vm1761, %v1953, 0
      %v1962 = vsel %vm1761, %v1954, 0
      %1964 = vmatpush.bf16.msra.mxu0 0
      %1965 = vmatpush.bf16.msra.mxu0 0
      %1966 = vmatpush.bf16.msra.mxu0 %v1773
      %1967 = vmatpush.bf16.msra.mxu0 %v1720
      %1968 = vmatpush.bf16.msra.mxu0 %v1719
      %1969 = vmatpush.bf16.msra.mxu0 %v1718
      %1970 = vmatpush.bf16.msra.mxu0 %v1717
      %1971 = vmatpush.bf16.msra.mxu0 %v1716
      %1972 = vmatmul.bf16.gmra.mxu0 %v1956
      %v1973 = vpop.f32.mrf.mxu0
      %v1974 = vadd.f32 0.0, %v1973
      %v1975 = vpop.f32.mrf.mxu0
      %v1976 = vadd.f32 0.0, %v1975
      %1977 = vmatmul.bf16.gmra.mxu0 %v1959
      %v1978 = vpop.f32.mrf.mxu0
      %v1979 = vadd.f32 0.0, %v1978
      %v1980 = vpop.f32.mrf.mxu0
      %v1981 = vadd.f32 0.0, %v1980
      %1982 = vmatmul.bf16.gmra.mxu0 %v1962
      %v1983 = vpop.f32.mrf.mxu0
      %v1984 = vadd.f32 0.0, %v1983
      %v1985 = vpop.f32.mrf.mxu0
      %v1986 = vadd.f32 0.0, %v1985
      %1987 = vdwg.mxu0
      %1988 = vmatpush.bf16.msra.mxu0 0
      %1989 = vmatpush.bf16.msra.mxu0 0
      %1990 = vmatpush.bf16.msra.mxu0 %v1823
      %1991 = vmatpush.bf16.msra.mxu0 %v1814
      %1992 = vmatpush.bf16.msra.mxu0 %v1812
      %1993 = vmatpush.bf16.msra.mxu0 %v1810
      %1994 = vmatpush.bf16.msra.mxu0 %v1808
      %1995 = vmatpush.bf16.msra.mxu0 %v1806
      %1996 = vmatmul.bf16.gmra.mxu0 %v1956
      %v1997 = vpop.f32.mrf.mxu0
      %v1998 = vadd.f32 0.0, %v1997
      %v1999 = vpop.f32.mrf.mxu0
      %v2000 = vadd.f32 0.0, %v1999
      %2001 = vmatmul.bf16.gmra.mxu0 %v1959
      %v2002 = vpop.f32.mrf.mxu0
      %v2003 = vadd.f32 0.0, %v2002
      %v2004 = vpop.f32.mrf.mxu0
      %v2005 = vadd.f32 0.0, %v2004
      %2006 = vmatmul.bf16.gmra.mxu0 %v1962
      %v2007 = vpop.f32.mrf.mxu0
      %v2008 = vadd.f32 0.0, %v2007
      %v2009 = vpop.f32.mrf.mxu0
      %v2010 = vadd.f32 0.0, %v2009
      %2011 = vdwg.mxu0
      %v2012 = vpack.c.bf16 %v1976, %v1974
      %v2013 = vpack.c.bf16 %v1981, %v1979
      %v2014 = vpack.c.bf16 %v1986, %v1984
      %v2017 = vunpack.c.l.b16 %v1702
      %v2018 = vunpack.c.l.b16 %v1703
      %v2019 = vpack.c.b16 %v2018, %v2017
      %v2022 = vsel %vm1861, %v2012, 0
      %v2025 = vsel %vm1861, %v2013, 0
      %v2028 = vsel %vm1861, %v2014, 0
      %2030 = vmatpush.bf16.msra.mxu0 0
      %2031 = vmatpush.bf16.msra.mxu0 0
      %2032 = vmatpush.bf16.msra.mxu0 0
      %2033 = vmatpush.bf16.msra.mxu0 0
      %2034 = vmatpush.bf16.msra.mxu0 0
      %2035 = vmatpush.bf16.msra.mxu0 0
      %2036 = vmatpush.bf16.msra.mxu0 0
      %2037 = vmatpush.bf16.msra.mxu0 %v2019
      %2038 = vmatmul.bf16.gmra.mxu0 %v2022
      %v2039 = vpop.f32.mrf.mxu0
      %v2040 = vadd.f32 0.0, %v2039
      %v2041 = vpop.f32.mrf.mxu0
      %v2042 = vadd.f32 0.0, %v2041
      %2043 = vmatmul.bf16.gmra.mxu0 %v2025
      %v2044 = vpop.f32.mrf.mxu0
      %v2045 = vadd.f32 0.0, %v2044
      %v2046 = vpop.f32.mrf.mxu0
      %v2047 = vadd.f32 0.0, %v2046
      %2048 = vmatmul.bf16.gmra.mxu0 %v2028
      %v2049 = vpop.f32.mrf.mxu0
      %v2050 = vadd.f32 0.0, %v2049
      %v2051 = vpop.f32.mrf.mxu0
      %v2052 = vadd.f32 0.0, %v2051
      %2053 = vdwg.mxu0
      %v2054 = vadd.f32 %v1920, %v2040
      %v2055 = vadd.f32 %v1922, %v2042
      %v2056 = vadd.f32 %v1925, %v2045
      %v2057 = vadd.f32 %v1927, %v2047
      %v2058 = vadd.f32 %v1930, %v2050
      %v2059 = vadd.f32 %v1932, %v2052
      %v2060 = vpack.c.bf16 %v2000, %v1998
      %v2061 = vpack.c.bf16 %v2005, %v2003
      %v2062 = vpack.c.bf16 %v2010, %v2008
      %v2065 = vunpack.c.l.b16 %v1704
      %v2066 = vunpack.c.l.b16 %v1705
      %v2067 = vpack.c.b16 %v2066, %v2065
      %v2070 = vsel %vm1861, %v2060, 0
      %v2073 = vsel %vm1861, %v2061, 0
      %v2076 = vsel %vm1861, %v2062, 0
      %2078 = vmatpush.bf16.msra.mxu0 0
      %2079 = vmatpush.bf16.msra.mxu0 0
      %2080 = vmatpush.bf16.msra.mxu0 0
      %2081 = vmatpush.bf16.msra.mxu0 0
      %2082 = vmatpush.bf16.msra.mxu0 0
      %2083 = vmatpush.bf16.msra.mxu0 0
      %2084 = vmatpush.bf16.msra.mxu0 0
      %2085 = vmatpush.bf16.msra.mxu0 %v2067
      %2086 = vmatmul.bf16.gmra.mxu0 %v2070
      %v2087 = vpop.f32.mrf.mxu0
      %v2088 = vadd.f32 0.0, %v2087
      %v2089 = vpop.f32.mrf.mxu0
      %v2090 = vadd.f32 0.0, %v2089
      %2091 = vmatmul.bf16.gmra.mxu0 %v2073
      %v2092 = vpop.f32.mrf.mxu0
      %v2093 = vadd.f32 0.0, %v2092
      %v2094 = vpop.f32.mrf.mxu0
      %v2095 = vadd.f32 0.0, %v2094
      %2096 = vmatmul.bf16.gmra.mxu0 %v2076
      %v2097 = vpop.f32.mrf.mxu0
      %v2098 = vadd.f32 0.0, %v2097
      %v2099 = vpop.f32.mrf.mxu0
      %v2100 = vadd.f32 0.0, %v2099
      %2101 = vdwg.mxu0
      %v2102 = vadd.f32 %v2054, %v2088
      %v2103 = vadd.f32 %v2055, %v2090
      %v2104 = vadd.f32 %v2056, %v2093
      %v2105 = vadd.f32 %v2057, %v2095
      %v2106 = vadd.f32 %v2058, %v2098
      %v2107 = vadd.f32 %v2059, %v2100
      %v2108 = vperm.slane %v1706, 0
      %v2109 = vadd.f32 %v2102, %v2108
      %v2110 = vadd.f32 %v2103, %v2108
      %v2111 = vadd.f32 %v2104, %v2108
      %v2112 = vadd.f32 %v2105, %v2108
      %v2113 = vadd.f32 %v2106, %v2108
      %v2114 = vadd.f32 %v2107, %v2108
      %v2115 = vsel %vm537, %v2109, 0.0
      %v2116 = vsel %vm537, %v2110, 0.0
      %v2117 = vadd.f32 %v2115, %v2116
      %v2118 = vsel %vm537, %v2111, 0.0
      %v2119 = vadd.f32 %v2117, %v2118
      %v2120 = vsel %vm537, %v2112, 0.0
      %v2121 = vadd.f32 %v2119, %v2120
      %v2122 = vsel %vm537, %v2113, 0.0
      %v2123 = vadd.f32 %v2121, %v2122
      %vm2124 = vcmask 257024
      %v2125 = vsel %vm2124, %v2114, 0.0
      %v2126 = vadd.f32 %v2123, %v2125
      %v2127 = vrot.slane %v2126, 4
      %v2128 = vadd.f32 %v2126, %v2127
      %v2129 = vrot.slane %v2128, 2
      %v2130 = vadd.f32 %v2128, %v2129
      %v2131 = vrot.slane %v2130, 1
      %v2132 = vadd.f32 %v2130, %v2131
      %v2133 = vmul.f32 %v2109, %v2109
      %v2134 = vmul.f32 %v2110, %v2110
      %v2135 = vmul.f32 %v2111, %v2111
      %v2136 = vmul.f32 %v2112, %v2112
      %v2137 = vmul.f32 %v2113, %v2113
      %v2138 = vmul.f32 %v2114, %v2114
      %v2139 = vsel %vm537, %v2133, 0.0
      %v2140 = vsel %vm537, %v2134, 0.0
      %v2141 = vadd.f32 %v2139, %v2140
      %v2142 = vsel %vm537, %v2135, 0.0
      %v2143 = vadd.f32 %v2141, %v2142
      %v2144 = vsel %vm537, %v2136, 0.0
      %v2145 = vadd.f32 %v2143, %v2144
      %v2146 = vsel %vm537, %v2137, 0.0
      %v2147 = vadd.f32 %v2145, %v2146
      %v2148 = vsel %vm2124, %v2138, 0.0
      %v2149 = vadd.f32 %v2147, %v2148
      %v2150 = vrot.slane %v2149, 4
      %v2151 = vadd.f32 %v2149, %v2150
      %v2152 = vrot.slane %v2151, 2
      %v2153 = vadd.f32 %v2151, %v2152
      %v2154 = vrot.slane %v2153, 1
      %v2155 = vadd.f32 %v2153, %v2154
      %2157 = vrot.lane.b32.xlu0 %v2132, 112
      %v2158 = vpop.permute.xlu0 %2157
      %v2160 = vadd.f32 %v2132, %v2158
      %v2161 = vmul.f32 %v2160, 0.011363637
      %2163 = vrot.lane.b32.xlu0 %v2155, 112
      %v2164 = vpop.permute.xlu0 %2163
      %v2166 = vadd.f32 %v2155, %v2164
      %v2167 = vmul.f32 %v2166, 0.011363637
      %v2168 = vmul.f32 %v2161, %v2161
      %v2169 = vsub.f32 %v2167, %v2168
      %v2170 = vmax.f32 %v2169, 0.0
      %v2171 = vadd.f32 %v2170, 1e-05
      %v2172 = vrsqrt.pop %v2171
      %v2173 = vmul.f32 %v2172, %v2171
      %v2174 = vmul.f32 %v2173, %v2172
      %v2175 = vmul.f32 0.5, %v2174
      %v2176 = vsub.f32 1.5, %v2175
      %v2177 = vmul.f32 %v2172, %v2176
      %vm2178 = vweird.f32 %v2171
      %vm2179 = vweird.f32 %v2172
      %vm2180 = vmor %vm2178, %vm2179
      %v2181 = vsel %vm2180, %v2172, %v2177
      %v2182 = vperm.slane %v2161, 0
      %v2183 = vsub.f32 %v2109, %v2182
      %v2184 = vsub.f32 %v2110, %v2182
      %v2185 = vsub.f32 %v2111, %v2182
      %v2186 = vsub.f32 %v2112, %v2182
      %v2187 = vsub.f32 %v2113, %v2182
      %v2188 = vsub.f32 %v2114, %v2182
      %v2189 = vperm.slane %v2181, 0
      %v2190 = vmul.f32 %v2183, %v2189
      %v2191 = vmul.f32 %v2184, %v2189
      %v2192 = vmul.f32 %v2185, %v2189
      %v2193 = vmul.f32 %v2186, %v2189
      %v2194 = vmul.f32 %v2187, %v2189
      %v2195 = vmul.f32 %v2188, %v2189
      %v2196 = vperm.slane %v1706, 1
      %v2197 = vmul.f32 %v2190, %v2196
      %v2198 = vmul.f32 %v2191, %v2196
      %v2199 = vmul.f32 %v2192, %v2196
      %v2200 = vmul.f32 %v2193, %v2196
      %v2201 = vmul.f32 %v2194, %v2196
      %v2202 = vmul.f32 %v2195, %v2196
      %v2203 = vperm.slane %v1706, 2
      %v2204 = vadd.f32 %v2197, %v2203
      %v2205 = vadd.f32 %v2198, %v2203
      %v2206 = vadd.f32 %v2199, %v2203
      %v2207 = vadd.f32 %v2200, %v2203
      %v2208 = vadd.f32 %v2201, %v2203
      %v2209 = vadd.f32 %v2202, %v2203
      %2211 = vrot.lane.b32.xlu0 %v2182, 16
      %v2212 = vpop.permute.xlu0 %2211
      %v2214 = vsub.f32 %v2109, %v2212
      %v2215 = vsub.f32 %v2110, %v2212
      %v2216 = vsub.f32 %v2111, %v2212
      %v2217 = vsub.f32 %v2112, %v2212
      %v2218 = vsub.f32 %v2113, %v2212
      %v2219 = vsub.f32 %v2114, %v2212
      %2221 = vrot.lane.b32.xlu0 %v2189, 16
      %v2222 = vpop.permute.xlu0 %2221
      %v2224 = vmul.f32 %v2214, %v2222
      %v2225 = vmul.f32 %v2215, %v2222
      %v2226 = vmul.f32 %v2216, %v2222
      %v2227 = vmul.f32 %v2217, %v2222
      %v2228 = vmul.f32 %v2218, %v2222
      %v2229 = vmul.f32 %v2219, %v2222
      %v2230 = vmul.f32 %v2224, %v2196
      %v2231 = vmul.f32 %v2225, %v2196
      %v2232 = vmul.f32 %v2226, %v2196
      %v2233 = vmul.f32 %v2227, %v2196
      %v2234 = vmul.f32 %v2228, %v2196
      %v2235 = vmul.f32 %v2229, %v2196
      %v2236 = vadd.f32 %v2230, %v2203
      %v2237 = vadd.f32 %v2231, %v2203
      %v2238 = vadd.f32 %v2232, %v2203
      %v2239 = vadd.f32 %v2233, %v2203
      %v2240 = vadd.f32 %v2234, %v2203
      %v2241 = vadd.f32 %v2235, %v2203
      %v2242 = vmul.f32 %v2204, 0.5
      %v2243 = vmul.f32 %v2205, 0.5
      %v2244 = vmul.f32 %v2206, 0.5
      %v2245 = vmul.f32 %v2207, 0.5
      %v2246 = vmul.f32 %v2208, 0.5
      %v2247 = vmul.f32 %v2209, 0.5
      %v2248 = vmul.f32 %v2204, 0.70710677
      %v2249 = vmul.f32 %v2205, 0.70710677
      %v2250 = vmul.f32 %v2206, 0.70710677
      %v2251 = vmul.f32 %v2207, 0.70710677
      %v2252 = vmul.f32 %v2208, 0.70710677
      %v2253 = vmul.f32 %v2209, 0.70710677
      %v2254 = vmul.f32 %v2248, %v2248
      %v2255 = vmin.f32 16.0, %v2254
      %v2256 = vmul.f32 %v2255, 2.1237322e-06
      %v2257 = vadd.f32 %v2256, 0.00028619796
      %v2258 = vmul.f32 %v2255, %v2257
      %v2259 = vadd.f32 %v2258, 0.0036580483
      %v2260 = vmul.f32 %v2255, %v2259
      %v2261 = vadd.f32 %v2260, 0.05243302
      %v2262 = vmul.f32 %v2255, %v2261
      %v2263 = vadd.f32 %v2262, 0.18741608
      %v2264 = vmul.f32 %v2255, %v2263
      %v2265 = vadd.f32 %v2264, 1.1283791
      %v2266 = vmul.f32 %v2248, %v2265
      %v2267 = vmul.f32 %v2255, 3.8918573e-05
      %v2268 = vadd.f32 %v2267, 0.001143296
      %v2269 = vmul.f32 %v2255, %v2268
      %v2270 = vadd.f32 %v2269, 0.014752088
      %v2271 = vmul.f32 %v2255, %v2270
      %v2272 = vadd.f32 %v2271, 0.112945676
      %v2273 = vmul.f32 %v2255, %v2272
      %v2274 = vadd.f32 %v2273, 0.4994258
      %v2275 = vmul.f32 %v2255, %v2274
      %v2276 = vadd.f32 %v2275, 1.0
      %v2277 = vrcp.pop %v2276
      %v2278 = vmul.f32 %v2276, %v2277
      %v2279 = vsub.f32 1.0, %v2278
      %v2280 = vmul.f32 %v2277, %v2279
      %v2281 = vadd.f32 %v2277, %v2280
      %vm2282 = vweird.f32 %v2276
      %vm2283 = vweird.f32 %v2277
      %vm2284 = vmor %vm2282, %vm2283
      %v2285 = vsel %vm2284, %v2277, %v2281
      %v2286 = vand.u32 2147483647, %v2276
      %vm2287 = vcmp.eq.f32.partialorder %v2286, 8.507059e+37
      %v2288 = vand.u32 %v2276, 2147483648
      %v2289 = vor.u32 1.1754944e-38, %v2288
      %v2290 = vsel %vm2287, %v2289, %v2285
      %v2291 = vmul.f32 %v2266, %v2290
      %v2292 = vmin.f32 %v2291, 1.0
      %v2293 = vmax.f32 %v2292, -1.0
      %v2294 = vmul.f32 %v2249, %v2249
      %v2295 = vmin.f32 16.0, %v2294
      %v2296 = vmul.f32 %v2295, 2.1237322e-06
      %v2297 = vadd.f32 %v2296, 0.00028619796
      %v2298 = vmul.f32 %v2295, %v2297
      %v2299 = vadd.f32 %v2298, 0.0036580483
      %v2300 = vmul.f32 %v2295, %v2299
      %v2301 = vadd.f32 %v2300, 0.05243302
      %v2302 = vmul.f32 %v2295, %v2301
      %v2303 = vadd.f32 %v2302, 0.18741608
      %v2304 = vmul.f32 %v2295, %v2303
      %v2305 = vadd.f32 %v2304, 1.1283791
      %v2306 = vmul.f32 %v2249, %v2305
      %v2307 = vmul.f32 %v2295, 3.8918573e-05
      %v2308 = vadd.f32 %v2307, 0.001143296
      %v2309 = vmul.f32 %v2295, %v2308
      %v2310 = vadd.f32 %v2309, 0.014752088
      %v2311 = vmul.f32 %v2295, %v2310
      %v2312 = vadd.f32 %v2311, 0.112945676
      %v2313 = vmul.f32 %v2295, %v2312
      %v2314 = vadd.f32 %v2313, 0.4994258
      %v2315 = vmul.f32 %v2295, %v2314
      %v2316 = vadd.f32 %v2315, 1.0
      %v2317 = vrcp.pop %v2316
      %v2318 = vmul.f32 %v2316, %v2317
      %v2319 = vsub.f32 1.0, %v2318
      %v2320 = vmul.f32 %v2317, %v2319
      %v2321 = vadd.f32 %v2317, %v2320
      %vm2322 = vweird.f32 %v2316
      %vm2323 = vweird.f32 %v2317
      %vm2324 = vmor %vm2322, %vm2323
      %v2325 = vsel %vm2324, %v2317, %v2321
      %v2326 = vand.u32 2147483647, %v2316
      %vm2327 = vcmp.eq.f32.partialorder %v2326, 8.507059e+37
      %v2328 = vand.u32 %v2316, 2147483648
      %v2329 = vor.u32 1.1754944e-38, %v2328
      %v2330 = vsel %vm2327, %v2329, %v2325
      %v2331 = vmul.f32 %v2306, %v2330
      %v2332 = vmin.f32 %v2331, 1.0
      %v2333 = vmax.f32 %v2332, -1.0
      %v2334 = vmul.f32 %v2250, %v2250
      %v2335 = vmin.f32 16.0, %v2334
      %v2336 = vmul.f32 %v2335, 2.1237322e-06
      %v2337 = vadd.f32 %v2336, 0.00028619796
      %v2338 = vmul.f32 %v2335, %v2337
      %v2339 = vadd.f32 %v2338, 0.0036580483
      %v2340 = vmul.f32 %v2335, %v2339
      %v2341 = vadd.f32 %v2340, 0.05243302
      %v2342 = vmul.f32 %v2335, %v2341
      %v2343 = vadd.f32 %v2342, 0.18741608
      %v2344 = vmul.f32 %v2335, %v2343
      %v2345 = vadd.f32 %v2344, 1.1283791
      %v2346 = vmul.f32 %v2250, %v2345
      %v2347 = vmul.f32 %v2335, 3.8918573e-05
      %v2348 = vadd.f32 %v2347, 0.001143296
      %v2349 = vmul.f32 %v2335, %v2348
      %v2350 = vadd.f32 %v2349, 0.014752088
      %v2351 = vmul.f32 %v2335, %v2350
      %v2352 = vadd.f32 %v2351, 0.112945676
      %v2353 = vmul.f32 %v2335, %v2352
      %v2354 = vadd.f32 %v2353, 0.4994258
      %v2355 = vmul.f32 %v2335, %v2354
      %v2356 = vadd.f32 %v2355, 1.0
      %v2357 = vrcp.pop %v2356
      %v2358 = vmul.f32 %v2356, %v2357
      %v2359 = vsub.f32 1.0, %v2358
      %v2360 = vmul.f32 %v2357, %v2359
      %v2361 = vadd.f32 %v2357, %v2360
      %vm2362 = vweird.f32 %v2356
      %vm2363 = vweird.f32 %v2357
      %vm2364 = vmor %vm2362, %vm2363
      %v2365 = vsel %vm2364, %v2357, %v2361
      %v2366 = vand.u32 2147483647, %v2356
      %vm2367 = vcmp.eq.f32.partialorder %v2366, 8.507059e+37
      %v2368 = vand.u32 %v2356, 2147483648
      %v2369 = vor.u32 1.1754944e-38, %v2368
      %v2370 = vsel %vm2367, %v2369, %v2365
      %v2371 = vmul.f32 %v2346, %v2370
      %v2372 = vmin.f32 %v2371, 1.0
      %v2373 = vmax.f32 %v2372, -1.0
      %v2374 = vmul.f32 %v2251, %v2251
      %v2375 = vmin.f32 16.0, %v2374
      %v2376 = vmul.f32 %v2375, 2.1237322e-06
      %v2377 = vadd.f32 %v2376, 0.00028619796
      %v2378 = vmul.f32 %v2375, %v2377
      %v2379 = vadd.f32 %v2378, 0.0036580483
      %v2380 = vmul.f32 %v2375, %v2379
      %v2381 = vadd.f32 %v2380, 0.05243302
      %v2382 = vmul.f32 %v2375, %v2381
      %v2383 = vadd.f32 %v2382, 0.18741608
      %v2384 = vmul.f32 %v2375, %v2383
      %v2385 = vadd.f32 %v2384, 1.1283791
      %v2386 = vmul.f32 %v2251, %v2385
      %v2387 = vmul.f32 %v2375, 3.8918573e-05
      %v2388 = vadd.f32 %v2387, 0.001143296
      %v2389 = vmul.f32 %v2375, %v2388
      %v2390 = vadd.f32 %v2389, 0.014752088
      %v2391 = vmul.f32 %v2375, %v2390
      %v2392 = vadd.f32 %v2391, 0.112945676
      %v2393 = vmul.f32 %v2375, %v2392
      %v2394 = vadd.f32 %v2393, 0.4994258
      %v2395 = vmul.f32 %v2375, %v2394
      %v2396 = vadd.f32 %v2395, 1.0
      %v2397 = vrcp.pop %v2396
      %v2398 = vmul.f32 %v2396, %v2397
      %v2399 = vsub.f32 1.0, %v2398
      %v2400 = vmul.f32 %v2397, %v2399
      %v2401 = vadd.f32 %v2397, %v2400
      %vm2402 = vweird.f32 %v2396
      %vm2403 = vweird.f32 %v2397
      %vm2404 = vmor %vm2402, %vm2403
      %v2405 = vsel %vm2404, %v2397, %v2401
      %v2406 = vand.u32 2147483647, %v2396
      %vm2407 = vcmp.eq.f32.partialorder %v2406, 8.507059e+37
      %v2408 = vand.u32 %v2396, 2147483648
      %v2409 = vor.u32 1.1754944e-38, %v2408
      %v2410 = vsel %vm2407, %v2409, %v2405
      %v2411 = vmul.f32 %v2386, %v2410
      %v2412 = vmin.f32 %v2411, 1.0
      %v2413 = vmax.f32 %v2412, -1.0
      %v2414 = vmul.f32 %v2252, %v2252
      %v2415 = vmin.f32 16.0, %v2414
      %v2416 = vmul.f32 %v2415, 2.1237322e-06
      %v2417 = vadd.f32 %v2416, 0.00028619796
      %v2418 = vmul.f32 %v2415, %v2417
      %v2419 = vadd.f32 %v2418, 0.0036580483
      %v2420 = vmul.f32 %v2415, %v2419
      %v2421 = vadd.f32 %v2420, 0.05243302
      %v2422 = vmul.f32 %v2415, %v2421
      %v2423 = vadd.f32 %v2422, 0.18741608
      %v2424 = vmul.f32 %v2415, %v2423
      %v2425 = vadd.f32 %v2424, 1.1283791
      %v2426 = vmul.f32 %v2252, %v2425
      %v2427 = vmul.f32 %v2415, 3.8918573e-05
      %v2428 = vadd.f32 %v2427, 0.001143296
      %v2429 = vmul.f32 %v2415, %v2428
      %v2430 = vadd.f32 %v2429, 0.014752088
      %v2431 = vmul.f32 %v2415, %v2430
      %v2432 = vadd.f32 %v2431, 0.112945676
      %v2433 = vmul.f32 %v2415, %v2432
      %v2434 = vadd.f32 %v2433, 0.4994258
      %v2435 = vmul.f32 %v2415, %v2434
      %v2436 = vadd.f32 %v2435, 1.0
      %v2437 = vrcp.pop %v2436
      %v2438 = vmul.f32 %v2436, %v2437
      %v2439 = vsub.f32 1.0, %v2438
      %v2440 = vmul.f32 %v2437, %v2439
      %v2441 = vadd.f32 %v2437, %v2440
      %vm2442 = vweird.f32 %v2436
      %vm2443 = vweird.f32 %v2437
      %vm2444 = vmor %vm2442, %vm2443
      %v2445 = vsel %vm2444, %v2437, %v2441
      %v2446 = vand.u32 2147483647, %v2436
      %vm2447 = vcmp.eq.f32.partialorder %v2446, 8.507059e+37
      %v2448 = vand.u32 %v2436, 2147483648
      %v2449 = vor.u32 1.1754944e-38, %v2448
      %v2450 = vsel %vm2447, %v2449, %v2445
      %v2451 = vmul.f32 %v2426, %v2450
      %v2452 = vmin.f32 %v2451, 1.0
      %v2453 = vmax.f32 %v2452, -1.0
      %v2454 = vmul.f32 %v2253, %v2253
      %v2455 = vmin.f32 16.0, %v2454
      %v2456 = vmul.f32 %v2455, 2.1237322e-06
      %v2457 = vadd.f32 %v2456, 0.00028619796
      %v2458 = vmul.f32 %v2455, %v2457
      %v2459 = vadd.f32 %v2458, 0.0036580483
      %v2460 = vmul.f32 %v2455, %v2459
      %v2461 = vadd.f32 %v2460, 0.05243302
      %v2462 = vmul.f32 %v2455, %v2461
      %v2463 = vadd.f32 %v2462, 0.18741608
      %v2464 = vmul.f32 %v2455, %v2463
      %v2465 = vadd.f32 %v2464, 1.1283791
      %v2466 = vmul.f32 %v2253, %v2465
      %v2467 = vmul.f32 %v2455, 3.8918573e-05
      %v2468 = vadd.f32 %v2467, 0.001143296
      %v2469 = vmul.f32 %v2455, %v2468
      %v2470 = vadd.f32 %v2469, 0.014752088
      %v2471 = vmul.f32 %v2455, %v2470
      %v2472 = vadd.f32 %v2471, 0.112945676
      %v2473 = vmul.f32 %v2455, %v2472
      %v2474 = vadd.f32 %v2473, 0.4994258
      %v2475 = vmul.f32 %v2455, %v2474
      %v2476 = vadd.f32 %v2475, 1.0
      %v2477 = vrcp.pop %v2476
      %v2478 = vmul.f32 %v2476, %v2477
      %v2479 = vsub.f32 1.0, %v2478
      %v2480 = vmul.f32 %v2477, %v2479
      %v2481 = vadd.f32 %v2477, %v2480
      %vm2482 = vweird.f32 %v2476
      %vm2483 = vweird.f32 %v2477
      %vm2484 = vmor %vm2482, %vm2483
      %v2485 = vsel %vm2484, %v2477, %v2481
      %v2486 = vand.u32 2147483647, %v2476
      %vm2487 = vcmp.eq.f32.partialorder %v2486, 8.507059e+37
      %v2488 = vand.u32 %v2476, 2147483648
      %v2489 = vor.u32 1.1754944e-38, %v2488
      %v2490 = vsel %vm2487, %v2489, %v2485
      %v2491 = vmul.f32 %v2466, %v2490
      %v2492 = vmin.f32 %v2491, 1.0
      %v2493 = vmax.f32 %v2492, -1.0
      %v2494 = vadd.f32 %v2293, 1.0
      %v2495 = vadd.f32 %v2333, 1.0
      %v2496 = vadd.f32 %v2373, 1.0
      %v2497 = vadd.f32 %v2413, 1.0
      %v2498 = vadd.f32 %v2453, 1.0
      %v2499 = vadd.f32 %v2493, 1.0
      %v2500 = vmul.f32 %v2242, %v2494
      %v2501 = vmul.f32 %v2243, %v2495
      %v2502 = vmul.f32 %v2244, %v2496
      %v2503 = vmul.f32 %v2245, %v2497
      %v2504 = vmul.f32 %v2246, %v2498
      %v2505 = vmul.f32 %v2247, %v2499
      %v2506 = vmul.f32 %v2236, 0.5
      %v2507 = vmul.f32 %v2237, 0.5
      %v2508 = vmul.f32 %v2238, 0.5
      %v2509 = vmul.f32 %v2239, 0.5
      %v2510 = vmul.f32 %v2240, 0.5
      %v2511 = vmul.f32 %v2241, 0.5
      %v2512 = vmul.f32 %v2236, 0.70710677
      %v2513 = vmul.f32 %v2237, 0.70710677
      %v2514 = vmul.f32 %v2238, 0.70710677
      %v2515 = vmul.f32 %v2239, 0.70710677
      %v2516 = vmul.f32 %v2240, 0.70710677
      %v2517 = vmul.f32 %v2241, 0.70710677
      %v2518 = vmul.f32 %v2512, %v2512
      %v2519 = vmin.f32 16.0, %v2518
      %v2520 = vmul.f32 %v2519, 2.1237322e-06
      %v2521 = vadd.f32 %v2520, 0.00028619796
      %v2522 = vmul.f32 %v2519, %v2521
      %v2523 = vadd.f32 %v2522, 0.0036580483
      %v2524 = vmul.f32 %v2519, %v2523
      %v2525 = vadd.f32 %v2524, 0.05243302
      %v2526 = vmul.f32 %v2519, %v2525
      %v2527 = vadd.f32 %v2526, 0.18741608
      %v2528 = vmul.f32 %v2519, %v2527
      %v2529 = vadd.f32 %v2528, 1.1283791
      %v2530 = vmul.f32 %v2512, %v2529
      %v2531 = vmul.f32 %v2519, 3.8918573e-05
      %v2532 = vadd.f32 %v2531, 0.001143296
      %v2533 = vmul.f32 %v2519, %v2532
      %v2534 = vadd.f32 %v2533, 0.014752088
      %v2535 = vmul.f32 %v2519, %v2534
      %v2536 = vadd.f32 %v2535, 0.112945676
      %v2537 = vmul.f32 %v2519, %v2536
      %v2538 = vadd.f32 %v2537, 0.4994258
      %v2539 = vmul.f32 %v2519, %v2538
      %v2540 = vadd.f32 %v2539, 1.0
      %v2541 = vrcp.pop %v2540
      %v2542 = vmul.f32 %v2540, %v2541
      %v2543 = vsub.f32 1.0, %v2542
      %v2544 = vmul.f32 %v2541, %v2543
      %v2545 = vadd.f32 %v2541, %v2544
      %vm2546 = vweird.f32 %v2540
      %vm2547 = vweird.f32 %v2541
      %vm2548 = vmor %vm2546, %vm2547
      %v2549 = vsel %vm2548, %v2541, %v2545
      %v2550 = vand.u32 2147483647, %v2540
      %vm2551 = vcmp.eq.f32.partialorder %v2550, 8.507059e+37
      %v2552 = vand.u32 %v2540, 2147483648
      %v2553 = vor.u32 1.1754944e-38, %v2552
      %v2554 = vsel %vm2551, %v2553, %v2549
      %v2555 = vmul.f32 %v2530, %v2554
      %v2556 = vmin.f32 %v2555, 1.0
      %v2557 = vmax.f32 %v2556, -1.0
      %v2558 = vmul.f32 %v2513, %v2513
      %v2559 = vmin.f32 16.0, %v2558
      %v2560 = vmul.f32 %v2559, 2.1237322e-06
      %v2561 = vadd.f32 %v2560, 0.00028619796
      %v2562 = vmul.f32 %v2559, %v2561
      %v2563 = vadd.f32 %v2562, 0.0036580483
      %v2564 = vmul.f32 %v2559, %v2563
      %v2565 = vadd.f32 %v2564, 0.05243302
      %v2566 = vmul.f32 %v2559, %v2565
      %v2567 = vadd.f32 %v2566, 0.18741608
      %v2568 = vmul.f32 %v2559, %v2567
      %v2569 = vadd.f32 %v2568, 1.1283791
      %v2570 = vmul.f32 %v2513, %v2569
      %v2571 = vmul.f32 %v2559, 3.8918573e-05
      %v2572 = vadd.f32 %v2571, 0.001143296
      %v2573 = vmul.f32 %v2559, %v2572
      %v2574 = vadd.f32 %v2573, 0.014752088
      %v2575 = vmul.f32 %v2559, %v2574
      %v2576 = vadd.f32 %v2575, 0.112945676
      %v2577 = vmul.f32 %v2559, %v2576
      %v2578 = vadd.f32 %v2577, 0.4994258
      %v2579 = vmul.f32 %v2559, %v2578
      %v2580 = vadd.f32 %v2579, 1.0
      %v2581 = vrcp.pop %v2580
      %v2582 = vmul.f32 %v2580, %v2581
      %v2583 = vsub.f32 1.0, %v2582
      %v2584 = vmul.f32 %v2581, %v2583
      %v2585 = vadd.f32 %v2581, %v2584
      %vm2586 = vweird.f32 %v2580
      %vm2587 = vweird.f32 %v2581
      %vm2588 = vmor %vm2586, %vm2587
      %v2589 = vsel %vm2588, %v2581, %v2585
      %v2590 = vand.u32 2147483647, %v2580
      %vm2591 = vcmp.eq.f32.partialorder %v2590, 8.507059e+37
      %v2592 = vand.u32 %v2580, 2147483648
      %v2593 = vor.u32 1.1754944e-38, %v2592
      %v2594 = vsel %vm2591, %v2593, %v2589
      %v2595 = vmul.f32 %v2570, %v2594
      %v2596 = vmin.f32 %v2595, 1.0
      %v2597 = vmax.f32 %v2596, -1.0
      %v2598 = vmul.f32 %v2514, %v2514
      %v2599 = vmin.f32 16.0, %v2598
      %v2600 = vmul.f32 %v2599, 2.1237322e-06
      %v2601 = vadd.f32 %v2600, 0.00028619796
      %v2602 = vmul.f32 %v2599, %v2601
      %v2603 = vadd.f32 %v2602, 0.0036580483
      %v2604 = vmul.f32 %v2599, %v2603
      %v2605 = vadd.f32 %v2604, 0.05243302
      %v2606 = vmul.f32 %v2599, %v2605
      %v2607 = vadd.f32 %v2606, 0.18741608
      %v2608 = vmul.f32 %v2599, %v2607
      %v2609 = vadd.f32 %v2608, 1.1283791
      %v2610 = vmul.f32 %v2514, %v2609
      %v2611 = vmul.f32 %v2599, 3.8918573e-05
      %v2612 = vadd.f32 %v2611, 0.001143296
      %v2613 = vmul.f32 %v2599, %v2612
      %v2614 = vadd.f32 %v2613, 0.014752088
      %v2615 = vmul.f32 %v2599, %v2614
      %v2616 = vadd.f32 %v2615, 0.112945676
      %v2617 = vmul.f32 %v2599, %v2616
      %v2618 = vadd.f32 %v2617, 0.4994258
      %v2619 = vmul.f32 %v2599, %v2618
      %v2620 = vadd.f32 %v2619, 1.0
      %v2621 = vrcp.pop %v2620
      %v2622 = vmul.f32 %v2620, %v2621
      %v2623 = vsub.f32 1.0, %v2622
      %v2624 = vmul.f32 %v2621, %v2623
      %v2625 = vadd.f32 %v2621, %v2624
      %vm2626 = vweird.f32 %v2620
      %vm2627 = vweird.f32 %v2621
      %vm2628 = vmor %vm2626, %vm2627
      %v2629 = vsel %vm2628, %v2621, %v2625
      %v2630 = vand.u32 2147483647, %v2620
      %vm2631 = vcmp.eq.f32.partialorder %v2630, 8.507059e+37
      %v2632 = vand.u32 %v2620, 2147483648
      %v2633 = vor.u32 1.1754944e-38, %v2632
      %v2634 = vsel %vm2631, %v2633, %v2629
      %v2635 = vmul.f32 %v2610, %v2634
      %v2636 = vmin.f32 %v2635, 1.0
      %v2637 = vmax.f32 %v2636, -1.0
      %v2638 = vmul.f32 %v2515, %v2515
      %v2639 = vmin.f32 16.0, %v2638
      %v2640 = vmul.f32 %v2639, 2.1237322e-06
      %v2641 = vadd.f32 %v2640, 0.00028619796
      %v2642 = vmul.f32 %v2639, %v2641
      %v2643 = vadd.f32 %v2642, 0.0036580483
      %v2644 = vmul.f32 %v2639, %v2643
      %v2645 = vadd.f32 %v2644, 0.05243302
      %v2646 = vmul.f32 %v2639, %v2645
      %v2647 = vadd.f32 %v2646, 0.18741608
      %v2648 = vmul.f32 %v2639, %v2647
      %v2649 = vadd.f32 %v2648, 1.1283791
      %v2650 = vmul.f32 %v2515, %v2649
      %v2651 = vmul.f32 %v2639, 3.8918573e-05
      %v2652 = vadd.f32 %v2651, 0.001143296
      %v2653 = vmul.f32 %v2639, %v2652
      %v2654 = vadd.f32 %v2653, 0.014752088
      %v2655 = vmul.f32 %v2639, %v2654
      %v2656 = vadd.f32 %v2655, 0.112945676
      %v2657 = vmul.f32 %v2639, %v2656
      %v2658 = vadd.f32 %v2657, 0.4994258
      %v2659 = vmul.f32 %v2639, %v2658
      %v2660 = vadd.f32 %v2659, 1.0
      %v2661 = vrcp.pop %v2660
      %v2662 = vmul.f32 %v2660, %v2661
      %v2663 = vsub.f32 1.0, %v2662
      %v2664 = vmul.f32 %v2661, %v2663
      %v2665 = vadd.f32 %v2661, %v2664
      %vm2666 = vweird.f32 %v2660
      %vm2667 = vweird.f32 %v2661
      %vm2668 = vmor %vm2666, %vm2667
      %v2669 = vsel %vm2668, %v2661, %v2665
      %v2670 = vand.u32 2147483647, %v2660
      %vm2671 = vcmp.eq.f32.partialorder %v2670, 8.507059e+37
      %v2672 = vand.u32 %v2660, 2147483648
      %v2673 = vor.u32 1.1754944e-38, %v2672
      %v2674 = vsel %vm2671, %v2673, %v2669
      %v2675 = vmul.f32 %v2650, %v2674
      %v2676 = vmin.f32 %v2675, 1.0
      %v2677 = vmax.f32 %v2676, -1.0
      %v2678 = vmul.f32 %v2516, %v2516
      %v2679 = vmin.f32 16.0, %v2678
      %v2680 = vmul.f32 %v2679, 2.1237322e-06
      %v2681 = vadd.f32 %v2680, 0.00028619796
      %v2682 = vmul.f32 %v2679, %v2681
      %v2683 = vadd.f32 %v2682, 0.0036580483
      %v2684 = vmul.f32 %v2679, %v2683
      %v2685 = vadd.f32 %v2684, 0.05243302
      %v2686 = vmul.f32 %v2679, %v2685
      %v2687 = vadd.f32 %v2686, 0.18741608
      %v2688 = vmul.f32 %v2679, %v2687
      %v2689 = vadd.f32 %v2688, 1.1283791
      %v2690 = vmul.f32 %v2516, %v2689
      %v2691 = vmul.f32 %v2679, 3.8918573e-05
      %v2692 = vadd.f32 %v2691, 0.001143296
      %v2693 = vmul.f32 %v2679, %v2692
      %v2694 = vadd.f32 %v2693, 0.014752088
      %v2695 = vmul.f32 %v2679, %v2694
      %v2696 = vadd.f32 %v2695, 0.112945676
      %v2697 = vmul.f32 %v2679, %v2696
      %v2698 = vadd.f32 %v2697, 0.4994258
      %v2699 = vmul.f32 %v2679, %v2698
      %v2700 = vadd.f32 %v2699, 1.0
      %v2701 = vrcp.pop %v2700
      %v2702 = vmul.f32 %v2700, %v2701
      %v2703 = vsub.f32 1.0, %v2702
      %v2704 = vmul.f32 %v2701, %v2703
      %v2705 = vadd.f32 %v2701, %v2704
      %vm2706 = vweird.f32 %v2700
      %vm2707 = vweird.f32 %v2701
      %vm2708 = vmor %vm2706, %vm2707
      %v2709 = vsel %vm2708, %v2701, %v2705
      %v2710 = vand.u32 2147483647, %v2700
      %vm2711 = vcmp.eq.f32.partialorder %v2710, 8.507059e+37
      %v2712 = vand.u32 %v2700, 2147483648
      %v2713 = vor.u32 1.1754944e-38, %v2712
      %v2714 = vsel %vm2711, %v2713, %v2709
      %v2715 = vmul.f32 %v2690, %v2714
      %v2716 = vmin.f32 %v2715, 1.0
      %v2717 = vmax.f32 %v2716, -1.0
      %v2718 = vmul.f32 %v2517, %v2517
      %v2719 = vmin.f32 16.0, %v2718
      %v2720 = vmul.f32 %v2719, 2.1237322e-06
      %v2721 = vadd.f32 %v2720, 0.00028619796
      %v2722 = vmul.f32 %v2719, %v2721
      %v2723 = vadd.f32 %v2722, 0.0036580483
      %v2724 = vmul.f32 %v2719, %v2723
      %v2725 = vadd.f32 %v2724, 0.05243302
      %v2726 = vmul.f32 %v2719, %v2725
      %v2727 = vadd.f32 %v2726, 0.18741608
      %v2728 = vmul.f32 %v2719, %v2727
      %v2729 = vadd.f32 %v2728, 1.1283791
      %v2730 = vmul.f32 %v2517, %v2729
      %v2731 = vmul.f32 %v2719, 3.8918573e-05
      %v2732 = vadd.f32 %v2731, 0.001143296
      %v2733 = vmul.f32 %v2719, %v2732
      %v2734 = vadd.f32 %v2733, 0.014752088
      %v2735 = vmul.f32 %v2719, %v2734
      %v2736 = vadd.f32 %v2735, 0.112945676
      %v2737 = vmul.f32 %v2719, %v2736
      %v2738 = vadd.f32 %v2737, 0.4994258
      %v2739 = vmul.f32 %v2719, %v2738
      %v2740 = vadd.f32 %v2739, 1.0
      %v2741 = vrcp.pop %v2740
      %v2742 = vmul.f32 %v2740, %v2741
      %v2743 = vsub.f32 1.0, %v2742
      %v2744 = vmul.f32 %v2741, %v2743
      %v2745 = vadd.f32 %v2741, %v2744
      %vm2746 = vweird.f32 %v2740
      %vm2747 = vweird.f32 %v2741
      %vm2748 = vmor %vm2746, %vm2747
      %v2749 = vsel %vm2748, %v2741, %v2745
      %v2750 = vand.u32 2147483647, %v2740
      %vm2751 = vcmp.eq.f32.partialorder %v2750, 8.507059e+37
      %v2752 = vand.u32 %v2740, 2147483648
      %v2753 = vor.u32 1.1754944e-38, %v2752
      %v2754 = vsel %vm2751, %v2753, %v2749
      %v2755 = vmul.f32 %v2730, %v2754
      %v2756 = vmin.f32 %v2755, 1.0
      %v2757 = vmax.f32 %v2756, -1.0
      %v2758 = vadd.f32 %v2557, 1.0
      %v2759 = vadd.f32 %v2597, 1.0
      %v2760 = vadd.f32 %v2637, 1.0
      %v2761 = vadd.f32 %v2677, 1.0
      %v2762 = vadd.f32 %v2717, 1.0
      %v2763 = vadd.f32 %v2757, 1.0
      %v2764 = vmul.f32 %v2506, %v2758
      %v2765 = vmul.f32 %v2507, %v2759
      %v2766 = vmul.f32 %v2508, %v2760
      %v2767 = vmul.f32 %v2509, %v2761
      %v2768 = vmul.f32 %v2510, %v2762
      %v2769 = vmul.f32 %v2511, %v2763
      %v2770 = vld [vmem:[%s5] sm:$0xf]
      %v2771 = vld [vmem:[%s5 + $0x4] sm:$0xf]
      %v2772 = vld [vmem:[%s5 + $0x8] sm:$0xf]
      %v2773 = vld [vmem:[%s5 + $0xc] sm:$0xf]
      %v2774 = vld [vmem:[%s5 + $0x10] sm:$0xf]
      %v2775 = vld [vmem:[%s5 + $0x14] sm:$0xf]
      %v2776 = vld [vmem:[%s5 + $0x18] sm:$0xf]
      %v2777 = vld [vmem:[%s5 + $0x1c] sm:$0xf]
      %v2778 = vld [vmem:[%s6] sm:$0x7]
      %v2779 = vpack.c.bf16 %v2501, %v2500
      %v2780 = vpack.c.bf16 %v2503, %v2502
      %v2781 = vpack.c.bf16 %v2505, %v2504
      %v2782 = vpack.c.bf16 %v2765, %v2764
      %v2783 = vpack.c.bf16 %v2767, %v2766
      %v2784 = vpack.c.bf16 %v2769, %v2768
      %v2785 = vpack.c.bf16 %v1754, %v1754
      %vm2786 = vcmask 359424
      %v2787 = vsel %vm2786, %v1758, 0
      %v2790 = vsel %vm2786, %v2785, 0
      %vm2792 = vcmask 1045504
      %v2794 = vsel %vm2792, %v2781, 0
      %2796 = vmatpush.bf16.msra.mxu0 0
      %2797 = vmatpush.bf16.msra.mxu0 0
      %2798 = vmatpush.bf16.msra.mxu0 0
      %2799 = vmatpush.bf16.msra.mxu0 0
      %2800 = vmatpush.bf16.msra.mxu0 0
      %2801 = vmatpush.bf16.msra.mxu0 %v2794
      %2802 = vmatpush.bf16.msra.mxu0 %v2780
      %2803 = vmatpush.bf16.msra.mxu0 %v2779
      %2804 = vmatmul.bf16.gmra.mxu0 %v2787
      %v2805 = vpop.f32.mrf.mxu0
      %v2806 = vadd.f32 0.0, %v2805
      %v2807 = vpop.f32.mrf.mxu0
      %v2808 = vadd.f32 0.0, %v2807
      %2809 = vmatmul.bf16.gmra.mxu0 %v2790
      %v2810 = vpop.f32.mrf.mxu0
      %v2811 = vadd.f32 0.0, %v2810
      %v2812 = vpop.f32.mrf.mxu0
      %2813 = vdwg.mxu0
      %2817 = vrot.lane.b32.xlu0 %v2782, 112
      %v2818 = vpop.permute.xlu0 %2817
      %2819 = vrot.lane.b32.xlu0 %v2783, 112
      %v2820 = vpop.permute.xlu0 %2819
      %2821 = vrot.lane.b32.xlu0 %v2784, 112
      %v2822 = vpop.permute.xlu0 %2821
      %v2826 = vsel %vm2792, %v2822, 0
      %2828 = vmatpush.bf16.msra.mxu0 0
      %2829 = vmatpush.bf16.msra.mxu0 0
      %2830 = vmatpush.bf16.msra.mxu0 0
      %2831 = vmatpush.bf16.msra.mxu0 0
      %2832 = vmatpush.bf16.msra.mxu0 0
      %2833 = vmatpush.bf16.msra.mxu0 %v2826
      %2834 = vmatpush.bf16.msra.mxu0 %v2820
      %2835 = vmatpush.bf16.msra.mxu0 %v2818
      %2836 = vmatmul.bf16.gmra.mxu0 %v2787
      %v2837 = vpop.f32.mrf.mxu0
      %v2838 = vadd.f32 0.0, %v2837
      %v2839 = vpop.f32.mrf.mxu0
      %v2840 = vadd.f32 0.0, %v2839
      %2841 = vmatmul.bf16.gmra.mxu0 %v2790
      %v2842 = vpop.f32.mrf.mxu0
      %v2843 = vadd.f32 0.0, %v2842
      %v2844 = vpop.f32.mrf.mxu0
      %2845 = vdwg.mxu0
      %v2846 = vpack.c.bf16 %v2808, %v2806
      %v2847 = vpack.c.bf16 %v2811, %v2811
      %v2848 = vpack.c.bf16 %v2840, %v2838
      %v2849 = vpack.c.bf16 %v2843, %v2843
      %v2852 = vunpack.c.l.b16 %v2772
      %v2853 = vunpack.c.l.b16 %v2773
      %v2854 = vpack.c.b16 %v2853, %v2852
      %v2857 = vsel %vm1861, %v2848, 0
      %v2860 = vsel %vm1861, %v2849, 0
      %2862 = vmatpush.bf16.msra.mxu0 0
      %2863 = vmatpush.bf16.msra.mxu0 0
      %2864 = vmatpush.bf16.msra.mxu0 0
      %2865 = vmatpush.bf16.msra.mxu0 0
      %2866 = vmatpush.bf16.msra.mxu0 0
      %2867 = vmatpush.bf16.msra.mxu0 0
      %2868 = vmatpush.bf16.msra.mxu0 0
      %2869 = vmatpush.bf16.msra.mxu0 %v2854
      %2870 = vmatmul.bf16.gmra.mxu0 %v2857
      %v2871 = vpop.f32.mrf.mxu0
      %v2872 = vadd.f32 0.0, %v2871
      %v2873 = vpop.f32.mrf.mxu0
      %v2874 = vadd.f32 0.0, %v2873
      %2875 = vmatmul.bf16.gmra.mxu0 %v2860
      %v2876 = vpop.f32.mrf.mxu0
      %v2877 = vadd.f32 0.0, %v2876
      %v2878 = vpop.f32.mrf.mxu0
      %2879 = vdwg.mxu0
      %v2882 = vunpack.c.l.b16 %v2770
      %v2883 = vunpack.c.l.b16 %v2771
      %v2884 = vpack.c.b16 %v2883, %v2882
      %v2887 = vsel %vm1861, %v2846, 0
      %v2890 = vsel %vm1861, %v2847, 0
      %2892 = vmatpush.bf16.msra.mxu0 0
      %2893 = vmatpush.bf16.msra.mxu0 0
      %2894 = vmatpush.bf16.msra.mxu0 0
      %2895 = vmatpush.bf16.msra.mxu0 0
      %2896 = vmatpush.bf16.msra.mxu0 0
      %2897 = vmatpush.bf16.msra.mxu0 0
      %2898 = vmatpush.bf16.msra.mxu0 0
      %2899 = vmatpush.bf16.msra.mxu0 %v2884
      %2900 = vmatmul.bf16.gmra.mxu0 %v2887
      %v2901 = vpop.f32.mrf.mxu0
      %v2902 = vadd.f32 %v2872, %v2901
      %v2903 = vpop.f32.mrf.mxu0
      %v2904 = vadd.f32 %v2874, %v2903
      %2905 = vmatmul.bf16.gmra.mxu0 %v2890
      %v2906 = vpop.f32.mrf.mxu0
      %v2907 = vadd.f32 %v2877, %v2906
      %v2908 = vpop.f32.mrf.mxu0
      %2909 = vdwg.mxu0
      %v2910 = vpack.c.bf16 %v1948, %v1948
      %v2911 = vsel %vm2786, %v1952, 0
      %v2914 = vsel %vm2786, %v2910, 0
      %2916 = vmatpush.bf16.msra.mxu0 0
      %2917 = vmatpush.bf16.msra.mxu0 0
      %2918 = vmatpush.bf16.msra.mxu0 0
      %2919 = vmatpush.bf16.msra.mxu0 0
      %2920 = vmatpush.bf16.msra.mxu0 0
      %2921 = vmatpush.bf16.msra.mxu0 %v2794
      %2922 = vmatpush.bf16.msra.mxu0 %v2780
      %2923 = vmatpush.bf16.msra.mxu0 %v2779
      %2924 = vmatmul.bf16.gmra.mxu0 %v2911
      %v2925 = vpop.f32.mrf.mxu0
      %v2926 = vadd.f32 0.0, %v2925
      %v2927 = vpop.f32.mrf.mxu0
      %v2928 = vadd.f32 0.0, %v2927
      %2929 = vmatmul.bf16.gmra.mxu0 %v2914
      %v2930 = vpop.f32.mrf.mxu0
      %v2931 = vadd.f32 0.0, %v2930
      %v2932 = vpop.f32.mrf.mxu0
      %2933 = vdwg.mxu0
      %2934 = vmatpush.bf16.msra.mxu0 0
      %2935 = vmatpush.bf16.msra.mxu0 0
      %2936 = vmatpush.bf16.msra.mxu0 0
      %2937 = vmatpush.bf16.msra.mxu0 0
      %2938 = vmatpush.bf16.msra.mxu0 0
      %2939 = vmatpush.bf16.msra.mxu0 %v2826
      %2940 = vmatpush.bf16.msra.mxu0 %v2820
      %2941 = vmatpush.bf16.msra.mxu0 %v2818
      %2942 = vmatmul.bf16.gmra.mxu0 %v2911
      %v2943 = vpop.f32.mrf.mxu0
      %v2944 = vadd.f32 0.0, %v2943
      %v2945 = vpop.f32.mrf.mxu0
      %v2946 = vadd.f32 0.0, %v2945
      %2947 = vmatmul.bf16.gmra.mxu0 %v2914
      %v2948 = vpop.f32.mrf.mxu0
      %v2949 = vadd.f32 0.0, %v2948
      %v2950 = vpop.f32.mrf.mxu0
      %2951 = vdwg.mxu0
      %v2952 = vpack.c.bf16 %v2928, %v2926
      %v2953 = vpack.c.bf16 %v2931, %v2931
      %v2956 = vunpack.c.l.b16 %v2774
      %v2957 = vunpack.c.l.b16 %v2775
      %v2958 = vpack.c.b16 %v2957, %v2956
      %v2961 = vsel %vm1861, %v2952, 0
      %v2964 = vsel %vm1861, %v2953, 0
      %2966 = vmatpush.bf16.msra.mxu0 0
      %2967 = vmatpush.bf16.msra.mxu0 0
      %2968 = vmatpush.bf16.msra.mxu0 0
      %2969 = vmatpush.bf16.msra.mxu0 0
      %2970 = vmatpush.bf16.msra.mxu0 0
      %2971 = vmatpush.bf16.msra.mxu0 0
      %2972 = vmatpush.bf16.msra.mxu0 0
      %2973 = vmatpush.bf16.msra.mxu0 %v2958
      %2974 = vmatmul.bf16.gmra.mxu0 %v2961
      %v2975 = vpop.f32.mrf.mxu0
      %v2976 = vadd.f32 0.0, %v2975
      %v2977 = vpop.f32.mrf.mxu0
      %v2978 = vadd.f32 0.0, %v2977
      %2979 = vmatmul.bf16.gmra.mxu0 %v2964
      %v2980 = vpop.f32.mrf.mxu0
      %v2981 = vadd.f32 0.0, %v2980
      %v2982 = vpop.f32.mrf.mxu0
      %2983 = vdwg.mxu0
      %v2984 = vadd.f32 %v2902, %v2976
      %v2985 = vadd.f32 %v2904, %v2978
      %v2986 = vadd.f32 %v2907, %v2981
      %v2987 = vpack.c.bf16 %v2946, %v2944
      %v2988 = vpack.c.bf16 %v2949, %v2949
      %v2991 = vunpack.c.l.b16 %v2776
      %v2992 = vunpack.c.l.b16 %v2777
      %v2993 = vpack.c.b16 %v2992, %v2991
      %v2996 = vsel %vm1861, %v2987, 0
      %v2999 = vsel %vm1861, %v2988, 0
      %3001 = vmatpush.bf16.msra.mxu0 0
      %3002 = vmatpush.bf16.msra.mxu0 0
      %3003 = vmatpush.bf16.msra.mxu0 0
      %3004 = vmatpush.bf16.msra.mxu0 0
      %3005 = vmatpush.bf16.msra.mxu0 0
      %3006 = vmatpush.bf16.msra.mxu0 0
      %3007 = vmatpush.bf16.msra.mxu0 0
      %3008 = vmatpush.bf16.msra.mxu0 %v2993
      %3009 = vmatmul.bf16.gmra.mxu0 %v2996
      %v3010 = vpop.f32.mrf.mxu0
      %v3011 = vadd.f32 0.0, %v3010
      %v3012 = vpop.f32.mrf.mxu0
      %v3013 = vadd.f32 0.0, %v3012
      %3014 = vmatmul.bf16.gmra.mxu0 %v2999
      %v3015 = vpop.f32.mrf.mxu0
      %v3016 = vadd.f32 0.0, %v3015
      %v3017 = vpop.f32.mrf.mxu0
      %3018 = vdwg.mxu0
      %v3019 = vadd.f32 %v2984, %v3011
      %v3020 = vadd.f32 %v2985, %v3013
      %v3021 = vadd.f32 %v2986, %v3016
      %v3022 = vperm.slane %v2778, 0
      %v3023 = vadd.f32 %v3019, %v3022
      %v3024 = vadd.f32 %v3020, %v3022
      %v3025 = vadd.f32 %v3021, %v3022
      %v3026 = vsel %vm537, %v3023, 0.0
      %v3027 = vsel %vm537, %v3024, 0.0
      %v3028 = vadd.f32 %v3026, %v3027
      %vm3029 = vcmask 260096
      %v3030 = vsel %vm3029, %v3025, 0.0
      %v3031 = vadd.f32 %v3028, %v3030
      %v3032 = vrot.slane %v3031, 4
      %v3033 = vadd.f32 %v3031, %v3032
      %v3034 = vrot.slane %v3033, 2
      %v3035 = vadd.f32 %v3033, %v3034
      %v3036 = vrot.slane %v3035, 1
      %v3037 = vadd.f32 %v3035, %v3036
      %v3038 = vmul.f32 %v3023, %v3023
      %v3039 = vmul.f32 %v3024, %v3024
      %v3040 = vmul.f32 %v3025, %v3025
      %v3041 = vsel %vm537, %v3038, 0.0
      %v3042 = vsel %vm537, %v3039, 0.0
      %v3043 = vadd.f32 %v3041, %v3042
      %v3044 = vsel %vm3029, %v3040, 0.0
      %v3045 = vadd.f32 %v3043, %v3044
      %v3046 = vrot.slane %v3045, 4
      %v3047 = vadd.f32 %v3045, %v3046
      %v3048 = vrot.slane %v3047, 2
      %v3049 = vadd.f32 %v3047, %v3048
      %v3050 = vrot.slane %v3049, 1
      %v3051 = vadd.f32 %v3049, %v3050
      %3053 = vrot.lane.b32.xlu0 %v3037, 112
      %v3054 = vpop.permute.xlu0 %3053
      %v3056 = vadd.f32 %v3037, %v3054
      %v3057 = vmul.f32 %v3056, 0.02173913
      %3059 = vrot.lane.b32.xlu0 %v3051, 112
      %v3060 = vpop.permute.xlu0 %3059
      %v3062 = vadd.f32 %v3051, %v3060
      %v3063 = vmul.f32 %v3062, 0.02173913
      %v3064 = vmul.f32 %v3057, %v3057
      %v3065 = vsub.f32 %v3063, %v3064
      %v3066 = vmax.f32 %v3065, 0.0
      %v3067 = vadd.f32 %v3066, 1e-05
      %v3068 = vrsqrt.pop %v3067
      %v3069 = vmul.f32 %v3068, %v3067
      %v3070 = vmul.f32 %v3069, %v3068
      %v3071 = vmul.f32 0.5, %v3070
      %v3072 = vsub.f32 1.5, %v3071
      %v3073 = vmul.f32 %v3068, %v3072
      %vm3074 = vweird.f32 %v3067
      %vm3075 = vweird.f32 %v3068
      %vm3076 = vmor %vm3074, %vm3075
      %v3077 = vsel %vm3076, %v3068, %v3073
      %v3078 = vperm.slane %v3057, 0
      %v3079 = vsub.f32 %v3023, %v3078
      %v3080 = vsub.f32 %v3024, %v3078
      %v3081 = vsub.f32 %v3025, %v3078
      %v3082 = vperm.slane %v3077, 0
      %v3083 = vmul.f32 %v3079, %v3082
      %v3084 = vmul.f32 %v3080, %v3082
      %v3085 = vmul.f32 %v3081, %v3082
      %v3086 = vperm.slane %v2778, 1
      %v3087 = vmul.f32 %v3083, %v3086
      %v3088 = vmul.f32 %v3084, %v3086
      %v3089 = vmul.f32 %v3085, %v3086
      %v3090 = vperm.slane %v2778, 2
      %v3091 = vadd.f32 %v3087, %v3090
      %v3092 = vadd.f32 %v3088, %v3090
      %v3093 = vadd.f32 %v3089, %v3090
      %3095 = vrot.lane.b32.xlu0 %v3078, 16
      %v3096 = vpop.permute.xlu0 %3095
      %v3098 = vsub.f32 %v3023, %v3096
      %v3099 = vsub.f32 %v3024, %v3096
      %v3100 = vsub.f32 %v3025, %v3096
      %3102 = vrot.lane.b32.xlu0 %v3082, 16
      %v3103 = vpop.permute.xlu0 %3102
      %v3105 = vmul.f32 %v3098, %v3103
      %v3106 = vmul.f32 %v3099, %v3103
      %v3107 = vmul.f32 %v3100, %v3103
      %v3108 = vmul.f32 %v3105, %v3086
      %v3109 = vmul.f32 %v3106, %v3086
      %v3110 = vmul.f32 %v3107, %v3086
      %v3111 = vadd.f32 %v3108, %v3090
      %v3112 = vadd.f32 %v3109, %v3090
      %v3113 = vadd.f32 %v3110, %v3090
      %v3114 = vmul.f32 %v3091, 0.5
      %v3115 = vmul.f32 %v3092, 0.5
      %v3116 = vmul.f32 %v3093, 0.5
      %v3117 = vmul.f32 %v3091, 0.70710677
      %v3118 = vmul.f32 %v3092, 0.70710677
      %v3119 = vmul.f32 %v3093, 0.70710677
      %v3120 = vmul.f32 %v3117, %v3117
      %v3121 = vmin.f32 16.0, %v3120
      %v3122 = vmul.f32 %v3121, 2.1237322e-06
      %v3123 = vadd.f32 %v3122, 0.00028619796
      %v3124 = vmul.f32 %v3121, %v3123
      %v3125 = vadd.f32 %v3124, 0.0036580483
      %v3126 = vmul.f32 %v3121, %v3125
      %v3127 = vadd.f32 %v3126, 0.05243302
      %v3128 = vmul.f32 %v3121, %v3127
      %v3129 = vadd.f32 %v3128, 0.18741608
      %v3130 = vmul.f32 %v3121, %v3129
      %v3131 = vadd.f32 %v3130, 1.1283791
      %v3132 = vmul.f32 %v3117, %v3131
      %v3133 = vmul.f32 %v3121, 3.8918573e-05
      %v3134 = vadd.f32 %v3133, 0.001143296
      %v3135 = vmul.f32 %v3121, %v3134
      %v3136 = vadd.f32 %v3135, 0.014752088
      %v3137 = vmul.f32 %v3121, %v3136
      %v3138 = vadd.f32 %v3137, 0.112945676
      %v3139 = vmul.f32 %v3121, %v3138
      %v3140 = vadd.f32 %v3139, 0.4994258
      %v3141 = vmul.f32 %v3121, %v3140
      %v3142 = vadd.f32 %v3141, 1.0
      %v3143 = vrcp.pop %v3142
      %v3144 = vmul.f32 %v3142, %v3143
      %v3145 = vsub.f32 1.0, %v3144
      %v3146 = vmul.f32 %v3143, %v3145
      %v3147 = vadd.f32 %v3143, %v3146
      %vm3148 = vweird.f32 %v3142
      %vm3149 = vweird.f32 %v3143
      %vm3150 = vmor %vm3148, %vm3149
      %v3151 = vsel %vm3150, %v3143, %v3147
      %v3152 = vand.u32 2147483647, %v3142
      %vm3153 = vcmp.eq.f32.partialorder %v3152, 8.507059e+37
      %v3154 = vand.u32 %v3142, 2147483648
      %v3155 = vor.u32 1.1754944e-38, %v3154
      %v3156 = vsel %vm3153, %v3155, %v3151
      %v3157 = vmul.f32 %v3132, %v3156
      %v3158 = vmin.f32 %v3157, 1.0
      %v3159 = vmax.f32 %v3158, -1.0
      %v3160 = vmul.f32 %v3118, %v3118
      %v3161 = vmin.f32 16.0, %v3160
      %v3162 = vmul.f32 %v3161, 2.1237322e-06
      %v3163 = vadd.f32 %v3162, 0.00028619796
      %v3164 = vmul.f32 %v3161, %v3163
      %v3165 = vadd.f32 %v3164, 0.0036580483
      %v3166 = vmul.f32 %v3161, %v3165
      %v3167 = vadd.f32 %v3166, 0.05243302
      %v3168 = vmul.f32 %v3161, %v3167
      %v3169 = vadd.f32 %v3168, 0.18741608
      %v3170 = vmul.f32 %v3161, %v3169
      %v3171 = vadd.f32 %v3170, 1.1283791
      %v3172 = vmul.f32 %v3118, %v3171
      %v3173 = vmul.f32 %v3161, 3.8918573e-05
      %v3174 = vadd.f32 %v3173, 0.001143296
      %v3175 = vmul.f32 %v3161, %v3174
      %v3176 = vadd.f32 %v3175, 0.014752088
      %v3177 = vmul.f32 %v3161, %v3176
      %v3178 = vadd.f32 %v3177, 0.112945676
      %v3179 = vmul.f32 %v3161, %v3178
      %v3180 = vadd.f32 %v3179, 0.4994258
      %v3181 = vmul.f32 %v3161, %v3180
      %v3182 = vadd.f32 %v3181, 1.0
      %v3183 = vrcp.pop %v3182
      %v3184 = vmul.f32 %v3182, %v3183
      %v3185 = vsub.f32 1.0, %v3184
      %v3186 = vmul.f32 %v3183, %v3185
      %v3187 = vadd.f32 %v3183, %v3186
      %vm3188 = vweird.f32 %v3182
      %vm3189 = vweird.f32 %v3183
      %vm3190 = vmor %vm3188, %vm3189
      %v3191 = vsel %vm3190, %v3183, %v3187
      %v3192 = vand.u32 2147483647, %v3182
      %vm3193 = vcmp.eq.f32.partialorder %v3192, 8.507059e+37
      %v3194 = vand.u32 %v3182, 2147483648
      %v3195 = vor.u32 1.1754944e-38, %v3194
      %v3196 = vsel %vm3193, %v3195, %v3191
      %v3197 = vmul.f32 %v3172, %v3196
      %v3198 = vmin.f32 %v3197, 1.0
      %v3199 = vmax.f32 %v3198, -1.0
      %v3200 = vmul.f32 %v3119, %v3119
      %v3201 = vmin.f32 16.0, %v3200
      %v3202 = vmul.f32 %v3201, 2.1237322e-06
      %v3203 = vadd.f32 %v3202, 0.00028619796
      %v3204 = vmul.f32 %v3201, %v3203
      %v3205 = vadd.f32 %v3204, 0.0036580483
      %v3206 = vmul.f32 %v3201, %v3205
      %v3207 = vadd.f32 %v3206, 0.05243302
      %v3208 = vmul.f32 %v3201, %v3207
      %v3209 = vadd.f32 %v3208, 0.18741608
      %v3210 = vmul.f32 %v3201, %v3209
      %v3211 = vadd.f32 %v3210, 1.1283791
      %v3212 = vmul.f32 %v3119, %v3211
      %v3213 = vmul.f32 %v3201, 3.8918573e-05
      %v3214 = vadd.f32 %v3213, 0.001143296
      %v3215 = vmul.f32 %v3201, %v3214
      %v3216 = vadd.f32 %v3215, 0.014752088
      %v3217 = vmul.f32 %v3201, %v3216
      %v3218 = vadd.f32 %v3217, 0.112945676
      %v3219 = vmul.f32 %v3201, %v3218
      %v3220 = vadd.f32 %v3219, 0.4994258
      %v3221 = vmul.f32 %v3201, %v3220
      %v3222 = vadd.f32 %v3221, 1.0
      %v3223 = vrcp.pop %v3222
      %v3224 = vmul.f32 %v3222, %v3223
      %v3225 = vsub.f32 1.0, %v3224
      %v3226 = vmul.f32 %v3223, %v3225
      %v3227 = vadd.f32 %v3223, %v3226
      %vm3228 = vweird.f32 %v3222
      %vm3229 = vweird.f32 %v3223
      %vm3230 = vmor %vm3228, %vm3229
      %v3231 = vsel %vm3230, %v3223, %v3227
      %v3232 = vand.u32 2147483647, %v3222
      %vm3233 = vcmp.eq.f32.partialorder %v3232, 8.507059e+37
      %v3234 = vand.u32 %v3222, 2147483648
      %v3235 = vor.u32 1.1754944e-38, %v3234
      %v3236 = vsel %vm3233, %v3235, %v3231
      %v3237 = vmul.f32 %v3212, %v3236
      %v3238 = vmin.f32 %v3237, 1.0
      %v3239 = vmax.f32 %v3238, -1.0
      %v3240 = vadd.f32 %v3159, 1.0
      %v3241 = vadd.f32 %v3199, 1.0
      %v3242 = vadd.f32 %v3239, 1.0
      %v3243 = vmul.f32 %v3114, %v3240
      %v3244 = vmul.f32 %v3115, %v3241
      %v3245 = vmul.f32 %v3116, %v3242
      %v3246 = vmul.f32 %v3111, 0.5
      %v3247 = vmul.f32 %v3112, 0.5
      %v3248 = vmul.f32 %v3113, 0.5
      %v3249 = vmul.f32 %v3111, 0.70710677
      %v3250 = vmul.f32 %v3112, 0.70710677
      %v3251 = vmul.f32 %v3113, 0.70710677
      %v3252 = vmul.f32 %v3249, %v3249
      %v3253 = vmin.f32 16.0, %v3252
      %v3254 = vmul.f32 %v3253, 2.1237322e-06
      %v3255 = vadd.f32 %v3254, 0.00028619796
      %v3256 = vmul.f32 %v3253, %v3255
      %v3257 = vadd.f32 %v3256, 0.0036580483
      %v3258 = vmul.f32 %v3253, %v3257
      %v3259 = vadd.f32 %v3258, 0.05243302
      %v3260 = vmul.f32 %v3253, %v3259
      %v3261 = vadd.f32 %v3260, 0.18741608
      %v3262 = vmul.f32 %v3253, %v3261
      %v3263 = vadd.f32 %v3262, 1.1283791
      %v3264 = vmul.f32 %v3249, %v3263
      %v3265 = vmul.f32 %v3253, 3.8918573e-05
      %v3266 = vadd.f32 %v3265, 0.001143296
      %v3267 = vmul.f32 %v3253, %v3266
      %v3268 = vadd.f32 %v3267, 0.014752088
      %v3269 = vmul.f32 %v3253, %v3268
      %v3270 = vadd.f32 %v3269, 0.112945676
      %v3271 = vmul.f32 %v3253, %v3270
      %v3272 = vadd.f32 %v3271, 0.4994258
      %v3273 = vmul.f32 %v3253, %v3272
      %v3274 = vadd.f32 %v3273, 1.0
      %v3275 = vrcp.pop %v3274
      %v3276 = vmul.f32 %v3274, %v3275
      %v3277 = vsub.f32 1.0, %v3276
      %v3278 = vmul.f32 %v3275, %v3277
      %v3279 = vadd.f32 %v3275, %v3278
      %vm3280 = vweird.f32 %v3274
      %vm3281 = vweird.f32 %v3275
      %vm3282 = vmor %vm3280, %vm3281
      %v3283 = vsel %vm3282, %v3275, %v3279
      %v3284 = vand.u32 2147483647, %v3274
      %vm3285 = vcmp.eq.f32.partialorder %v3284, 8.507059e+37
      %v3286 = vand.u32 %v3274, 2147483648
      %v3287 = vor.u32 1.1754944e-38, %v3286
      %v3288 = vsel %vm3285, %v3287, %v3283
      %v3289 = vmul.f32 %v3264, %v3288
      %v3290 = vmin.f32 %v3289, 1.0
      %v3291 = vmax.f32 %v3290, -1.0
      %v3292 = vmul.f32 %v3250, %v3250
      %v3293 = vmin.f32 16.0, %v3292
      %v3294 = vmul.f32 %v3293, 2.1237322e-06
      %v3295 = vadd.f32 %v3294, 0.00028619796
      %v3296 = vmul.f32 %v3293, %v3295
      %v3297 = vadd.f32 %v3296, 0.0036580483
      %v3298 = vmul.f32 %v3293, %v3297
      %v3299 = vadd.f32 %v3298, 0.05243302
      %v3300 = vmul.f32 %v3293, %v3299
      %v3301 = vadd.f32 %v3300, 0.18741608
      %v3302 = vmul.f32 %v3293, %v3301
      %v3303 = vadd.f32 %v3302, 1.1283791
      %v3304 = vmul.f32 %v3250, %v3303
      %v3305 = vmul.f32 %v3293, 3.8918573e-05
      %v3306 = vadd.f32 %v3305, 0.001143296
      %v3307 = vmul.f32 %v3293, %v3306
      %v3308 = vadd.f32 %v3307, 0.014752088
      %v3309 = vmul.f32 %v3293, %v3308
      %v3310 = vadd.f32 %v3309, 0.112945676
      %v3311 = vmul.f32 %v3293, %v3310
      %v3312 = vadd.f32 %v3311, 0.4994258
      %v3313 = vmul.f32 %v3293, %v3312
      %v3314 = vadd.f32 %v3313, 1.0
      %v3315 = vrcp.pop %v3314
      %v3316 = vmul.f32 %v3314, %v3315
      %v3317 = vsub.f32 1.0, %v3316
      %v3318 = vmul.f32 %v3315, %v3317
      %v3319 = vadd.f32 %v3315, %v3318
      %vm3320 = vweird.f32 %v3314
      %vm3321 = vweird.f32 %v3315
      %vm3322 = vmor %vm3320, %vm3321
      %v3323 = vsel %vm3322, %v3315, %v3319
      %v3324 = vand.u32 2147483647, %v3314
      %vm3325 = vcmp.eq.f32.partialorder %v3324, 8.507059e+37
      %v3326 = vand.u32 %v3314, 2147483648
      %v3327 = vor.u32 1.1754944e-38, %v3326
      %v3328 = vsel %vm3325, %v3327, %v3323
      %v3329 = vmul.f32 %v3304, %v3328
      %v3330 = vmin.f32 %v3329, 1.0
      %v3331 = vmax.f32 %v3330, -1.0
      %v3332 = vmul.f32 %v3251, %v3251
      %v3333 = vmin.f32 16.0, %v3332
      %v3334 = vmul.f32 %v3333, 2.1237322e-06
      %v3335 = vadd.f32 %v3334, 0.00028619796
      %v3336 = vmul.f32 %v3333, %v3335
      %v3337 = vadd.f32 %v3336, 0.0036580483
      %v3338 = vmul.f32 %v3333, %v3337
      %v3339 = vadd.f32 %v3338, 0.05243302
      %v3340 = vmul.f32 %v3333, %v3339
      %v3341 = vadd.f32 %v3340, 0.18741608
      %v3342 = vmul.f32 %v3333, %v3341
      %v3343 = vadd.f32 %v3342, 1.1283791
      %v3344 = vmul.f32 %v3251, %v3343
      %v3345 = vmul.f32 %v3333, 3.8918573e-05
      %v3346 = vadd.f32 %v3345, 0.001143296
      %v3347 = vmul.f32 %v3333, %v3346
      %v3348 = vadd.f32 %v3347, 0.014752088
      %v3349 = vmul.f32 %v3333, %v3348
      %v3350 = vadd.f32 %v3349, 0.112945676
      %v3351 = vmul.f32 %v3333, %v3350
      %v3352 = vadd.f32 %v3351, 0.4994258
      %v3353 = vmul.f32 %v3333, %v3352
      %v3354 = vadd.f32 %v3353, 1.0
      %v3355 = vrcp.pop %v3354
      %v3356 = vmul.f32 %v3354, %v3355
      %v3357 = vsub.f32 1.0, %v3356
      %v3358 = vmul.f32 %v3355, %v3357
      %v3359 = vadd.f32 %v3355, %v3358
      %vm3360 = vweird.f32 %v3354
      %vm3361 = vweird.f32 %v3355
      %vm3362 = vmor %vm3360, %vm3361
      %v3363 = vsel %vm3362, %v3355, %v3359
      %v3364 = vand.u32 2147483647, %v3354
      %vm3365 = vcmp.eq.f32.partialorder %v3364, 8.507059e+37
      %v3366 = vand.u32 %v3354, 2147483648
      %v3367 = vor.u32 1.1754944e-38, %v3366
      %v3368 = vsel %vm3365, %v3367, %v3363
      %v3369 = vmul.f32 %v3344, %v3368
      %v3370 = vmin.f32 %v3369, 1.0
      %v3371 = vmax.f32 %v3370, -1.0
      %v3372 = vadd.f32 %v3291, 1.0
      %v3373 = vadd.f32 %v3331, 1.0
      %v3374 = vadd.f32 %v3371, 1.0
      %v3375 = vmul.f32 %v3246, %v3372
      %v3376 = vmul.f32 %v3247, %v3373
      %v3377 = vmul.f32 %v3248, %v3374
      %v3378 = vld [vmem:[%s7] sm:$0xf]
      %v3379 = vld [vmem:[%s7 + $0x4] sm:$0xf]
      %v3380 = vld [vmem:[%s7 + $0x8] sm:$0xf]
      %v3381 = vld [vmem:[%s7 + $0xc] sm:$0xf]
      %v3382 = vld [vmem:[%s7 + $0x10] sm:$0xf]
      %v3383 = vld [vmem:[%s7 + $0x14] sm:$0xf]
      %v3384 = vld [vmem:[%s7 + $0x18] sm:$0xf]
      %v3385 = vld [vmem:[%s7 + $0x1c] sm:$0xf]
      %v3386 = vld [vmem:[%s8] sm:$0x7]
      %v3387 = vpack.c.bf16 %v3244, %v3243
      %v3388 = vpack.c.bf16 %v3245, %v3245
      %v3389 = vpack.c.bf16 %v3376, %v3375
      %v3390 = vpack.c.bf16 %v3377, %v3377
      %vm3391 = vcmask 187392
      %v3392 = vsel %vm3391, %v1758, 0
      %vm3394 = vcmask 1043456
      %v3395 = vsel %vm1771, 4294967295, 65535
      %v3396 = vsel %vm3394, %v3395, 0
      %v3398 = vand.u32 %v3388, %v3396
      %3400 = vmatpush.bf16.msra.mxu0 0
      %3401 = vmatpush.bf16.msra.mxu0 0
      %3402 = vmatpush.bf16.msra.mxu0 0
      %3403 = vmatpush.bf16.msra.mxu0 0
      %3404 = vmatpush.bf16.msra.mxu0 0
      %3405 = vmatpush.bf16.msra.mxu0 0
      %3406 = vmatpush.bf16.msra.mxu0 %v3398
      %3407 = vmatpush.bf16.msra.mxu0 %v3387
      %3408 = vmatmul.bf16.gmra.mxu0 %v3392
      %v3409 = vpop.f32.mrf.mxu0
      %v3410 = vadd.f32 0.0, %v3409
      %v3411 = vpop.f32.mrf.mxu0
      %v3412 = vadd.f32 0.0, %v3411
      %3413 = vdwg.mxu0
      %3416 = vrot.lane.b32.xlu0 %v3389, 112
      %v3417 = vpop.permute.xlu0 %3416
      %3418 = vrot.lane.b32.xlu0 %v3390, 112
      %v3419 = vpop.permute.xlu0 %3418
      %v3422 = vand.u32 %v3419, %v3396
      %3424 = vmatpush.bf16.msra.mxu0 0
      %3425 = vmatpush.bf16.msra.mxu0 0
      %3426 = vmatpush.bf16.msra.mxu0 0
      %3427 = vmatpush.bf16.msra.mxu0 0
      %3428 = vmatpush.bf16.msra.mxu0 0
      %3429 = vmatpush.bf16.msra.mxu0 0
      %3430 = vmatpush.bf16.msra.mxu0 %v3422
      %3431 = vmatpush.bf16.msra.mxu0 %v3417
      %3432 = vmatmul.bf16.gmra.mxu0 %v3392
      %v3433 = vpop.f32.mrf.mxu0
      %v3434 = vadd.f32 0.0, %v3433
      %v3435 = vpop.f32.mrf.mxu0
      %v3436 = vadd.f32 0.0, %v3435
      %3437 = vdwg.mxu0
      %v3438 = vpack.c.bf16 %v3412, %v3410
      %v3439 = vpack.c.bf16 %v3436, %v3434
      %v3442 = vunpack.c.l.b16 %v3380
      %v3443 = vunpack.c.l.b16 %v3381
      %v3444 = vpack.c.b16 %v3443, %v3442
      %v3447 = vsel %vm1861, %v3439, 0
      %3449 = vmatpush.bf16.msra.mxu0 0
      %3450 = vmatpush.bf16.msra.mxu0 0
      %3451 = vmatpush.bf16.msra.mxu0 0
      %3452 = vmatpush.bf16.msra.mxu0 0
      %3453 = vmatpush.bf16.msra.mxu0 0
      %3454 = vmatpush.bf16.msra.mxu0 0
      %3455 = vmatpush.bf16.msra.mxu0 0
      %3456 = vmatpush.bf16.msra.mxu0 %v3444
      %3457 = vmatmul.bf16.gmra.mxu0 %v3447
      %v3458 = vpop.f32.mrf.mxu0
      %v3459 = vadd.f32 0.0, %v3458
      %v3460 = vpop.f32.mrf.mxu0
      %v3461 = vadd.f32 0.0, %v3460
      %3462 = vdwg.mxu0
      %v3465 = vunpack.c.l.b16 %v3378
      %v3466 = vunpack.c.l.b16 %v3379
      %v3467 = vpack.c.b16 %v3466, %v3465
      %v3470 = vsel %vm1861, %v3438, 0
      %3472 = vmatpush.bf16.msra.mxu0 0
      %3473 = vmatpush.bf16.msra.mxu0 0
      %3474 = vmatpush.bf16.msra.mxu0 0
      %3475 = vmatpush.bf16.msra.mxu0 0
      %3476 = vmatpush.bf16.msra.mxu0 0
      %3477 = vmatpush.bf16.msra.mxu0 0
      %3478 = vmatpush.bf16.msra.mxu0 0
      %3479 = vmatpush.bf16.msra.mxu0 %v3467
      %3480 = vmatmul.bf16.gmra.mxu0 %v3470
      %v3481 = vpop.f32.mrf.mxu0
      %v3482 = vadd.f32 %v3459, %v3481
      %v3483 = vpop.f32.mrf.mxu0
      %v3484 = vadd.f32 %v3461, %v3483
      %3485 = vdwg.mxu0
      %v3486 = vsel %vm3391, %v1952, 0
      %3488 = vmatpush.bf16.msra.mxu0 0
      %3489 = vmatpush.bf16.msra.mxu0 0
      %3490 = vmatpush.bf16.msra.mxu0 0
      %3491 = vmatpush.bf16.msra.mxu0 0
      %3492 = vmatpush.bf16.msra.mxu0 0
      %3493 = vmatpush.bf16.msra.mxu0 0
      %3494 = vmatpush.bf16.msra.mxu0 %v3398
      %3495 = vmatpush.bf16.msra.mxu0 %v3387
      %3496 = vmatmul.bf16.gmra.mxu0 %v3486
      %v3497 = vpop.f32.mrf.mxu0
      %v3498 = vadd.f32 0.0, %v3497
      %v3499 = vpop.f32.mrf.mxu0
      %v3500 = vadd.f32 0.0, %v3499
      %3501 = vdwg.mxu0
      %3502 = vmatpush.bf16.msra.mxu0 0
      %3503 = vmatpush.bf16.msra.mxu0 0
      %3504 = vmatpush.bf16.msra.mxu0 0
      %3505 = vmatpush.bf16.msra.mxu0 0
      %3506 = vmatpush.bf16.msra.mxu0 0
      %3507 = vmatpush.bf16.msra.mxu0 0
      %3508 = vmatpush.bf16.msra.mxu0 %v3422
      %3509 = vmatpush.bf16.msra.mxu0 %v3417
      %3510 = vmatmul.bf16.gmra.mxu0 %v3486
      %v3511 = vpop.f32.mrf.mxu0
      %v3512 = vadd.f32 0.0, %v3511
      %v3513 = vpop.f32.mrf.mxu0
      %v3514 = vadd.f32 0.0, %v3513
      %3515 = vdwg.mxu0
      %v3516 = vpack.c.bf16 %v3500, %v3498
      %v3519 = vunpack.c.l.b16 %v3382
      %v3520 = vunpack.c.l.b16 %v3383
      %v3521 = vpack.c.b16 %v3520, %v3519
      %v3524 = vsel %vm1861, %v3516, 0
      %3526 = vmatpush.bf16.msra.mxu0 0
      %3527 = vmatpush.bf16.msra.mxu0 0
      %3528 = vmatpush.bf16.msra.mxu0 0
      %3529 = vmatpush.bf16.msra.mxu0 0
      %3530 = vmatpush.bf16.msra.mxu0 0
      %3531 = vmatpush.bf16.msra.mxu0 0
      %3532 = vmatpush.bf16.msra.mxu0 0
      %3533 = vmatpush.bf16.msra.mxu0 %v3521
      %3534 = vmatmul.bf16.gmra.mxu0 %v3524
      %v3535 = vpop.f32.mrf.mxu0
      %v3536 = vadd.f32 0.0, %v3535
      %v3537 = vpop.f32.mrf.mxu0
      %v3538 = vadd.f32 0.0, %v3537
      %3539 = vdwg.mxu0
      %v3540 = vadd.f32 %v3482, %v3536
      %v3541 = vadd.f32 %v3484, %v3538
      %v3542 = vpack.c.bf16 %v3514, %v3512
      %v3545 = vunpack.c.l.b16 %v3384
      %v3546 = vunpack.c.l.b16 %v3385
      %v3547 = vpack.c.b16 %v3546, %v3545
      %v3550 = vsel %vm1861, %v3542, 0
      %3552 = vmatpush.bf16.msra.mxu0 0
      %3553 = vmatpush.bf16.msra.mxu0 0
      %3554 = vmatpush.bf16.msra.mxu0 0
      %3555 = vmatpush.bf16.msra.mxu0 0
      %3556 = vmatpush.bf16.msra.mxu0 0
      %3557 = vmatpush.bf16.msra.mxu0 0
      %3558 = vmatpush.bf16.msra.mxu0 0
      %3559 = vmatpush.bf16.msra.mxu0 %v3547
      %3560 = vmatmul.bf16.gmra.mxu0 %v3550
      %v3561 = vpop.f32.mrf.mxu0
      %v3562 = vadd.f32 0.0, %v3561
      %v3563 = vpop.f32.mrf.mxu0
      %v3564 = vadd.f32 0.0, %v3563
      %3565 = vdwg.mxu0
      %v3566 = vadd.f32 %v3540, %v3562
      %v3567 = vadd.f32 %v3541, %v3564
      %v3568 = vperm.slane %v3386, 0
      %v3569 = vadd.f32 %v3566, %v3568
      %v3570 = vadd.f32 %v3567, %v3568
      %v3571 = vsel %vm537, %v3569, 0.0
      %v3572 = vsel %vm2124, %v3570, 0.0
      %v3573 = vadd.f32 %v3571, %v3572
      %v3574 = vrot.slane %v3573, 4
      %v3575 = vadd.f32 %v3573, %v3574
      %v3576 = vrot.slane %v3575, 2
      %v3577 = vadd.f32 %v3575, %v3576
      %v3578 = vrot.slane %v3577, 1
      %v3579 = vadd.f32 %v3577, %v3578
      %v3580 = vmul.f32 %v3569, %v3569
      %v3581 = vmul.f32 %v3570, %v3570
      %v3582 = vsel %vm537, %v3580, 0.0
      %v3583 = vsel %vm2124, %v3581, 0.0
      %v3584 = vadd.f32 %v3582, %v3583
      %v3585 = vrot.slane %v3584, 4
      %v3586 = vadd.f32 %v3584, %v3585
      %v3587 = vrot.slane %v3586, 2
      %v3588 = vadd.f32 %v3586, %v3587
      %v3589 = vrot.slane %v3588, 1
      %v3590 = vadd.f32 %v3588, %v3589
      %3592 = vrot.lane.b32.xlu0 %v3579, 112
      %v3593 = vpop.permute.xlu0 %3592
      %v3595 = vadd.f32 %v3579, %v3593
      %v3596 = vmul.f32 %v3595, 0.041666668
      %3598 = vrot.lane.b32.xlu0 %v3590, 112
      %v3599 = vpop.permute.xlu0 %3598
      %v3601 = vadd.f32 %v3590, %v3599
      %v3602 = vmul.f32 %v3601, 0.041666668
      %v3603 = vmul.f32 %v3596, %v3596
      %v3604 = vsub.f32 %v3602, %v3603
      %v3605 = vmax.f32 %v3604, 0.0
      %v3606 = vadd.f32 %v3605, 1e-05
      %v3607 = vrsqrt.pop %v3606
      %v3608 = vmul.f32 %v3607, %v3606
      %v3609 = vmul.f32 %v3608, %v3607
      %v3610 = vmul.f32 0.5, %v3609
      %v3611 = vsub.f32 1.5, %v3610
      %v3612 = vmul.f32 %v3607, %v3611
      %vm3613 = vweird.f32 %v3606
      %vm3614 = vweird.f32 %v3607
      %vm3615 = vmor %vm3613, %vm3614
      %v3616 = vsel %vm3615, %v3607, %v3612
      %v3617 = vperm.slane %v3596, 0
      %v3618 = vsub.f32 %v3569, %v3617
      %v3619 = vsub.f32 %v3570, %v3617
      %v3620 = vperm.slane %v3616, 0
      %v3621 = vmul.f32 %v3618, %v3620
      %v3622 = vmul.f32 %v3619, %v3620
      %v3623 = vperm.slane %v3386, 1
      %v3624 = vmul.f32 %v3621, %v3623
      %v3625 = vmul.f32 %v3622, %v3623
      %v3626 = vperm.slane %v3386, 2
      %v3627 = vadd.f32 %v3624, %v3626
      %v3628 = vadd.f32 %v3625, %v3626
      %3630 = vrot.lane.b32.xlu0 %v3617, 16
      %v3631 = vpop.permute.xlu0 %3630
      %v3633 = vsub.f32 %v3569, %v3631
      %v3634 = vsub.f32 %v3570, %v3631
      %3636 = vrot.lane.b32.xlu0 %v3620, 16
      %v3637 = vpop.permute.xlu0 %3636
      %v3639 = vmul.f32 %v3633, %v3637
      %v3640 = vmul.f32 %v3634, %v3637
      %v3641 = vmul.f32 %v3639, %v3623
      %v3642 = vmul.f32 %v3640, %v3623
      %v3643 = vadd.f32 %v3641, %v3626
      %v3644 = vadd.f32 %v3642, %v3626
      %v3645 = vmul.f32 %v3627, 0.5
      %v3646 = vmul.f32 %v3628, 0.5
      %v3647 = vmul.f32 %v3627, 0.70710677
      %v3648 = vmul.f32 %v3628, 0.70710677
      %v3649 = vmul.f32 %v3647, %v3647
      %v3650 = vmin.f32 16.0, %v3649
      %v3651 = vmul.f32 %v3650, 2.1237322e-06
      %v3652 = vadd.f32 %v3651, 0.00028619796
      %v3653 = vmul.f32 %v3650, %v3652
      %v3654 = vadd.f32 %v3653, 0.0036580483
      %v3655 = vmul.f32 %v3650, %v3654
      %v3656 = vadd.f32 %v3655, 0.05243302
      %v3657 = vmul.f32 %v3650, %v3656
      %v3658 = vadd.f32 %v3657, 0.18741608
      %v3659 = vmul.f32 %v3650, %v3658
      %v3660 = vadd.f32 %v3659, 1.1283791
      %v3661 = vmul.f32 %v3647, %v3660
      %v3662 = vmul.f32 %v3650, 3.8918573e-05
      %v3663 = vadd.f32 %v3662, 0.001143296
      %v3664 = vmul.f32 %v3650, %v3663
      %v3665 = vadd.f32 %v3664, 0.014752088
      %v3666 = vmul.f32 %v3650, %v3665
      %v3667 = vadd.f32 %v3666, 0.112945676
      %v3668 = vmul.f32 %v3650, %v3667
      %v3669 = vadd.f32 %v3668, 0.4994258
      %v3670 = vmul.f32 %v3650, %v3669
      %v3671 = vadd.f32 %v3670, 1.0
      %v3672 = vrcp.pop %v3671
      %v3673 = vmul.f32 %v3671, %v3672
      %v3674 = vsub.f32 1.0, %v3673
      %v3675 = vmul.f32 %v3672, %v3674
      %v3676 = vadd.f32 %v3672, %v3675
      %vm3677 = vweird.f32 %v3671
      %vm3678 = vweird.f32 %v3672
      %vm3679 = vmor %vm3677, %vm3678
      %v3680 = vsel %vm3679, %v3672, %v3676
      %v3681 = vand.u32 2147483647, %v3671
      %vm3682 = vcmp.eq.f32.partialorder %v3681, 8.507059e+37
      %v3683 = vand.u32 %v3671, 2147483648
      %v3684 = vor.u32 1.1754944e-38, %v3683
      %v3685 = vsel %vm3682, %v3684, %v3680
      %v3686 = vmul.f32 %v3661, %v3685
      %v3687 = vmin.f32 %v3686, 1.0
      %v3688 = vmax.f32 %v3687, -1.0
      %v3689 = vmul.f32 %v3648, %v3648
      %v3690 = vmin.f32 16.0, %v3689
      %v3691 = vmul.f32 %v3690, 2.1237322e-06
      %v3692 = vadd.f32 %v3691, 0.00028619796
      %v3693 = vmul.f32 %v3690, %v3692
      %v3694 = vadd.f32 %v3693, 0.0036580483
      %v3695 = vmul.f32 %v3690, %v3694
      %v3696 = vadd.f32 %v3695, 0.05243302
      %v3697 = vmul.f32 %v3690, %v3696
      %v3698 = vadd.f32 %v3697, 0.18741608
      %v3699 = vmul.f32 %v3690, %v3698
      %v3700 = vadd.f32 %v3699, 1.1283791
      %v3701 = vmul.f32 %v3648, %v3700
      %v3702 = vmul.f32 %v3690, 3.8918573e-05
      %v3703 = vadd.f32 %v3702, 0.001143296
      %v3704 = vmul.f32 %v3690, %v3703
      %v3705 = vadd.f32 %v3704, 0.014752088
      %v3706 = vmul.f32 %v3690, %v3705
      %v3707 = vadd.f32 %v3706, 0.112945676
      %v3708 = vmul.f32 %v3690, %v3707
      %v3709 = vadd.f32 %v3708, 0.4994258
      %v3710 = vmul.f32 %v3690, %v3709
      %v3711 = vadd.f32 %v3710, 1.0
      %v3712 = vrcp.pop %v3711
      %v3713 = vmul.f32 %v3711, %v3712
      %v3714 = vsub.f32 1.0, %v3713
      %v3715 = vmul.f32 %v3712, %v3714
      %v3716 = vadd.f32 %v3712, %v3715
      %vm3717 = vweird.f32 %v3711
      %vm3718 = vweird.f32 %v3712
      %vm3719 = vmor %vm3717, %vm3718
      %v3720 = vsel %vm3719, %v3712, %v3716
      %v3721 = vand.u32 2147483647, %v3711
      %vm3722 = vcmp.eq.f32.partialorder %v3721, 8.507059e+37
      %v3723 = vand.u32 %v3711, 2147483648
      %v3724 = vor.u32 1.1754944e-38, %v3723
      %v3725 = vsel %vm3722, %v3724, %v3720
      %v3726 = vmul.f32 %v3701, %v3725
      %v3727 = vmin.f32 %v3726, 1.0
      %v3728 = vmax.f32 %v3727, -1.0
      %v3729 = vadd.f32 %v3688, 1.0
      %v3730 = vadd.f32 %v3728, 1.0
      %v3731 = vmul.f32 %v3645, %v3729
      %v3732 = vmul.f32 %v3646, %v3730
      %v3733 = vmul.f32 %v3643, 0.5
      %v3734 = vmul.f32 %v3644, 0.5
      %v3735 = vmul.f32 %v3643, 0.70710677
      %v3736 = vmul.f32 %v3644, 0.70710677
      %v3737 = vmul.f32 %v3735, %v3735
      %v3738 = vmin.f32 16.0, %v3737
      %v3739 = vmul.f32 %v3738, 2.1237322e-06
      %v3740 = vadd.f32 %v3739, 0.00028619796
      %v3741 = vmul.f32 %v3738, %v3740
      %v3742 = vadd.f32 %v3741, 0.0036580483
      %v3743 = vmul.f32 %v3738, %v3742
      %v3744 = vadd.f32 %v3743, 0.05243302
      %v3745 = vmul.f32 %v3738, %v3744
      %v3746 = vadd.f32 %v3745, 0.18741608
      %v3747 = vmul.f32 %v3738, %v3746
      %v3748 = vadd.f32 %v3747, 1.1283791
      %v3749 = vmul.f32 %v3735, %v3748
      %v3750 = vmul.f32 %v3738, 3.8918573e-05
      %v3751 = vadd.f32 %v3750, 0.001143296
      %v3752 = vmul.f32 %v3738, %v3751
      %v3753 = vadd.f32 %v3752, 0.014752088
      %v3754 = vmul.f32 %v3738, %v3753
      %v3755 = vadd.f32 %v3754, 0.112945676
      %v3756 = vmul.f32 %v3738, %v3755
      %v3757 = vadd.f32 %v3756, 0.4994258
      %v3758 = vmul.f32 %v3738, %v3757
      %v3759 = vadd.f32 %v3758, 1.0
      %v3760 = vrcp.pop %v3759
      %v3761 = vmul.f32 %v3759, %v3760
      %v3762 = vsub.f32 1.0, %v3761
      %v3763 = vmul.f32 %v3760, %v3762
      %v3764 = vadd.f32 %v3760, %v3763
      %vm3765 = vweird.f32 %v3759
      %vm3766 = vweird.f32 %v3760
      %vm3767 = vmor %vm3765, %vm3766
      %v3768 = vsel %vm3767, %v3760, %v3764
      %v3769 = vand.u32 2147483647, %v3759
      %vm3770 = vcmp.eq.f32.partialorder %v3769, 8.507059e+37
      %v3771 = vand.u32 %v3759, 2147483648
      %v3772 = vor.u32 1.1754944e-38, %v3771
      %v3773 = vsel %vm3770, %v3772, %v3768
      %v3774 = vmul.f32 %v3749, %v3773
      %v3775 = vmin.f32 %v3774, 1.0
      %v3776 = vmax.f32 %v3775, -1.0
      %v3777 = vmul.f32 %v3736, %v3736
      %v3778 = vmin.f32 16.0, %v3777
      %v3779 = vmul.f32 %v3778, 2.1237322e-06
      %v3780 = vadd.f32 %v3779, 0.00028619796
      %v3781 = vmul.f32 %v3778, %v3780
      %v3782 = vadd.f32 %v3781, 0.0036580483
      %v3783 = vmul.f32 %v3778, %v3782
      %v3784 = vadd.f32 %v3783, 0.05243302
      %v3785 = vmul.f32 %v3778, %v3784
      %v3786 = vadd.f32 %v3785, 0.18741608
      %v3787 = vmul.f32 %v3778, %v3786
      %v3788 = vadd.f32 %v3787, 1.1283791
      %v3789 = vmul.f32 %v3736, %v3788
      %v3790 = vmul.f32 %v3778, 3.8918573e-05
      %v3791 = vadd.f32 %v3790, 0.001143296
      %v3792 = vmul.f32 %v3778, %v3791
      %v3793 = vadd.f32 %v3792, 0.014752088
      %v3794 = vmul.f32 %v3778, %v3793
      %v3795 = vadd.f32 %v3794, 0.112945676
      %v3796 = vmul.f32 %v3778, %v3795
      %v3797 = vadd.f32 %v3796, 0.4994258
      %v3798 = vmul.f32 %v3778, %v3797
      %v3799 = vadd.f32 %v3798, 1.0
      %v3800 = vrcp.pop %v3799
      %v3801 = vmul.f32 %v3799, %v3800
      %v3802 = vsub.f32 1.0, %v3801
      %v3803 = vmul.f32 %v3800, %v3802
      %v3804 = vadd.f32 %v3800, %v3803
      %vm3805 = vweird.f32 %v3799
      %vm3806 = vweird.f32 %v3800
      %vm3807 = vmor %vm3805, %vm3806
      %v3808 = vsel %vm3807, %v3800, %v3804
      %v3809 = vand.u32 2147483647, %v3799
      %vm3810 = vcmp.eq.f32.partialorder %v3809, 8.507059e+37
      %v3811 = vand.u32 %v3799, 2147483648
      %v3812 = vor.u32 1.1754944e-38, %v3811
      %v3813 = vsel %vm3810, %v3812, %v3808
      %v3814 = vmul.f32 %v3789, %v3813
      %v3815 = vmin.f32 %v3814, 1.0
      %v3816 = vmax.f32 %v3815, -1.0
      %v3817 = vadd.f32 %v3776, 1.0
      %v3818 = vadd.f32 %v3816, 1.0
      %v3819 = vmul.f32 %v3733, %v3817
      %v3820 = vmul.f32 %v3734, %v3818
      %v3821 = vld [vmem:[%s9] sm:$0xf]
      %v3822 = vld [vmem:[%s9 + $0x4] sm:$0xf]
      %v3823 = vld [vmem:[%s9 + $0x8] sm:$0xf]
      %v3824 = vld [vmem:[%s9 + $0xc] sm:$0xf]
      %v3825 = vld [vmem:[%s9 + $0x10] sm:$0xf]
      %v3826 = vld [vmem:[%s9 + $0x14] sm:$0xf]
      %v3827 = vld [vmem:[%s9 + $0x18] sm:$0xf]
      %v3828 = vld [vmem:[%s9 + $0x1c] sm:$0xf]
      %v3829 = vld [vmem:[%s10] sm:$0x7]
      %v3830 = vpack.c.bf16 %v3732, %v3731
      %v3831 = vpack.c.bf16 %v3820, %v3819
      %v3832 = vpack.c.bf16 %v1752, %v1752
      %vm3833 = vcmask 97280
      %v3835 = vsel %vm3833, %v3832, 0
      %v3838 = vsel %vm2792, %v3830, 0
      %3840 = vmatpush.bf16.msra.mxu0 0
      %3841 = vmatpush.bf16.msra.mxu0 0
      %3842 = vmatpush.bf16.msra.mxu0 0
      %3843 = vmatpush.bf16.msra.mxu0 0
      %3844 = vmatpush.bf16.msra.mxu0 0
      %3845 = vmatpush.bf16.msra.mxu0 0
      %3846 = vmatpush.bf16.msra.mxu0 0
      %3847 = vmatpush.bf16.msra.mxu0 %v3838
      %3848 = vmatmul.bf16.gmra.mxu0 %v3835
      %v3849 = vpop.f32.mrf.mxu0
      %v3850 = vadd.f32 0.0, %v3849
      %v3851 = vpop.f32.mrf.mxu0
      %3852 = vdwg.mxu0
      %3854 = vrot.lane.b32.xlu0 %v3831, 112
      %v3855 = vpop.permute.xlu0 %3854
      %v3857 = vsel %vm2792, %v3855, 0
      %3859 = vmatpush.bf16.msra.mxu0 0
      %3860 = vmatpush.bf16.msra.mxu0 0
      %3861 = vmatpush.bf16.msra.mxu0 0
      %3862 = vmatpush.bf16.msra.mxu0 0
      %3863 = vmatpush.bf16.msra.mxu0 0
      %3864 = vmatpush.bf16.msra.mxu0 0
      %3865 = vmatpush.bf16.msra.mxu0 0
      %3866 = vmatpush.bf16.msra.mxu0 %v3857
      %3867 = vmatmul.bf16.gmra.mxu0 %v3835
      %v3868 = vpop.f32.mrf.mxu0
      %v3869 = vadd.f32 0.0, %v3868
      %v3870 = vpop.f32.mrf.mxu0
      %3871 = vdwg.mxu0
      %v3872 = vpack.c.bf16 %v3850, %v3850
      %v3873 = vpack.c.bf16 %v3869, %v3869
      %v3876 = vunpack.c.l.b16 %v3823
      %v3877 = vunpack.c.l.b16 %v3824
      %v3878 = vpack.c.b16 %v3877, %v3876
      %v3881 = vsel %vm1861, %v3873, 0
      %3883 = vmatpush.bf16.msra.mxu0 0
      %3884 = vmatpush.bf16.msra.mxu0 0
      %3885 = vmatpush.bf16.msra.mxu0 0
      %3886 = vmatpush.bf16.msra.mxu0 0
      %3887 = vmatpush.bf16.msra.mxu0 0
      %3888 = vmatpush.bf16.msra.mxu0 0
      %3889 = vmatpush.bf16.msra.mxu0 0
      %3890 = vmatpush.bf16.msra.mxu0 %v3878
      %3891 = vmatmul.bf16.gmra.mxu0 %v3881
      %v3892 = vpop.f32.mrf.mxu0
      %v3893 = vadd.f32 0.0, %v3892
      %v3894 = vpop.f32.mrf.mxu0
      %3895 = vdwg.mxu0
      %v3898 = vunpack.c.l.b16 %v3821
      %v3899 = vunpack.c.l.b16 %v3822
      %v3900 = vpack.c.b16 %v3899, %v3898
      %v3903 = vsel %vm1861, %v3872, 0
      %3905 = vmatpush.bf16.msra.mxu0 0
      %3906 = vmatpush.bf16.msra.mxu0 0
      %3907 = vmatpush.bf16.msra.mxu0 0
      %3908 = vmatpush.bf16.msra.mxu0 0
      %3909 = vmatpush.bf16.msra.mxu0 0
      %3910 = vmatpush.bf16.msra.mxu0 0
      %3911 = vmatpush.bf16.msra.mxu0 0
      %3912 = vmatpush.bf16.msra.mxu0 %v3900
      %3913 = vmatmul.bf16.gmra.mxu0 %v3903
      %v3914 = vpop.f32.mrf.mxu0
      %v3915 = vadd.f32 %v3893, %v3914
      %v3916 = vpop.f32.mrf.mxu0
      %3917 = vdwg.mxu0
      %v3918 = vpack.c.bf16 %v1946, %v1946
      %v3920 = vsel %vm3833, %v3918, 0
      %3922 = vmatpush.bf16.msra.mxu0 0
      %3923 = vmatpush.bf16.msra.mxu0 0
      %3924 = vmatpush.bf16.msra.mxu0 0
      %3925 = vmatpush.bf16.msra.mxu0 0
      %3926 = vmatpush.bf16.msra.mxu0 0
      %3927 = vmatpush.bf16.msra.mxu0 0
      %3928 = vmatpush.bf16.msra.mxu0 0
      %3929 = vmatpush.bf16.msra.mxu0 %v3838
      %3930 = vmatmul.bf16.gmra.mxu0 %v3920
      %v3931 = vpop.f32.mrf.mxu0
      %v3932 = vadd.f32 0.0, %v3931
      %v3933 = vpop.f32.mrf.mxu0
      %3934 = vdwg.mxu0
      %3935 = vmatpush.bf16.msra.mxu0 0
      %3936 = vmatpush.bf16.msra.mxu0 0
      %3937 = vmatpush.bf16.msra.mxu0 0
      %3938 = vmatpush.bf16.msra.mxu0 0
      %3939 = vmatpush.bf16.msra.mxu0 0
      %3940 = vmatpush.bf16.msra.mxu0 0
      %3941 = vmatpush.bf16.msra.mxu0 0
      %3942 = vmatpush.bf16.msra.mxu0 %v3857
      %3943 = vmatmul.bf16.gmra.mxu0 %v3920
      %v3944 = vpop.f32.mrf.mxu0
      %v3945 = vadd.f32 0.0, %v3944
      %v3946 = vpop.f32.mrf.mxu0
      %3947 = vdwg.mxu0
      %v3948 = vpack.c.bf16 %v3932, %v3932
      %v3951 = vunpack.c.l.b16 %v3825
      %v3952 = vunpack.c.l.b16 %v3826
      %v3953 = vpack.c.b16 %v3952, %v3951
      %v3956 = vsel %vm1861, %v3948, 0
      %3958 = vmatpush.bf16.msra.mxu0 0
      %3959 = vmatpush.bf16.msra.mxu0 0
      %3960 = vmatpush.bf16.msra.mxu0 0
      %3961 = vmatpush.bf16.msra.mxu0 0
      %3962 = vmatpush.bf16.msra.mxu0 0
      %3963 = vmatpush.bf16.msra.mxu0 0
      %3964 = vmatpush.bf16.msra.mxu0 0
      %3965 = vmatpush.bf16.msra.mxu0 %v3953
      %3966 = vmatmul.bf16.gmra.mxu0 %v3956
      %v3967 = vpop.f32.mrf.mxu0
      %v3968 = vadd.f32 0.0, %v3967
      %v3969 = vpop.f32.mrf.mxu0
      %3970 = vdwg.mxu0
      %v3971 = vadd.f32 %v3915, %v3968
      %v3972 = vpack.c.bf16 %v3945, %v3945
      %v3975 = vunpack.c.l.b16 %v3827
      %v3976 = vunpack.c.l.b16 %v3828
      %v3977 = vpack.c.b16 %v3976, %v3975
      %v3980 = vsel %vm1861, %v3972, 0
      %3982 = vmatpush.bf16.msra.mxu0 0
      %3983 = vmatpush.bf16.msra.mxu0 0
      %3984 = vmatpush.bf16.msra.mxu0 0
      %3985 = vmatpush.bf16.msra.mxu0 0
      %3986 = vmatpush.bf16.msra.mxu0 0
      %3987 = vmatpush.bf16.msra.mxu0 0
      %3988 = vmatpush.bf16.msra.mxu0 0
      %3989 = vmatpush.bf16.msra.mxu0 %v3977
      %3990 = vmatmul.bf16.gmra.mxu0 %v3980
      %v3991 = vpop.f32.mrf.mxu0
      %v3992 = vadd.f32 0.0, %v3991
      %v3993 = vpop.f32.mrf.mxu0
      %3994 = vdwg.mxu0
      %v3995 = vadd.f32 %v3971, %v3992
      %v3996 = vperm.slane %v3829, 0
      %v3997 = vadd.f32 %v3995, %v3996
      %v3998 = vsel %vm3029, %v3997, 0.0
      %v3999 = vrot.slane %v3998, 4
      %v4000 = vadd.f32 %v3998, %v3999
      %v4001 = vrot.slane %v4000, 2
      %v4002 = vadd.f32 %v4000, %v4001
      %v4003 = vrot.slane %v4002, 1
      %v4004 = vadd.f32 %v4002, %v4003
      %v4005 = vmul.f32 %v3997, %v3997
      %v4006 = vsel %vm3029, %v4005, 0.0
      %v4007 = vrot.slane %v4006, 4
      %v4008 = vadd.f32 %v4006, %v4007
      %v4009 = vrot.slane %v4008, 2
      %v4010 = vadd.f32 %v4008, %v4009
      %v4011 = vrot.slane %v4010, 1
      %v4012 = vadd.f32 %v4010, %v4011
      %4014 = vrot.lane.b32.xlu0 %v4004, 112
      %v4015 = vpop.permute.xlu0 %4014
      %v4017 = vadd.f32 %v4004, %v4015
      %v4018 = vmul.f32 %v4017, 0.071428575
      %4020 = vrot.lane.b32.xlu0 %v4012, 112
      %v4021 = vpop.permute.xlu0 %4020
      %v4023 = vadd.f32 %v4012, %v4021
      %v4024 = vmul.f32 %v4023, 0.071428575
      %v4025 = vmul.f32 %v4018, %v4018
      %v4026 = vsub.f32 %v4024, %v4025
      %v4027 = vmax.f32 %v4026, 0.0
      %v4028 = vadd.f32 %v4027, 1e-05
      %v4029 = vrsqrt.pop %v4028
      %v4030 = vmul.f32 %v4029, %v4028
      %v4031 = vmul.f32 %v4030, %v4029
      %v4032 = vmul.f32 0.5, %v4031
      %v4033 = vsub.f32 1.5, %v4032
      %v4034 = vmul.f32 %v4029, %v4033
      %vm4035 = vweird.f32 %v4028
      %vm4036 = vweird.f32 %v4029
      %vm4037 = vmor %vm4035, %vm4036
      %v4038 = vsel %vm4037, %v4029, %v4034
      %v4039 = vperm.slane %v4018, 0
      %v4040 = vsub.f32 %v3997, %v4039
      %v4041 = vperm.slane %v4038, 0
      %v4042 = vmul.f32 %v4040, %v4041
      %v4043 = vperm.slane %v3829, 1
      %v4044 = vmul.f32 %v4042, %v4043
      %v4045 = vperm.slane %v3829, 2
      %v4046 = vadd.f32 %v4044, %v4045
      %4048 = vrot.lane.b32.xlu0 %v4039, 16
      %v4049 = vpop.permute.xlu0 %4048
      %v4051 = vsub.f32 %v3997, %v4049
      %4053 = vrot.lane.b32.xlu0 %v4041, 16
      %v4054 = vpop.permute.xlu0 %4053
      %v4056 = vmul.f32 %v4051, %v4054
      %v4057 = vmul.f32 %v4056, %v4043
      %v4058 = vadd.f32 %v4057, %v4045
      %v4059 = vmul.f32 %v4046, 0.5
      %v4060 = vmul.f32 %v4046, 0.70710677
      %v4061 = vmul.f32 %v4060, %v4060
      %v4062 = vmin.f32 16.0, %v4061
      %v4063 = vmul.f32 %v4062, 2.1237322e-06
      %v4064 = vadd.f32 %v4063, 0.00028619796
      %v4065 = vmul.f32 %v4062, %v4064
      %v4066 = vadd.f32 %v4065, 0.0036580483
      %v4067 = vmul.f32 %v4062, %v4066
      %v4068 = vadd.f32 %v4067, 0.05243302
      %v4069 = vmul.f32 %v4062, %v4068
      %v4070 = vadd.f32 %v4069, 0.18741608
      %v4071 = vmul.f32 %v4062, %v4070
      %v4072 = vadd.f32 %v4071, 1.1283791
      %v4073 = vmul.f32 %v4060, %v4072
      %v4074 = vmul.f32 %v4062, 3.8918573e-05
      %v4075 = vadd.f32 %v4074, 0.001143296
      %v4076 = vmul.f32 %v4062, %v4075
      %v4077 = vadd.f32 %v4076, 0.014752088
      %v4078 = vmul.f32 %v4062, %v4077
      %v4079 = vadd.f32 %v4078, 0.112945676
      %v4080 = vmul.f32 %v4062, %v4079
      %v4081 = vadd.f32 %v4080, 0.4994258
      %v4082 = vmul.f32 %v4062, %v4081
      %v4083 = vadd.f32 %v4082, 1.0
      %v4084 = vrcp.pop %v4083
      %v4085 = vmul.f32 %v4083, %v4084
      %v4086 = vsub.f32 1.0, %v4085
      %v4087 = vmul.f32 %v4084, %v4086
      %v4088 = vadd.f32 %v4084, %v4087
      %vm4089 = vweird.f32 %v4083
      %vm4090 = vweird.f32 %v4084
      %vm4091 = vmor %vm4089, %vm4090
      %v4092 = vsel %vm4091, %v4084, %v4088
      %v4093 = vand.u32 2147483647, %v4083
      %vm4094 = vcmp.eq.f32.partialorder %v4093, 8.507059e+37
      %v4095 = vand.u32 %v4083, 2147483648
      %v4096 = vor.u32 1.1754944e-38, %v4095
      %v4097 = vsel %vm4094, %v4096, %v4092
      %v4098 = vmul.f32 %v4073, %v4097
      %v4099 = vmin.f32 %v4098, 1.0
      %v4100 = vmax.f32 %v4099, -1.0
      %v4101 = vadd.f32 %v4100, 1.0
      %v4102 = vmul.f32 %v4059, %v4101
      %v4103 = vmul.f32 %v4058, 0.5
      %v4104 = vmul.f32 %v4058, 0.70710677
      %v4105 = vmul.f32 %v4104, %v4104
      %v4106 = vmin.f32 16.0, %v4105
      %v4107 = vmul.f32 %v4106, 2.1237322e-06
      %v4108 = vadd.f32 %v4107, 0.00028619796
      %v4109 = vmul.f32 %v4106, %v4108
      %v4110 = vadd.f32 %v4109, 0.0036580483
      %v4111 = vmul.f32 %v4106, %v4110
      %v4112 = vadd.f32 %v4111, 0.05243302
      %v4113 = vmul.f32 %v4106, %v4112
      %v4114 = vadd.f32 %v4113, 0.18741608
      %v4115 = vmul.f32 %v4106, %v4114
      %v4116 = vadd.f32 %v4115, 1.1283791
      %v4117 = vmul.f32 %v4104, %v4116
      %v4118 = vmul.f32 %v4106, 3.8918573e-05
      %v4119 = vadd.f32 %v4118, 0.001143296
      %v4120 = vmul.f32 %v4106, %v4119
      %v4121 = vadd.f32 %v4120, 0.014752088
      %v4122 = vmul.f32 %v4106, %v4121
      %v4123 = vadd.f32 %v4122, 0.112945676
      %v4124 = vmul.f32 %v4106, %v4123
      %v4125 = vadd.f32 %v4124, 0.4994258
      %v4126 = vmul.f32 %v4106, %v4125
      %v4127 = vadd.f32 %v4126, 1.0
      %v4128 = vrcp.pop %v4127
      %v4129 = vmul.f32 %v4127, %v4128
      %v4130 = vsub.f32 1.0, %v4129
      %v4131 = vmul.f32 %v4128, %v4130
      %v4132 = vadd.f32 %v4128, %v4131
      %vm4133 = vweird.f32 %v4127
      %vm4134 = vweird.f32 %v4128
      %vm4135 = vmor %vm4133, %vm4134
      %v4136 = vsel %vm4135, %v4128, %v4132
      %v4137 = vand.u32 2147483647, %v4127
      %vm4138 = vcmp.eq.f32.partialorder %v4137, 8.507059e+37
      %v4139 = vand.u32 %v4127, 2147483648
      %v4140 = vor.u32 1.1754944e-38, %v4139
      %v4141 = vsel %vm4138, %v4140, %v4136
      %v4142 = vmul.f32 %v4117, %v4141
      %v4143 = vmin.f32 %v4142, 1.0
      %v4144 = vmax.f32 %v4143, -1.0
      %v4145 = vadd.f32 %v4144, 1.0
      %v4146 = vmul.f32 %v4103, %v4145
      %vm4147 = vcmask 129024
      %4148 = vst.msk [vmem:[%s386] sm:$0x7f] %vm4147, %v4102
      %4150 = vrot.lane.b32.xlu0 %v4146, 112
      %v4151 = vpop.permute.xlu0 %4150
      %s4153 = scalar_lea.vmem %s386, 8
      %4154 = vst.msk [vmem:[%s4153] sm:$0x7f] %vm4147, %v4151
      %p4155 = scmp.lt.s32.totalorder %s22, 1
      %s4156 = scalar_select %p4155, %s22, 1
      %s4157 = smul.addr %s4156, 2
      %s4158 = smul.addr %s4157, 8
      %s4159 = scalar_lea.vmem %s11, %s4158
      // Predicated region
      $region65: #{_lambda_.3} parent=63 // pred_check
        %p4160 = pneg %p276
      $region66: #{_lambda_.3} parent=63 // pred_check_branch
        %4162 = sbr.rel (%p4160) target = $region68
      $region67: #{_lambda_.3} parent=63 // pred_region
        _
      $region68: #{_lambda_.3} parent=63 // pred_fallthru
        _
    $region64: #{_lambda_.3} parent=5 // pred_fallthru
      _
    %p4163 = scmp.le.s32.totalorder 2, %s17
    // Predicated region
    $region69: #{_lambda_.3} parent=5 // pred_check
      %p4164 = pneg %p4163
    $region70: #{_lambda_.3} parent=5 // pred_check_branch
      %4166 = sbr.rel (%p4164) target = $region72
    $region71: #{_lambda_.3} parent=5 // pred_region
      %s4167 = ssub.s32 %s17, 2
      // Predicated region
      $region73: #{_lambda_.3} parent=71 // pred_check
        %p4168 = pneg %p282
      $region74: #{_lambda_.3} parent=71 // pred_check_branch
        %4170 = sbr.rel (%p4168) target = $region76
      $region75: #{_lambda_.3} parent=71 // pred_region
        %p4171 = scmp.lt.s32.totalorder %s23, 1
        %s4172 = scalar_select %p4171, %s23, 1
        %s4173 = smul.addr %s4172, 2
        %s4174 = smul.addr %s4173, 8
        %s4175 = scalar_lea.vmem %s11, %s4174
      $region76: #{_lambda_.3} parent=71 // pred_fallthru
        _
    $region72: #{_lambda_.3} parent=5 // pred_fallthru
      _
  $region6: #{_lambda_.3} parent=0 // loop_footer
    %s21 = sadd.s32 1, %s17
  $region7: #{_lambda_.3} parent=0 // loop_footer_branch
    %16 = sbr.rel target = $region3
  $region8: #{_lambda_.3} parent=0 // loop_exit
    _

</llo_original>
